<compile_context>
chip_gen: v6e
topology: v6e:2x2x1
jax: 0.10.0
libtpu: 0.0.40
codegen_flags: <defaults>
</compile_context>

<pallas_src>
import functools

import jax
import jax.numpy as jnp
from jax import lax
from jax.experimental import pallas as pl
from jax.experimental.pallas import tpu as pltpu


def _round_up(x, m):
    return (x + m - 1) // m * m


def _basic_block_kernel(x_ref, w1_ref, a1_ref, w2_ref, a2_ref, mask_ref,
                        o_ref, ypad_scr, *, H, W, Cp):
    """One batch element per grid step, everything in flattened padded rows.

    x_ref    : (P, Cp)     f32   zero-padded image, rows flattened; P=(H+2)*(W+2)
    w1_ref   : (9, Cp, Cp) bf16  conv1 weight, [tap, cin, cout], tap = ky*3+kx
    a1_ref   : (1, Cp)     f32   PReLU1 per-channel slope
    w2_ref   : (9, Cp, Cp) bf16  conv2 weight
    a2_ref   : (1, Cp)     f32   PReLU2 per-channel slope
    mask_ref : (M, 1)      f32   1.0 on real pixels of the band, 0.0 on the
                                 left/right zero-padding ring
    o_ref    : (M, Cp)     f32   output band in padded-row layout, M=(H-1)*Wp+W
    ypad_scr : (P, Cp)     f32   zero-padded conv1 activation (conv2 input)
    """
    Wp = W + 2
    P = (H + 2) * Wp
    M = (H - 1) * Wp + W
    p0 = Wp + 1                      # flat index of padded position (1, 1)

    # ---- conv1: 9 row-offset matmuls over the flattened padded image ----
    acc1 = jnp.zeros((M, Cp), jnp.float32)
    for ky in range(3):
        for kx in range(3):
            d = ky * Wp + kx
            acc1 = acc1 + jnp.dot(
                x_ref[pl.ds(d, M), :].astype(jnp.bfloat16),
                w1_ref[ky * 3 + kx],
                preferred_element_type=jnp.float32)

    # ---- PReLU1, then build the zero-padded conv2 input in VMEM ----
    y1 = jnp.where(acc1 > 0, acc1, acc1 * a1_ref[...])
    # top / bottom padding bands (each p0 = W+3 rows) are written with zeros;
    # the left/right padding ring inside the band is zeroed via the mask.
    ypad_scr[pl.ds(0, p0), :] = jnp.zeros((p0, Cp), jnp.float32)
    ypad_scr[pl.ds(p0, M), :] = y1 * mask_ref[...]
    ypad_scr[pl.ds(p0 + M, P - p0 - M), :] = jnp.zeros((P - p0 - M, Cp),
                                                       jnp.float32)

    # ---- conv2: same 9 row-offset matmuls on the padded activation ----
    acc2 = jnp.zeros((M, Cp), jnp.float32)
    for ky in range(3):
        for kx in range(3):
            d = ky * Wp + kx
            acc2 = acc2 + jnp.dot(
                ypad_scr[pl.ds(d, M), :].astype(jnp.bfloat16),
                w2_ref[ky * 3 + kx],
                preferred_element_type=jnp.float32)

    # ---- PReLU2 + residual (f32 input, contiguous offset slice) ----
    y2 = jnp.where(acc2 > 0, acc2, acc2 * a2_ref[...])
    o_ref[...] = y2 + x_ref[pl.ds(p0, M), :]


@jax.jit
def basic_block_pallas(x_nchw, w1_oihw, a1, w2_oihw, a2):
    """Forward pass of BasicBlock (anchor=None). x_nchw: (N, C, H, W) float32."""
    N, C, H, W = x_nchw.shape
    assert w1_oihw.shape == (C, C, 3, 3) and w2_oihw.shape == (C, C, 3, 3)

    Hp, Wp = H + 2, W + 2
    P = Hp * Wp
    M = (H - 1) * Wp + W
    p0 = Wp + 1
    Cp = _round_up(C, 128)           # lane-dense channel dimension

    # NCHW -> flattened, zero-padded (spatially + channel) NHWC rows, f32.
    x_nhwc = jnp.transpose(x_nchw, (0, 2, 3, 1)).astype(jnp.float32)
    x_flat = jnp.pad(x_nhwc, ((0, 0), (1, 1), (1, 1), (0, Cp - C))
                     ).reshape(N, P, Cp)

    # OIHW -> (tap, Cin, Cout) bf16, channel-padded.  tap = ky*3 + kx.
    def to_tap(w):
        wt = jnp.transpose(w, (2, 3, 1, 0)).reshape(9, C, C)
        wt = jnp.pad(wt, ((0, 0), (0, Cp - C), (0, Cp - C)))
        return wt.astype(jnp.bfloat16)

    w1_t, w2_t = to_tap(w1_oihw), to_tap(w2_oihw)
    a1_p = jnp.pad(a1.reshape(1, C).astype(jnp.float32), ((0, 0), (0, Cp - C)))
    a2_p = jnp.pad(a2.reshape(1, C).astype(jnp.float32), ((0, 0), (0, Cp - C)))

    # Interior mask over the band of rows the kernel computes.
    interior = jnp.zeros((Hp, Wp), jnp.float32).at[1:H + 1, 1:W + 1].set(1.0)
    mask = interior.reshape(P, 1)[p0:p0 + M]

    kernel = functools.partial(_basic_block_kernel, H=H, W=W, Cp=Cp)

    out_flat = pl.pallas_call(
        kernel,
        out_shape=jax.ShapeDtypeStruct((N, M, Cp), jnp.float32),
        grid_spec=pltpu.PrefetchScalarGridSpec(
            num_scalar_prefetch=0,
            grid=(N,),
            in_specs=[
                pl.BlockSpec((None, P, Cp), lambda n: (n, 0, 0)),
                pl.BlockSpec((9, Cp, Cp), lambda n: (0, 0, 0)),
                pl.BlockSpec((1, Cp), lambda n: (0, 0)),
                pl.BlockSpec((9, Cp, Cp), lambda n: (0, 0, 0)),
                pl.BlockSpec((1, Cp), lambda n: (0, 0)),
                pl.BlockSpec((M, 1), lambda n: (0, 0)),
            ],
            out_specs=pl.BlockSpec((None, M, Cp), lambda n: (n, 0, 0)),
            scratch_shapes=[
                pltpu.VMEM((P, Cp), jnp.float32),   # padded conv1 activation
            ],
        ),
        compiler_params=pltpu.CompilerParams(
            dimension_semantics=("parallel",)),
    )(x_flat, w1_t, a1_p, w2_t, a2_p, mask)

    # Padded-row layout -> NCHW: append the 2 missing border rows, reshape to
    # (H, Wp) rows and drop the padding ring / padded channels (pure XLA).
    out_pad = jnp.pad(out_flat, ((0, 0), (0, H * Wp - M), (0, 0)))
    out_nhwc = out_pad.reshape(N, H, Wp, Cp)[:, :, :W, :C]
    return jnp.transpose(out_nhwc, (0, 3, 1, 2))


def _reference(x_nchw, w1, a1, w2, a2):
    """Pure-JAX reference matching the PyTorch forward (NCHW, OIHW)."""
    dn = ('NCHW', 'OIHW', 'NCHW')

    def conv(x, w):
        return lax.conv_general_dilated(x, w, window_strides=(1, 1),
                                        padding=((1, 1), (1, 1)),
                                        dimension_numbers=dn)

    def prelu(x, a):
        a = a.reshape(1, -1, 1, 1)
        return jnp.where(x > 0, x, x * a)

    residual = x_nchw
    y = prelu(conv(x_nchw, w1), a1)
    y = prelu(conv(y, w2), a2)
    return y + residual


if __name__ == "__main__":
    # BasicBlock(inplanes=planes=C) — residual add requires inplanes == planes.
    N, C, H, W = 2, 4, 16, 16

    key = jax.random.PRNGKey(0)
    k_x, k_w1, k_w2 = jax.random.split(key, 3)

    x = jax.random.normal(k_x, (N, C, H, W), dtype=jnp.float32)
    # reset_parameters: conv weights ~ N(0, 0.01); PReLU slopes keep default 0.25
    w1 = 0.01 * jax.random.normal(k_w1, (C, C, 3, 3), dtype=jnp.float32)
    w2 = 0.01 * jax.random.normal(k_w2, (C, C, 3, 3), dtype=jnp.float32)
    a1 = 0.25 * jnp.ones((C,), dtype=jnp.float32)
    a2 = 0.25 * jnp.ones((C,), dtype=jnp.float32)

    out = jax.block_until_ready(basic_block_pallas(x, w1, a1, w2, a2))
    ref = jax.block_until_ready(_reference(x, w1, a1, w2, a2))

    assert out.shape == (N, C, H, W), out.shape
    # bf16 MXU operands (f32 accumulate, f32 residual): measured error here is
    # ~5e-5 vs. the pure-f32 reference; 5e-4 leaves margin.
    assert jnp.allclose(out, ref, atol=5e-4, rtol=5e-4), float(
        jnp.max(jnp.abs(out - ref)))

    print("KERNEL_OK")
</pallas_src>

<mosaic_0001>
module attributes {stable_mosaic.version = 11 : i64} {
  func.func @_basic_block_kernel(%arg0: i32, %arg1: memref<1x324x128xf32, #tpu.memory_space<vmem>>, %arg2: memref<9x128x128xbf16, #tpu.memory_space<vmem>>, %arg3: memref<1x128xf32, #tpu.memory_space<vmem>>, %arg4: memref<9x128x128xbf16, #tpu.memory_space<vmem>>, %arg5: memref<1x128xf32, #tpu.memory_space<vmem>>, %arg6: memref<286x1xf32, #tpu.memory_space<vmem>>, %arg7: memref<1x286x128xf32, #tpu.memory_space<vmem>>, %arg8: memref<324x128xf32, #tpu.memory_space<vmem>>) attributes {dimension_semantics = [#tpu.dimension_semantics<parallel>], iteration_bounds = array<i64: 2>, scalar_prefetch = 0 : i64, scratch_operands = 1 : i64, tpu.core_type = #tpu.core_type<tc>, window_params = [{transform_indices = @transform_0, window_bounds = array<i64: 1, 324, 128>}, {pipeline_mode = #tpu.pipeline_mode<synchronous>, transform_indices = @transform_1, window_bounds = array<i64: 9, 128, 128>}, {pipeline_mode = #tpu.pipeline_mode<synchronous>, transform_indices = @transform_2, window_bounds = array<i64: 1, 128>}, {pipeline_mode = #tpu.pipeline_mode<synchronous>, transform_indices = @transform_3, window_bounds = array<i64: 9, 128, 128>}, {pipeline_mode = #tpu.pipeline_mode<synchronous>, transform_indices = @transform_4, window_bounds = array<i64: 1, 128>}, {pipeline_mode = #tpu.pipeline_mode<synchronous>, transform_indices = @transform_5, window_bounds = array<i64: 286, 1>}, {transform_indices = @transform_6, window_bounds = array<i64: 1, 286, 128>}]} {
    %cst = arith.constant 0.000000e+00 : f32
    %0 = vector.broadcast %cst : f32 to vector<286x128xf32>
    %c0 = arith.constant 0 : index
    %c0_0 = arith.constant 0 : index
    %c0_1 = arith.constant 0 : index
    %1 = vector.load %arg1[%c0, %c0_0, %c0_1] : memref<1x324x128xf32, #tpu.memory_space<vmem>>, vector<1x286x128xf32>
    %2 = vector.shape_cast %1 : vector<1x286x128xf32> to vector<286x128xf32>
    %3 = arith.truncf %2 : vector<286x128xf32> to vector<286x128xbf16>
    %c0_2 = arith.constant 0 : index
    %c0_3 = arith.constant 0 : index
    %c0_4 = arith.constant 0 : index
    %4 = vector.load %arg2[%c0_2, %c0_3, %c0_4] : memref<9x128x128xbf16, #tpu.memory_space<vmem>>, vector<1x128x128xbf16>
    %5 = vector.shape_cast %4 : vector<1x128x128xbf16> to vector<128x128xbf16>
    %cst_5 = arith.constant dense<0.000000e+00> : vector<286x128xf32>
    %6 = tpu.matmul %3, %5, %cst_5 {dimension_numbers = #tpu.dot_dimension_numbers<[1], [0], [0], [1], [0, 0, 1, 1], [], []>} : vector<286x128xbf16>, vector<128x128xbf16>, vector<286x128xf32> -> vector<286x128xf32>
    %7 = arith.addf %0, %6 : vector<286x128xf32>
    %c0_6 = arith.constant 0 : index
    %c1 = arith.constant 1 : index
    %c0_7 = arith.constant 0 : index
    %8 = vector.load %arg1[%c0_6, %c1, %c0_7] : memref<1x324x128xf32, #tpu.memory_space<vmem>>, vector<1x286x128xf32>
    %9 = vector.shape_cast %8 : vector<1x286x128xf32> to vector<286x128xf32>
    %10 = arith.truncf %9 : vector<286x128xf32> to vector<286x128xbf16>
    %c1_8 = arith.constant 1 : index
    %c0_9 = arith.constant 0 : index
    %c0_10 = arith.constant 0 : index
    %11 = vector.load %arg2[%c1_8, %c0_9, %c0_10] : memref<9x128x128xbf16, #tpu.memory_space<vmem>>, vector<1x128x128xbf16>
    %12 = vector.shape_cast %11 : vector<1x128x128xbf16> to vector<128x128xbf16>
    %cst_11 = arith.constant dense<0.000000e+00> : vector<286x128xf32>
    %13 = tpu.matmul %10, %12, %cst_11 {dimension_numbers = #tpu.dot_dimension_numbers<[1], [0], [0], [1], [0, 0, 1, 1], [], []>} : vector<286x128xbf16>, vector<128x128xbf16>, vector<286x128xf32> -> vector<286x128xf32>
    %14 = arith.addf %7, %13 : vector<286x128xf32>
    %c0_12 = arith.constant 0 : index
    %c2 = arith.constant 2 : index
    %c0_13 = arith.constant 0 : index
    %15 = vector.load %arg1[%c0_12, %c2, %c0_13] : memref<1x324x128xf32, #tpu.memory_space<vmem>>, vector<1x286x128xf32>
    %16 = vector.shape_cast %15 : vector<1x286x128xf32> to vector<286x128xf32>
    %17 = arith.truncf %16 : vector<286x128xf32> to vector<286x128xbf16>
    %c2_14 = arith.constant 2 : index
    %c0_15 = arith.constant 0 : index
    %c0_16 = arith.constant 0 : index
    %18 = vector.load %arg2[%c2_14, %c0_15, %c0_16] : memref<9x128x128xbf16, #tpu.memory_space<vmem>>, vector<1x128x128xbf16>
    %19 = vector.shape_cast %18 : vector<1x128x128xbf16> to vector<128x128xbf16>
    %cst_17 = arith.constant dense<0.000000e+00> : vector<286x128xf32>
    %20 = tpu.matmul %17, %19, %cst_17 {dimension_numbers = #tpu.dot_dimension_numbers<[1], [0], [0], [1], [0, 0, 1, 1], [], []>} : vector<286x128xbf16>, vector<128x128xbf16>, vector<286x128xf32> -> vector<286x128xf32>
    %21 = arith.addf %14, %20 : vector<286x128xf32>
    %c0_18 = arith.constant 0 : index
    %c18 = arith.constant 18 : index
    %c0_19 = arith.constant 0 : index
    %22 = vector.load %arg1[%c0_18, %c18, %c0_19] : memref<1x324x128xf32, #tpu.memory_space<vmem>>, vector<1x286x128xf32>
    %23 = vector.shape_cast %22 : vector<1x286x128xf32> to vector<286x128xf32>
    %24 = arith.truncf %23 : vector<286x128xf32> to vector<286x128xbf16>
    %c3 = arith.constant 3 : index
    %c0_20 = arith.constant 0 : index
    %c0_21 = arith.constant 0 : index
    %25 = vector.load %arg2[%c3, %c0_20, %c0_21] : memref<9x128x128xbf16, #tpu.memory_space<vmem>>, vector<1x128x128xbf16>
    %26 = vector.shape_cast %25 : vector<1x128x128xbf16> to vector<128x128xbf16>
    %cst_22 = arith.constant dense<0.000000e+00> : vector<286x128xf32>
    %27 = tpu.matmul %24, %26, %cst_22 {dimension_numbers = #tpu.dot_dimension_numbers<[1], [0], [0], [1], [0, 0, 1, 1], [], []>} : vector<286x128xbf16>, vector<128x128xbf16>, vector<286x128xf32> -> vector<286x128xf32>
    %28 = arith.addf %21, %27 : vector<286x128xf32>
    %c0_23 = arith.constant 0 : index
    %c19 = arith.constant 19 : index
    %c0_24 = arith.constant 0 : index
    %29 = vector.load %arg1[%c0_23, %c19, %c0_24] : memref<1x324x128xf32, #tpu.memory_space<vmem>>, vector<1x286x128xf32>
    %30 = vector.shape_cast %29 : vector<1x286x128xf32> to vector<286x128xf32>
    %31 = arith.truncf %30 : vector<286x128xf32> to vector<286x128xbf16>
    %c4 = arith.constant 4 : index
    %c0_25 = arith.constant 0 : index
    %c0_26 = arith.constant 0 : index
    %32 = vector.load %arg2[%c4, %c0_25, %c0_26] : memref<9x128x128xbf16, #tpu.memory_space<vmem>>, vector<1x128x128xbf16>
    %33 = vector.shape_cast %32 : vector<1x128x128xbf16> to vector<128x128xbf16>
    %cst_27 = arith.constant dense<0.000000e+00> : vector<286x128xf32>
    %34 = tpu.matmul %31, %33, %cst_27 {dimension_numbers = #tpu.dot_dimension_numbers<[1], [0], [0], [1], [0, 0, 1, 1], [], []>} : vector<286x128xbf16>, vector<128x128xbf16>, vector<286x128xf32> -> vector<286x128xf32>
    %35 = arith.addf %28, %34 : vector<286x128xf32>
    %c0_28 = arith.constant 0 : index
    %c20 = arith.constant 20 : index
    %c0_29 = arith.constant 0 : index
    %36 = vector.load %arg1[%c0_28, %c20, %c0_29] : memref<1x324x128xf32, #tpu.memory_space<vmem>>, vector<1x286x128xf32>
    %37 = vector.shape_cast %36 : vector<1x286x128xf32> to vector<286x128xf32>
    %38 = arith.truncf %37 : vector<286x128xf32> to vector<286x128xbf16>
    %c5 = arith.constant 5 : index
    %c0_30 = arith.constant 0 : index
    %c0_31 = arith.constant 0 : index
    %39 = vector.load %arg2[%c5, %c0_30, %c0_31] : memref<9x128x128xbf16, #tpu.memory_space<vmem>>, vector<1x128x128xbf16>
    %40 = vector.shape_cast %39 : vector<1x128x128xbf16> to vector<128x128xbf16>
    %cst_32 = arith.constant dense<0.000000e+00> : vector<286x128xf32>
    %41 = tpu.matmul %38, %40, %cst_32 {dimension_numbers = #tpu.dot_dimension_numbers<[1], [0], [0], [1], [0, 0, 1, 1], [], []>} : vector<286x128xbf16>, vector<128x128xbf16>, vector<286x128xf32> -> vector<286x128xf32>
    %42 = arith.addf %35, %41 : vector<286x128xf32>
    %c0_33 = arith.constant 0 : index
    %c36 = arith.constant 36 : index
    %c0_34 = arith.constant 0 : index
    %43 = vector.load %arg1[%c0_33, %c36, %c0_34] : memref<1x324x128xf32, #tpu.memory_space<vmem>>, vector<1x286x128xf32>
    %44 = vector.shape_cast %43 : vector<1x286x128xf32> to vector<286x128xf32>
    %45 = arith.truncf %44 : vector<286x128xf32> to vector<286x128xbf16>
    %c6 = arith.constant 6 : index
    %c0_35 = arith.constant 0 : index
    %c0_36 = arith.constant 0 : index
    %46 = vector.load %arg2[%c6, %c0_35, %c0_36] : memref<9x128x128xbf16, #tpu.memory_space<vmem>>, vector<1x128x128xbf16>
    %47 = vector.shape_cast %46 : vector<1x128x128xbf16> to vector<128x128xbf16>
    %cst_37 = arith.constant dense<0.000000e+00> : vector<286x128xf32>
    %48 = tpu.matmul %45, %47, %cst_37 {dimension_numbers = #tpu.dot_dimension_numbers<[1], [0], [0], [1], [0, 0, 1, 1], [], []>} : vector<286x128xbf16>, vector<128x128xbf16>, vector<286x128xf32> -> vector<286x128xf32>
    %49 = arith.addf %42, %48 : vector<286x128xf32>
    %c0_38 = arith.constant 0 : index
    %c37 = arith.constant 37 : index
    %c0_39 = arith.constant 0 : index
    %50 = vector.load %arg1[%c0_38, %c37, %c0_39] : memref<1x324x128xf32, #tpu.memory_space<vmem>>, vector<1x286x128xf32>
    %51 = vector.shape_cast %50 : vector<1x286x128xf32> to vector<286x128xf32>
    %52 = arith.truncf %51 : vector<286x128xf32> to vector<286x128xbf16>
    %c7 = arith.constant 7 : index
    %c0_40 = arith.constant 0 : index
    %c0_41 = arith.constant 0 : index
    %53 = vector.load %arg2[%c7, %c0_40, %c0_41] : memref<9x128x128xbf16, #tpu.memory_space<vmem>>, vector<1x128x128xbf16>
    %54 = vector.shape_cast %53 : vector<1x128x128xbf16> to vector<128x128xbf16>
    %cst_42 = arith.constant dense<0.000000e+00> : vector<286x128xf32>
    %55 = tpu.matmul %52, %54, %cst_42 {dimension_numbers = #tpu.dot_dimension_numbers<[1], [0], [0], [1], [0, 0, 1, 1], [], []>} : vector<286x128xbf16>, vector<128x128xbf16>, vector<286x128xf32> -> vector<286x128xf32>
    %56 = arith.addf %49, %55 : vector<286x128xf32>
    %c0_43 = arith.constant 0 : index
    %c38 = arith.constant 38 : index
    %c0_44 = arith.constant 0 : index
    %57 = vector.load %arg1[%c0_43, %c38, %c0_44] : memref<1x324x128xf32, #tpu.memory_space<vmem>>, vector<1x286x128xf32>
    %58 = vector.shape_cast %57 : vector<1x286x128xf32> to vector<286x128xf32>
    %59 = arith.truncf %58 : vector<286x128xf32> to vector<286x128xbf16>
    %c8 = arith.constant 8 : index
    %c0_45 = arith.constant 0 : index
    %c0_46 = arith.constant 0 : index
    %60 = vector.load %arg2[%c8, %c0_45, %c0_46] : memref<9x128x128xbf16, #tpu.memory_space<vmem>>, vector<1x128x128xbf16>
    %61 = vector.shape_cast %60 : vector<1x128x128xbf16> to vector<128x128xbf16>
    %cst_47 = arith.constant dense<0.000000e+00> : vector<286x128xf32>
    %62 = tpu.matmul %59, %61, %cst_47 {dimension_numbers = #tpu.dot_dimension_numbers<[1], [0], [0], [1], [0, 0, 1, 1], [], []>} : vector<286x128xbf16>, vector<128x128xbf16>, vector<286x128xf32> -> vector<286x128xf32>
    %63 = arith.addf %56, %62 : vector<286x128xf32>
    %cst_48 = arith.constant 0.000000e+00 : f32
    %64 = vector.broadcast %cst_48 : f32 to vector<286x128xf32>
    %65 = arith.cmpf ogt, %63, %64 : vector<286x128xf32>
    %c0_49 = arith.constant 0 : index
    %c0_50 = arith.constant 0 : index
    %66 = vector.load %arg3[%c0_49, %c0_50] : memref<1x128xf32, #tpu.memory_space<vmem>>, vector<1x128xf32>
    %67 = vector.broadcast %66 : vector<1x128xf32> to vector<286x128xf32>
    %68 = arith.mulf %63, %67 : vector<286x128xf32>
    %69 = arith.select %65, %63, %68 : vector<286x128xi1>, vector<286x128xf32>
    %cst_51 = arith.constant 0.000000e+00 : f32
    %70 = vector.broadcast %cst_51 : f32 to vector<19x128xf32>
    %c0_52 = arith.constant 0 : index
    %c0_53 = arith.constant 0 : index
    %71 = vector.load %arg8[%c0_52, %c0_53] : memref<324x128xf32, #tpu.memory_space<vmem>>, vector<19x128xf32>
    tpu.vector_store %arg8[%c0_52, %c0_53], %70 {strides = array<i32>} : memref<324x128xf32, #tpu.memory_space<vmem>>, vector<19x128xf32>,
    %c0_54 = arith.constant 0 : index
    %c0_55 = arith.constant 0 : index
    %72 = vector.load %arg6[%c0_54, %c0_55] : memref<286x1xf32, #tpu.memory_space<vmem>>, vector<286x1xf32>
    %73 = vector.broadcast %72 : vector<286x1xf32> to vector<286x128xf32>
    %74 = arith.mulf %69, %73 : vector<286x128xf32>
    %c19_56 = arith.constant 19 : index
    %c0_57 = arith.constant 0 : index
    %75 = vector.load %arg8[%c19_56, %c0_57] : memref<324x128xf32, #tpu.memory_space<vmem>>, vector<286x128xf32>
    tpu.vector_store %arg8[%c19_56, %c0_57], %74 {strides = array<i32>} : memref<324x128xf32, #tpu.memory_space<vmem>>, vector<286x128xf32>,
    %cst_58 = arith.constant 0.000000e+00 : f32
    %76 = vector.broadcast %cst_58 : f32 to vector<19x128xf32>
    %c305 = arith.constant 305 : index
    %c0_59 = arith.constant 0 : index
    %77 = vector.load %arg8[%c305, %c0_59] : memref<324x128xf32, #tpu.memory_space<vmem>>, vector<19x128xf32>
    tpu.vector_store %arg8[%c305, %c0_59], %76 {strides = array<i32>} : memref<324x128xf32, #tpu.memory_space<vmem>>, vector<19x128xf32>,
    %cst_60 = arith.constant 0.000000e+00 : f32
    %78 = vector.broadcast %cst_60 : f32 to vector<286x128xf32>
    %c0_61 = arith.constant 0 : index
    %c0_62 = arith.constant 0 : index
    %79 = vector.load %arg8[%c0_61, %c0_62] : memref<324x128xf32, #tpu.memory_space<vmem>>, vector<286x128xf32>
    %80 = arith.truncf %79 : vector<286x128xf32> to vector<286x128xbf16>
    %c0_63 = arith.constant 0 : index
    %c0_64 = arith.constant 0 : index
    %c0_65 = arith.constant 0 : index
    %81 = vector.load %arg4[%c0_63, %c0_64, %c0_65] : memref<9x128x128xbf16, #tpu.memory_space<vmem>>, vector<1x128x128xbf16>
    %82 = vector.shape_cast %81 : vector<1x128x128xbf16> to vector<128x128xbf16>
    %cst_66 = arith.constant dense<0.000000e+00> : vector<286x128xf32>
    %83 = tpu.matmul %80, %82, %cst_66 {dimension_numbers = #tpu.dot_dimension_numbers<[1], [0], [0], [1], [0, 0, 1, 1], [], []>} : vector<286x128xbf16>, vector<128x128xbf16>, vector<286x128xf32> -> vector<286x128xf32>
    %84 = arith.addf %78, %83 : vector<286x128xf32>
    %c1_67 = arith.constant 1 : index
    %c0_68 = arith.constant 0 : index
    %85 = vector.load %arg8[%c1_67, %c0_68] : memref<324x128xf32, #tpu.memory_space<vmem>>, vector<286x128xf32>
    %86 = arith.truncf %85 : vector<286x128xf32> to vector<286x128xbf16>
    %c1_69 = arith.constant 1 : index
    %c0_70 = arith.constant 0 : index
    %c0_71 = arith.constant 0 : index
    %87 = vector.load %arg4[%c1_69, %c0_70, %c0_71] : memref<9x128x128xbf16, #tpu.memory_space<vmem>>, vector<1x128x128xbf16>
    %88 = vector.shape_cast %87 : vector<1x128x128xbf16> to vector<128x128xbf16>
    %cst_72 = arith.constant dense<0.000000e+00> : vector<286x128xf32>
    %89 = tpu.matmul %86, %88, %cst_72 {dimension_numbers = #tpu.dot_dimension_numbers<[1], [0], [0], [1], [0, 0, 1, 1], [], []>} : vector<286x128xbf16>, vector<128x128xbf16>, vector<286x128xf32> -> vector<286x128xf32>
    %90 = arith.addf %84, %89 : vector<286x128xf32>
    %c2_73 = arith.constant 2 : index
    %c0_74 = arith.constant 0 : index
    %91 = vector.load %arg8[%c2_73, %c0_74] : memref<324x128xf32, #tpu.memory_space<vmem>>, vector<286x128xf32>
    %92 = arith.truncf %91 : vector<286x128xf32> to vector<286x128xbf16>
    %c2_75 = arith.constant 2 : index
    %c0_76 = arith.constant 0 : index
    %c0_77 = arith.constant 0 : index
    %93 = vector.load %arg4[%c2_75, %c0_76, %c0_77] : memref<9x128x128xbf16, #tpu.memory_space<vmem>>, vector<1x128x128xbf16>
    %94 = vector.shape_cast %93 : vector<1x128x128xbf16> to vector<128x128xbf16>
    %cst_78 = arith.constant dense<0.000000e+00> : vector<286x128xf32>
    %95 = tpu.matmul %92, %94, %cst_78 {dimension_numbers = #tpu.dot_dimension_numbers<[1], [0], [0], [1], [0, 0, 1, 1], [], []>} : vector<286x128xbf16>, vector<128x128xbf16>, vector<286x128xf32> -> vector<286x128xf32>
    %96 = arith.addf %90, %95 : vector<286x128xf32>
    %c18_79 = arith.constant 18 : index
    %c0_80 = arith.constant 0 : index
    %97 = vector.load %arg8[%c18_79, %c0_80] : memref<324x128xf32, #tpu.memory_space<vmem>>, vector<286x128xf32>
    %98 = arith.truncf %97 : vector<286x128xf32> to vector<286x128xbf16>
    %c3_81 = arith.constant 3 : index
    %c0_82 = arith.constant 0 : index
    %c0_83 = arith.constant 0 : index
    %99 = vector.load %arg4[%c3_81, %c0_82, %c0_83] : memref<9x128x128xbf16, #tpu.memory_space<vmem>>, vector<1x128x128xbf16>
    %100 = vector.shape_cast %99 : vector<1x128x128xbf16> to vector<128x128xbf16>
    %cst_84 = arith.constant dense<0.000000e+00> : vector<286x128xf32>
    %101 = tpu.matmul %98, %100, %cst_84 {dimension_numbers = #tpu.dot_dimension_numbers<[1], [0], [0], [1], [0, 0, 1, 1], [], []>} : vector<286x128xbf16>, vector<128x128xbf16>, vector<286x128xf32> -> vector<286x128xf32>
    %102 = arith.addf %96, %101 : vector<286x128xf32>
    %c19_85 = arith.constant 19 : index
    %c0_86 = arith.constant 0 : index
    %103 = vector.load %arg8[%c19_85, %c0_86] : memref<324x128xf32, #tpu.memory_space<vmem>>, vector<286x128xf32>
    %104 = arith.truncf %103 : vector<286x128xf32> to vector<286x128xbf16>
    %c4_87 = arith.constant 4 : index
    %c0_88 = arith.constant 0 : index
    %c0_89 = arith.constant 0 : index
    %105 = vector.load %arg4[%c4_87, %c0_88, %c0_89] : memref<9x128x128xbf16, #tpu.memory_space<vmem>>, vector<1x128x128xbf16>
    %106 = vector.shape_cast %105 : vector<1x128x128xbf16> to vector<128x128xbf16>
    %cst_90 = arith.constant dense<0.000000e+00> : vector<286x128xf32>
    %107 = tpu.matmul %104, %106, %cst_90 {dimension_numbers = #tpu.dot_dimension_numbers<[1], [0], [0], [1], [0, 0, 1, 1], [], []>} : vector<286x128xbf16>, vector<128x128xbf16>, vector<286x128xf32> -> vector<286x128xf32>
    %108 = arith.addf %102, %107 : vector<286x128xf32>
    %c20_91 = arith.constant 20 : index
    %c0_92 = arith.constant 0 : index
    %109 = vector.load %arg8[%c20_91, %c0_92] : memref<324x128xf32, #tpu.memory_space<vmem>>, vector<286x128xf32>
    %110 = arith.truncf %109 : vector<286x128xf32> to vector<286x128xbf16>
    %c5_93 = arith.constant 5 : index
    %c0_94 = arith.constant 0 : index
    %c0_95 = arith.constant 0 : index
    %111 = vector.load %arg4[%c5_93, %c0_94, %c0_95] : memref<9x128x128xbf16, #tpu.memory_space<vmem>>, vector<1x128x128xbf16>
    %112 = vector.shape_cast %111 : vector<1x128x128xbf16> to vector<128x128xbf16>
    %cst_96 = arith.constant dense<0.000000e+00> : vector<286x128xf32>
    %113 = tpu.matmul %110, %112, %cst_96 {dimension_numbers = #tpu.dot_dimension_numbers<[1], [0], [0], [1], [0, 0, 1, 1], [], []>} : vector<286x128xbf16>, vector<128x128xbf16>, vector<286x128xf32> -> vector<286x128xf32>
    %114 = arith.addf %108, %113 : vector<286x128xf32>
    %c36_97 = arith.constant 36 : index
    %c0_98 = arith.constant 0 : index
    %115 = vector.load %arg8[%c36_97, %c0_98] : memref<324x128xf32, #tpu.memory_space<vmem>>, vector<286x128xf32>
    %116 = arith.truncf %115 : vector<286x128xf32> to vector<286x128xbf16>
    %c6_99 = arith.constant 6 : index
    %c0_100 = arith.constant 0 : index
    %c0_101 = arith.constant 0 : index
    %117 = vector.load %arg4[%c6_99, %c0_100, %c0_101] : memref<9x128x128xbf16, #tpu.memory_space<vmem>>, vector<1x128x128xbf16>
    %118 = vector.shape_cast %117 : vector<1x128x128xbf16> to vector<128x128xbf16>
    %cst_102 = arith.constant dense<0.000000e+00> : vector<286x128xf32>
    %119 = tpu.matmul %116, %118, %cst_102 {dimension_numbers = #tpu.dot_dimension_numbers<[1], [0], [0], [1], [0, 0, 1, 1], [], []>} : vector<286x128xbf16>, vector<128x128xbf16>, vector<286x128xf32> -> vector<286x128xf32>
    %120 = arith.addf %114, %119 : vector<286x128xf32>
    %c37_103 = arith.constant 37 : index
    %c0_104 = arith.constant 0 : index
    %121 = vector.load %arg8[%c37_103, %c0_104] : memref<324x128xf32, #tpu.memory_space<vmem>>, vector<286x128xf32>
    %122 = arith.truncf %121 : vector<286x128xf32> to vector<286x128xbf16>
    %c7_105 = arith.constant 7 : index
    %c0_106 = arith.constant 0 : index
    %c0_107 = arith.constant 0 : index
    %123 = vector.load %arg4[%c7_105, %c0_106, %c0_107] : memref<9x128x128xbf16, #tpu.memory_space<vmem>>, vector<1x128x128xbf16>
    %124 = vector.shape_cast %123 : vector<1x128x128xbf16> to vector<128x128xbf16>
    %cst_108 = arith.constant dense<0.000000e+00> : vector<286x128xf32>
    %125 = tpu.matmul %122, %124, %cst_108 {dimension_numbers = #tpu.dot_dimension_numbers<[1], [0], [0], [1], [0, 0, 1, 1], [], []>} : vector<286x128xbf16>, vector<128x128xbf16>, vector<286x128xf32> -> vector<286x128xf32>
    %126 = arith.addf %120, %125 : vector<286x128xf32>
    %c38_109 = arith.constant 38 : index
    %c0_110 = arith.constant 0 : index
    %127 = vector.load %arg8[%c38_109, %c0_110] : memref<324x128xf32, #tpu.memory_space<vmem>>, vector<286x128xf32>
    %128 = arith.truncf %127 : vector<286x128xf32> to vector<286x128xbf16>
    %c8_111 = arith.constant 8 : index
    %c0_112 = arith.constant 0 : index
    %c0_113 = arith.constant 0 : index
    %129 = vector.load %arg4[%c8_111, %c0_112, %c0_113] : memref<9x128x128xbf16, #tpu.memory_space<vmem>>, vector<1x128x128xbf16>
    %130 = vector.shape_cast %129 : vector<1x128x128xbf16> to vector<128x128xbf16>
    %cst_114 = arith.constant dense<0.000000e+00> : vector<286x128xf32>
    %131 = tpu.matmul %128, %130, %cst_114 {dimension_numbers = #tpu.dot_dimension_numbers<[1], [0], [0], [1], [0, 0, 1, 1], [], []>} : vector<286x128xbf16>, vector<128x128xbf16>, vector<286x128xf32> -> vector<286x128xf32>
    %132 = arith.addf %126, %131 : vector<286x128xf32>
    %cst_115 = arith.constant 0.000000e+00 : f32
    %133 = vector.broadcast %cst_115 : f32 to vector<286x128xf32>
    %134 = arith.cmpf ogt, %132, %133 : vector<286x128xf32>
    %c0_116 = arith.constant 0 : index
    %c0_117 = arith.constant 0 : index
    %135 = vector.load %arg5[%c0_116, %c0_117] : memref<1x128xf32, #tpu.memory_space<vmem>>, vector<1x128xf32>
    %136 = vector.broadcast %135 : vector<1x128xf32> to vector<286x128xf32>
    %137 = arith.mulf %132, %136 : vector<286x128xf32>
    %138 = arith.select %134, %132, %137 : vector<286x128xi1>, vector<286x128xf32>
    %c0_118 = arith.constant 0 : index
    %c19_119 = arith.constant 19 : index
    %c0_120 = arith.constant 0 : index
    %139 = vector.load %arg1[%c0_118, %c19_119, %c0_120] : memref<1x324x128xf32, #tpu.memory_space<vmem>>, vector<1x286x128xf32>
    %140 = vector.shape_cast %139 : vector<1x286x128xf32> to vector<286x128xf32>
    %141 = arith.addf %138, %140 : vector<286x128xf32>
    %c0_121 = arith.constant 0 : index
    %c0_122 = arith.constant 0 : index
    %c0_123 = arith.constant 0 : index
    %142 = vector.load %arg7[%c0_121, %c0_122, %c0_123] : memref<1x286x128xf32, #tpu.memory_space<vmem>>, vector<1x286x128xf32>
    %143 = vector.shape_cast %142 : vector<1x286x128xf32> to vector<286x128xf32>
    %144 = vector.shape_cast %141 : vector<286x128xf32> to vector<1x286x128xf32>
    tpu.vector_store %arg7[%c0_121, %c0_122, %c0_123], %144 {strides = array<i32>} : memref<1x286x128xf32, #tpu.memory_space<vmem>>, vector<1x286x128xf32>,
    return
  }
  func.func @transform_0(%arg0: i32) -> (i32, i32, i32) {
    %c0_i32 = arith.constant 0 : i32
    %c0_i32_0 = arith.constant 0 : i32
    %c0_i32_1 = arith.constant 0 : i32
    return %arg0, %c0_i32, %c0_i32_0 : i32, i32, i32
  }
  func.func @transform_1(%arg0: i32) -> (i32, i32, i32) {
    %c0_i32 = arith.constant 0 : i32
    %c0_i32_0 = arith.constant 0 : i32
    %c0_i32_1 = arith.constant 0 : i32
    %c0_i32_2 = arith.constant 0 : i32
    return %c0_i32, %c0_i32_0, %c0_i32_1 : i32, i32, i32
  }
  func.func @transform_2(%arg0: i32) -> (i32, i32) {
    %c0_i32 = arith.constant 0 : i32
    %c0_i32_0 = arith.constant 0 : i32
    %c0_i32_1 = arith.constant 0 : i32
    return %c0_i32, %c0_i32_0 : i32, i32
  }
  func.func @transform_3(%arg0: i32) -> (i32, i32, i32) {
    %c0_i32 = arith.constant 0 : i32
    %c0_i32_0 = arith.constant 0 : i32
    %c0_i32_1 = arith.constant 0 : i32
    %c0_i32_2 = arith.constant 0 : i32
    return %c0_i32, %c0_i32_0, %c0_i32_1 : i32, i32, i32
  }
  func.func @transform_4(%arg0: i32) -> (i32, i32) {
    %c0_i32 = arith.constant 0 : i32
    %c0_i32_0 = arith.constant 0 : i32
    %c0_i32_1 = arith.constant 0 : i32
    return %c0_i32, %c0_i32_0 : i32, i32
  }
  func.func @transform_5(%arg0: i32) -> (i32, i32) {
    %c0_i32 = arith.constant 0 : i32
    %c0_i32_0 = arith.constant 0 : i32
    %c0_i32_1 = arith.constant 0 : i32
    return %c0_i32, %c0_i32_0 : i32, i32
  }
  func.func @transform_6(%arg0: i32) -> (i32, i32, i32) {
    %c0_i32 = arith.constant 0 : i32
    %c0_i32_0 = arith.constant 0 : i32
    %c0_i32_1 = arith.constant 0 : i32
    return %arg0, %c0_i32, %c0_i32_0 : i32, i32, i32
  }
}

</mosaic_0001>

<llo_original>
// kernel: basic_block_pallas.1
$region0: #{basic_block_pallas.1}
  #allocation0 [shape = 'u32[]', space=smem, size = 0x4, offset = 0x4, fixed_abs, tag = 'smem constant byte address 0x4 - core index']
  #allocation1 [shape = 'u32[144,128]{1,0:T(1,128)}', space=vmem, size = 0x12000, scoped, tag = 'internal scratch']
  #allocation2 [shape = 'f32[324,128]{1,0:T(8,128)}', space=vmem, size = 0x29000, scoped, tag = 'scratch operand']
  %s0 = inlined_call_operand.vmem [shape: f32[2,324,128], index: 0, kind: input, shape index: {}]
  %s1 = inlined_call_operand.vmem [shape: bf16[9,128,128], index: 1, kind: input, shape index: {}]
  %s2 = inlined_call_operand.vmem [shape: f32[1,128], index: 2, kind: input, shape index: {}]
  %s3 = inlined_call_operand.vmem [shape: bf16[9,128,128], index: 3, kind: input, shape index: {}]
  %s4 = inlined_call_operand.vmem [shape: f32[1,128], index: 4, kind: input, shape index: {}]
  %s5 = inlined_call_operand.vmem [shape: f32[286,1], index: 5, kind: input, shape index: {}]
  %s6 = inlined_call_operand.vmem [shape: f32[2,286,128], index: 6, kind: output, shape index: {}]
  %s7 = sld [smem:[#allocation0]]
  $region57: #{basic_block_pallas.1} parent=0
    _
  %s9 = ssub.s32 1, %s7
  %s10 = scalar_select 0, %s9, %s7
  loop: start=0, step=1, limit=4
  $region2: #{basic_block_pallas.1} parent=0 // loop_pre_header
    _
  $region3: #{basic_block_pallas.1} parent=0 // loop_header
    %s12 = sphi 0, %s16
    %p13 = scmp.ge.s32.totalorder %s12, 4
    %s22 = sphi 0, %s24
    %s25 = sphi 0, %s22
    %s26 = sphi 0, %s25
    %s42 = sphi 0, %s26
    %s46 = sphi 0, %s46
    %s48 = sphi 0, %s46
    %s49 = sphi 0, %s48
    %s63 = sphi 0, %s49
    %s67 = sphi 0, %s67
    %s69 = sphi 0, %s67
    %s70 = sphi 0, %s69
    %s84 = sphi 0, %s70
    %s88 = sphi 0, %s88
    %s90 = sphi 0, %s88
    %s91 = sphi 0, %s90
    %s105 = sphi 0, %s91
    %s109 = sphi 0, %s109
    %s111 = sphi 0, %s109
    %s112 = sphi 0, %s111
    %s126 = sphi 0, %s112
    %s130 = sphi 0, %s130
    %s132 = sphi 0, %s130
    %s133 = sphi 0, %s132
    %s147 = sphi 0, %s133
    %s153 = sphi 0, %s155
    %s156 = sphi 0, %s153
    %s157 = sphi 0, %s156
    %s173 = sphi 0, %s157
  $region4: #{basic_block_pallas.1} parent=0 // loop_header_branch
    %15 = sbr.rel (%p13) target = $region8
  $region5: #{basic_block_pallas.1} parent=0 // loop_body
    %s17 = ssub.s32 %s12, 1
    %s18 = ssub.s32 %s12, 2
    %s19 = sadd.s32 %s12, 1
    %s20 = ssub.s32 %s12, %s19
    %p21 = scmp.eq.s32.totalorder %s20, 0
    %s23 = sadd.s32 %s22, 1
    %s24 = scalar_select %p21, %s22, %s23
    %p27 = pneg %p21
    %p28 = scmp.eq.s32.totalorder %s12, 1
    %p29 = por %p27, %p28
    %p30 = scmp.ne.s32.totalorder %s22, %s25
    %p31 = scmp.eq.s32.totalorder %s12, 0
    %p32 = por %p30, %p31
    %p33 = scmp.ne.s32.totalorder %s22, %s25
    %p34 = scmp.eq.s32.totalorder %s17, 1
    %p35 = por %p33, %p34
    %p36 = scmp.ne.s32.totalorder %s25, %s26
    %p37 = scmp.eq.s32.totalorder %s17, 0
    %p38 = por %p36, %p37
    %p39 = scmp.ne.s32.totalorder %s25, %s26
    %p40 = scmp.eq.s32.totalorder %s18, 1
    %p41 = por %p39, %p40
    %p43 = scmp.ne.s32.totalorder %s26, %s42
    %p44 = scmp.eq.s32.totalorder %s18, 0
    %p45 = por %p43, %p44
    %s47 = sadd.s32 %s46, 1
    %p50 = scmp.eq.s32.totalorder %s12, 1
    %p51 = scmp.ne.s32.totalorder %s46, %s48
    %p52 = scmp.eq.s32.totalorder %s12, 0
    %p53 = por %p51, %p52
    %p54 = scmp.ne.s32.totalorder %s46, %s48
    %p55 = scmp.eq.s32.totalorder %s17, 1
    %p56 = por %p54, %p55
    %p57 = scmp.ne.s32.totalorder %s48, %s49
    %p58 = scmp.eq.s32.totalorder %s17, 0
    %p59 = por %p57, %p58
    %p60 = scmp.ne.s32.totalorder %s48, %s49
    %p61 = scmp.eq.s32.totalorder %s18, 1
    %p62 = por %p60, %p61
    %p64 = scmp.ne.s32.totalorder %s49, %s63
    %p65 = scmp.eq.s32.totalorder %s18, 0
    %p66 = por %p64, %p65
    %s68 = sadd.s32 %s67, 1
    %p71 = scmp.eq.s32.totalorder %s12, 1
    %p72 = scmp.ne.s32.totalorder %s67, %s69
    %p73 = scmp.eq.s32.totalorder %s12, 0
    %p74 = por %p72, %p73
    %p75 = scmp.ne.s32.totalorder %s67, %s69
    %p76 = scmp.eq.s32.totalorder %s17, 1
    %p77 = por %p75, %p76
    %p78 = scmp.ne.s32.totalorder %s69, %s70
    %p79 = scmp.eq.s32.totalorder %s17, 0
    %p80 = por %p78, %p79
    %p81 = scmp.ne.s32.totalorder %s69, %s70
    %p82 = scmp.eq.s32.totalorder %s18, 1
    %p83 = por %p81, %p82
    %p85 = scmp.ne.s32.totalorder %s70, %s84
    %p86 = scmp.eq.s32.totalorder %s18, 0
    %p87 = por %p85, %p86
    %s89 = sadd.s32 %s88, 1
    %p92 = scmp.eq.s32.totalorder %s12, 1
    %p93 = scmp.ne.s32.totalorder %s88, %s90
    %p94 = scmp.eq.s32.totalorder %s12, 0
    %p95 = por %p93, %p94
    %p96 = scmp.ne.s32.totalorder %s88, %s90
    %p97 = scmp.eq.s32.totalorder %s17, 1
    %p98 = por %p96, %p97
    %p99 = scmp.ne.s32.totalorder %s90, %s91
    %p100 = scmp.eq.s32.totalorder %s17, 0
    %p101 = por %p99, %p100
    %p102 = scmp.ne.s32.totalorder %s90, %s91
    %p103 = scmp.eq.s32.totalorder %s18, 1
    %p104 = por %p102, %p103
    %p106 = scmp.ne.s32.totalorder %s91, %s105
    %p107 = scmp.eq.s32.totalorder %s18, 0
    %p108 = por %p106, %p107
    %s110 = sadd.s32 %s109, 1
    %p113 = scmp.eq.s32.totalorder %s12, 1
    %p114 = scmp.ne.s32.totalorder %s109, %s111
    %p115 = scmp.eq.s32.totalorder %s12, 0
    %p116 = por %p114, %p115
    %p117 = scmp.ne.s32.totalorder %s109, %s111
    %p118 = scmp.eq.s32.totalorder %s17, 1
    %p119 = por %p117, %p118
    %p120 = scmp.ne.s32.totalorder %s111, %s112
    %p121 = scmp.eq.s32.totalorder %s17, 0
    %p122 = por %p120, %p121
    %p123 = scmp.ne.s32.totalorder %s111, %s112
    %p124 = scmp.eq.s32.totalorder %s18, 1
    %p125 = por %p123, %p124
    %p127 = scmp.ne.s32.totalorder %s112, %s126
    %p128 = scmp.eq.s32.totalorder %s18, 0
    %p129 = por %p127, %p128
    %s131 = sadd.s32 %s130, 1
    %p134 = scmp.eq.s32.totalorder %s12, 1
    %p135 = scmp.ne.s32.totalorder %s130, %s132
    %p136 = scmp.eq.s32.totalorder %s12, 0
    %p137 = por %p135, %p136
    %p138 = scmp.ne.s32.totalorder %s130, %s132
    %p139 = scmp.eq.s32.totalorder %s17, 1
    %p140 = por %p138, %p139
    %p141 = scmp.ne.s32.totalorder %s132, %s133
    %p142 = scmp.eq.s32.totalorder %s17, 0
    %p143 = por %p141, %p142
    %p144 = scmp.ne.s32.totalorder %s132, %s133
    %p145 = scmp.eq.s32.totalorder %s18, 1
    %p146 = por %p144, %p145
    %p148 = scmp.ne.s32.totalorder %s133, %s147
    %p149 = scmp.eq.s32.totalorder %s18, 0
    %p150 = por %p148, %p149
    %s151 = ssub.s32 %s12, %s19
    %p152 = scmp.eq.s32.totalorder %s151, 0
    %s154 = sadd.s32 %s153, 1
    %s155 = scalar_select %p152, %s153, %s154
    %p158 = pneg %p152
    %p159 = scmp.eq.s32.totalorder %s12, 1
    %p160 = por %p158, %p159
    %p161 = scmp.ne.s32.totalorder %s153, %s156
    %p162 = scmp.eq.s32.totalorder %s12, 0
    %p163 = por %p161, %p162
    %p164 = scmp.ne.s32.totalorder %s153, %s156
    %p165 = scmp.eq.s32.totalorder %s17, 1
    %p166 = por %p164, %p165
    %p167 = scmp.ne.s32.totalorder %s156, %s157
    %p168 = scmp.eq.s32.totalorder %s17, 0
    %p169 = por %p167, %p168
    %p170 = scmp.ne.s32.totalorder %s156, %s157
    %p171 = scmp.eq.s32.totalorder %s18, 1
    %p172 = por %p170, %p171
    %p174 = scmp.ne.s32.totalorder %s157, %s173
    %p175 = scmp.eq.s32.totalorder %s18, 0
    %p176 = por %p174, %p175
    %p177 = scmp.le.s32.totalorder 1, %s12
    %p178 = scmp.lt.s32.totalorder %s12, 3
    %p179 = pnand %p177, %p178
    %p180 = pneg %p179
    // Predicated region
    $region9: #{basic_block_pallas.1} parent=5 // pred_check
      _
    $region10: #{basic_block_pallas.1} parent=5 // pred_check_branch
      %182 = sbr.rel (%p179) target = $region12
    $region11: #{basic_block_pallas.1} parent=5 // pred_region
      %s183 = ssub.s32 %s12, 1
      // Predicated region
      $region13: #{basic_block_pallas.1} parent=11 // pred_check
        %p184 = pneg %p59
      $region14: #{basic_block_pallas.1} parent=11 // pred_check_branch
        %186 = sbr.rel (%p184) target = $region16
      $region15: #{basic_block_pallas.1} parent=11 // pred_region
        _
      $region16: #{basic_block_pallas.1} parent=11 // pred_fallthru
        _
      // Predicated region
      $region17: #{basic_block_pallas.1} parent=11 // pred_check
        %p187 = pneg %p80
      $region18: #{basic_block_pallas.1} parent=11 // pred_check_branch
        %189 = sbr.rel (%p187) target = $region20
      $region19: #{basic_block_pallas.1} parent=11 // pred_region
        _
      $region20: #{basic_block_pallas.1} parent=11 // pred_fallthru
        _
      // Predicated region
      $region21: #{basic_block_pallas.1} parent=11 // pred_check
        %p190 = pneg %p101
      $region22: #{basic_block_pallas.1} parent=11 // pred_check_branch
        %192 = sbr.rel (%p190) target = $region24
      $region23: #{basic_block_pallas.1} parent=11 // pred_region
        _
      $region24: #{basic_block_pallas.1} parent=11 // pred_fallthru
        _
      // Predicated region
      $region25: #{basic_block_pallas.1} parent=11 // pred_check
        %p193 = pneg %p122
      $region26: #{basic_block_pallas.1} parent=11 // pred_check_branch
        %195 = sbr.rel (%p193) target = $region28
      $region27: #{basic_block_pallas.1} parent=11 // pred_region
        _
      $region28: #{basic_block_pallas.1} parent=11 // pred_fallthru
        _
      // Predicated region
      $region29: #{basic_block_pallas.1} parent=11 // pred_check
        %p196 = pneg %p143
      $region30: #{basic_block_pallas.1} parent=11 // pred_check_branch
        %198 = sbr.rel (%p196) target = $region32
      $region31: #{basic_block_pallas.1} parent=11 // pred_region
        _
      $region32: #{basic_block_pallas.1} parent=11 // pred_fallthru
        _
    $region12: #{basic_block_pallas.1} parent=5 // pred_fallthru
      _
    %p199 = scmp.lt.s32.totalorder %s12, 2
    // Predicated region
    $region33: #{basic_block_pallas.1} parent=5 // pred_check
      %p200 = pneg %p199
    $region34: #{basic_block_pallas.1} parent=5 // pred_check_branch
      %202 = sbr.rel (%p200) target = $region36
    $region35: #{basic_block_pallas.1} parent=5 // pred_region
      // Predicated region
      $region37: #{basic_block_pallas.1} parent=35 // pred_check
        %p203 = pneg %p32
      $region38: #{basic_block_pallas.1} parent=35 // pred_check_branch
        %205 = sbr.rel (%p203) target = $region40
      $region39: #{basic_block_pallas.1} parent=35 // pred_region
        %p206 = scmp.lt.s32.totalorder %s12, 1
        %s207 = scalar_select %p206, %s12, 1
        %s208 = smul.addr %s207, 41
        %s209 = smul.addr %s208, 8
        %s210 = scalar_lea.vmem %s0, %s209
      $region40: #{basic_block_pallas.1} parent=35 // pred_fallthru
        _
    $region36: #{basic_block_pallas.1} parent=5 // pred_fallthru
      _
    %p211 = scmp.le.s32.totalorder 1, %s12
    %p212 = scmp.lt.s32.totalorder %s12, 3
    %p213 = pnand %p211, %p212
    %p214 = pneg %p213
    // Predicated region
    $region41: #{basic_block_pallas.1} parent=5 // pred_check
      _
    $region42: #{basic_block_pallas.1} parent=5 // pred_check_branch
      %216 = sbr.rel (%p213) target = $region44
    $region43: #{basic_block_pallas.1} parent=5 // pred_region
      %s217 = ssub.s32 %s12, 1
      %p218 = scmp.lt.s32.totalorder %s17, 1
      %s219 = scalar_select %p218, %s17, 1
      %s220 = smul.addr %s219, 41
      %s221 = smul.addr %s220, 8
      %s222 = scalar_lea.vmem %s0, %s221
      %p223 = pneg %p38
      %p224 = pneg %p35
      %p225 = pneg %p59
      %p226 = pneg %p56
      %p227 = pneg %p80
      %p228 = pneg %p77
      %p229 = pneg %p101
      %p230 = pneg %p98
      %p231 = pneg %p122
      %p232 = pneg %p119
      %p233 = pneg %p143
      %p234 = pneg %p140
      %p235 = pneg %p169
      %p236 = pneg %p166
      %p237 = scmp.lt.s32.totalorder %s17, 1
      %s238 = scalar_select %p237, %s17, 1
      %s239 = smul.addr %s238, 36
      %s240 = smul.addr %s239, 8
      %s241 = scalar_lea.vmem %s6, %s240
      %p242 = scmp.lt.s32.totalorder %s17, 1
      %s243 = scalar_select %p242, %s17, 1
      %s244 = smul.addr %s243, 41
      %s245 = smul.addr %s244, 8
      %s246 = scalar_lea.vmem %s0, %s245
      %p247 = scmp.lt.s32.totalorder %s17, 1
      %s248 = scalar_select %p247, %s17, 1
      %s249 = smul.addr %s248, 36
      %s250 = smul.addr %s249, 8
      %s251 = scalar_lea.vmem %s6, %s250
      %v253 = vld [vmem:[%s246] sm:$0xff]
      %v254 = vld [vmem:[%s246 + $0x8] sm:$0xff]
      %v255 = vld [vmem:[%s246 + $0x10] sm:$0xff]
      %v256 = vld [vmem:[%s246 + $0x18] sm:$0xff]
      %v257 = vld [vmem:[%s246 + $0x20] sm:$0xff]
      %v258 = vld [vmem:[%s246 + $0x28] sm:$0xff]
      %v259 = vld [vmem:[%s246 + $0x30] sm:$0xff]
      %v260 = vld [vmem:[%s246 + $0x38] sm:$0xff]
      %v261 = vld [vmem:[%s246 + $0x40] sm:$0xff]
      %v262 = vld [vmem:[%s246 + $0x48] sm:$0xff]
      %v263 = vld [vmem:[%s246 + $0x50] sm:$0xff]
      %v264 = vld [vmem:[%s246 + $0x58] sm:$0xff]
      %v265 = vld [vmem:[%s246 + $0x60] sm:$0xff]
      %v266 = vld [vmem:[%s246 + $0x68] sm:$0xff]
      %v267 = vld [vmem:[%s246 + $0x70] sm:$0xff]
      %v268 = vld [vmem:[%s246 + $0x78] sm:$0xff]
      %v269 = vld [vmem:[%s246 + $0x80] sm:$0xff]
      %v270 = vld [vmem:[%s246 + $0x88] sm:$0xff]
      %v271 = vld [vmem:[%s246 + $0x90] sm:$0xff]
      %v272 = vld [vmem:[%s246 + $0x98] sm:$0xff]
      %v273 = vld [vmem:[%s246 + $0xa0] sm:$0xff]
      %v274 = vld [vmem:[%s246 + $0xa8] sm:$0xff]
      %v275 = vld [vmem:[%s246 + $0xb0] sm:$0xff]
      %v276 = vld [vmem:[%s246 + $0xb8] sm:$0xff]
      %v277 = vld [vmem:[%s246 + $0xc0] sm:$0xff]
      %v278 = vld [vmem:[%s246 + $0xc8] sm:$0xff]
      %v279 = vld [vmem:[%s246 + $0xd0] sm:$0xff]
      %v280 = vld [vmem:[%s246 + $0xd8] sm:$0xff]
      %v281 = vld [vmem:[%s246 + $0xe0] sm:$0xff]
      %v282 = vld [vmem:[%s246 + $0xe8] sm:$0xff]
      %v283 = vld [vmem:[%s246 + $0xf0] sm:$0xff]
      %v284 = vld [vmem:[%s246 + $0xf8] sm:$0xff]
      %v285 = vld [vmem:[%s246 + $0x100] sm:$0xff]
      %v286 = vld [vmem:[%s246 + $0x108] sm:$0xff]
      %v287 = vld [vmem:[%s246 + $0x110] sm:$0xff]
      %v288 = vld [vmem:[%s246 + $0x118] sm:$0x3f]
      %v289 = vpack.c.bf16 %v254, %v253
      %v290 = vpack.c.bf16 %v256, %v255
      %v291 = vpack.c.bf16 %v258, %v257
      %v292 = vpack.c.bf16 %v260, %v259
      %v293 = vpack.c.bf16 %v262, %v261
      %v294 = vpack.c.bf16 %v264, %v263
      %v295 = vpack.c.bf16 %v266, %v265
      %v296 = vpack.c.bf16 %v268, %v267
      %v297 = vpack.c.bf16 %v270, %v269
      %v298 = vpack.c.bf16 %v272, %v271
      %v299 = vpack.c.bf16 %v274, %v273
      %v300 = vpack.c.bf16 %v276, %v275
      %v301 = vpack.c.bf16 %v278, %v277
      %v302 = vpack.c.bf16 %v280, %v279
      %v303 = vpack.c.bf16 %v282, %v281
      %v304 = vpack.c.bf16 %v284, %v283
      %v305 = vpack.c.bf16 %v286, %v285
      %v306 = vpack.c.bf16 %v288, %v287
      %v307 = vld [vmem:[%s1] sm:$0xf]
      %v308 = vld [vmem:[%s1 + $0x4] sm:$0xf]
      %v309 = vld [vmem:[%s1 + $0x8] sm:$0xf]
      %v310 = vld [vmem:[%s1 + $0xc] sm:$0xf]
      %v311 = vld [vmem:[%s1 + $0x10] sm:$0xf]
      %v312 = vld [vmem:[%s1 + $0x14] sm:$0xf]
      %v313 = vld [vmem:[%s1 + $0x18] sm:$0xf]
      %v314 = vld [vmem:[%s1 + $0x1c] sm:$0xf]
      %v315 = vld [vmem:[%s1 + $0x20] sm:$0xf]
      %v316 = vld [vmem:[%s1 + $0x24] sm:$0xf]
      %v317 = vld [vmem:[%s1 + $0x28] sm:$0xf]
      %v318 = vld [vmem:[%s1 + $0x2c] sm:$0xf]
      %v319 = vld [vmem:[%s1 + $0x30] sm:$0xf]
      %v320 = vld [vmem:[%s1 + $0x34] sm:$0xf]
      %v321 = vld [vmem:[%s1 + $0x38] sm:$0xf]
      %v322 = vld [vmem:[%s1 + $0x3c] sm:$0xf]
      %v323 = vld [vmem:[%s246 + $0x1] sm:$0xff]
      %v324 = vld [vmem:[%s246 + $0x9] sm:$0xff]
      %v325 = vld [vmem:[%s246 + $0x11] sm:$0xff]
      %v326 = vld [vmem:[%s246 + $0x19] sm:$0xff]
      %v327 = vld [vmem:[%s246 + $0x21] sm:$0xff]
      %v328 = vld [vmem:[%s246 + $0x29] sm:$0xff]
      %v329 = vld [vmem:[%s246 + $0x31] sm:$0xff]
      %v330 = vld [vmem:[%s246 + $0x39] sm:$0xff]
      %v331 = vld [vmem:[%s246 + $0x41] sm:$0xff]
      %v332 = vld [vmem:[%s246 + $0x49] sm:$0xff]
      %v333 = vld [vmem:[%s246 + $0x51] sm:$0xff]
      %v334 = vld [vmem:[%s246 + $0x59] sm:$0xff]
      %v335 = vld [vmem:[%s246 + $0x61] sm:$0xff]
      %v336 = vld [vmem:[%s246 + $0x69] sm:$0xff]
      %v337 = vld [vmem:[%s246 + $0x71] sm:$0xff]
      %v338 = vld [vmem:[%s246 + $0x79] sm:$0xff]
      %v339 = vld [vmem:[%s246 + $0x81] sm:$0xff]
      %v340 = vld [vmem:[%s246 + $0x89] sm:$0xff]
      %v341 = vld [vmem:[%s246 + $0x91] sm:$0xff]
      %v342 = vld [vmem:[%s246 + $0x99] sm:$0xff]
      %v343 = vld [vmem:[%s246 + $0xa1] sm:$0xff]
      %v344 = vld [vmem:[%s246 + $0xa9] sm:$0xff]
      %v345 = vld [vmem:[%s246 + $0xb1] sm:$0xff]
      %v346 = vld [vmem:[%s246 + $0xb9] sm:$0xff]
      %v347 = vld [vmem:[%s246 + $0xc1] sm:$0xff]
      %v348 = vld [vmem:[%s246 + $0xc9] sm:$0xff]
      %v349 = vld [vmem:[%s246 + $0xd1] sm:$0xff]
      %v350 = vld [vmem:[%s246 + $0xd9] sm:$0xff]
      %v351 = vld [vmem:[%s246 + $0xe1] sm:$0xff]
      %v352 = vld [vmem:[%s246 + $0xe9] sm:$0xff]
      %v353 = vld [vmem:[%s246 + $0xf1] sm:$0xff]
      %v354 = vld [vmem:[%s246 + $0xf9] sm:$0xff]
      %v355 = vld [vmem:[%s246 + $0x101] sm:$0xff]
      %v356 = vld [vmem:[%s246 + $0x109] sm:$0xff]
      %v357 = vld [vmem:[%s246 + $0x111] sm:$0xff]
      %v358 = vld [vmem:[%s246 + $0x119] sm:$0x3f]
      %v359 = vpack.c.bf16 %v324, %v323
      %v360 = vpack.c.bf16 %v326, %v325
      %v361 = vpack.c.bf16 %v328, %v327
      %v362 = vpack.c.bf16 %v330, %v329
      %v363 = vpack.c.bf16 %v332, %v331
      %v364 = vpack.c.bf16 %v334, %v333
      %v365 = vpack.c.bf16 %v336, %v335
      %v366 = vpack.c.bf16 %v338, %v337
      %v367 = vpack.c.bf16 %v340, %v339
      %v368 = vpack.c.bf16 %v342, %v341
      %v369 = vpack.c.bf16 %v344, %v343
      %v370 = vpack.c.bf16 %v346, %v345
      %v371 = vpack.c.bf16 %v348, %v347
      %v372 = vpack.c.bf16 %v350, %v349
      %v373 = vpack.c.bf16 %v352, %v351
      %v374 = vpack.c.bf16 %v354, %v353
      %v375 = vpack.c.bf16 %v356, %v355
      %v376 = vpack.c.bf16 %v358, %v357
      %s377 = scalar_lea.vmem %s1, 64
      %v378 = vld [vmem:[%s377] sm:$0xf]
      %v379 = vld [vmem:[%s377 + $0x4] sm:$0xf]
      %v380 = vld [vmem:[%s377 + $0x8] sm:$0xf]
      %v381 = vld [vmem:[%s377 + $0xc] sm:$0xf]
      %v382 = vld [vmem:[%s377 + $0x10] sm:$0xf]
      %v383 = vld [vmem:[%s377 + $0x14] sm:$0xf]
      %v384 = vld [vmem:[%s377 + $0x18] sm:$0xf]
      %v385 = vld [vmem:[%s377 + $0x1c] sm:$0xf]
      %v386 = vld [vmem:[%s377 + $0x20] sm:$0xf]
      %v387 = vld [vmem:[%s377 + $0x24] sm:$0xf]
      %v388 = vld [vmem:[%s377 + $0x28] sm:$0xf]
      %v389 = vld [vmem:[%s377 + $0x2c] sm:$0xf]
      %v390 = vld [vmem:[%s377 + $0x30] sm:$0xf]
      %v391 = vld [vmem:[%s377 + $0x34] sm:$0xf]
      %v392 = vld [vmem:[%s377 + $0x38] sm:$0xf]
      %v393 = vld [vmem:[%s377 + $0x3c] sm:$0xf]
      %v410 = vunpack.c.l.b16 %v378
      %v411 = vunpack.c.l.b16 %v379
      %v412 = vunpack.c.l.b16 %v380
      %v413 = vunpack.c.l.b16 %v381
      %v414 = vunpack.c.l.b16 %v382
      %v415 = vunpack.c.l.b16 %v383
      %v416 = vunpack.c.l.b16 %v384
      %v417 = vunpack.c.l.b16 %v385
      %v418 = vunpack.c.l.b16 %v386
      %v419 = vunpack.c.l.b16 %v387
      %v420 = vunpack.c.l.b16 %v388
      %v421 = vunpack.c.l.b16 %v389
      %v422 = vunpack.c.l.b16 %v390
      %v423 = vunpack.c.l.b16 %v391
      %v424 = vunpack.c.l.b16 %v392
      %v425 = vunpack.c.l.b16 %v393
      %v426 = vpack.c.b16 %v411, %v410
      %v427 = vpack.c.b16 %v413, %v412
      %v428 = vpack.c.b16 %v415, %v414
      %v429 = vpack.c.b16 %v417, %v416
      %v430 = vpack.c.b16 %v419, %v418
      %v431 = vpack.c.b16 %v421, %v420
      %v432 = vpack.c.b16 %v423, %v422
      %v433 = vpack.c.b16 %v425, %v424
      %442 = vmatprep.subr.bf16.mxu0 0
      %443 = vmatpush1.bf16.msra.mxu0 %v433
      %444 = vmatprep.subr.bf16.mxu0 0
      %445 = vmatpush1.bf16.msra.mxu0 %v432
      %446 = vmatprep.subr.bf16.mxu0 0
      %447 = vmatpush1.bf16.msra.mxu0 %v431
      %448 = vmatprep.subr.bf16.mxu0 0
      %449 = vmatpush1.bf16.msra.mxu0 %v430
      %450 = vmatprep.subr.bf16.mxu0 0
      %451 = vmatpush1.bf16.msra.mxu0 %v429
      %452 = vmatprep.subr.bf16.mxu0 0
      %453 = vmatpush1.bf16.msra.mxu0 %v428
      %454 = vmatprep.subr.bf16.mxu0 0
      %455 = vmatpush1.bf16.msra.mxu0 %v427
      %456 = vmatprep.subr.bf16.mxu0 0
      %457 = vmatpush1.bf16.msra.mxu0 %v426
      %458 = vmatprep.subr.bf16.mxu0 0
      %459 = vmatpush2.bf16.msra.mxu0 0
      %460 = vmatprep.subr.bf16.mxu0 0
      %461 = vmatpush2.bf16.msra.mxu0 0
      %462 = vmatprep.subr.bf16.mxu0 0
      %463 = vmatpush2.bf16.msra.mxu0 0
      %464 = vmatprep.subr.bf16.mxu0 0
      %465 = vmatpush2.bf16.msra.mxu0 0
      %466 = vmatprep.subr.bf16.mxu0 0
      %467 = vmatpush2.bf16.msra.mxu0 0
      %468 = vmatprep.subr.bf16.mxu0 0
      %469 = vmatpush2.bf16.msra.mxu0 0
      %470 = vmatprep.subr.bf16.mxu0 0
      %471 = vmatpush2.bf16.msra.mxu0 0
      %472 = vmatprep.subr.bf16.mxu0 0
      %473 = vmatpush2.bf16.msra.mxu0 0
      %474 = vmatprep.mubr.bf16.mxu0 0
      %475 = vmatmul.mubr.bf16.gmra.mxu0 %v359
      %v476 = vpop.f32.mrf.mxu0
      %v477 = vadd.f32 0.0, %v476
      %v478 = vpop.f32.mrf.mxu0
      %v479 = vpop.f32.mrf.mxu0
      %v480 = vadd.f32 0.0, %v479
      %v481 = vpop.f32.mrf.mxu0
      %482 = vmatprep.mubr.bf16.mxu0 0
      %483 = vmatmul.mubr.bf16.gmra.mxu0 %v360
      %v484 = vpop.f32.mrf.mxu0
      %v485 = vadd.f32 0.0, %v484
      %v486 = vpop.f32.mrf.mxu0
      %v487 = vpop.f32.mrf.mxu0
      %v488 = vadd.f32 0.0, %v487
      %v489 = vpop.f32.mrf.mxu0
      %490 = vmatprep.mubr.bf16.mxu0 0
      %491 = vmatmul.mubr.bf16.gmra.mxu0 %v361
      %v492 = vpop.f32.mrf.mxu0
      %v493 = vadd.f32 0.0, %v492
      %v494 = vpop.f32.mrf.mxu0
      %v495 = vpop.f32.mrf.mxu0
      %v496 = vadd.f32 0.0, %v495
      %v497 = vpop.f32.mrf.mxu0
      %498 = vmatprep.mubr.bf16.mxu0 0
      %499 = vmatmul.mubr.bf16.gmra.mxu0 %v362
      %v500 = vpop.f32.mrf.mxu0
      %v501 = vadd.f32 0.0, %v500
      %v502 = vpop.f32.mrf.mxu0
      %v503 = vpop.f32.mrf.mxu0
      %v504 = vadd.f32 0.0, %v503
      %v505 = vpop.f32.mrf.mxu0
      %506 = vmatprep.mubr.bf16.mxu0 0
      %507 = vmatmul.mubr.bf16.gmra.mxu0 %v363
      %v508 = vpop.f32.mrf.mxu0
      %v509 = vadd.f32 0.0, %v508
      %v510 = vpop.f32.mrf.mxu0
      %v511 = vpop.f32.mrf.mxu0
      %v512 = vadd.f32 0.0, %v511
      %v513 = vpop.f32.mrf.mxu0
      %514 = vmatprep.mubr.bf16.mxu0 0
      %515 = vmatmul.mubr.bf16.gmra.mxu0 %v364
      %v516 = vpop.f32.mrf.mxu0
      %v517 = vadd.f32 0.0, %v516
      %v518 = vpop.f32.mrf.mxu0
      %v519 = vpop.f32.mrf.mxu0
      %v520 = vadd.f32 0.0, %v519
      %v521 = vpop.f32.mrf.mxu0
      %522 = vmatprep.mubr.bf16.mxu0 0
      %523 = vmatmul.mubr.bf16.gmra.mxu0 %v365
      %v524 = vpop.f32.mrf.mxu0
      %v525 = vadd.f32 0.0, %v524
      %v526 = vpop.f32.mrf.mxu0
      %v527 = vpop.f32.mrf.mxu0
      %v528 = vadd.f32 0.0, %v527
      %v529 = vpop.f32.mrf.mxu0
      %530 = vmatprep.mubr.bf16.mxu0 0
      %531 = vmatmul.mubr.bf16.gmra.mxu0 %v366
      %v532 = vpop.f32.mrf.mxu0
      %v533 = vadd.f32 0.0, %v532
      %v534 = vpop.f32.mrf.mxu0
      %v535 = vpop.f32.mrf.mxu0
      %v536 = vadd.f32 0.0, %v535
      %v537 = vpop.f32.mrf.mxu0
      %538 = vmatprep.mubr.bf16.mxu0 0
      %539 = vmatmul.mubr.bf16.gmra.mxu0 %v367
      %v540 = vpop.f32.mrf.mxu0
      %v541 = vadd.f32 0.0, %v540
      %v542 = vpop.f32.mrf.mxu0
      %v543 = vpop.f32.mrf.mxu0
      %v544 = vadd.f32 0.0, %v543
      %v545 = vpop.f32.mrf.mxu0
      %546 = vmatprep.mubr.bf16.mxu0 0
      %547 = vmatmul.mubr.bf16.gmra.mxu0 %v368
      %v548 = vpop.f32.mrf.mxu0
      %v549 = vadd.f32 0.0, %v548
      %v550 = vpop.f32.mrf.mxu0
      %v551 = vpop.f32.mrf.mxu0
      %v552 = vadd.f32 0.0, %v551
      %v553 = vpop.f32.mrf.mxu0
      %554 = vmatprep.mubr.bf16.mxu0 0
      %555 = vmatmul.mubr.bf16.gmra.mxu0 %v369
      %v556 = vpop.f32.mrf.mxu0
      %v557 = vadd.f32 0.0, %v556
      %v558 = vpop.f32.mrf.mxu0
      %v559 = vpop.f32.mrf.mxu0
      %v560 = vadd.f32 0.0, %v559
      %v561 = vpop.f32.mrf.mxu0
      %562 = vmatprep.mubr.bf16.mxu0 0
      %563 = vmatmul.mubr.bf16.gmra.mxu0 %v370
      %v564 = vpop.f32.mrf.mxu0
      %v565 = vadd.f32 0.0, %v564
      %v566 = vpop.f32.mrf.mxu0
      %v567 = vpop.f32.mrf.mxu0
      %v568 = vadd.f32 0.0, %v567
      %v569 = vpop.f32.mrf.mxu0
      %570 = vmatprep.mubr.bf16.mxu0 0
      %571 = vmatmul.mubr.bf16.gmra.mxu0 %v371
      %v572 = vpop.f32.mrf.mxu0
      %v573 = vadd.f32 0.0, %v572
      %v574 = vpop.f32.mrf.mxu0
      %v575 = vpop.f32.mrf.mxu0
      %v576 = vadd.f32 0.0, %v575
      %v577 = vpop.f32.mrf.mxu0
      %578 = vmatprep.mubr.bf16.mxu0 0
      %579 = vmatmul.mubr.bf16.gmra.mxu0 %v372
      %v580 = vpop.f32.mrf.mxu0
      %v581 = vadd.f32 0.0, %v580
      %v582 = vpop.f32.mrf.mxu0
      %v583 = vpop.f32.mrf.mxu0
      %v584 = vadd.f32 0.0, %v583
      %v585 = vpop.f32.mrf.mxu0
      %586 = vmatprep.mubr.bf16.mxu0 0
      %587 = vmatmul.mubr.bf16.gmra.mxu0 %v373
      %v588 = vpop.f32.mrf.mxu0
      %v589 = vadd.f32 0.0, %v588
      %v590 = vpop.f32.mrf.mxu0
      %v591 = vpop.f32.mrf.mxu0
      %v592 = vadd.f32 0.0, %v591
      %v593 = vpop.f32.mrf.mxu0
      %594 = vmatprep.mubr.bf16.mxu0 0
      %595 = vmatmul.mubr.bf16.gmra.mxu0 %v374
      %v596 = vpop.f32.mrf.mxu0
      %v597 = vadd.f32 0.0, %v596
      %v598 = vpop.f32.mrf.mxu0
      %v599 = vpop.f32.mrf.mxu0
      %v600 = vadd.f32 0.0, %v599
      %v601 = vpop.f32.mrf.mxu0
      %602 = vmatprep.mubr.bf16.mxu0 0
      %603 = vmatmul.mubr.bf16.gmra.mxu0 %v375
      %v604 = vpop.f32.mrf.mxu0
      %v605 = vadd.f32 0.0, %v604
      %v606 = vpop.f32.mrf.mxu0
      %v607 = vpop.f32.mrf.mxu0
      %v608 = vadd.f32 0.0, %v607
      %v609 = vpop.f32.mrf.mxu0
      %610 = vmatprep.mubr.bf16.mxu0 0
      %611 = vmatmul.mubr.bf16.gmra.mxu0 %v376
      %v612 = vpop.f32.mrf.mxu0
      %v613 = vadd.f32 0.0, %v612
      %v614 = vpop.f32.mrf.mxu0
      %v615 = vpop.f32.mrf.mxu0
      %v616 = vadd.f32 0.0, %v615
      %v617 = vpop.f32.mrf.mxu0
      %618 = vdwg.mxu0
      %v635 = vunpack.c.l.b16 %v307
      %v636 = vunpack.c.l.b16 %v308
      %v637 = vunpack.c.l.b16 %v309
      %v638 = vunpack.c.l.b16 %v310
      %v639 = vunpack.c.l.b16 %v311
      %v640 = vunpack.c.l.b16 %v312
      %v641 = vunpack.c.l.b16 %v313
      %v642 = vunpack.c.l.b16 %v314
      %v643 = vunpack.c.l.b16 %v315
      %v644 = vunpack.c.l.b16 %v316
      %v645 = vunpack.c.l.b16 %v317
      %v646 = vunpack.c.l.b16 %v318
      %v647 = vunpack.c.l.b16 %v319
      %v648 = vunpack.c.l.b16 %v320
      %v649 = vunpack.c.l.b16 %v321
      %v650 = vunpack.c.l.b16 %v322
      %v651 = vpack.c.b16 %v636, %v635
      %v652 = vpack.c.b16 %v638, %v637
      %v653 = vpack.c.b16 %v640, %v639
      %v654 = vpack.c.b16 %v642, %v641
      %v655 = vpack.c.b16 %v644, %v643
      %v656 = vpack.c.b16 %v646, %v645
      %v657 = vpack.c.b16 %v648, %v647
      %v658 = vpack.c.b16 %v650, %v649
      %667 = vmatprep.subr.bf16.mxu0 0
      %668 = vmatpush1.bf16.msra.mxu0 %v658
      %669 = vmatprep.subr.bf16.mxu0 0
      %670 = vmatpush1.bf16.msra.mxu0 %v657
      %671 = vmatprep.subr.bf16.mxu0 0
      %672 = vmatpush1.bf16.msra.mxu0 %v656
      %673 = vmatprep.subr.bf16.mxu0 0
      %674 = vmatpush1.bf16.msra.mxu0 %v655
      %675 = vmatprep.subr.bf16.mxu0 0
      %676 = vmatpush1.bf16.msra.mxu0 %v654
      %677 = vmatprep.subr.bf16.mxu0 0
      %678 = vmatpush1.bf16.msra.mxu0 %v653
      %679 = vmatprep.subr.bf16.mxu0 0
      %680 = vmatpush1.bf16.msra.mxu0 %v652
      %681 = vmatprep.subr.bf16.mxu0 0
      %682 = vmatpush1.bf16.msra.mxu0 %v651
      %683 = vmatprep.subr.bf16.mxu0 0
      %684 = vmatpush2.bf16.msra.mxu0 0
      %685 = vmatprep.subr.bf16.mxu0 0
      %686 = vmatpush2.bf16.msra.mxu0 0
      %687 = vmatprep.subr.bf16.mxu0 0
      %688 = vmatpush2.bf16.msra.mxu0 0
      %689 = vmatprep.subr.bf16.mxu0 0
      %690 = vmatpush2.bf16.msra.mxu0 0
      %691 = vmatprep.subr.bf16.mxu0 0
      %692 = vmatpush2.bf16.msra.mxu0 0
      %693 = vmatprep.subr.bf16.mxu0 0
      %694 = vmatpush2.bf16.msra.mxu0 0
      %695 = vmatprep.subr.bf16.mxu0 0
      %696 = vmatpush2.bf16.msra.mxu0 0
      %697 = vmatprep.subr.bf16.mxu0 0
      %698 = vmatpush2.bf16.msra.mxu0 0
      %699 = vmatprep.mubr.bf16.mxu0 0
      %700 = vmatmul.mubr.bf16.gmra.mxu0 %v289
      %v701 = vpop.f32.mrf.mxu0
      %v702 = vadd.f32 %v477, %v701
      %v703 = vpop.f32.mrf.mxu0
      %v704 = vpop.f32.mrf.mxu0
      %v705 = vadd.f32 %v480, %v704
      %v706 = vpop.f32.mrf.mxu0
      %707 = vmatprep.mubr.bf16.mxu0 0
      %708 = vmatmul.mubr.bf16.gmra.mxu0 %v290
      %v709 = vpop.f32.mrf.mxu0
      %v710 = vadd.f32 %v485, %v709
      %v711 = vpop.f32.mrf.mxu0
      %v712 = vpop.f32.mrf.mxu0
      %v713 = vadd.f32 %v488, %v712
      %v714 = vpop.f32.mrf.mxu0
      %715 = vmatprep.mubr.bf16.mxu0 0
      %716 = vmatmul.mubr.bf16.gmra.mxu0 %v291
      %v717 = vpop.f32.mrf.mxu0
      %v718 = vadd.f32 %v493, %v717
      %v719 = vpop.f32.mrf.mxu0
      %v720 = vpop.f32.mrf.mxu0
      %v721 = vadd.f32 %v496, %v720
      %v722 = vpop.f32.mrf.mxu0
      %723 = vmatprep.mubr.bf16.mxu0 0
      %724 = vmatmul.mubr.bf16.gmra.mxu0 %v292
      %v725 = vpop.f32.mrf.mxu0
      %v726 = vadd.f32 %v501, %v725
      %v727 = vpop.f32.mrf.mxu0
      %v728 = vpop.f32.mrf.mxu0
      %v729 = vadd.f32 %v504, %v728
      %v730 = vpop.f32.mrf.mxu0
      %731 = vmatprep.mubr.bf16.mxu0 0
      %732 = vmatmul.mubr.bf16.gmra.mxu0 %v293
      %v733 = vpop.f32.mrf.mxu0
      %v734 = vadd.f32 %v509, %v733
      %v735 = vpop.f32.mrf.mxu0
      %v736 = vpop.f32.mrf.mxu0
      %v737 = vadd.f32 %v512, %v736
      %v738 = vpop.f32.mrf.mxu0
      %739 = vmatprep.mubr.bf16.mxu0 0
      %740 = vmatmul.mubr.bf16.gmra.mxu0 %v294
      %v741 = vpop.f32.mrf.mxu0
      %v742 = vadd.f32 %v517, %v741
      %v743 = vpop.f32.mrf.mxu0
      %v744 = vpop.f32.mrf.mxu0
      %v745 = vadd.f32 %v520, %v744
      %v746 = vpop.f32.mrf.mxu0
      %747 = vmatprep.mubr.bf16.mxu0 0
      %748 = vmatmul.mubr.bf16.gmra.mxu0 %v295
      %v749 = vpop.f32.mrf.mxu0
      %v750 = vadd.f32 %v525, %v749
      %v751 = vpop.f32.mrf.mxu0
      %v752 = vpop.f32.mrf.mxu0
      %v753 = vadd.f32 %v528, %v752
      %v754 = vpop.f32.mrf.mxu0
      %755 = vmatprep.mubr.bf16.mxu0 0
      %756 = vmatmul.mubr.bf16.gmra.mxu0 %v296
      %v757 = vpop.f32.mrf.mxu0
      %v758 = vadd.f32 %v533, %v757
      %v759 = vpop.f32.mrf.mxu0
      %v760 = vpop.f32.mrf.mxu0
      %v761 = vadd.f32 %v536, %v760
      %v762 = vpop.f32.mrf.mxu0
      %763 = vmatprep.mubr.bf16.mxu0 0
      %764 = vmatmul.mubr.bf16.gmra.mxu0 %v297
      %v765 = vpop.f32.mrf.mxu0
      %v766 = vadd.f32 %v541, %v765
      %v767 = vpop.f32.mrf.mxu0
      %v768 = vpop.f32.mrf.mxu0
      %v769 = vadd.f32 %v544, %v768
      %v770 = vpop.f32.mrf.mxu0
      %771 = vmatprep.mubr.bf16.mxu0 0
      %772 = vmatmul.mubr.bf16.gmra.mxu0 %v298
      %v773 = vpop.f32.mrf.mxu0
      %v774 = vadd.f32 %v549, %v773
      %v775 = vpop.f32.mrf.mxu0
      %v776 = vpop.f32.mrf.mxu0
      %v777 = vadd.f32 %v552, %v776
      %v778 = vpop.f32.mrf.mxu0
      %779 = vmatprep.mubr.bf16.mxu0 0
      %780 = vmatmul.mubr.bf16.gmra.mxu0 %v299
      %v781 = vpop.f32.mrf.mxu0
      %v782 = vadd.f32 %v557, %v781
      %v783 = vpop.f32.mrf.mxu0
      %v784 = vpop.f32.mrf.mxu0
      %v785 = vadd.f32 %v560, %v784
      %v786 = vpop.f32.mrf.mxu0
      %787 = vmatprep.mubr.bf16.mxu0 0
      %788 = vmatmul.mubr.bf16.gmra.mxu0 %v300
      %v789 = vpop.f32.mrf.mxu0
      %v790 = vadd.f32 %v565, %v789
      %v791 = vpop.f32.mrf.mxu0
      %v792 = vpop.f32.mrf.mxu0
      %v793 = vadd.f32 %v568, %v792
      %v794 = vpop.f32.mrf.mxu0
      %795 = vmatprep.mubr.bf16.mxu0 0
      %796 = vmatmul.mubr.bf16.gmra.mxu0 %v301
      %v797 = vpop.f32.mrf.mxu0
      %v798 = vadd.f32 %v573, %v797
      %v799 = vpop.f32.mrf.mxu0
      %v800 = vpop.f32.mrf.mxu0
      %v801 = vadd.f32 %v576, %v800
      %v802 = vpop.f32.mrf.mxu0
      %803 = vmatprep.mubr.bf16.mxu0 0
      %804 = vmatmul.mubr.bf16.gmra.mxu0 %v302
      %v805 = vpop.f32.mrf.mxu0
      %v806 = vadd.f32 %v581, %v805
      %v807 = vpop.f32.mrf.mxu0
      %v808 = vpop.f32.mrf.mxu0
      %v809 = vadd.f32 %v584, %v808
      %v810 = vpop.f32.mrf.mxu0
      %811 = vmatprep.mubr.bf16.mxu0 0
      %812 = vmatmul.mubr.bf16.gmra.mxu0 %v303
      %v813 = vpop.f32.mrf.mxu0
      %v814 = vadd.f32 %v589, %v813
      %v815 = vpop.f32.mrf.mxu0
      %v816 = vpop.f32.mrf.mxu0
      %v817 = vadd.f32 %v592, %v816
      %v818 = vpop.f32.mrf.mxu0
      %819 = vmatprep.mubr.bf16.mxu0 0
      %820 = vmatmul.mubr.bf16.gmra.mxu0 %v304
      %v821 = vpop.f32.mrf.mxu0
      %v822 = vadd.f32 %v597, %v821
      %v823 = vpop.f32.mrf.mxu0
      %v824 = vpop.f32.mrf.mxu0
      %v825 = vadd.f32 %v600, %v824
      %v826 = vpop.f32.mrf.mxu0
      %827 = vmatprep.mubr.bf16.mxu0 0
      %828 = vmatmul.mubr.bf16.gmra.mxu0 %v305
      %v829 = vpop.f32.mrf.mxu0
      %v830 = vadd.f32 %v605, %v829
      %v831 = vpop.f32.mrf.mxu0
      %v832 = vpop.f32.mrf.mxu0
      %v833 = vadd.f32 %v608, %v832
      %v834 = vpop.f32.mrf.mxu0
      %835 = vmatprep.mubr.bf16.mxu0 0
      %836 = vmatmul.mubr.bf16.gmra.mxu0 %v306
      %v837 = vpop.f32.mrf.mxu0
      %v838 = vadd.f32 %v613, %v837
      %v839 = vpop.f32.mrf.mxu0
      %v840 = vpop.f32.mrf.mxu0
      %v841 = vadd.f32 %v616, %v840
      %v842 = vpop.f32.mrf.mxu0
      %843 = vdwg.mxu0
      %v844 = vld [vmem:[%s246 + $0x2] sm:$0xff]
      %v845 = vld [vmem:[%s246 + $0xa] sm:$0xff]
      %v846 = vld [vmem:[%s246 + $0x12] sm:$0xff]
      %v847 = vld [vmem:[%s246 + $0x1a] sm:$0xff]
      %v848 = vld [vmem:[%s246 + $0x22] sm:$0xff]
      %v849 = vld [vmem:[%s246 + $0x2a] sm:$0xff]
      %v850 = vld [vmem:[%s246 + $0x32] sm:$0xff]
      %v851 = vld [vmem:[%s246 + $0x3a] sm:$0xff]
      %v852 = vld [vmem:[%s246 + $0x42] sm:$0xff]
      %v853 = vld [vmem:[%s246 + $0x4a] sm:$0xff]
      %v854 = vld [vmem:[%s246 + $0x52] sm:$0xff]
      %v855 = vld [vmem:[%s246 + $0x5a] sm:$0xff]
      %v856 = vld [vmem:[%s246 + $0x62] sm:$0xff]
      %v857 = vld [vmem:[%s246 + $0x6a] sm:$0xff]
      %v858 = vld [vmem:[%s246 + $0x72] sm:$0xff]
      %v859 = vld [vmem:[%s246 + $0x7a] sm:$0xff]
      %v860 = vld [vmem:[%s246 + $0x82] sm:$0xff]
      %v861 = vld [vmem:[%s246 + $0x8a] sm:$0xff]
      %v862 = vld [vmem:[%s246 + $0x92] sm:$0xff]
      %v863 = vld [vmem:[%s246 + $0x9a] sm:$0xff]
      %v864 = vld [vmem:[%s246 + $0xa2] sm:$0xff]
      %v865 = vld [vmem:[%s246 + $0xaa] sm:$0xff]
      %v866 = vld [vmem:[%s246 + $0xb2] sm:$0xff]
      %v867 = vld [vmem:[%s246 + $0xba] sm:$0xff]
      %v868 = vld [vmem:[%s246 + $0xc2] sm:$0xff]
      %v869 = vld [vmem:[%s246 + $0xca] sm:$0xff]
      %v870 = vld [vmem:[%s246 + $0xd2] sm:$0xff]
      %v871 = vld [vmem:[%s246 + $0xda] sm:$0xff]
      %v872 = vld [vmem:[%s246 + $0xe2] sm:$0xff]
      %v873 = vld [vmem:[%s246 + $0xea] sm:$0xff]
      %v874 = vld [vmem:[%s246 + $0xf2] sm:$0xff]
      %v875 = vld [vmem:[%s246 + $0xfa] sm:$0xff]
      %v876 = vld [vmem:[%s246 + $0x102] sm:$0xff]
      %v877 = vld [vmem:[%s246 + $0x10a] sm:$0xff]
      %v878 = vld [vmem:[%s246 + $0x112] sm:$0xff]
      %v879 = vld [vmem:[%s246 + $0x11a] sm:$0x3f]
      %v880 = vpack.c.bf16 %v845, %v844
      %v881 = vpack.c.bf16 %v847, %v846
      %v882 = vpack.c.bf16 %v849, %v848
      %v883 = vpack.c.bf16 %v851, %v850
      %v884 = vpack.c.bf16 %v853, %v852
      %v885 = vpack.c.bf16 %v855, %v854
      %v886 = vpack.c.bf16 %v857, %v856
      %v887 = vpack.c.bf16 %v859, %v858
      %v888 = vpack.c.bf16 %v861, %v860
      %v889 = vpack.c.bf16 %v863, %v862
      %v890 = vpack.c.bf16 %v865, %v864
      %v891 = vpack.c.bf16 %v867, %v866
      %v892 = vpack.c.bf16 %v869, %v868
      %v893 = vpack.c.bf16 %v871, %v870
      %v894 = vpack.c.bf16 %v873, %v872
      %v895 = vpack.c.bf16 %v875, %v874
      %v896 = vpack.c.bf16 %v877, %v876
      %v897 = vpack.c.bf16 %v879, %v878
      %s898 = scalar_lea.vmem %s1, 128
      %v899 = vld [vmem:[%s898] sm:$0xf]
      %v900 = vld [vmem:[%s898 + $0x4] sm:$0xf]
      %v901 = vld [vmem:[%s898 + $0x8] sm:$0xf]
      %v902 = vld [vmem:[%s898 + $0xc] sm:$0xf]
      %v903 = vld [vmem:[%s898 + $0x10] sm:$0xf]
      %v904 = vld [vmem:[%s898 + $0x14] sm:$0xf]
      %v905 = vld [vmem:[%s898 + $0x18] sm:$0xf]
      %v906 = vld [vmem:[%s898 + $0x1c] sm:$0xf]
      %v907 = vld [vmem:[%s898 + $0x20] sm:$0xf]
      %v908 = vld [vmem:[%s898 + $0x24] sm:$0xf]
      %v909 = vld [vmem:[%s898 + $0x28] sm:$0xf]
      %v910 = vld [vmem:[%s898 + $0x2c] sm:$0xf]
      %v911 = vld [vmem:[%s898 + $0x30] sm:$0xf]
      %v912 = vld [vmem:[%s898 + $0x34] sm:$0xf]
      %v913 = vld [vmem:[%s898 + $0x38] sm:$0xf]
      %v914 = vld [vmem:[%s898 + $0x3c] sm:$0xf]
      %v931 = vunpack.c.l.b16 %v899
      %v932 = vunpack.c.l.b16 %v900
      %v933 = vunpack.c.l.b16 %v901
      %v934 = vunpack.c.l.b16 %v902
      %v935 = vunpack.c.l.b16 %v903
      %v936 = vunpack.c.l.b16 %v904
      %v937 = vunpack.c.l.b16 %v905
      %v938 = vunpack.c.l.b16 %v906
      %v939 = vunpack.c.l.b16 %v907
      %v940 = vunpack.c.l.b16 %v908
      %v941 = vunpack.c.l.b16 %v909
      %v942 = vunpack.c.l.b16 %v910
      %v943 = vunpack.c.l.b16 %v911
      %v944 = vunpack.c.l.b16 %v912
      %v945 = vunpack.c.l.b16 %v913
      %v946 = vunpack.c.l.b16 %v914
      %v947 = vpack.c.b16 %v932, %v931
      %v948 = vpack.c.b16 %v934, %v933
      %v949 = vpack.c.b16 %v936, %v935
      %v950 = vpack.c.b16 %v938, %v937
      %v951 = vpack.c.b16 %v940, %v939
      %v952 = vpack.c.b16 %v942, %v941
      %v953 = vpack.c.b16 %v944, %v943
      %v954 = vpack.c.b16 %v946, %v945
      %963 = vmatprep.subr.bf16.mxu0 0
      %964 = vmatpush1.bf16.msra.mxu0 %v954
      %965 = vmatprep.subr.bf16.mxu0 0
      %966 = vmatpush1.bf16.msra.mxu0 %v953
      %967 = vmatprep.subr.bf16.mxu0 0
      %968 = vmatpush1.bf16.msra.mxu0 %v952
      %969 = vmatprep.subr.bf16.mxu0 0
      %970 = vmatpush1.bf16.msra.mxu0 %v951
      %971 = vmatprep.subr.bf16.mxu0 0
      %972 = vmatpush1.bf16.msra.mxu0 %v950
      %973 = vmatprep.subr.bf16.mxu0 0
      %974 = vmatpush1.bf16.msra.mxu0 %v949
      %975 = vmatprep.subr.bf16.mxu0 0
      %976 = vmatpush1.bf16.msra.mxu0 %v948
      %977 = vmatprep.subr.bf16.mxu0 0
      %978 = vmatpush1.bf16.msra.mxu0 %v947
      %979 = vmatprep.subr.bf16.mxu0 0
      %980 = vmatpush2.bf16.msra.mxu0 0
      %981 = vmatprep.subr.bf16.mxu0 0
      %982 = vmatpush2.bf16.msra.mxu0 0
      %983 = vmatprep.subr.bf16.mxu0 0
      %984 = vmatpush2.bf16.msra.mxu0 0
      %985 = vmatprep.subr.bf16.mxu0 0
      %986 = vmatpush2.bf16.msra.mxu0 0
      %987 = vmatprep.subr.bf16.mxu0 0
      %988 = vmatpush2.bf16.msra.mxu0 0
      %989 = vmatprep.subr.bf16.mxu0 0
      %990 = vmatpush2.bf16.msra.mxu0 0
      %991 = vmatprep.subr.bf16.mxu0 0
      %992 = vmatpush2.bf16.msra.mxu0 0
      %993 = vmatprep.subr.bf16.mxu0 0
      %994 = vmatpush2.bf16.msra.mxu0 0
      %995 = vmatprep.mubr.bf16.mxu0 0
      %996 = vmatmul.mubr.bf16.gmra.mxu0 %v880
      %v997 = vpop.f32.mrf.mxu0
      %v998 = vadd.f32 0.0, %v997
      %v999 = vpop.f32.mrf.mxu0
      %v1000 = vpop.f32.mrf.mxu0
      %v1001 = vadd.f32 0.0, %v1000
      %v1002 = vpop.f32.mrf.mxu0
      %1003 = vmatprep.mubr.bf16.mxu0 0
      %1004 = vmatmul.mubr.bf16.gmra.mxu0 %v881
      %v1005 = vpop.f32.mrf.mxu0
      %v1006 = vadd.f32 0.0, %v1005
      %v1007 = vpop.f32.mrf.mxu0
      %v1008 = vpop.f32.mrf.mxu0
      %v1009 = vadd.f32 0.0, %v1008
      %v1010 = vpop.f32.mrf.mxu0
      %1011 = vmatprep.mubr.bf16.mxu0 0
      %1012 = vmatmul.mubr.bf16.gmra.mxu0 %v882
      %v1013 = vpop.f32.mrf.mxu0
      %v1014 = vadd.f32 0.0, %v1013
      %v1015 = vpop.f32.mrf.mxu0
      %v1016 = vpop.f32.mrf.mxu0
      %v1017 = vadd.f32 0.0, %v1016
      %v1018 = vpop.f32.mrf.mxu0
      %1019 = vmatprep.mubr.bf16.mxu0 0
      %1020 = vmatmul.mubr.bf16.gmra.mxu0 %v883
      %v1021 = vpop.f32.mrf.mxu0
      %v1022 = vadd.f32 0.0, %v1021
      %v1023 = vpop.f32.mrf.mxu0
      %v1024 = vpop.f32.mrf.mxu0
      %v1025 = vadd.f32 0.0, %v1024
      %v1026 = vpop.f32.mrf.mxu0
      %1027 = vmatprep.mubr.bf16.mxu0 0
      %1028 = vmatmul.mubr.bf16.gmra.mxu0 %v884
      %v1029 = vpop.f32.mrf.mxu0
      %v1030 = vadd.f32 0.0, %v1029
      %v1031 = vpop.f32.mrf.mxu0
      %v1032 = vpop.f32.mrf.mxu0
      %v1033 = vadd.f32 0.0, %v1032
      %v1034 = vpop.f32.mrf.mxu0
      %1035 = vmatprep.mubr.bf16.mxu0 0
      %1036 = vmatmul.mubr.bf16.gmra.mxu0 %v885
      %v1037 = vpop.f32.mrf.mxu0
      %v1038 = vadd.f32 0.0, %v1037
      %v1039 = vpop.f32.mrf.mxu0
      %v1040 = vpop.f32.mrf.mxu0
      %v1041 = vadd.f32 0.0, %v1040
      %v1042 = vpop.f32.mrf.mxu0
      %1043 = vmatprep.mubr.bf16.mxu0 0
      %1044 = vmatmul.mubr.bf16.gmra.mxu0 %v886
      %v1045 = vpop.f32.mrf.mxu0
      %v1046 = vadd.f32 0.0, %v1045
      %v1047 = vpop.f32.mrf.mxu0
      %v1048 = vpop.f32.mrf.mxu0
      %v1049 = vadd.f32 0.0, %v1048
      %v1050 = vpop.f32.mrf.mxu0
      %1051 = vmatprep.mubr.bf16.mxu0 0
      %1052 = vmatmul.mubr.bf16.gmra.mxu0 %v887
      %v1053 = vpop.f32.mrf.mxu0
      %v1054 = vadd.f32 0.0, %v1053
      %v1055 = vpop.f32.mrf.mxu0
      %v1056 = vpop.f32.mrf.mxu0
      %v1057 = vadd.f32 0.0, %v1056
      %v1058 = vpop.f32.mrf.mxu0
      %1059 = vmatprep.mubr.bf16.mxu0 0
      %1060 = vmatmul.mubr.bf16.gmra.mxu0 %v888
      %v1061 = vpop.f32.mrf.mxu0
      %v1062 = vadd.f32 0.0, %v1061
      %v1063 = vpop.f32.mrf.mxu0
      %v1064 = vpop.f32.mrf.mxu0
      %v1065 = vadd.f32 0.0, %v1064
      %v1066 = vpop.f32.mrf.mxu0
      %1067 = vmatprep.mubr.bf16.mxu0 0
      %1068 = vmatmul.mubr.bf16.gmra.mxu0 %v889
      %v1069 = vpop.f32.mrf.mxu0
      %v1070 = vadd.f32 0.0, %v1069
      %v1071 = vpop.f32.mrf.mxu0
      %v1072 = vpop.f32.mrf.mxu0
      %v1073 = vadd.f32 0.0, %v1072
      %v1074 = vpop.f32.mrf.mxu0
      %1075 = vmatprep.mubr.bf16.mxu0 0
      %1076 = vmatmul.mubr.bf16.gmra.mxu0 %v890
      %v1077 = vpop.f32.mrf.mxu0
      %v1078 = vadd.f32 0.0, %v1077
      %v1079 = vpop.f32.mrf.mxu0
      %v1080 = vpop.f32.mrf.mxu0
      %v1081 = vadd.f32 0.0, %v1080
      %v1082 = vpop.f32.mrf.mxu0
      %1083 = vmatprep.mubr.bf16.mxu0 0
      %1084 = vmatmul.mubr.bf16.gmra.mxu0 %v891
      %v1085 = vpop.f32.mrf.mxu0
      %v1086 = vadd.f32 0.0, %v1085
      %v1087 = vpop.f32.mrf.mxu0
      %v1088 = vpop.f32.mrf.mxu0
      %v1089 = vadd.f32 0.0, %v1088
      %v1090 = vpop.f32.mrf.mxu0
      %1091 = vmatprep.mubr.bf16.mxu0 0
      %1092 = vmatmul.mubr.bf16.gmra.mxu0 %v892
      %v1093 = vpop.f32.mrf.mxu0
      %v1094 = vadd.f32 0.0, %v1093
      %v1095 = vpop.f32.mrf.mxu0
      %v1096 = vpop.f32.mrf.mxu0
      %v1097 = vadd.f32 0.0, %v1096
      %v1098 = vpop.f32.mrf.mxu0
      %1099 = vmatprep.mubr.bf16.mxu0 0
      %1100 = vmatmul.mubr.bf16.gmra.mxu0 %v893
      %v1101 = vpop.f32.mrf.mxu0
      %v1102 = vadd.f32 0.0, %v1101
      %v1103 = vpop.f32.mrf.mxu0
      %v1104 = vpop.f32.mrf.mxu0
      %v1105 = vadd.f32 0.0, %v1104
      %v1106 = vpop.f32.mrf.mxu0
      %1107 = vmatprep.mubr.bf16.mxu0 0
      %1108 = vmatmul.mubr.bf16.gmra.mxu0 %v894
      %v1109 = vpop.f32.mrf.mxu0
      %v1110 = vadd.f32 0.0, %v1109
      %v1111 = vpop.f32.mrf.mxu0
      %v1112 = vpop.f32.mrf.mxu0
      %v1113 = vadd.f32 0.0, %v1112
      %v1114 = vpop.f32.mrf.mxu0
      %1115 = vmatprep.mubr.bf16.mxu0 0
      %1116 = vmatmul.mubr.bf16.gmra.mxu0 %v895
      %v1117 = vpop.f32.mrf.mxu0
      %v1118 = vadd.f32 0.0, %v1117
      %v1119 = vpop.f32.mrf.mxu0
      %v1120 = vpop.f32.mrf.mxu0
      %v1121 = vadd.f32 0.0, %v1120
      %v1122 = vpop.f32.mrf.mxu0
      %1123 = vmatprep.mubr.bf16.mxu0 0
      %1124 = vmatmul.mubr.bf16.gmra.mxu0 %v896
      %v1125 = vpop.f32.mrf.mxu0
      %v1126 = vadd.f32 0.0, %v1125
      %v1127 = vpop.f32.mrf.mxu0
      %v1128 = vpop.f32.mrf.mxu0
      %v1129 = vadd.f32 0.0, %v1128
      %v1130 = vpop.f32.mrf.mxu0
      %1131 = vmatprep.mubr.bf16.mxu0 0
      %1132 = vmatmul.mubr.bf16.gmra.mxu0 %v897
      %v1133 = vpop.f32.mrf.mxu0
      %v1134 = vadd.f32 0.0, %v1133
      %v1135 = vpop.f32.mrf.mxu0
      %v1136 = vpop.f32.mrf.mxu0
      %v1137 = vadd.f32 0.0, %v1136
      %v1138 = vpop.f32.mrf.mxu0
      %1139 = vdwg.mxu0
      %v1140 = vadd.f32 %v702, %v998
      %v1141 = vadd.f32 %v705, %v1001
      %v1142 = vadd.f32 %v710, %v1006
      %v1143 = vadd.f32 %v713, %v1009
      %v1144 = vadd.f32 %v718, %v1014
      %v1145 = vadd.f32 %v721, %v1017
      %v1146 = vadd.f32 %v726, %v1022
      %v1147 = vadd.f32 %v729, %v1025
      %v1148 = vadd.f32 %v734, %v1030
      %v1149 = vadd.f32 %v737, %v1033
      %v1150 = vadd.f32 %v742, %v1038
      %v1151 = vadd.f32 %v745, %v1041
      %v1152 = vadd.f32 %v750, %v1046
      %v1153 = vadd.f32 %v753, %v1049
      %v1154 = vadd.f32 %v758, %v1054
      %v1155 = vadd.f32 %v761, %v1057
      %v1156 = vadd.f32 %v766, %v1062
      %v1157 = vadd.f32 %v769, %v1065
      %v1158 = vadd.f32 %v774, %v1070
      %v1159 = vadd.f32 %v777, %v1073
      %v1160 = vadd.f32 %v782, %v1078
      %v1161 = vadd.f32 %v785, %v1081
      %v1162 = vadd.f32 %v790, %v1086
      %v1163 = vadd.f32 %v793, %v1089
      %v1164 = vadd.f32 %v798, %v1094
      %v1165 = vadd.f32 %v801, %v1097
      %v1166 = vadd.f32 %v806, %v1102
      %v1167 = vadd.f32 %v809, %v1105
      %v1168 = vadd.f32 %v814, %v1110
      %v1169 = vadd.f32 %v817, %v1113
      %v1170 = vadd.f32 %v822, %v1118
      %v1171 = vadd.f32 %v825, %v1121
      %v1172 = vadd.f32 %v830, %v1126
      %v1173 = vadd.f32 %v833, %v1129
      %v1174 = vadd.f32 %v838, %v1134
      %v1175 = vadd.f32 %v841, %v1137
      %v1176 = vld [vmem:[%s246 + $0x12] sm:$0xff]
      %v1177 = vld [vmem:[%s246 + $0x1a] sm:$0xff]
      %v1178 = vld [vmem:[%s246 + $0x22] sm:$0xff]
      %v1179 = vld [vmem:[%s246 + $0x2a] sm:$0xff]
      %v1180 = vld [vmem:[%s246 + $0x32] sm:$0xff]
      %v1181 = vld [vmem:[%s246 + $0x3a] sm:$0xff]
      %v1182 = vld [vmem:[%s246 + $0x42] sm:$0xff]
      %v1183 = vld [vmem:[%s246 + $0x4a] sm:$0xff]
      %v1184 = vld [vmem:[%s246 + $0x52] sm:$0xff]
      %v1185 = vld [vmem:[%s246 + $0x5a] sm:$0xff]
      %v1186 = vld [vmem:[%s246 + $0x62] sm:$0xff]
      %v1187 = vld [vmem:[%s246 + $0x6a] sm:$0xff]
      %v1188 = vld [vmem:[%s246 + $0x72] sm:$0xff]
      %v1189 = vld [vmem:[%s246 + $0x7a] sm:$0xff]
      %v1190 = vld [vmem:[%s246 + $0x82] sm:$0xff]
      %v1191 = vld [vmem:[%s246 + $0x8a] sm:$0xff]
      %v1192 = vld [vmem:[%s246 + $0x92] sm:$0xff]
      %v1193 = vld [vmem:[%s246 + $0x9a] sm:$0xff]
      %v1194 = vld [vmem:[%s246 + $0xa2] sm:$0xff]
      %v1195 = vld [vmem:[%s246 + $0xaa] sm:$0xff]
      %v1196 = vld [vmem:[%s246 + $0xb2] sm:$0xff]
      %v1197 = vld [vmem:[%s246 + $0xba] sm:$0xff]
      %v1198 = vld [vmem:[%s246 + $0xc2] sm:$0xff]
      %v1199 = vld [vmem:[%s246 + $0xca] sm:$0xff]
      %v1200 = vld [vmem:[%s246 + $0xd2] sm:$0xff]
      %v1201 = vld [vmem:[%s246 + $0xda] sm:$0xff]
      %v1202 = vld [vmem:[%s246 + $0xe2] sm:$0xff]
      %v1203 = vld [vmem:[%s246 + $0xea] sm:$0xff]
      %v1204 = vld [vmem:[%s246 + $0xf2] sm:$0xff]
      %v1205 = vld [vmem:[%s246 + $0xfa] sm:$0xff]
      %v1206 = vld [vmem:[%s246 + $0x102] sm:$0xff]
      %v1207 = vld [vmem:[%s246 + $0x10a] sm:$0xff]
      %v1208 = vld [vmem:[%s246 + $0x112] sm:$0xff]
      %v1209 = vld [vmem:[%s246 + $0x11a] sm:$0xff]
      %v1210 = vld [vmem:[%s246 + $0x122] sm:$0xff]
      %v1211 = vld [vmem:[%s246 + $0x12a] sm:$0x3f]
      %v1212 = vpack.c.bf16 %v1177, %v1176
      %v1213 = vpack.c.bf16 %v1179, %v1178
      %v1214 = vpack.c.bf16 %v1181, %v1180
      %v1215 = vpack.c.bf16 %v1183, %v1182
      %v1216 = vpack.c.bf16 %v1185, %v1184
      %v1217 = vpack.c.bf16 %v1187, %v1186
      %v1218 = vpack.c.bf16 %v1189, %v1188
      %v1219 = vpack.c.bf16 %v1191, %v1190
      %v1220 = vpack.c.bf16 %v1193, %v1192
      %v1221 = vpack.c.bf16 %v1195, %v1194
      %v1222 = vpack.c.bf16 %v1197, %v1196
      %v1223 = vpack.c.bf16 %v1199, %v1198
      %v1224 = vpack.c.bf16 %v1201, %v1200
      %v1225 = vpack.c.bf16 %v1203, %v1202
      %v1226 = vpack.c.bf16 %v1205, %v1204
      %v1227 = vpack.c.bf16 %v1207, %v1206
      %v1228 = vpack.c.bf16 %v1209, %v1208
      %v1229 = vpack.c.bf16 %v1211, %v1210
      %s1230 = scalar_lea.vmem %s1, 192
      %v1231 = vld [vmem:[%s1230] sm:$0xf]
      %v1232 = vld [vmem:[%s1230 + $0x4] sm:$0xf]
      %v1233 = vld [vmem:[%s1230 + $0x8] sm:$0xf]
      %v1234 = vld [vmem:[%s1230 + $0xc] sm:$0xf]
      %v1235 = vld [vmem:[%s1230 + $0x10] sm:$0xf]
      %v1236 = vld [vmem:[%s1230 + $0x14] sm:$0xf]
      %v1237 = vld [vmem:[%s1230 + $0x18] sm:$0xf]
      %v1238 = vld [vmem:[%s1230 + $0x1c] sm:$0xf]
      %v1239 = vld [vmem:[%s1230 + $0x20] sm:$0xf]
      %v1240 = vld [vmem:[%s1230 + $0x24] sm:$0xf]
      %v1241 = vld [vmem:[%s1230 + $0x28] sm:$0xf]
      %v1242 = vld [vmem:[%s1230 + $0x2c] sm:$0xf]
      %v1243 = vld [vmem:[%s1230 + $0x30] sm:$0xf]
      %v1244 = vld [vmem:[%s1230 + $0x34] sm:$0xf]
      %v1245 = vld [vmem:[%s1230 + $0x38] sm:$0xf]
      %v1246 = vld [vmem:[%s1230 + $0x3c] sm:$0xf]
      %v1263 = vunpack.c.l.b16 %v1231
      %v1264 = vunpack.c.l.b16 %v1232
      %v1265 = vunpack.c.l.b16 %v1233
      %v1266 = vunpack.c.l.b16 %v1234
      %v1267 = vunpack.c.l.b16 %v1235
      %v1268 = vunpack.c.l.b16 %v1236
      %v1269 = vunpack.c.l.b16 %v1237
      %v1270 = vunpack.c.l.b16 %v1238
      %v1271 = vunpack.c.l.b16 %v1239
      %v1272 = vunpack.c.l.b16 %v1240
      %v1273 = vunpack.c.l.b16 %v1241
      %v1274 = vunpack.c.l.b16 %v1242
      %v1275 = vunpack.c.l.b16 %v1243
      %v1276 = vunpack.c.l.b16 %v1244
      %v1277 = vunpack.c.l.b16 %v1245
      %v1278 = vunpack.c.l.b16 %v1246
      %v1279 = vpack.c.b16 %v1264, %v1263
      %v1280 = vpack.c.b16 %v1266, %v1265
      %v1281 = vpack.c.b16 %v1268, %v1267
      %v1282 = vpack.c.b16 %v1270, %v1269
      %v1283 = vpack.c.b16 %v1272, %v1271
      %v1284 = vpack.c.b16 %v1274, %v1273
      %v1285 = vpack.c.b16 %v1276, %v1275
      %v1286 = vpack.c.b16 %v1278, %v1277
      %1295 = vmatprep.subr.bf16.mxu0 0
      %1296 = vmatpush1.bf16.msra.mxu0 %v1286
      %1297 = vmatprep.subr.bf16.mxu0 0
      %1298 = vmatpush1.bf16.msra.mxu0 %v1285
      %1299 = vmatprep.subr.bf16.mxu0 0
      %1300 = vmatpush1.bf16.msra.mxu0 %v1284
      %1301 = vmatprep.subr.bf16.mxu0 0
      %1302 = vmatpush1.bf16.msra.mxu0 %v1283
      %1303 = vmatprep.subr.bf16.mxu0 0
      %1304 = vmatpush1.bf16.msra.mxu0 %v1282
      %1305 = vmatprep.subr.bf16.mxu0 0
      %1306 = vmatpush1.bf16.msra.mxu0 %v1281
      %1307 = vmatprep.subr.bf16.mxu0 0
      %1308 = vmatpush1.bf16.msra.mxu0 %v1280
      %1309 = vmatprep.subr.bf16.mxu0 0
      %1310 = vmatpush1.bf16.msra.mxu0 %v1279
      %1311 = vmatprep.subr.bf16.mxu0 0
      %1312 = vmatpush2.bf16.msra.mxu0 0
      %1313 = vmatprep.subr.bf16.mxu0 0
      %1314 = vmatpush2.bf16.msra.mxu0 0
      %1315 = vmatprep.subr.bf16.mxu0 0
      %1316 = vmatpush2.bf16.msra.mxu0 0
      %1317 = vmatprep.subr.bf16.mxu0 0
      %1318 = vmatpush2.bf16.msra.mxu0 0
      %1319 = vmatprep.subr.bf16.mxu0 0
      %1320 = vmatpush2.bf16.msra.mxu0 0
      %1321 = vmatprep.subr.bf16.mxu0 0
      %1322 = vmatpush2.bf16.msra.mxu0 0
      %1323 = vmatprep.subr.bf16.mxu0 0
      %1324 = vmatpush2.bf16.msra.mxu0 0
      %1325 = vmatprep.subr.bf16.mxu0 0
      %1326 = vmatpush2.bf16.msra.mxu0 0
      %1327 = vmatprep.mubr.bf16.mxu0 0
      %1328 = vmatmul.mubr.bf16.gmra.mxu0 %v1212
      %v1329 = vpop.f32.mrf.mxu0
      %v1330 = vadd.f32 0.0, %v1329
      %v1331 = vpop.f32.mrf.mxu0
      %v1332 = vpop.f32.mrf.mxu0
      %v1333 = vadd.f32 0.0, %v1332
      %v1334 = vpop.f32.mrf.mxu0
      %1335 = vmatprep.mubr.bf16.mxu0 0
      %1336 = vmatmul.mubr.bf16.gmra.mxu0 %v1213
      %v1337 = vpop.f32.mrf.mxu0
      %v1338 = vadd.f32 0.0, %v1337
      %v1339 = vpop.f32.mrf.mxu0
      %v1340 = vpop.f32.mrf.mxu0
      %v1341 = vadd.f32 0.0, %v1340
      %v1342 = vpop.f32.mrf.mxu0
      %1343 = vmatprep.mubr.bf16.mxu0 0
      %1344 = vmatmul.mubr.bf16.gmra.mxu0 %v1214
      %v1345 = vpop.f32.mrf.mxu0
      %v1346 = vadd.f32 0.0, %v1345
      %v1347 = vpop.f32.mrf.mxu0
      %v1348 = vpop.f32.mrf.mxu0
      %v1349 = vadd.f32 0.0, %v1348
      %v1350 = vpop.f32.mrf.mxu0
      %1351 = vmatprep.mubr.bf16.mxu0 0
      %1352 = vmatmul.mubr.bf16.gmra.mxu0 %v1215
      %v1353 = vpop.f32.mrf.mxu0
      %v1354 = vadd.f32 0.0, %v1353
      %v1355 = vpop.f32.mrf.mxu0
      %v1356 = vpop.f32.mrf.mxu0
      %v1357 = vadd.f32 0.0, %v1356
      %v1358 = vpop.f32.mrf.mxu0
      %1359 = vmatprep.mubr.bf16.mxu0 0
      %1360 = vmatmul.mubr.bf16.gmra.mxu0 %v1216
      %v1361 = vpop.f32.mrf.mxu0
      %v1362 = vadd.f32 0.0, %v1361
      %v1363 = vpop.f32.mrf.mxu0
      %v1364 = vpop.f32.mrf.mxu0
      %v1365 = vadd.f32 0.0, %v1364
      %v1366 = vpop.f32.mrf.mxu0
      %1367 = vmatprep.mubr.bf16.mxu0 0
      %1368 = vmatmul.mubr.bf16.gmra.mxu0 %v1217
      %v1369 = vpop.f32.mrf.mxu0
      %v1370 = vadd.f32 0.0, %v1369
      %v1371 = vpop.f32.mrf.mxu0
      %v1372 = vpop.f32.mrf.mxu0
      %v1373 = vadd.f32 0.0, %v1372
      %v1374 = vpop.f32.mrf.mxu0
      %1375 = vmatprep.mubr.bf16.mxu0 0
      %1376 = vmatmul.mubr.bf16.gmra.mxu0 %v1218
      %v1377 = vpop.f32.mrf.mxu0
      %v1378 = vadd.f32 0.0, %v1377
      %v1379 = vpop.f32.mrf.mxu0
      %v1380 = vpop.f32.mrf.mxu0
      %v1381 = vadd.f32 0.0, %v1380
      %v1382 = vpop.f32.mrf.mxu0
      %1383 = vmatprep.mubr.bf16.mxu0 0
      %1384 = vmatmul.mubr.bf16.gmra.mxu0 %v1219
      %v1385 = vpop.f32.mrf.mxu0
      %v1386 = vadd.f32 0.0, %v1385
      %v1387 = vpop.f32.mrf.mxu0
      %v1388 = vpop.f32.mrf.mxu0
      %v1389 = vadd.f32 0.0, %v1388
      %v1390 = vpop.f32.mrf.mxu0
      %1391 = vmatprep.mubr.bf16.mxu0 0
      %1392 = vmatmul.mubr.bf16.gmra.mxu0 %v1220
      %v1393 = vpop.f32.mrf.mxu0
      %v1394 = vadd.f32 0.0, %v1393
      %v1395 = vpop.f32.mrf.mxu0
      %v1396 = vpop.f32.mrf.mxu0
      %v1397 = vadd.f32 0.0, %v1396
      %v1398 = vpop.f32.mrf.mxu0
      %1399 = vmatprep.mubr.bf16.mxu0 0
      %1400 = vmatmul.mubr.bf16.gmra.mxu0 %v1221
      %v1401 = vpop.f32.mrf.mxu0
      %v1402 = vadd.f32 0.0, %v1401
      %v1403 = vpop.f32.mrf.mxu0
      %v1404 = vpop.f32.mrf.mxu0
      %v1405 = vadd.f32 0.0, %v1404
      %v1406 = vpop.f32.mrf.mxu0
      %1407 = vmatprep.mubr.bf16.mxu0 0
      %1408 = vmatmul.mubr.bf16.gmra.mxu0 %v1222
      %v1409 = vpop.f32.mrf.mxu0
      %v1410 = vadd.f32 0.0, %v1409
      %v1411 = vpop.f32.mrf.mxu0
      %v1412 = vpop.f32.mrf.mxu0
      %v1413 = vadd.f32 0.0, %v1412
      %v1414 = vpop.f32.mrf.mxu0
      %1415 = vmatprep.mubr.bf16.mxu0 0
      %1416 = vmatmul.mubr.bf16.gmra.mxu0 %v1223
      %v1417 = vpop.f32.mrf.mxu0
      %v1418 = vadd.f32 0.0, %v1417
      %v1419 = vpop.f32.mrf.mxu0
      %v1420 = vpop.f32.mrf.mxu0
      %v1421 = vadd.f32 0.0, %v1420
      %v1422 = vpop.f32.mrf.mxu0
      %1423 = vmatprep.mubr.bf16.mxu0 0
      %1424 = vmatmul.mubr.bf16.gmra.mxu0 %v1224
      %v1425 = vpop.f32.mrf.mxu0
      %v1426 = vadd.f32 0.0, %v1425
      %v1427 = vpop.f32.mrf.mxu0
      %v1428 = vpop.f32.mrf.mxu0
      %v1429 = vadd.f32 0.0, %v1428
      %v1430 = vpop.f32.mrf.mxu0
      %1431 = vmatprep.mubr.bf16.mxu0 0
      %1432 = vmatmul.mubr.bf16.gmra.mxu0 %v1225
      %v1433 = vpop.f32.mrf.mxu0
      %v1434 = vadd.f32 0.0, %v1433
      %v1435 = vpop.f32.mrf.mxu0
      %v1436 = vpop.f32.mrf.mxu0
      %v1437 = vadd.f32 0.0, %v1436
      %v1438 = vpop.f32.mrf.mxu0
      %1439 = vmatprep.mubr.bf16.mxu0 0
      %1440 = vmatmul.mubr.bf16.gmra.mxu0 %v1226
      %v1441 = vpop.f32.mrf.mxu0
      %v1442 = vadd.f32 0.0, %v1441
      %v1443 = vpop.f32.mrf.mxu0
      %v1444 = vpop.f32.mrf.mxu0
      %v1445 = vadd.f32 0.0, %v1444
      %v1446 = vpop.f32.mrf.mxu0
      %1447 = vmatprep.mubr.bf16.mxu0 0
      %1448 = vmatmul.mubr.bf16.gmra.mxu0 %v1227
      %v1449 = vpop.f32.mrf.mxu0
      %v1450 = vadd.f32 0.0, %v1449
      %v1451 = vpop.f32.mrf.mxu0
      %v1452 = vpop.f32.mrf.mxu0
      %v1453 = vadd.f32 0.0, %v1452
      %v1454 = vpop.f32.mrf.mxu0
      %1455 = vmatprep.mubr.bf16.mxu0 0
      %1456 = vmatmul.mubr.bf16.gmra.mxu0 %v1228
      %v1457 = vpop.f32.mrf.mxu0
      %v1458 = vadd.f32 0.0, %v1457
      %v1459 = vpop.f32.mrf.mxu0
      %v1460 = vpop.f32.mrf.mxu0
      %v1461 = vadd.f32 0.0, %v1460
      %v1462 = vpop.f32.mrf.mxu0
      %1463 = vmatprep.mubr.bf16.mxu0 0
      %1464 = vmatmul.mubr.bf16.gmra.mxu0 %v1229
      %v1465 = vpop.f32.mrf.mxu0
      %v1466 = vadd.f32 0.0, %v1465
      %v1467 = vpop.f32.mrf.mxu0
      %v1468 = vpop.f32.mrf.mxu0
      %v1469 = vadd.f32 0.0, %v1468
      %v1470 = vpop.f32.mrf.mxu0
      %1471 = vdwg.mxu0
      %v1472 = vadd.f32 %v1140, %v1330
      %v1473 = vadd.f32 %v1141, %v1333
      %v1474 = vadd.f32 %v1142, %v1338
      %v1475 = vadd.f32 %v1143, %v1341
      %v1476 = vadd.f32 %v1144, %v1346
      %v1477 = vadd.f32 %v1145, %v1349
      %v1478 = vadd.f32 %v1146, %v1354
      %v1479 = vadd.f32 %v1147, %v1357
      %v1480 = vadd.f32 %v1148, %v1362
      %v1481 = vadd.f32 %v1149, %v1365
      %v1482 = vadd.f32 %v1150, %v1370
      %v1483 = vadd.f32 %v1151, %v1373
      %v1484 = vadd.f32 %v1152, %v1378
      %v1485 = vadd.f32 %v1153, %v1381
      %v1486 = vadd.f32 %v1154, %v1386
      %v1487 = vadd.f32 %v1155, %v1389
      %v1488 = vadd.f32 %v1156, %v1394
      %v1489 = vadd.f32 %v1157, %v1397
      %v1490 = vadd.f32 %v1158, %v1402
      %v1491 = vadd.f32 %v1159, %v1405
      %v1492 = vadd.f32 %v1160, %v1410
      %v1493 = vadd.f32 %v1161, %v1413
      %v1494 = vadd.f32 %v1162, %v1418
      %v1495 = vadd.f32 %v1163, %v1421
      %v1496 = vadd.f32 %v1164, %v1426
      %v1497 = vadd.f32 %v1165, %v1429
      %v1498 = vadd.f32 %v1166, %v1434
      %v1499 = vadd.f32 %v1167, %v1437
      %v1500 = vadd.f32 %v1168, %v1442
      %v1501 = vadd.f32 %v1169, %v1445
      %v1502 = vadd.f32 %v1170, %v1450
      %v1503 = vadd.f32 %v1171, %v1453
      %v1504 = vadd.f32 %v1172, %v1458
      %v1505 = vadd.f32 %v1173, %v1461
      %v1506 = vadd.f32 %v1174, %v1466
      %v1507 = vadd.f32 %v1175, %v1469
      %v1508 = vld [vmem:[%s246 + $0x13] sm:$0xff]
      %v1509 = vld [vmem:[%s246 + $0x1b] sm:$0xff]
      %v1510 = vld [vmem:[%s246 + $0x23] sm:$0xff]
      %v1511 = vld [vmem:[%s246 + $0x2b] sm:$0xff]
      %v1512 = vld [vmem:[%s246 + $0x33] sm:$0xff]
      %v1513 = vld [vmem:[%s246 + $0x3b] sm:$0xff]
      %v1514 = vld [vmem:[%s246 + $0x43] sm:$0xff]
      %v1515 = vld [vmem:[%s246 + $0x4b] sm:$0xff]
      %v1516 = vld [vmem:[%s246 + $0x53] sm:$0xff]
      %v1517 = vld [vmem:[%s246 + $0x5b] sm:$0xff]
      %v1518 = vld [vmem:[%s246 + $0x63] sm:$0xff]
      %v1519 = vld [vmem:[%s246 + $0x6b] sm:$0xff]
      %v1520 = vld [vmem:[%s246 + $0x73] sm:$0xff]
      %v1521 = vld [vmem:[%s246 + $0x7b] sm:$0xff]
      %v1522 = vld [vmem:[%s246 + $0x83] sm:$0xff]
      %v1523 = vld [vmem:[%s246 + $0x8b] sm:$0xff]
      %v1524 = vld [vmem:[%s246 + $0x93] sm:$0xff]
      %v1525 = vld [vmem:[%s246 + $0x9b] sm:$0xff]
      %v1526 = vld [vmem:[%s246 + $0xa3] sm:$0xff]
      %v1527 = vld [vmem:[%s246 + $0xab] sm:$0xff]
      %v1528 = vld [vmem:[%s246 + $0xb3] sm:$0xff]
      %v1529 = vld [vmem:[%s246 + $0xbb] sm:$0xff]
      %v1530 = vld [vmem:[%s246 + $0xc3] sm:$0xff]
      %v1531 = vld [vmem:[%s246 + $0xcb] sm:$0xff]
      %v1532 = vld [vmem:[%s246 + $0xd3] sm:$0xff]
      %v1533 = vld [vmem:[%s246 + $0xdb] sm:$0xff]
      %v1534 = vld [vmem:[%s246 + $0xe3] sm:$0xff]
      %v1535 = vld [vmem:[%s246 + $0xeb] sm:$0xff]
      %v1536 = vld [vmem:[%s246 + $0xf3] sm:$0xff]
      %v1537 = vld [vmem:[%s246 + $0xfb] sm:$0xff]
      %v1538 = vld [vmem:[%s246 + $0x103] sm:$0xff]
      %v1539 = vld [vmem:[%s246 + $0x10b] sm:$0xff]
      %v1540 = vld [vmem:[%s246 + $0x113] sm:$0xff]
      %v1541 = vld [vmem:[%s246 + $0x11b] sm:$0xff]
      %v1542 = vld [vmem:[%s246 + $0x123] sm:$0xff]
      %v1543 = vld [vmem:[%s246 + $0x12b] sm:$0x3f]
      %v1544 = vpack.c.bf16 %v1509, %v1508
      %v1545 = vpack.c.bf16 %v1511, %v1510
      %v1546 = vpack.c.bf16 %v1513, %v1512
      %v1547 = vpack.c.bf16 %v1515, %v1514
      %v1548 = vpack.c.bf16 %v1517, %v1516
      %v1549 = vpack.c.bf16 %v1519, %v1518
      %v1550 = vpack.c.bf16 %v1521, %v1520
      %v1551 = vpack.c.bf16 %v1523, %v1522
      %v1552 = vpack.c.bf16 %v1525, %v1524
      %v1553 = vpack.c.bf16 %v1527, %v1526
      %v1554 = vpack.c.bf16 %v1529, %v1528
      %v1555 = vpack.c.bf16 %v1531, %v1530
      %v1556 = vpack.c.bf16 %v1533, %v1532
      %v1557 = vpack.c.bf16 %v1535, %v1534
      %v1558 = vpack.c.bf16 %v1537, %v1536
      %v1559 = vpack.c.bf16 %v1539, %v1538
      %v1560 = vpack.c.bf16 %v1541, %v1540
      %v1561 = vpack.c.bf16 %v1543, %v1542
      %s1562 = scalar_lea.vmem %s1, 256
      %v1563 = vld [vmem:[%s1562] sm:$0xf]
      %v1564 = vld [vmem:[%s1562 + $0x4] sm:$0xf]
      %v1565 = vld [vmem:[%s1562 + $0x8] sm:$0xf]
      %v1566 = vld [vmem:[%s1562 + $0xc] sm:$0xf]
      %v1567 = vld [vmem:[%s1562 + $0x10] sm:$0xf]
      %v1568 = vld [vmem:[%s1562 + $0x14] sm:$0xf]
      %v1569 = vld [vmem:[%s1562 + $0x18] sm:$0xf]
      %v1570 = vld [vmem:[%s1562 + $0x1c] sm:$0xf]
      %v1571 = vld [vmem:[%s1562 + $0x20] sm:$0xf]
      %v1572 = vld [vmem:[%s1562 + $0x24] sm:$0xf]
      %v1573 = vld [vmem:[%s1562 + $0x28] sm:$0xf]
      %v1574 = vld [vmem:[%s1562 + $0x2c] sm:$0xf]
      %v1575 = vld [vmem:[%s1562 + $0x30] sm:$0xf]
      %v1576 = vld [vmem:[%s1562 + $0x34] sm:$0xf]
      %v1577 = vld [vmem:[%s1562 + $0x38] sm:$0xf]
      %v1578 = vld [vmem:[%s1562 + $0x3c] sm:$0xf]
      %v1595 = vunpack.c.l.b16 %v1563
      %v1596 = vunpack.c.l.b16 %v1564
      %v1597 = vunpack.c.l.b16 %v1565
      %v1598 = vunpack.c.l.b16 %v1566
      %v1599 = vunpack.c.l.b16 %v1567
      %v1600 = vunpack.c.l.b16 %v1568
      %v1601 = vunpack.c.l.b16 %v1569
      %v1602 = vunpack.c.l.b16 %v1570
      %v1603 = vunpack.c.l.b16 %v1571
      %v1604 = vunpack.c.l.b16 %v1572
      %v1605 = vunpack.c.l.b16 %v1573
      %v1606 = vunpack.c.l.b16 %v1574
      %v1607 = vunpack.c.l.b16 %v1575
      %v1608 = vunpack.c.l.b16 %v1576
      %v1609 = vunpack.c.l.b16 %v1577
      %v1610 = vunpack.c.l.b16 %v1578
      %v1611 = vpack.c.b16 %v1596, %v1595
      %v1612 = vpack.c.b16 %v1598, %v1597
      %v1613 = vpack.c.b16 %v1600, %v1599
      %v1614 = vpack.c.b16 %v1602, %v1601
      %v1615 = vpack.c.b16 %v1604, %v1603
      %v1616 = vpack.c.b16 %v1606, %v1605
      %v1617 = vpack.c.b16 %v1608, %v1607
      %v1618 = vpack.c.b16 %v1610, %v1609
      %1627 = vmatprep.subr.bf16.mxu0 0
      %1628 = vmatpush1.bf16.msra.mxu0 %v1618
      %1629 = vmatprep.subr.bf16.mxu0 0
      %1630 = vmatpush1.bf16.msra.mxu0 %v1617
      %1631 = vmatprep.subr.bf16.mxu0 0
      %1632 = vmatpush1.bf16.msra.mxu0 %v1616
      %1633 = vmatprep.subr.bf16.mxu0 0
      %1634 = vmatpush1.bf16.msra.mxu0 %v1615
      %1635 = vmatprep.subr.bf16.mxu0 0
      %1636 = vmatpush1.bf16.msra.mxu0 %v1614
      %1637 = vmatprep.subr.bf16.mxu0 0
      %1638 = vmatpush1.bf16.msra.mxu0 %v1613
      %1639 = vmatprep.subr.bf16.mxu0 0
      %1640 = vmatpush1.bf16.msra.mxu0 %v1612
      %1641 = vmatprep.subr.bf16.mxu0 0
      %1642 = vmatpush1.bf16.msra.mxu0 %v1611
      %1643 = vmatprep.subr.bf16.mxu0 0
      %1644 = vmatpush2.bf16.msra.mxu0 0
      %1645 = vmatprep.subr.bf16.mxu0 0
      %1646 = vmatpush2.bf16.msra.mxu0 0
      %1647 = vmatprep.subr.bf16.mxu0 0
      %1648 = vmatpush2.bf16.msra.mxu0 0
      %1649 = vmatprep.subr.bf16.mxu0 0
      %1650 = vmatpush2.bf16.msra.mxu0 0
      %1651 = vmatprep.subr.bf16.mxu0 0
      %1652 = vmatpush2.bf16.msra.mxu0 0
      %1653 = vmatprep.subr.bf16.mxu0 0
      %1654 = vmatpush2.bf16.msra.mxu0 0
      %1655 = vmatprep.subr.bf16.mxu0 0
      %1656 = vmatpush2.bf16.msra.mxu0 0
      %1657 = vmatprep.subr.bf16.mxu0 0
      %1658 = vmatpush2.bf16.msra.mxu0 0
      %1659 = vmatprep.mubr.bf16.mxu0 0
      %1660 = vmatmul.mubr.bf16.gmra.mxu0 %v1544
      %v1661 = vpop.f32.mrf.mxu0
      %v1662 = vadd.f32 0.0, %v1661
      %v1663 = vpop.f32.mrf.mxu0
      %v1664 = vpop.f32.mrf.mxu0
      %v1665 = vadd.f32 0.0, %v1664
      %v1666 = vpop.f32.mrf.mxu0
      %1667 = vmatprep.mubr.bf16.mxu0 0
      %1668 = vmatmul.mubr.bf16.gmra.mxu0 %v1545
      %v1669 = vpop.f32.mrf.mxu0
      %v1670 = vadd.f32 0.0, %v1669
      %v1671 = vpop.f32.mrf.mxu0
      %v1672 = vpop.f32.mrf.mxu0
      %v1673 = vadd.f32 0.0, %v1672
      %v1674 = vpop.f32.mrf.mxu0
      %1675 = vmatprep.mubr.bf16.mxu0 0
      %1676 = vmatmul.mubr.bf16.gmra.mxu0 %v1546
      %v1677 = vpop.f32.mrf.mxu0
      %v1678 = vadd.f32 0.0, %v1677
      %v1679 = vpop.f32.mrf.mxu0
      %v1680 = vpop.f32.mrf.mxu0
      %v1681 = vadd.f32 0.0, %v1680
      %v1682 = vpop.f32.mrf.mxu0
      %1683 = vmatprep.mubr.bf16.mxu0 0
      %1684 = vmatmul.mubr.bf16.gmra.mxu0 %v1547
      %v1685 = vpop.f32.mrf.mxu0
      %v1686 = vadd.f32 0.0, %v1685
      %v1687 = vpop.f32.mrf.mxu0
      %v1688 = vpop.f32.mrf.mxu0
      %v1689 = vadd.f32 0.0, %v1688
      %v1690 = vpop.f32.mrf.mxu0
      %1691 = vmatprep.mubr.bf16.mxu0 0
      %1692 = vmatmul.mubr.bf16.gmra.mxu0 %v1548
      %v1693 = vpop.f32.mrf.mxu0
      %v1694 = vadd.f32 0.0, %v1693
      %v1695 = vpop.f32.mrf.mxu0
      %v1696 = vpop.f32.mrf.mxu0
      %v1697 = vadd.f32 0.0, %v1696
      %v1698 = vpop.f32.mrf.mxu0
      %1699 = vmatprep.mubr.bf16.mxu0 0
      %1700 = vmatmul.mubr.bf16.gmra.mxu0 %v1549
      %v1701 = vpop.f32.mrf.mxu0
      %v1702 = vadd.f32 0.0, %v1701
      %v1703 = vpop.f32.mrf.mxu0
      %v1704 = vpop.f32.mrf.mxu0
      %v1705 = vadd.f32 0.0, %v1704
      %v1706 = vpop.f32.mrf.mxu0
      %1707 = vmatprep.mubr.bf16.mxu0 0
      %1708 = vmatmul.mubr.bf16.gmra.mxu0 %v1550
      %v1709 = vpop.f32.mrf.mxu0
      %v1710 = vadd.f32 0.0, %v1709
      %v1711 = vpop.f32.mrf.mxu0
      %v1712 = vpop.f32.mrf.mxu0
      %v1713 = vadd.f32 0.0, %v1712
      %v1714 = vpop.f32.mrf.mxu0
      %1715 = vmatprep.mubr.bf16.mxu0 0
      %1716 = vmatmul.mubr.bf16.gmra.mxu0 %v1551
      %v1717 = vpop.f32.mrf.mxu0
      %v1718 = vadd.f32 0.0, %v1717
      %v1719 = vpop.f32.mrf.mxu0
      %v1720 = vpop.f32.mrf.mxu0
      %v1721 = vadd.f32 0.0, %v1720
      %v1722 = vpop.f32.mrf.mxu0
      %1723 = vmatprep.mubr.bf16.mxu0 0
      %1724 = vmatmul.mubr.bf16.gmra.mxu0 %v1552
      %v1725 = vpop.f32.mrf.mxu0
      %v1726 = vadd.f32 0.0, %v1725
      %v1727 = vpop.f32.mrf.mxu0
      %v1728 = vpop.f32.mrf.mxu0
      %v1729 = vadd.f32 0.0, %v1728
      %v1730 = vpop.f32.mrf.mxu0
      %1731 = vmatprep.mubr.bf16.mxu0 0
      %1732 = vmatmul.mubr.bf16.gmra.mxu0 %v1553
      %v1733 = vpop.f32.mrf.mxu0
      %v1734 = vadd.f32 0.0, %v1733
      %v1735 = vpop.f32.mrf.mxu0
      %v1736 = vpop.f32.mrf.mxu0
      %v1737 = vadd.f32 0.0, %v1736
      %v1738 = vpop.f32.mrf.mxu0
      %1739 = vmatprep.mubr.bf16.mxu0 0
      %1740 = vmatmul.mubr.bf16.gmra.mxu0 %v1554
      %v1741 = vpop.f32.mrf.mxu0
      %v1742 = vadd.f32 0.0, %v1741
      %v1743 = vpop.f32.mrf.mxu0
      %v1744 = vpop.f32.mrf.mxu0
      %v1745 = vadd.f32 0.0, %v1744
      %v1746 = vpop.f32.mrf.mxu0
      %1747 = vmatprep.mubr.bf16.mxu0 0
      %1748 = vmatmul.mubr.bf16.gmra.mxu0 %v1555
      %v1749 = vpop.f32.mrf.mxu0
      %v1750 = vadd.f32 0.0, %v1749
      %v1751 = vpop.f32.mrf.mxu0
      %v1752 = vpop.f32.mrf.mxu0
      %v1753 = vadd.f32 0.0, %v1752
      %v1754 = vpop.f32.mrf.mxu0
      %1755 = vmatprep.mubr.bf16.mxu0 0
      %1756 = vmatmul.mubr.bf16.gmra.mxu0 %v1556
      %v1757 = vpop.f32.mrf.mxu0
      %v1758 = vadd.f32 0.0, %v1757
      %v1759 = vpop.f32.mrf.mxu0
      %v1760 = vpop.f32.mrf.mxu0
      %v1761 = vadd.f32 0.0, %v1760
      %v1762 = vpop.f32.mrf.mxu0
      %1763 = vmatprep.mubr.bf16.mxu0 0
      %1764 = vmatmul.mubr.bf16.gmra.mxu0 %v1557
      %v1765 = vpop.f32.mrf.mxu0
      %v1766 = vadd.f32 0.0, %v1765
      %v1767 = vpop.f32.mrf.mxu0
      %v1768 = vpop.f32.mrf.mxu0
      %v1769 = vadd.f32 0.0, %v1768
      %v1770 = vpop.f32.mrf.mxu0
      %1771 = vmatprep.mubr.bf16.mxu0 0
      %1772 = vmatmul.mubr.bf16.gmra.mxu0 %v1558
      %v1773 = vpop.f32.mrf.mxu0
      %v1774 = vadd.f32 0.0, %v1773
      %v1775 = vpop.f32.mrf.mxu0
      %v1776 = vpop.f32.mrf.mxu0
      %v1777 = vadd.f32 0.0, %v1776
      %v1778 = vpop.f32.mrf.mxu0
      %1779 = vmatprep.mubr.bf16.mxu0 0
      %1780 = vmatmul.mubr.bf16.gmra.mxu0 %v1559
      %v1781 = vpop.f32.mrf.mxu0
      %v1782 = vadd.f32 0.0, %v1781
      %v1783 = vpop.f32.mrf.mxu0
      %v1784 = vpop.f32.mrf.mxu0
      %v1785 = vadd.f32 0.0, %v1784
      %v1786 = vpop.f32.mrf.mxu0
      %1787 = vmatprep.mubr.bf16.mxu0 0
      %1788 = vmatmul.mubr.bf16.gmra.mxu0 %v1560
      %v1789 = vpop.f32.mrf.mxu0
      %v1790 = vadd.f32 0.0, %v1789
      %v1791 = vpop.f32.mrf.mxu0
      %v1792 = vpop.f32.mrf.mxu0
      %v1793 = vadd.f32 0.0, %v1792
      %v1794 = vpop.f32.mrf.mxu0
      %1795 = vmatprep.mubr.bf16.mxu0 0
      %1796 = vmatmul.mubr.bf16.gmra.mxu0 %v1561
      %v1797 = vpop.f32.mrf.mxu0
      %v1798 = vadd.f32 0.0, %v1797
      %v1799 = vpop.f32.mrf.mxu0
      %v1800 = vpop.f32.mrf.mxu0
      %v1801 = vadd.f32 0.0, %v1800
      %v1802 = vpop.f32.mrf.mxu0
      %1803 = vdwg.mxu0
      %v1804 = vadd.f32 %v1472, %v1662
      %v1805 = vadd.f32 %v1473, %v1665
      %v1806 = vadd.f32 %v1474, %v1670
      %v1807 = vadd.f32 %v1475, %v1673
      %v1808 = vadd.f32 %v1476, %v1678
      %v1809 = vadd.f32 %v1477, %v1681
      %v1810 = vadd.f32 %v1478, %v1686
      %v1811 = vadd.f32 %v1479, %v1689
      %v1812 = vadd.f32 %v1480, %v1694
      %v1813 = vadd.f32 %v1481, %v1697
      %v1814 = vadd.f32 %v1482, %v1702
      %v1815 = vadd.f32 %v1483, %v1705
      %v1816 = vadd.f32 %v1484, %v1710
      %v1817 = vadd.f32 %v1485, %v1713
      %v1818 = vadd.f32 %v1486, %v1718
      %v1819 = vadd.f32 %v1487, %v1721
      %v1820 = vadd.f32 %v1488, %v1726
      %v1821 = vadd.f32 %v1489, %v1729
      %v1822 = vadd.f32 %v1490, %v1734
      %v1823 = vadd.f32 %v1491, %v1737
      %v1824 = vadd.f32 %v1492, %v1742
      %v1825 = vadd.f32 %v1493, %v1745
      %v1826 = vadd.f32 %v1494, %v1750
      %v1827 = vadd.f32 %v1495, %v1753
      %v1828 = vadd.f32 %v1496, %v1758
      %v1829 = vadd.f32 %v1497, %v1761
      %v1830 = vadd.f32 %v1498, %v1766
      %v1831 = vadd.f32 %v1499, %v1769
      %v1832 = vadd.f32 %v1500, %v1774
      %v1833 = vadd.f32 %v1501, %v1777
      %v1834 = vadd.f32 %v1502, %v1782
      %v1835 = vadd.f32 %v1503, %v1785
      %v1836 = vadd.f32 %v1504, %v1790
      %v1837 = vadd.f32 %v1505, %v1793
      %v1838 = vadd.f32 %v1506, %v1798
      %v1839 = vadd.f32 %v1507, %v1801
      %v1840 = vld [vmem:[%s246 + $0x14] sm:$0xff]
      %v1841 = vld [vmem:[%s246 + $0x1c] sm:$0xff]
      %v1842 = vld [vmem:[%s246 + $0x24] sm:$0xff]
      %v1843 = vld [vmem:[%s246 + $0x2c] sm:$0xff]
      %v1844 = vld [vmem:[%s246 + $0x34] sm:$0xff]
      %v1845 = vld [vmem:[%s246 + $0x3c] sm:$0xff]
      %v1846 = vld [vmem:[%s246 + $0x44] sm:$0xff]
      %v1847 = vld [vmem:[%s246 + $0x4c] sm:$0xff]
      %v1848 = vld [vmem:[%s246 + $0x54] sm:$0xff]
      %v1849 = vld [vmem:[%s246 + $0x5c] sm:$0xff]
      %v1850 = vld [vmem:[%s246 + $0x64] sm:$0xff]
      %v1851 = vld [vmem:[%s246 + $0x6c] sm:$0xff]
      %v1852 = vld [vmem:[%s246 + $0x74] sm:$0xff]
      %v1853 = vld [vmem:[%s246 + $0x7c] sm:$0xff]
      %v1854 = vld [vmem:[%s246 + $0x84] sm:$0xff]
      %v1855 = vld [vmem:[%s246 + $0x8c] sm:$0xff]
      %v1856 = vld [vmem:[%s246 + $0x94] sm:$0xff]
      %v1857 = vld [vmem:[%s246 + $0x9c] sm:$0xff]
      %v1858 = vld [vmem:[%s246 + $0xa4] sm:$0xff]
      %v1859 = vld [vmem:[%s246 + $0xac] sm:$0xff]
      %v1860 = vld [vmem:[%s246 + $0xb4] sm:$0xff]
      %v1861 = vld [vmem:[%s246 + $0xbc] sm:$0xff]
      %v1862 = vld [vmem:[%s246 + $0xc4] sm:$0xff]
      %v1863 = vld [vmem:[%s246 + $0xcc] sm:$0xff]
      %v1864 = vld [vmem:[%s246 + $0xd4] sm:$0xff]
      %v1865 = vld [vmem:[%s246 + $0xdc] sm:$0xff]
      %v1866 = vld [vmem:[%s246 + $0xe4] sm:$0xff]
      %v1867 = vld [vmem:[%s246 + $0xec] sm:$0xff]
      %v1868 = vld [vmem:[%s246 + $0xf4] sm:$0xff]
      %v1869 = vld [vmem:[%s246 + $0xfc] sm:$0xff]
      %v1870 = vld [vmem:[%s246 + $0x104] sm:$0xff]
      %v1871 = vld [vmem:[%s246 + $0x10c] sm:$0xff]
      %v1872 = vld [vmem:[%s246 + $0x114] sm:$0xff]
      %v1873 = vld [vmem:[%s246 + $0x11c] sm:$0xff]
      %v1874 = vld [vmem:[%s246 + $0x124] sm:$0xff]
      %v1875 = vld [vmem:[%s246 + $0x12c] sm:$0x3f]
      %v1876 = vpack.c.bf16 %v1841, %v1840
      %v1877 = vpack.c.bf16 %v1843, %v1842
      %v1878 = vpack.c.bf16 %v1845, %v1844
      %v1879 = vpack.c.bf16 %v1847, %v1846
      %v1880 = vpack.c.bf16 %v1849, %v1848
      %v1881 = vpack.c.bf16 %v1851, %v1850
      %v1882 = vpack.c.bf16 %v1853, %v1852
      %v1883 = vpack.c.bf16 %v1855, %v1854
      %v1884 = vpack.c.bf16 %v1857, %v1856
      %v1885 = vpack.c.bf16 %v1859, %v1858
      %v1886 = vpack.c.bf16 %v1861, %v1860
      %v1887 = vpack.c.bf16 %v1863, %v1862
      %v1888 = vpack.c.bf16 %v1865, %v1864
      %v1889 = vpack.c.bf16 %v1867, %v1866
      %v1890 = vpack.c.bf16 %v1869, %v1868
      %v1891 = vpack.c.bf16 %v1871, %v1870
      %v1892 = vpack.c.bf16 %v1873, %v1872
      %v1893 = vpack.c.bf16 %v1875, %v1874
      %s1894 = scalar_lea.vmem %s1, 320
      %v1895 = vld [vmem:[%s1894] sm:$0xf]
      %v1896 = vld [vmem:[%s1894 + $0x4] sm:$0xf]
      %v1897 = vld [vmem:[%s1894 + $0x8] sm:$0xf]
      %v1898 = vld [vmem:[%s1894 + $0xc] sm:$0xf]
      %v1899 = vld [vmem:[%s1894 + $0x10] sm:$0xf]
      %v1900 = vld [vmem:[%s1894 + $0x14] sm:$0xf]
      %v1901 = vld [vmem:[%s1894 + $0x18] sm:$0xf]
      %v1902 = vld [vmem:[%s1894 + $0x1c] sm:$0xf]
      %v1903 = vld [vmem:[%s1894 + $0x20] sm:$0xf]
      %v1904 = vld [vmem:[%s1894 + $0x24] sm:$0xf]
      %v1905 = vld [vmem:[%s1894 + $0x28] sm:$0xf]
      %v1906 = vld [vmem:[%s1894 + $0x2c] sm:$0xf]
      %v1907 = vld [vmem:[%s1894 + $0x30] sm:$0xf]
      %v1908 = vld [vmem:[%s1894 + $0x34] sm:$0xf]
      %v1909 = vld [vmem:[%s1894 + $0x38] sm:$0xf]
      %v1910 = vld [vmem:[%s1894 + $0x3c] sm:$0xf]
      %v1927 = vunpack.c.l.b16 %v1895
      %v1928 = vunpack.c.l.b16 %v1896
      %v1929 = vunpack.c.l.b16 %v1897
      %v1930 = vunpack.c.l.b16 %v1898
      %v1931 = vunpack.c.l.b16 %v1899
      %v1932 = vunpack.c.l.b16 %v1900
      %v1933 = vunpack.c.l.b16 %v1901
      %v1934 = vunpack.c.l.b16 %v1902
      %v1935 = vunpack.c.l.b16 %v1903
      %v1936 = vunpack.c.l.b16 %v1904
      %v1937 = vunpack.c.l.b16 %v1905
      %v1938 = vunpack.c.l.b16 %v1906
      %v1939 = vunpack.c.l.b16 %v1907
      %v1940 = vunpack.c.l.b16 %v1908
      %v1941 = vunpack.c.l.b16 %v1909
      %v1942 = vunpack.c.l.b16 %v1910
      %v1943 = vpack.c.b16 %v1928, %v1927
      %v1944 = vpack.c.b16 %v1930, %v1929
      %v1945 = vpack.c.b16 %v1932, %v1931
      %v1946 = vpack.c.b16 %v1934, %v1933
      %v1947 = vpack.c.b16 %v1936, %v1935
      %v1948 = vpack.c.b16 %v1938, %v1937
      %v1949 = vpack.c.b16 %v1940, %v1939
      %v1950 = vpack.c.b16 %v1942, %v1941
      %1959 = vmatprep.subr.bf16.mxu0 0
      %1960 = vmatpush1.bf16.msra.mxu0 %v1950
      %1961 = vmatprep.subr.bf16.mxu0 0
      %1962 = vmatpush1.bf16.msra.mxu0 %v1949
      %1963 = vmatprep.subr.bf16.mxu0 0
      %1964 = vmatpush1.bf16.msra.mxu0 %v1948
      %1965 = vmatprep.subr.bf16.mxu0 0
      %1966 = vmatpush1.bf16.msra.mxu0 %v1947
      %1967 = vmatprep.subr.bf16.mxu0 0
      %1968 = vmatpush1.bf16.msra.mxu0 %v1946
      %1969 = vmatprep.subr.bf16.mxu0 0
      %1970 = vmatpush1.bf16.msra.mxu0 %v1945
      %1971 = vmatprep.subr.bf16.mxu0 0
      %1972 = vmatpush1.bf16.msra.mxu0 %v1944
      %1973 = vmatprep.subr.bf16.mxu0 0
      %1974 = vmatpush1.bf16.msra.mxu0 %v1943
      %1975 = vmatprep.subr.bf16.mxu0 0
      %1976 = vmatpush2.bf16.msra.mxu0 0
      %1977 = vmatprep.subr.bf16.mxu0 0
      %1978 = vmatpush2.bf16.msra.mxu0 0
      %1979 = vmatprep.subr.bf16.mxu0 0
      %1980 = vmatpush2.bf16.msra.mxu0 0
      %1981 = vmatprep.subr.bf16.mxu0 0
      %1982 = vmatpush2.bf16.msra.mxu0 0
      %1983 = vmatprep.subr.bf16.mxu0 0
      %1984 = vmatpush2.bf16.msra.mxu0 0
      %1985 = vmatprep.subr.bf16.mxu0 0
      %1986 = vmatpush2.bf16.msra.mxu0 0
      %1987 = vmatprep.subr.bf16.mxu0 0
      %1988 = vmatpush2.bf16.msra.mxu0 0
      %1989 = vmatprep.subr.bf16.mxu0 0
      %1990 = vmatpush2.bf16.msra.mxu0 0
      %1991 = vmatprep.mubr.bf16.mxu0 0
      %1992 = vmatmul.mubr.bf16.gmra.mxu0 %v1876
      %v1993 = vpop.f32.mrf.mxu0
      %v1994 = vadd.f32 0.0, %v1993
      %v1995 = vpop.f32.mrf.mxu0
      %v1996 = vpop.f32.mrf.mxu0
      %v1997 = vadd.f32 0.0, %v1996
      %v1998 = vpop.f32.mrf.mxu0
      %1999 = vmatprep.mubr.bf16.mxu0 0
      %2000 = vmatmul.mubr.bf16.gmra.mxu0 %v1877
      %v2001 = vpop.f32.mrf.mxu0
      %v2002 = vadd.f32 0.0, %v2001
      %v2003 = vpop.f32.mrf.mxu0
      %v2004 = vpop.f32.mrf.mxu0
      %v2005 = vadd.f32 0.0, %v2004
      %v2006 = vpop.f32.mrf.mxu0
      %2007 = vmatprep.mubr.bf16.mxu0 0
      %2008 = vmatmul.mubr.bf16.gmra.mxu0 %v1878
      %v2009 = vpop.f32.mrf.mxu0
      %v2010 = vadd.f32 0.0, %v2009
      %v2011 = vpop.f32.mrf.mxu0
      %v2012 = vpop.f32.mrf.mxu0
      %v2013 = vadd.f32 0.0, %v2012
      %v2014 = vpop.f32.mrf.mxu0
      %2015 = vmatprep.mubr.bf16.mxu0 0
      %2016 = vmatmul.mubr.bf16.gmra.mxu0 %v1879
      %v2017 = vpop.f32.mrf.mxu0
      %v2018 = vadd.f32 0.0, %v2017
      %v2019 = vpop.f32.mrf.mxu0
      %v2020 = vpop.f32.mrf.mxu0
      %v2021 = vadd.f32 0.0, %v2020
      %v2022 = vpop.f32.mrf.mxu0
      %2023 = vmatprep.mubr.bf16.mxu0 0
      %2024 = vmatmul.mubr.bf16.gmra.mxu0 %v1880
      %v2025 = vpop.f32.mrf.mxu0
      %v2026 = vadd.f32 0.0, %v2025
      %v2027 = vpop.f32.mrf.mxu0
      %v2028 = vpop.f32.mrf.mxu0
      %v2029 = vadd.f32 0.0, %v2028
      %v2030 = vpop.f32.mrf.mxu0
      %2031 = vmatprep.mubr.bf16.mxu0 0
      %2032 = vmatmul.mubr.bf16.gmra.mxu0 %v1881
      %v2033 = vpop.f32.mrf.mxu0
      %v2034 = vadd.f32 0.0, %v2033
      %v2035 = vpop.f32.mrf.mxu0
      %v2036 = vpop.f32.mrf.mxu0
      %v2037 = vadd.f32 0.0, %v2036
      %v2038 = vpop.f32.mrf.mxu0
      %2039 = vmatprep.mubr.bf16.mxu0 0
      %2040 = vmatmul.mubr.bf16.gmra.mxu0 %v1882
      %v2041 = vpop.f32.mrf.mxu0
      %v2042 = vadd.f32 0.0, %v2041
      %v2043 = vpop.f32.mrf.mxu0
      %v2044 = vpop.f32.mrf.mxu0
      %v2045 = vadd.f32 0.0, %v2044
      %v2046 = vpop.f32.mrf.mxu0
      %2047 = vmatprep.mubr.bf16.mxu0 0
      %2048 = vmatmul.mubr.bf16.gmra.mxu0 %v1883
      %v2049 = vpop.f32.mrf.mxu0
      %v2050 = vadd.f32 0.0, %v2049
      %v2051 = vpop.f32.mrf.mxu0
      %v2052 = vpop.f32.mrf.mxu0
      %v2053 = vadd.f32 0.0, %v2052
      %v2054 = vpop.f32.mrf.mxu0
      %2055 = vmatprep.mubr.bf16.mxu0 0
      %2056 = vmatmul.mubr.bf16.gmra.mxu0 %v1884
      %v2057 = vpop.f32.mrf.mxu0
      %v2058 = vadd.f32 0.0, %v2057
      %v2059 = vpop.f32.mrf.mxu0
      %v2060 = vpop.f32.mrf.mxu0
      %v2061 = vadd.f32 0.0, %v2060
      %v2062 = vpop.f32.mrf.mxu0
      %2063 = vmatprep.mubr.bf16.mxu0 0
      %2064 = vmatmul.mubr.bf16.gmra.mxu0 %v1885
      %v2065 = vpop.f32.mrf.mxu0
      %v2066 = vadd.f32 0.0, %v2065
      %v2067 = vpop.f32.mrf.mxu0
      %v2068 = vpop.f32.mrf.mxu0
      %v2069 = vadd.f32 0.0, %v2068
      %v2070 = vpop.f32.mrf.mxu0
      %2071 = vmatprep.mubr.bf16.mxu0 0
      %2072 = vmatmul.mubr.bf16.gmra.mxu0 %v1886
      %v2073 = vpop.f32.mrf.mxu0
      %v2074 = vadd.f32 0.0, %v2073
      %v2075 = vpop.f32.mrf.mxu0
      %v2076 = vpop.f32.mrf.mxu0
      %v2077 = vadd.f32 0.0, %v2076
      %v2078 = vpop.f32.mrf.mxu0
      %2079 = vmatprep.mubr.bf16.mxu0 0
      %2080 = vmatmul.mubr.bf16.gmra.mxu0 %v1887
      %v2081 = vpop.f32.mrf.mxu0
      %v2082 = vadd.f32 0.0, %v2081
      %v2083 = vpop.f32.mrf.mxu0
      %v2084 = vpop.f32.mrf.mxu0
      %v2085 = vadd.f32 0.0, %v2084
      %v2086 = vpop.f32.mrf.mxu0
      %2087 = vmatprep.mubr.bf16.mxu0 0
      %2088 = vmatmul.mubr.bf16.gmra.mxu0 %v1888
      %v2089 = vpop.f32.mrf.mxu0
      %v2090 = vadd.f32 0.0, %v2089
      %v2091 = vpop.f32.mrf.mxu0
      %v2092 = vpop.f32.mrf.mxu0
      %v2093 = vadd.f32 0.0, %v2092
      %v2094 = vpop.f32.mrf.mxu0
      %2095 = vmatprep.mubr.bf16.mxu0 0
      %2096 = vmatmul.mubr.bf16.gmra.mxu0 %v1889
      %v2097 = vpop.f32.mrf.mxu0
      %v2098 = vadd.f32 0.0, %v2097
      %v2099 = vpop.f32.mrf.mxu0
      %v2100 = vpop.f32.mrf.mxu0
      %v2101 = vadd.f32 0.0, %v2100
      %v2102 = vpop.f32.mrf.mxu0
      %2103 = vmatprep.mubr.bf16.mxu0 0
      %2104 = vmatmul.mubr.bf16.gmra.mxu0 %v1890
      %v2105 = vpop.f32.mrf.mxu0
      %v2106 = vadd.f32 0.0, %v2105
      %v2107 = vpop.f32.mrf.mxu0
      %v2108 = vpop.f32.mrf.mxu0
      %v2109 = vadd.f32 0.0, %v2108
      %v2110 = vpop.f32.mrf.mxu0
      %2111 = vmatprep.mubr.bf16.mxu0 0
      %2112 = vmatmul.mubr.bf16.gmra.mxu0 %v1891
      %v2113 = vpop.f32.mrf.mxu0
      %v2114 = vadd.f32 0.0, %v2113
      %v2115 = vpop.f32.mrf.mxu0
      %v2116 = vpop.f32.mrf.mxu0
      %v2117 = vadd.f32 0.0, %v2116
      %v2118 = vpop.f32.mrf.mxu0
      %2119 = vmatprep.mubr.bf16.mxu0 0
      %2120 = vmatmul.mubr.bf16.gmra.mxu0 %v1892
      %v2121 = vpop.f32.mrf.mxu0
      %v2122 = vadd.f32 0.0, %v2121
      %v2123 = vpop.f32.mrf.mxu0
      %v2124 = vpop.f32.mrf.mxu0
      %v2125 = vadd.f32 0.0, %v2124
      %v2126 = vpop.f32.mrf.mxu0
      %2127 = vmatprep.mubr.bf16.mxu0 0
      %2128 = vmatmul.mubr.bf16.gmra.mxu0 %v1893
      %v2129 = vpop.f32.mrf.mxu0
      %v2130 = vadd.f32 0.0, %v2129
      %v2131 = vpop.f32.mrf.mxu0
      %v2132 = vpop.f32.mrf.mxu0
      %v2133 = vadd.f32 0.0, %v2132
      %v2134 = vpop.f32.mrf.mxu0
      %2135 = vdwg.mxu0
      %v2136 = vadd.f32 %v1804, %v1994
      %v2137 = vadd.f32 %v1805, %v1997
      %v2138 = vadd.f32 %v1806, %v2002
      %v2139 = vadd.f32 %v1807, %v2005
      %v2140 = vadd.f32 %v1808, %v2010
      %v2141 = vadd.f32 %v1809, %v2013
      %v2142 = vadd.f32 %v1810, %v2018
      %v2143 = vadd.f32 %v1811, %v2021
      %v2144 = vadd.f32 %v1812, %v2026
      %v2145 = vadd.f32 %v1813, %v2029
      %v2146 = vadd.f32 %v1814, %v2034
      %v2147 = vadd.f32 %v1815, %v2037
      %v2148 = vadd.f32 %v1816, %v2042
      %v2149 = vadd.f32 %v1817, %v2045
      %v2150 = vadd.f32 %v1818, %v2050
      %v2151 = vadd.f32 %v1819, %v2053
      %v2152 = vadd.f32 %v1820, %v2058
      %v2153 = vadd.f32 %v1821, %v2061
      %v2154 = vadd.f32 %v1822, %v2066
      %v2155 = vadd.f32 %v1823, %v2069
      %v2156 = vadd.f32 %v1824, %v2074
      %v2157 = vadd.f32 %v1825, %v2077
      %v2158 = vadd.f32 %v1826, %v2082
      %v2159 = vadd.f32 %v1827, %v2085
      %v2160 = vadd.f32 %v1828, %v2090
      %v2161 = vadd.f32 %v1829, %v2093
      %v2162 = vadd.f32 %v1830, %v2098
      %v2163 = vadd.f32 %v1831, %v2101
      %v2164 = vadd.f32 %v1832, %v2106
      %v2165 = vadd.f32 %v1833, %v2109
      %v2166 = vadd.f32 %v1834, %v2114
      %v2167 = vadd.f32 %v1835, %v2117
      %v2168 = vadd.f32 %v1836, %v2122
      %v2169 = vadd.f32 %v1837, %v2125
      %v2170 = vadd.f32 %v1838, %v2130
      %v2171 = vadd.f32 %v1839, %v2133
      %v2172 = vld [vmem:[%s246 + $0x24] sm:$0xff]
      %v2173 = vld [vmem:[%s246 + $0x2c] sm:$0xff]
      %v2174 = vld [vmem:[%s246 + $0x34] sm:$0xff]
      %v2175 = vld [vmem:[%s246 + $0x3c] sm:$0xff]
      %v2176 = vld [vmem:[%s246 + $0x44] sm:$0xff]
      %v2177 = vld [vmem:[%s246 + $0x4c] sm:$0xff]
      %v2178 = vld [vmem:[%s246 + $0x54] sm:$0xff]
      %v2179 = vld [vmem:[%s246 + $0x5c] sm:$0xff]
      %v2180 = vld [vmem:[%s246 + $0x64] sm:$0xff]
      %v2181 = vld [vmem:[%s246 + $0x6c] sm:$0xff]
      %v2182 = vld [vmem:[%s246 + $0x74] sm:$0xff]
      %v2183 = vld [vmem:[%s246 + $0x7c] sm:$0xff]
      %v2184 = vld [vmem:[%s246 + $0x84] sm:$0xff]
      %v2185 = vld [vmem:[%s246 + $0x8c] sm:$0xff]
      %v2186 = vld [vmem:[%s246 + $0x94] sm:$0xff]
      %v2187 = vld [vmem:[%s246 + $0x9c] sm:$0xff]
      %v2188 = vld [vmem:[%s246 + $0xa4] sm:$0xff]
      %v2189 = vld [vmem:[%s246 + $0xac] sm:$0xff]
      %v2190 = vld [vmem:[%s246 + $0xb4] sm:$0xff]
      %v2191 = vld [vmem:[%s246 + $0xbc] sm:$0xff]
      %v2192 = vld [vmem:[%s246 + $0xc4] sm:$0xff]
      %v2193 = vld [vmem:[%s246 + $0xcc] sm:$0xff]
      %v2194 = vld [vmem:[%s246 + $0xd4] sm:$0xff]
      %v2195 = vld [vmem:[%s246 + $0xdc] sm:$0xff]
      %v2196 = vld [vmem:[%s246 + $0xe4] sm:$0xff]
      %v2197 = vld [vmem:[%s246 + $0xec] sm:$0xff]
      %v2198 = vld [vmem:[%s246 + $0xf4] sm:$0xff]
      %v2199 = vld [vmem:[%s246 + $0xfc] sm:$0xff]
      %v2200 = vld [vmem:[%s246 + $0x104] sm:$0xff]
      %v2201 = vld [vmem:[%s246 + $0x10c] sm:$0xff]
      %v2202 = vld [vmem:[%s246 + $0x114] sm:$0xff]
      %v2203 = vld [vmem:[%s246 + $0x11c] sm:$0xff]
      %v2204 = vld [vmem:[%s246 + $0x124] sm:$0xff]
      %v2205 = vld [vmem:[%s246 + $0x12c] sm:$0xff]
      %v2206 = vld [vmem:[%s246 + $0x134] sm:$0xff]
      %v2207 = vld [vmem:[%s246 + $0x13c] sm:$0x3f]
      %v2208 = vpack.c.bf16 %v2173, %v2172
      %v2209 = vpack.c.bf16 %v2175, %v2174
      %v2210 = vpack.c.bf16 %v2177, %v2176
      %v2211 = vpack.c.bf16 %v2179, %v2178
      %v2212 = vpack.c.bf16 %v2181, %v2180
      %v2213 = vpack.c.bf16 %v2183, %v2182
      %v2214 = vpack.c.bf16 %v2185, %v2184
      %v2215 = vpack.c.bf16 %v2187, %v2186
      %v2216 = vpack.c.bf16 %v2189, %v2188
      %v2217 = vpack.c.bf16 %v2191, %v2190
      %v2218 = vpack.c.bf16 %v2193, %v2192
      %v2219 = vpack.c.bf16 %v2195, %v2194
      %v2220 = vpack.c.bf16 %v2197, %v2196
      %v2221 = vpack.c.bf16 %v2199, %v2198
      %v2222 = vpack.c.bf16 %v2201, %v2200
      %v2223 = vpack.c.bf16 %v2203, %v2202
      %v2224 = vpack.c.bf16 %v2205, %v2204
      %v2225 = vpack.c.bf16 %v2207, %v2206
      %s2226 = scalar_lea.vmem %s1, 384
      %v2227 = vld [vmem:[%s2226] sm:$0xf]
      %v2228 = vld [vmem:[%s2226 + $0x4] sm:$0xf]
      %v2229 = vld [vmem:[%s2226 + $0x8] sm:$0xf]
      %v2230 = vld [vmem:[%s2226 + $0xc] sm:$0xf]
      %v2231 = vld [vmem:[%s2226 + $0x10] sm:$0xf]
      %v2232 = vld [vmem:[%s2226 + $0x14] sm:$0xf]
      %v2233 = vld [vmem:[%s2226 + $0x18] sm:$0xf]
      %v2234 = vld [vmem:[%s2226 + $0x1c] sm:$0xf]
      %v2235 = vld [vmem:[%s2226 + $0x20] sm:$0xf]
      %v2236 = vld [vmem:[%s2226 + $0x24] sm:$0xf]
      %v2237 = vld [vmem:[%s2226 + $0x28] sm:$0xf]
      %v2238 = vld [vmem:[%s2226 + $0x2c] sm:$0xf]
      %v2239 = vld [vmem:[%s2226 + $0x30] sm:$0xf]
      %v2240 = vld [vmem:[%s2226 + $0x34] sm:$0xf]
      %v2241 = vld [vmem:[%s2226 + $0x38] sm:$0xf]
      %v2242 = vld [vmem:[%s2226 + $0x3c] sm:$0xf]
      %v2259 = vunpack.c.l.b16 %v2227
      %v2260 = vunpack.c.l.b16 %v2228
      %v2261 = vunpack.c.l.b16 %v2229
      %v2262 = vunpack.c.l.b16 %v2230
      %v2263 = vunpack.c.l.b16 %v2231
      %v2264 = vunpack.c.l.b16 %v2232
      %v2265 = vunpack.c.l.b16 %v2233
      %v2266 = vunpack.c.l.b16 %v2234
      %v2267 = vunpack.c.l.b16 %v2235
      %v2268 = vunpack.c.l.b16 %v2236
      %v2269 = vunpack.c.l.b16 %v2237
      %v2270 = vunpack.c.l.b16 %v2238
      %v2271 = vunpack.c.l.b16 %v2239
      %v2272 = vunpack.c.l.b16 %v2240
      %v2273 = vunpack.c.l.b16 %v2241
      %v2274 = vunpack.c.l.b16 %v2242
      %v2275 = vpack.c.b16 %v2260, %v2259
      %v2276 = vpack.c.b16 %v2262, %v2261
      %v2277 = vpack.c.b16 %v2264, %v2263
      %v2278 = vpack.c.b16 %v2266, %v2265
      %v2279 = vpack.c.b16 %v2268, %v2267
      %v2280 = vpack.c.b16 %v2270, %v2269
      %v2281 = vpack.c.b16 %v2272, %v2271
      %v2282 = vpack.c.b16 %v2274, %v2273
      %2291 = vmatprep.subr.bf16.mxu0 0
      %2292 = vmatpush1.bf16.msra.mxu0 %v2282
      %2293 = vmatprep.subr.bf16.mxu0 0
      %2294 = vmatpush1.bf16.msra.mxu0 %v2281
      %2295 = vmatprep.subr.bf16.mxu0 0
      %2296 = vmatpush1.bf16.msra.mxu0 %v2280
      %2297 = vmatprep.subr.bf16.mxu0 0
      %2298 = vmatpush1.bf16.msra.mxu0 %v2279
      %2299 = vmatprep.subr.bf16.mxu0 0
      %2300 = vmatpush1.bf16.msra.mxu0 %v2278
      %2301 = vmatprep.subr.bf16.mxu0 0
      %2302 = vmatpush1.bf16.msra.mxu0 %v2277
      %2303 = vmatprep.subr.bf16.mxu0 0
      %2304 = vmatpush1.bf16.msra.mxu0 %v2276
      %2305 = vmatprep.subr.bf16.mxu0 0
      %2306 = vmatpush1.bf16.msra.mxu0 %v2275
      %2307 = vmatprep.subr.bf16.mxu0 0
      %2308 = vmatpush2.bf16.msra.mxu0 0
      %2309 = vmatprep.subr.bf16.mxu0 0
      %2310 = vmatpush2.bf16.msra.mxu0 0
      %2311 = vmatprep.subr.bf16.mxu0 0
      %2312 = vmatpush2.bf16.msra.mxu0 0
      %2313 = vmatprep.subr.bf16.mxu0 0
      %2314 = vmatpush2.bf16.msra.mxu0 0
      %2315 = vmatprep.subr.bf16.mxu0 0
      %2316 = vmatpush2.bf16.msra.mxu0 0
      %2317 = vmatprep.subr.bf16.mxu0 0
      %2318 = vmatpush2.bf16.msra.mxu0 0
      %2319 = vmatprep.subr.bf16.mxu0 0
      %2320 = vmatpush2.bf16.msra.mxu0 0
      %2321 = vmatprep.subr.bf16.mxu0 0
      %2322 = vmatpush2.bf16.msra.mxu0 0
      %2323 = vmatprep.mubr.bf16.mxu0 0
      %2324 = vmatmul.mubr.bf16.gmra.mxu0 %v2208
      %v2325 = vpop.f32.mrf.mxu0
      %v2326 = vadd.f32 0.0, %v2325
      %v2327 = vpop.f32.mrf.mxu0
      %v2328 = vpop.f32.mrf.mxu0
      %v2329 = vadd.f32 0.0, %v2328
      %v2330 = vpop.f32.mrf.mxu0
      %2331 = vmatprep.mubr.bf16.mxu0 0
      %2332 = vmatmul.mubr.bf16.gmra.mxu0 %v2209
      %v2333 = vpop.f32.mrf.mxu0
      %v2334 = vadd.f32 0.0, %v2333
      %v2335 = vpop.f32.mrf.mxu0
      %v2336 = vpop.f32.mrf.mxu0
      %v2337 = vadd.f32 0.0, %v2336
      %v2338 = vpop.f32.mrf.mxu0
      %2339 = vmatprep.mubr.bf16.mxu0 0
      %2340 = vmatmul.mubr.bf16.gmra.mxu0 %v2210
      %v2341 = vpop.f32.mrf.mxu0
      %v2342 = vadd.f32 0.0, %v2341
      %v2343 = vpop.f32.mrf.mxu0
      %v2344 = vpop.f32.mrf.mxu0
      %v2345 = vadd.f32 0.0, %v2344
      %v2346 = vpop.f32.mrf.mxu0
      %2347 = vmatprep.mubr.bf16.mxu0 0
      %2348 = vmatmul.mubr.bf16.gmra.mxu0 %v2211
      %v2349 = vpop.f32.mrf.mxu0
      %v2350 = vadd.f32 0.0, %v2349
      %v2351 = vpop.f32.mrf.mxu0
      %v2352 = vpop.f32.mrf.mxu0
      %v2353 = vadd.f32 0.0, %v2352
      %v2354 = vpop.f32.mrf.mxu0
      %2355 = vmatprep.mubr.bf16.mxu0 0
      %2356 = vmatmul.mubr.bf16.gmra.mxu0 %v2212
      %v2357 = vpop.f32.mrf.mxu0
      %v2358 = vadd.f32 0.0, %v2357
      %v2359 = vpop.f32.mrf.mxu0
      %v2360 = vpop.f32.mrf.mxu0
      %v2361 = vadd.f32 0.0, %v2360
      %v2362 = vpop.f32.mrf.mxu0
      %2363 = vmatprep.mubr.bf16.mxu0 0
      %2364 = vmatmul.mubr.bf16.gmra.mxu0 %v2213
      %v2365 = vpop.f32.mrf.mxu0
      %v2366 = vadd.f32 0.0, %v2365
      %v2367 = vpop.f32.mrf.mxu0
      %v2368 = vpop.f32.mrf.mxu0
      %v2369 = vadd.f32 0.0, %v2368
      %v2370 = vpop.f32.mrf.mxu0
      %2371 = vmatprep.mubr.bf16.mxu0 0
      %2372 = vmatmul.mubr.bf16.gmra.mxu0 %v2214
      %v2373 = vpop.f32.mrf.mxu0
      %v2374 = vadd.f32 0.0, %v2373
      %v2375 = vpop.f32.mrf.mxu0
      %v2376 = vpop.f32.mrf.mxu0
      %v2377 = vadd.f32 0.0, %v2376
      %v2378 = vpop.f32.mrf.mxu0
      %2379 = vmatprep.mubr.bf16.mxu0 0
      %2380 = vmatmul.mubr.bf16.gmra.mxu0 %v2215
      %v2381 = vpop.f32.mrf.mxu0
      %v2382 = vadd.f32 0.0, %v2381
      %v2383 = vpop.f32.mrf.mxu0
      %v2384 = vpop.f32.mrf.mxu0
      %v2385 = vadd.f32 0.0, %v2384
      %v2386 = vpop.f32.mrf.mxu0
      %2387 = vmatprep.mubr.bf16.mxu0 0
      %2388 = vmatmul.mubr.bf16.gmra.mxu0 %v2216
      %v2389 = vpop.f32.mrf.mxu0
      %v2390 = vadd.f32 0.0, %v2389
      %v2391 = vpop.f32.mrf.mxu0
      %v2392 = vpop.f32.mrf.mxu0
      %v2393 = vadd.f32 0.0, %v2392
      %v2394 = vpop.f32.mrf.mxu0
      %2395 = vmatprep.mubr.bf16.mxu0 0
      %2396 = vmatmul.mubr.bf16.gmra.mxu0 %v2217
      %v2397 = vpop.f32.mrf.mxu0
      %v2398 = vadd.f32 0.0, %v2397
      %v2399 = vpop.f32.mrf.mxu0
      %v2400 = vpop.f32.mrf.mxu0
      %v2401 = vadd.f32 0.0, %v2400
      %v2402 = vpop.f32.mrf.mxu0
      %2403 = vmatprep.mubr.bf16.mxu0 0
      %2404 = vmatmul.mubr.bf16.gmra.mxu0 %v2218
      %v2405 = vpop.f32.mrf.mxu0
      %v2406 = vadd.f32 0.0, %v2405
      %v2407 = vpop.f32.mrf.mxu0
      %v2408 = vpop.f32.mrf.mxu0
      %v2409 = vadd.f32 0.0, %v2408
      %v2410 = vpop.f32.mrf.mxu0
      %2411 = vmatprep.mubr.bf16.mxu0 0
      %2412 = vmatmul.mubr.bf16.gmra.mxu0 %v2219
      %v2413 = vpop.f32.mrf.mxu0
      %v2414 = vadd.f32 0.0, %v2413
      %v2415 = vpop.f32.mrf.mxu0
      %v2416 = vpop.f32.mrf.mxu0
      %v2417 = vadd.f32 0.0, %v2416
      %v2418 = vpop.f32.mrf.mxu0
      %2419 = vmatprep.mubr.bf16.mxu0 0
      %2420 = vmatmul.mubr.bf16.gmra.mxu0 %v2220
      %v2421 = vpop.f32.mrf.mxu0
      %v2422 = vadd.f32 0.0, %v2421
      %v2423 = vpop.f32.mrf.mxu0
      %v2424 = vpop.f32.mrf.mxu0
      %v2425 = vadd.f32 0.0, %v2424
      %v2426 = vpop.f32.mrf.mxu0
      %2427 = vmatprep.mubr.bf16.mxu0 0
      %2428 = vmatmul.mubr.bf16.gmra.mxu0 %v2221
      %v2429 = vpop.f32.mrf.mxu0
      %v2430 = vadd.f32 0.0, %v2429
      %v2431 = vpop.f32.mrf.mxu0
      %v2432 = vpop.f32.mrf.mxu0
      %v2433 = vadd.f32 0.0, %v2432
      %v2434 = vpop.f32.mrf.mxu0
      %2435 = vmatprep.mubr.bf16.mxu0 0
      %2436 = vmatmul.mubr.bf16.gmra.mxu0 %v2222
      %v2437 = vpop.f32.mrf.mxu0
      %v2438 = vadd.f32 0.0, %v2437
      %v2439 = vpop.f32.mrf.mxu0
      %v2440 = vpop.f32.mrf.mxu0
      %v2441 = vadd.f32 0.0, %v2440
      %v2442 = vpop.f32.mrf.mxu0
      %2443 = vmatprep.mubr.bf16.mxu0 0
      %2444 = vmatmul.mubr.bf16.gmra.mxu0 %v2223
      %v2445 = vpop.f32.mrf.mxu0
      %v2446 = vadd.f32 0.0, %v2445
      %v2447 = vpop.f32.mrf.mxu0
      %v2448 = vpop.f32.mrf.mxu0
      %v2449 = vadd.f32 0.0, %v2448
      %v2450 = vpop.f32.mrf.mxu0
      %2451 = vmatprep.mubr.bf16.mxu0 0
      %2452 = vmatmul.mubr.bf16.gmra.mxu0 %v2224
      %v2453 = vpop.f32.mrf.mxu0
      %v2454 = vadd.f32 0.0, %v2453
      %v2455 = vpop.f32.mrf.mxu0
      %v2456 = vpop.f32.mrf.mxu0
      %v2457 = vadd.f32 0.0, %v2456
      %v2458 = vpop.f32.mrf.mxu0
      %2459 = vmatprep.mubr.bf16.mxu0 0
      %2460 = vmatmul.mubr.bf16.gmra.mxu0 %v2225
      %v2461 = vpop.f32.mrf.mxu0
      %v2462 = vadd.f32 0.0, %v2461
      %v2463 = vpop.f32.mrf.mxu0
      %v2464 = vpop.f32.mrf.mxu0
      %v2465 = vadd.f32 0.0, %v2464
      %v2466 = vpop.f32.mrf.mxu0
      %2467 = vdwg.mxu0
      %v2468 = vadd.f32 %v2136, %v2326
      %v2469 = vadd.f32 %v2137, %v2329
      %v2470 = vadd.f32 %v2138, %v2334
      %v2471 = vadd.f32 %v2139, %v2337
      %v2472 = vadd.f32 %v2140, %v2342
      %v2473 = vadd.f32 %v2141, %v2345
      %v2474 = vadd.f32 %v2142, %v2350
      %v2475 = vadd.f32 %v2143, %v2353
      %v2476 = vadd.f32 %v2144, %v2358
      %v2477 = vadd.f32 %v2145, %v2361
      %v2478 = vadd.f32 %v2146, %v2366
      %v2479 = vadd.f32 %v2147, %v2369
      %v2480 = vadd.f32 %v2148, %v2374
      %v2481 = vadd.f32 %v2149, %v2377
      %v2482 = vadd.f32 %v2150, %v2382
      %v2483 = vadd.f32 %v2151, %v2385
      %v2484 = vadd.f32 %v2152, %v2390
      %v2485 = vadd.f32 %v2153, %v2393
      %v2486 = vadd.f32 %v2154, %v2398
      %v2487 = vadd.f32 %v2155, %v2401
      %v2488 = vadd.f32 %v2156, %v2406
      %v2489 = vadd.f32 %v2157, %v2409
      %v2490 = vadd.f32 %v2158, %v2414
      %v2491 = vadd.f32 %v2159, %v2417
      %v2492 = vadd.f32 %v2160, %v2422
      %v2493 = vadd.f32 %v2161, %v2425
      %v2494 = vadd.f32 %v2162, %v2430
      %v2495 = vadd.f32 %v2163, %v2433
      %v2496 = vadd.f32 %v2164, %v2438
      %v2497 = vadd.f32 %v2165, %v2441
      %v2498 = vadd.f32 %v2166, %v2446
      %v2499 = vadd.f32 %v2167, %v2449
      %v2500 = vadd.f32 %v2168, %v2454
      %v2501 = vadd.f32 %v2169, %v2457
      %v2502 = vadd.f32 %v2170, %v2462
      %v2503 = vadd.f32 %v2171, %v2465
      %v2504 = vld [vmem:[%s246 + $0x25] sm:$0xff]
      %v2505 = vld [vmem:[%s246 + $0x2d] sm:$0xff]
      %v2506 = vld [vmem:[%s246 + $0x35] sm:$0xff]
      %v2507 = vld [vmem:[%s246 + $0x3d] sm:$0xff]
      %v2508 = vld [vmem:[%s246 + $0x45] sm:$0xff]
      %v2509 = vld [vmem:[%s246 + $0x4d] sm:$0xff]
      %v2510 = vld [vmem:[%s246 + $0x55] sm:$0xff]
      %v2511 = vld [vmem:[%s246 + $0x5d] sm:$0xff]
      %v2512 = vld [vmem:[%s246 + $0x65] sm:$0xff]
      %v2513 = vld [vmem:[%s246 + $0x6d] sm:$0xff]
      %v2514 = vld [vmem:[%s246 + $0x75] sm:$0xff]
      %v2515 = vld [vmem:[%s246 + $0x7d] sm:$0xff]
      %v2516 = vld [vmem:[%s246 + $0x85] sm:$0xff]
      %v2517 = vld [vmem:[%s246 + $0x8d] sm:$0xff]
      %v2518 = vld [vmem:[%s246 + $0x95] sm:$0xff]
      %v2519 = vld [vmem:[%s246 + $0x9d] sm:$0xff]
      %v2520 = vld [vmem:[%s246 + $0xa5] sm:$0xff]
      %v2521 = vld [vmem:[%s246 + $0xad] sm:$0xff]
      %v2522 = vld [vmem:[%s246 + $0xb5] sm:$0xff]
      %v2523 = vld [vmem:[%s246 + $0xbd] sm:$0xff]
      %v2524 = vld [vmem:[%s246 + $0xc5] sm:$0xff]
      %v2525 = vld [vmem:[%s246 + $0xcd] sm:$0xff]
      %v2526 = vld [vmem:[%s246 + $0xd5] sm:$0xff]
      %v2527 = vld [vmem:[%s246 + $0xdd] sm:$0xff]
      %v2528 = vld [vmem:[%s246 + $0xe5] sm:$0xff]
      %v2529 = vld [vmem:[%s246 + $0xed] sm:$0xff]
      %v2530 = vld [vmem:[%s246 + $0xf5] sm:$0xff]
      %v2531 = vld [vmem:[%s246 + $0xfd] sm:$0xff]
      %v2532 = vld [vmem:[%s246 + $0x105] sm:$0xff]
      %v2533 = vld [vmem:[%s246 + $0x10d] sm:$0xff]
      %v2534 = vld [vmem:[%s246 + $0x115] sm:$0xff]
      %v2535 = vld [vmem:[%s246 + $0x11d] sm:$0xff]
      %v2536 = vld [vmem:[%s246 + $0x125] sm:$0xff]
      %v2537 = vld [vmem:[%s246 + $0x12d] sm:$0xff]
      %v2538 = vld [vmem:[%s246 + $0x135] sm:$0xff]
      %v2539 = vld [vmem:[%s246 + $0x13d] sm:$0x3f]
      %v2540 = vpack.c.bf16 %v2505, %v2504
      %v2541 = vpack.c.bf16 %v2507, %v2506
      %v2542 = vpack.c.bf16 %v2509, %v2508
      %v2543 = vpack.c.bf16 %v2511, %v2510
      %v2544 = vpack.c.bf16 %v2513, %v2512
      %v2545 = vpack.c.bf16 %v2515, %v2514
      %v2546 = vpack.c.bf16 %v2517, %v2516
      %v2547 = vpack.c.bf16 %v2519, %v2518
      %v2548 = vpack.c.bf16 %v2521, %v2520
      %v2549 = vpack.c.bf16 %v2523, %v2522
      %v2550 = vpack.c.bf16 %v2525, %v2524
      %v2551 = vpack.c.bf16 %v2527, %v2526
      %v2552 = vpack.c.bf16 %v2529, %v2528
      %v2553 = vpack.c.bf16 %v2531, %v2530
      %v2554 = vpack.c.bf16 %v2533, %v2532
      %v2555 = vpack.c.bf16 %v2535, %v2534
      %v2556 = vpack.c.bf16 %v2537, %v2536
      %v2557 = vpack.c.bf16 %v2539, %v2538
      %s2558 = scalar_lea.vmem %s1, 448
      %v2559 = vld [vmem:[%s2558] sm:$0xf]
      %v2560 = vld [vmem:[%s2558 + $0x4] sm:$0xf]
      %v2561 = vld [vmem:[%s2558 + $0x8] sm:$0xf]
      %v2562 = vld [vmem:[%s2558 + $0xc] sm:$0xf]
      %v2563 = vld [vmem:[%s2558 + $0x10] sm:$0xf]
      %v2564 = vld [vmem:[%s2558 + $0x14] sm:$0xf]
      %v2565 = vld [vmem:[%s2558 + $0x18] sm:$0xf]
      %v2566 = vld [vmem:[%s2558 + $0x1c] sm:$0xf]
      %v2567 = vld [vmem:[%s2558 + $0x20] sm:$0xf]
      %v2568 = vld [vmem:[%s2558 + $0x24] sm:$0xf]
      %v2569 = vld [vmem:[%s2558 + $0x28] sm:$0xf]
      %v2570 = vld [vmem:[%s2558 + $0x2c] sm:$0xf]
      %v2571 = vld [vmem:[%s2558 + $0x30] sm:$0xf]
      %v2572 = vld [vmem:[%s2558 + $0x34] sm:$0xf]
      %v2573 = vld [vmem:[%s2558 + $0x38] sm:$0xf]
      %v2574 = vld [vmem:[%s2558 + $0x3c] sm:$0xf]
      %v2591 = vunpack.c.l.b16 %v2559
      %v2592 = vunpack.c.l.b16 %v2560
      %v2593 = vunpack.c.l.b16 %v2561
      %v2594 = vunpack.c.l.b16 %v2562
      %v2595 = vunpack.c.l.b16 %v2563
      %v2596 = vunpack.c.l.b16 %v2564
      %v2597 = vunpack.c.l.b16 %v2565
      %v2598 = vunpack.c.l.b16 %v2566
      %v2599 = vunpack.c.l.b16 %v2567
      %v2600 = vunpack.c.l.b16 %v2568
      %v2601 = vunpack.c.l.b16 %v2569
      %v2602 = vunpack.c.l.b16 %v2570
      %v2603 = vunpack.c.l.b16 %v2571
      %v2604 = vunpack.c.l.b16 %v2572
      %v2605 = vunpack.c.l.b16 %v2573
      %v2606 = vunpack.c.l.b16 %v2574
      %v2607 = vpack.c.b16 %v2592, %v2591
      %v2608 = vpack.c.b16 %v2594, %v2593
      %v2609 = vpack.c.b16 %v2596, %v2595
      %v2610 = vpack.c.b16 %v2598, %v2597
      %v2611 = vpack.c.b16 %v2600, %v2599
      %v2612 = vpack.c.b16 %v2602, %v2601
      %v2613 = vpack.c.b16 %v2604, %v2603
      %v2614 = vpack.c.b16 %v2606, %v2605
      %2623 = vmatprep.subr.bf16.mxu0 0
      %2624 = vmatpush1.bf16.msra.mxu0 %v2614
      %2625 = vmatprep.subr.bf16.mxu0 0
      %2626 = vmatpush1.bf16.msra.mxu0 %v2613
      %2627 = vmatprep.subr.bf16.mxu0 0
      %2628 = vmatpush1.bf16.msra.mxu0 %v2612
      %2629 = vmatprep.subr.bf16.mxu0 0
      %2630 = vmatpush1.bf16.msra.mxu0 %v2611
      %2631 = vmatprep.subr.bf16.mxu0 0
      %2632 = vmatpush1.bf16.msra.mxu0 %v2610
      %2633 = vmatprep.subr.bf16.mxu0 0
      %2634 = vmatpush1.bf16.msra.mxu0 %v2609
      %2635 = vmatprep.subr.bf16.mxu0 0
      %2636 = vmatpush1.bf16.msra.mxu0 %v2608
      %2637 = vmatprep.subr.bf16.mxu0 0
      %2638 = vmatpush1.bf16.msra.mxu0 %v2607
      %2639 = vmatprep.subr.bf16.mxu0 0
      %2640 = vmatpush2.bf16.msra.mxu0 0
      %2641 = vmatprep.subr.bf16.mxu0 0
      %2642 = vmatpush2.bf16.msra.mxu0 0
      %2643 = vmatprep.subr.bf16.mxu0 0
      %2644 = vmatpush2.bf16.msra.mxu0 0
      %2645 = vmatprep.subr.bf16.mxu0 0
      %2646 = vmatpush2.bf16.msra.mxu0 0
      %2647 = vmatprep.subr.bf16.mxu0 0
      %2648 = vmatpush2.bf16.msra.mxu0 0
      %2649 = vmatprep.subr.bf16.mxu0 0
      %2650 = vmatpush2.bf16.msra.mxu0 0
      %2651 = vmatprep.subr.bf16.mxu0 0
      %2652 = vmatpush2.bf16.msra.mxu0 0
      %2653 = vmatprep.subr.bf16.mxu0 0
      %2654 = vmatpush2.bf16.msra.mxu0 0
      %2655 = vmatprep.mubr.bf16.mxu0 0
      %2656 = vmatmul.mubr.bf16.gmra.mxu0 %v2540
      %v2657 = vpop.f32.mrf.mxu0
      %v2658 = vadd.f32 0.0, %v2657
      %v2659 = vpop.f32.mrf.mxu0
      %v2660 = vpop.f32.mrf.mxu0
      %v2661 = vadd.f32 0.0, %v2660
      %v2662 = vpop.f32.mrf.mxu0
      %2663 = vmatprep.mubr.bf16.mxu0 0
      %2664 = vmatmul.mubr.bf16.gmra.mxu0 %v2541
      %v2665 = vpop.f32.mrf.mxu0
      %v2666 = vadd.f32 0.0, %v2665
      %v2667 = vpop.f32.mrf.mxu0
      %v2668 = vpop.f32.mrf.mxu0
      %v2669 = vadd.f32 0.0, %v2668
      %v2670 = vpop.f32.mrf.mxu0
      %2671 = vmatprep.mubr.bf16.mxu0 0
      %2672 = vmatmul.mubr.bf16.gmra.mxu0 %v2542
      %v2673 = vpop.f32.mrf.mxu0
      %v2674 = vadd.f32 0.0, %v2673
      %v2675 = vpop.f32.mrf.mxu0
      %v2676 = vpop.f32.mrf.mxu0
      %v2677 = vadd.f32 0.0, %v2676
      %v2678 = vpop.f32.mrf.mxu0
      %2679 = vmatprep.mubr.bf16.mxu0 0
      %2680 = vmatmul.mubr.bf16.gmra.mxu0 %v2543
      %v2681 = vpop.f32.mrf.mxu0
      %v2682 = vadd.f32 0.0, %v2681
      %v2683 = vpop.f32.mrf.mxu0
      %v2684 = vpop.f32.mrf.mxu0
      %v2685 = vadd.f32 0.0, %v2684
      %v2686 = vpop.f32.mrf.mxu0
      %2687 = vmatprep.mubr.bf16.mxu0 0
      %2688 = vmatmul.mubr.bf16.gmra.mxu0 %v2544
      %v2689 = vpop.f32.mrf.mxu0
      %v2690 = vadd.f32 0.0, %v2689
      %v2691 = vpop.f32.mrf.mxu0
      %v2692 = vpop.f32.mrf.mxu0
      %v2693 = vadd.f32 0.0, %v2692
      %v2694 = vpop.f32.mrf.mxu0
      %2695 = vmatprep.mubr.bf16.mxu0 0
      %2696 = vmatmul.mubr.bf16.gmra.mxu0 %v2545
      %v2697 = vpop.f32.mrf.mxu0
      %v2698 = vadd.f32 0.0, %v2697
      %v2699 = vpop.f32.mrf.mxu0
      %v2700 = vpop.f32.mrf.mxu0
      %v2701 = vadd.f32 0.0, %v2700
      %v2702 = vpop.f32.mrf.mxu0
      %2703 = vmatprep.mubr.bf16.mxu0 0
      %2704 = vmatmul.mubr.bf16.gmra.mxu0 %v2546
      %v2705 = vpop.f32.mrf.mxu0
      %v2706 = vadd.f32 0.0, %v2705
      %v2707 = vpop.f32.mrf.mxu0
      %v2708 = vpop.f32.mrf.mxu0
      %v2709 = vadd.f32 0.0, %v2708
      %v2710 = vpop.f32.mrf.mxu0
      %2711 = vmatprep.mubr.bf16.mxu0 0
      %2712 = vmatmul.mubr.bf16.gmra.mxu0 %v2547
      %v2713 = vpop.f32.mrf.mxu0
      %v2714 = vadd.f32 0.0, %v2713
      %v2715 = vpop.f32.mrf.mxu0
      %v2716 = vpop.f32.mrf.mxu0
      %v2717 = vadd.f32 0.0, %v2716
      %v2718 = vpop.f32.mrf.mxu0
      %2719 = vmatprep.mubr.bf16.mxu0 0
      %2720 = vmatmul.mubr.bf16.gmra.mxu0 %v2548
      %v2721 = vpop.f32.mrf.mxu0
      %v2722 = vadd.f32 0.0, %v2721
      %v2723 = vpop.f32.mrf.mxu0
      %v2724 = vpop.f32.mrf.mxu0
      %v2725 = vadd.f32 0.0, %v2724
      %v2726 = vpop.f32.mrf.mxu0
      %2727 = vmatprep.mubr.bf16.mxu0 0
      %2728 = vmatmul.mubr.bf16.gmra.mxu0 %v2549
      %v2729 = vpop.f32.mrf.mxu0
      %v2730 = vadd.f32 0.0, %v2729
      %v2731 = vpop.f32.mrf.mxu0
      %v2732 = vpop.f32.mrf.mxu0
      %v2733 = vadd.f32 0.0, %v2732
      %v2734 = vpop.f32.mrf.mxu0
      %2735 = vmatprep.mubr.bf16.mxu0 0
      %2736 = vmatmul.mubr.bf16.gmra.mxu0 %v2550
      %v2737 = vpop.f32.mrf.mxu0
      %v2738 = vadd.f32 0.0, %v2737
      %v2739 = vpop.f32.mrf.mxu0
      %v2740 = vpop.f32.mrf.mxu0
      %v2741 = vadd.f32 0.0, %v2740
      %v2742 = vpop.f32.mrf.mxu0
      %2743 = vmatprep.mubr.bf16.mxu0 0
      %2744 = vmatmul.mubr.bf16.gmra.mxu0 %v2551
      %v2745 = vpop.f32.mrf.mxu0
      %v2746 = vadd.f32 0.0, %v2745
      %v2747 = vpop.f32.mrf.mxu0
      %v2748 = vpop.f32.mrf.mxu0
      %v2749 = vadd.f32 0.0, %v2748
      %v2750 = vpop.f32.mrf.mxu0
      %2751 = vmatprep.mubr.bf16.mxu0 0
      %2752 = vmatmul.mubr.bf16.gmra.mxu0 %v2552
      %v2753 = vpop.f32.mrf.mxu0
      %v2754 = vadd.f32 0.0, %v2753
      %v2755 = vpop.f32.mrf.mxu0
      %v2756 = vpop.f32.mrf.mxu0
      %v2757 = vadd.f32 0.0, %v2756
      %v2758 = vpop.f32.mrf.mxu0
      %2759 = vmatprep.mubr.bf16.mxu0 0
      %2760 = vmatmul.mubr.bf16.gmra.mxu0 %v2553
      %v2761 = vpop.f32.mrf.mxu0
      %v2762 = vadd.f32 0.0, %v2761
      %v2763 = vpop.f32.mrf.mxu0
      %v2764 = vpop.f32.mrf.mxu0
      %v2765 = vadd.f32 0.0, %v2764
      %v2766 = vpop.f32.mrf.mxu0
      %2767 = vmatprep.mubr.bf16.mxu0 0
      %2768 = vmatmul.mubr.bf16.gmra.mxu0 %v2554
      %v2769 = vpop.f32.mrf.mxu0
      %v2770 = vadd.f32 0.0, %v2769
      %v2771 = vpop.f32.mrf.mxu0
      %v2772 = vpop.f32.mrf.mxu0
      %v2773 = vadd.f32 0.0, %v2772
      %v2774 = vpop.f32.mrf.mxu0
      %2775 = vmatprep.mubr.bf16.mxu0 0
      %2776 = vmatmul.mubr.bf16.gmra.mxu0 %v2555
      %v2777 = vpop.f32.mrf.mxu0
      %v2778 = vadd.f32 0.0, %v2777
      %v2779 = vpop.f32.mrf.mxu0
      %v2780 = vpop.f32.mrf.mxu0
      %v2781 = vadd.f32 0.0, %v2780
      %v2782 = vpop.f32.mrf.mxu0
      %2783 = vmatprep.mubr.bf16.mxu0 0
      %2784 = vmatmul.mubr.bf16.gmra.mxu0 %v2556
      %v2785 = vpop.f32.mrf.mxu0
      %v2786 = vadd.f32 0.0, %v2785
      %v2787 = vpop.f32.mrf.mxu0
      %v2788 = vpop.f32.mrf.mxu0
      %v2789 = vadd.f32 0.0, %v2788
      %v2790 = vpop.f32.mrf.mxu0
      %2791 = vmatprep.mubr.bf16.mxu0 0
      %2792 = vmatmul.mubr.bf16.gmra.mxu0 %v2557
      %v2793 = vpop.f32.mrf.mxu0
      %v2794 = vadd.f32 0.0, %v2793
      %v2795 = vpop.f32.mrf.mxu0
      %v2796 = vpop.f32.mrf.mxu0
      %v2797 = vadd.f32 0.0, %v2796
      %v2798 = vpop.f32.mrf.mxu0
      %2799 = vdwg.mxu0
      %v2800 = vadd.f32 %v2468, %v2658
      %v2801 = vadd.f32 %v2469, %v2661
      %v2802 = vadd.f32 %v2470, %v2666
      %v2803 = vadd.f32 %v2471, %v2669
      %v2804 = vadd.f32 %v2472, %v2674
      %v2805 = vadd.f32 %v2473, %v2677
      %v2806 = vadd.f32 %v2474, %v2682
      %v2807 = vadd.f32 %v2475, %v2685
      %v2808 = vadd.f32 %v2476, %v2690
      %v2809 = vadd.f32 %v2477, %v2693
      %v2810 = vadd.f32 %v2478, %v2698
      %v2811 = vadd.f32 %v2479, %v2701
      %v2812 = vadd.f32 %v2480, %v2706
      %v2813 = vadd.f32 %v2481, %v2709
      %v2814 = vadd.f32 %v2482, %v2714
      %v2815 = vadd.f32 %v2483, %v2717
      %v2816 = vadd.f32 %v2484, %v2722
      %v2817 = vadd.f32 %v2485, %v2725
      %v2818 = vadd.f32 %v2486, %v2730
      %v2819 = vadd.f32 %v2487, %v2733
      %v2820 = vadd.f32 %v2488, %v2738
      %v2821 = vadd.f32 %v2489, %v2741
      %v2822 = vadd.f32 %v2490, %v2746
      %v2823 = vadd.f32 %v2491, %v2749
      %v2824 = vadd.f32 %v2492, %v2754
      %v2825 = vadd.f32 %v2493, %v2757
      %v2826 = vadd.f32 %v2494, %v2762
      %v2827 = vadd.f32 %v2495, %v2765
      %v2828 = vadd.f32 %v2496, %v2770
      %v2829 = vadd.f32 %v2497, %v2773
      %v2830 = vadd.f32 %v2498, %v2778
      %v2831 = vadd.f32 %v2499, %v2781
      %v2832 = vadd.f32 %v2500, %v2786
      %v2833 = vadd.f32 %v2501, %v2789
      %v2834 = vadd.f32 %v2502, %v2794
      %v2835 = vadd.f32 %v2503, %v2797
      %v2836 = vld [vmem:[%s246 + $0x26] sm:$0xff]
      %v2837 = vld [vmem:[%s246 + $0x2e] sm:$0xff]
      %v2838 = vld [vmem:[%s246 + $0x36] sm:$0xff]
      %v2839 = vld [vmem:[%s246 + $0x3e] sm:$0xff]
      %v2840 = vld [vmem:[%s246 + $0x46] sm:$0xff]
      %v2841 = vld [vmem:[%s246 + $0x4e] sm:$0xff]
      %v2842 = vld [vmem:[%s246 + $0x56] sm:$0xff]
      %v2843 = vld [vmem:[%s246 + $0x5e] sm:$0xff]
      %v2844 = vld [vmem:[%s246 + $0x66] sm:$0xff]
      %v2845 = vld [vmem:[%s246 + $0x6e] sm:$0xff]
      %v2846 = vld [vmem:[%s246 + $0x76] sm:$0xff]
      %v2847 = vld [vmem:[%s246 + $0x7e] sm:$0xff]
      %v2848 = vld [vmem:[%s246 + $0x86] sm:$0xff]
      %v2849 = vld [vmem:[%s246 + $0x8e] sm:$0xff]
      %v2850 = vld [vmem:[%s246 + $0x96] sm:$0xff]
      %v2851 = vld [vmem:[%s246 + $0x9e] sm:$0xff]
      %v2852 = vld [vmem:[%s246 + $0xa6] sm:$0xff]
      %v2853 = vld [vmem:[%s246 + $0xae] sm:$0xff]
      %v2854 = vld [vmem:[%s246 + $0xb6] sm:$0xff]
      %v2855 = vld [vmem:[%s246 + $0xbe] sm:$0xff]
      %v2856 = vld [vmem:[%s246 + $0xc6] sm:$0xff]
      %v2857 = vld [vmem:[%s246 + $0xce] sm:$0xff]
      %v2858 = vld [vmem:[%s246 + $0xd6] sm:$0xff]
      %v2859 = vld [vmem:[%s246 + $0xde] sm:$0xff]
      %v2860 = vld [vmem:[%s246 + $0xe6] sm:$0xff]
      %v2861 = vld [vmem:[%s246 + $0xee] sm:$0xff]
      %v2862 = vld [vmem:[%s246 + $0xf6] sm:$0xff]
      %v2863 = vld [vmem:[%s246 + $0xfe] sm:$0xff]
      %v2864 = vld [vmem:[%s246 + $0x106] sm:$0xff]
      %v2865 = vld [vmem:[%s246 + $0x10e] sm:$0xff]
      %v2866 = vld [vmem:[%s246 + $0x116] sm:$0xff]
      %v2867 = vld [vmem:[%s246 + $0x11e] sm:$0xff]
      %v2868 = vld [vmem:[%s246 + $0x126] sm:$0xff]
      %v2869 = vld [vmem:[%s246 + $0x12e] sm:$0xff]
      %v2870 = vld [vmem:[%s246 + $0x136] sm:$0xff]
      %v2871 = vld [vmem:[%s246 + $0x13e] sm:$0x3f]
      %v2872 = vpack.c.bf16 %v2837, %v2836
      %v2873 = vpack.c.bf16 %v2839, %v2838
      %v2874 = vpack.c.bf16 %v2841, %v2840
      %v2875 = vpack.c.bf16 %v2843, %v2842
      %v2876 = vpack.c.bf16 %v2845, %v2844
      %v2877 = vpack.c.bf16 %v2847, %v2846
      %v2878 = vpack.c.bf16 %v2849, %v2848
      %v2879 = vpack.c.bf16 %v2851, %v2850
      %v2880 = vpack.c.bf16 %v2853, %v2852
      %v2881 = vpack.c.bf16 %v2855, %v2854
      %v2882 = vpack.c.bf16 %v2857, %v2856
      %v2883 = vpack.c.bf16 %v2859, %v2858
      %v2884 = vpack.c.bf16 %v2861, %v2860
      %v2885 = vpack.c.bf16 %v2863, %v2862
      %v2886 = vpack.c.bf16 %v2865, %v2864
      %v2887 = vpack.c.bf16 %v2867, %v2866
      %v2888 = vpack.c.bf16 %v2869, %v2868
      %v2889 = vpack.c.bf16 %v2871, %v2870
      %s2890 = scalar_lea.vmem %s1, 512
      %v2891 = vld [vmem:[%s2890] sm:$0xf]
      %v2892 = vld [vmem:[%s2890 + $0x4] sm:$0xf]
      %v2893 = vld [vmem:[%s2890 + $0x8] sm:$0xf]
      %v2894 = vld [vmem:[%s2890 + $0xc] sm:$0xf]
      %v2895 = vld [vmem:[%s2890 + $0x10] sm:$0xf]
      %v2896 = vld [vmem:[%s2890 + $0x14] sm:$0xf]
      %v2897 = vld [vmem:[%s2890 + $0x18] sm:$0xf]
      %v2898 = vld [vmem:[%s2890 + $0x1c] sm:$0xf]
      %v2899 = vld [vmem:[%s2890 + $0x20] sm:$0xf]
      %v2900 = vld [vmem:[%s2890 + $0x24] sm:$0xf]
      %v2901 = vld [vmem:[%s2890 + $0x28] sm:$0xf]
      %v2902 = vld [vmem:[%s2890 + $0x2c] sm:$0xf]
      %v2903 = vld [vmem:[%s2890 + $0x30] sm:$0xf]
      %v2904 = vld [vmem:[%s2890 + $0x34] sm:$0xf]
      %v2905 = vld [vmem:[%s2890 + $0x38] sm:$0xf]
      %v2906 = vld [vmem:[%s2890 + $0x3c] sm:$0xf]
      %v2923 = vunpack.c.l.b16 %v2891
      %v2924 = vunpack.c.l.b16 %v2892
      %v2925 = vunpack.c.l.b16 %v2893
      %v2926 = vunpack.c.l.b16 %v2894
      %v2927 = vunpack.c.l.b16 %v2895
      %v2928 = vunpack.c.l.b16 %v2896
      %v2929 = vunpack.c.l.b16 %v2897
      %v2930 = vunpack.c.l.b16 %v2898
      %v2931 = vunpack.c.l.b16 %v2899
      %v2932 = vunpack.c.l.b16 %v2900
      %v2933 = vunpack.c.l.b16 %v2901
      %v2934 = vunpack.c.l.b16 %v2902
      %v2935 = vunpack.c.l.b16 %v2903
      %v2936 = vunpack.c.l.b16 %v2904
      %v2937 = vunpack.c.l.b16 %v2905
      %v2938 = vunpack.c.l.b16 %v2906
      %v2939 = vpack.c.b16 %v2924, %v2923
      %v2940 = vpack.c.b16 %v2926, %v2925
      %v2941 = vpack.c.b16 %v2928, %v2927
      %v2942 = vpack.c.b16 %v2930, %v2929
      %v2943 = vpack.c.b16 %v2932, %v2931
      %v2944 = vpack.c.b16 %v2934, %v2933
      %v2945 = vpack.c.b16 %v2936, %v2935
      %v2946 = vpack.c.b16 %v2938, %v2937
      %2955 = vmatprep.subr.bf16.mxu0 0
      %2956 = vmatpush1.bf16.msra.mxu0 %v2946
      %2957 = vmatprep.subr.bf16.mxu0 0
      %2958 = vmatpush1.bf16.msra.mxu0 %v2945
      %2959 = vmatprep.subr.bf16.mxu0 0
      %2960 = vmatpush1.bf16.msra.mxu0 %v2944
      %2961 = vmatprep.subr.bf16.mxu0 0
      %2962 = vmatpush1.bf16.msra.mxu0 %v2943
      %2963 = vmatprep.subr.bf16.mxu0 0
      %2964 = vmatpush1.bf16.msra.mxu0 %v2942
      %2965 = vmatprep.subr.bf16.mxu0 0
      %2966 = vmatpush1.bf16.msra.mxu0 %v2941
      %2967 = vmatprep.subr.bf16.mxu0 0
      %2968 = vmatpush1.bf16.msra.mxu0 %v2940
      %2969 = vmatprep.subr.bf16.mxu0 0
      %2970 = vmatpush1.bf16.msra.mxu0 %v2939
      %2971 = vmatprep.subr.bf16.mxu0 0
      %2972 = vmatpush2.bf16.msra.mxu0 0
      %2973 = vmatprep.subr.bf16.mxu0 0
      %2974 = vmatpush2.bf16.msra.mxu0 0
      %2975 = vmatprep.subr.bf16.mxu0 0
      %2976 = vmatpush2.bf16.msra.mxu0 0
      %2977 = vmatprep.subr.bf16.mxu0 0
      %2978 = vmatpush2.bf16.msra.mxu0 0
      %2979 = vmatprep.subr.bf16.mxu0 0
      %2980 = vmatpush2.bf16.msra.mxu0 0
      %2981 = vmatprep.subr.bf16.mxu0 0
      %2982 = vmatpush2.bf16.msra.mxu0 0
      %2983 = vmatprep.subr.bf16.mxu0 0
      %2984 = vmatpush2.bf16.msra.mxu0 0
      %2985 = vmatprep.subr.bf16.mxu0 0
      %2986 = vmatpush2.bf16.msra.mxu0 0
      %2987 = vmatprep.mubr.bf16.mxu0 0
      %2988 = vmatmul.mubr.bf16.gmra.mxu0 %v2872
      %v2989 = vpop.f32.mrf.mxu0
      %v2990 = vadd.f32 0.0, %v2989
      %v2991 = vpop.f32.mrf.mxu0
      %v2992 = vpop.f32.mrf.mxu0
      %v2993 = vadd.f32 0.0, %v2992
      %v2994 = vpop.f32.mrf.mxu0
      %2995 = vmatprep.mubr.bf16.mxu0 0
      %2996 = vmatmul.mubr.bf16.gmra.mxu0 %v2873
      %v2997 = vpop.f32.mrf.mxu0
      %v2998 = vadd.f32 0.0, %v2997
      %v2999 = vpop.f32.mrf.mxu0
      %v3000 = vpop.f32.mrf.mxu0
      %v3001 = vadd.f32 0.0, %v3000
      %v3002 = vpop.f32.mrf.mxu0
      %3003 = vmatprep.mubr.bf16.mxu0 0
      %3004 = vmatmul.mubr.bf16.gmra.mxu0 %v2874
      %v3005 = vpop.f32.mrf.mxu0
      %v3006 = vadd.f32 0.0, %v3005
      %v3007 = vpop.f32.mrf.mxu0
      %v3008 = vpop.f32.mrf.mxu0
      %v3009 = vadd.f32 0.0, %v3008
      %v3010 = vpop.f32.mrf.mxu0
      %3011 = vmatprep.mubr.bf16.mxu0 0
      %3012 = vmatmul.mubr.bf16.gmra.mxu0 %v2875
      %v3013 = vpop.f32.mrf.mxu0
      %v3014 = vadd.f32 0.0, %v3013
      %v3015 = vpop.f32.mrf.mxu0
      %v3016 = vpop.f32.mrf.mxu0
      %v3017 = vadd.f32 0.0, %v3016
      %v3018 = vpop.f32.mrf.mxu0
      %3019 = vmatprep.mubr.bf16.mxu0 0
      %3020 = vmatmul.mubr.bf16.gmra.mxu0 %v2876
      %v3021 = vpop.f32.mrf.mxu0
      %v3022 = vadd.f32 0.0, %v3021
      %v3023 = vpop.f32.mrf.mxu0
      %v3024 = vpop.f32.mrf.mxu0
      %v3025 = vadd.f32 0.0, %v3024
      %v3026 = vpop.f32.mrf.mxu0
      %3027 = vmatprep.mubr.bf16.mxu0 0
      %3028 = vmatmul.mubr.bf16.gmra.mxu0 %v2877
      %v3029 = vpop.f32.mrf.mxu0
      %v3030 = vadd.f32 0.0, %v3029
      %v3031 = vpop.f32.mrf.mxu0
      %v3032 = vpop.f32.mrf.mxu0
      %v3033 = vadd.f32 0.0, %v3032
      %v3034 = vpop.f32.mrf.mxu0
      %3035 = vmatprep.mubr.bf16.mxu0 0
      %3036 = vmatmul.mubr.bf16.gmra.mxu0 %v2878
      %v3037 = vpop.f32.mrf.mxu0
      %v3038 = vadd.f32 0.0, %v3037
      %v3039 = vpop.f32.mrf.mxu0
      %v3040 = vpop.f32.mrf.mxu0
      %v3041 = vadd.f32 0.0, %v3040
      %v3042 = vpop.f32.mrf.mxu0
      %3043 = vmatprep.mubr.bf16.mxu0 0
      %3044 = vmatmul.mubr.bf16.gmra.mxu0 %v2879
      %v3045 = vpop.f32.mrf.mxu0
      %v3046 = vadd.f32 0.0, %v3045
      %v3047 = vpop.f32.mrf.mxu0
      %v3048 = vpop.f32.mrf.mxu0
      %v3049 = vadd.f32 0.0, %v3048
      %v3050 = vpop.f32.mrf.mxu0
      %3051 = vmatprep.mubr.bf16.mxu0 0
      %3052 = vmatmul.mubr.bf16.gmra.mxu0 %v2880
      %v3053 = vpop.f32.mrf.mxu0
      %v3054 = vadd.f32 0.0, %v3053
      %v3055 = vpop.f32.mrf.mxu0
      %v3056 = vpop.f32.mrf.mxu0
      %v3057 = vadd.f32 0.0, %v3056
      %v3058 = vpop.f32.mrf.mxu0
      %3059 = vmatprep.mubr.bf16.mxu0 0
      %3060 = vmatmul.mubr.bf16.gmra.mxu0 %v2881
      %v3061 = vpop.f32.mrf.mxu0
      %v3062 = vadd.f32 0.0, %v3061
      %v3063 = vpop.f32.mrf.mxu0
      %v3064 = vpop.f32.mrf.mxu0
      %v3065 = vadd.f32 0.0, %v3064
      %v3066 = vpop.f32.mrf.mxu0
      %3067 = vmatprep.mubr.bf16.mxu0 0
      %3068 = vmatmul.mubr.bf16.gmra.mxu0 %v2882
      %v3069 = vpop.f32.mrf.mxu0
      %v3070 = vadd.f32 0.0, %v3069
      %v3071 = vpop.f32.mrf.mxu0
      %v3072 = vpop.f32.mrf.mxu0
      %v3073 = vadd.f32 0.0, %v3072
      %v3074 = vpop.f32.mrf.mxu0
      %3075 = vmatprep.mubr.bf16.mxu0 0
      %3076 = vmatmul.mubr.bf16.gmra.mxu0 %v2883
      %v3077 = vpop.f32.mrf.mxu0
      %v3078 = vadd.f32 0.0, %v3077
      %v3079 = vpop.f32.mrf.mxu0
      %v3080 = vpop.f32.mrf.mxu0
      %v3081 = vadd.f32 0.0, %v3080
      %v3082 = vpop.f32.mrf.mxu0
      %3083 = vmatprep.mubr.bf16.mxu0 0
      %3084 = vmatmul.mubr.bf16.gmra.mxu0 %v2884
      %v3085 = vpop.f32.mrf.mxu0
      %v3086 = vadd.f32 0.0, %v3085
      %v3087 = vpop.f32.mrf.mxu0
      %v3088 = vpop.f32.mrf.mxu0
      %v3089 = vadd.f32 0.0, %v3088
      %v3090 = vpop.f32.mrf.mxu0
      %3091 = vmatprep.mubr.bf16.mxu0 0
      %3092 = vmatmul.mubr.bf16.gmra.mxu0 %v2885
      %v3093 = vpop.f32.mrf.mxu0
      %v3094 = vadd.f32 0.0, %v3093
      %v3095 = vpop.f32.mrf.mxu0
      %v3096 = vpop.f32.mrf.mxu0
      %v3097 = vadd.f32 0.0, %v3096
      %v3098 = vpop.f32.mrf.mxu0
      %3099 = vmatprep.mubr.bf16.mxu0 0
      %3100 = vmatmul.mubr.bf16.gmra.mxu0 %v2886
      %v3101 = vpop.f32.mrf.mxu0
      %v3102 = vadd.f32 0.0, %v3101
      %v3103 = vpop.f32.mrf.mxu0
      %v3104 = vpop.f32.mrf.mxu0
      %v3105 = vadd.f32 0.0, %v3104
      %v3106 = vpop.f32.mrf.mxu0
      %3107 = vmatprep.mubr.bf16.mxu0 0
      %3108 = vmatmul.mubr.bf16.gmra.mxu0 %v2887
      %v3109 = vpop.f32.mrf.mxu0
      %v3110 = vadd.f32 0.0, %v3109
      %v3111 = vpop.f32.mrf.mxu0
      %v3112 = vpop.f32.mrf.mxu0
      %v3113 = vadd.f32 0.0, %v3112
      %v3114 = vpop.f32.mrf.mxu0
      %3115 = vmatprep.mubr.bf16.mxu0 0
      %3116 = vmatmul.mubr.bf16.gmra.mxu0 %v2888
      %v3117 = vpop.f32.mrf.mxu0
      %v3118 = vadd.f32 0.0, %v3117
      %v3119 = vpop.f32.mrf.mxu0
      %v3120 = vpop.f32.mrf.mxu0
      %v3121 = vadd.f32 0.0, %v3120
      %v3122 = vpop.f32.mrf.mxu0
      %3123 = vmatprep.mubr.bf16.mxu0 0
      %3124 = vmatmul.mubr.bf16.gmra.mxu0 %v2889
      %v3125 = vpop.f32.mrf.mxu0
      %v3126 = vadd.f32 0.0, %v3125
      %v3127 = vpop.f32.mrf.mxu0
      %v3128 = vpop.f32.mrf.mxu0
      %v3129 = vadd.f32 0.0, %v3128
      %v3130 = vpop.f32.mrf.mxu0
      %3131 = vdwg.mxu0
      %v3132 = vadd.f32 %v2800, %v2990
      %v3133 = vadd.f32 %v2801, %v2993
      %v3134 = vadd.f32 %v2802, %v2998
      %v3135 = vadd.f32 %v2803, %v3001
      %v3136 = vadd.f32 %v2804, %v3006
      %v3137 = vadd.f32 %v2805, %v3009
      %v3138 = vadd.f32 %v2806, %v3014
      %v3139 = vadd.f32 %v2807, %v3017
      %v3140 = vadd.f32 %v2808, %v3022
      %v3141 = vadd.f32 %v2809, %v3025
      %v3142 = vadd.f32 %v2810, %v3030
      %v3143 = vadd.f32 %v2811, %v3033
      %v3144 = vadd.f32 %v2812, %v3038
      %v3145 = vadd.f32 %v2813, %v3041
      %v3146 = vadd.f32 %v2814, %v3046
      %v3147 = vadd.f32 %v2815, %v3049
      %v3148 = vadd.f32 %v2816, %v3054
      %v3149 = vadd.f32 %v2817, %v3057
      %v3150 = vadd.f32 %v2818, %v3062
      %v3151 = vadd.f32 %v2819, %v3065
      %v3152 = vadd.f32 %v2820, %v3070
      %v3153 = vadd.f32 %v2821, %v3073
      %v3154 = vadd.f32 %v2822, %v3078
      %v3155 = vadd.f32 %v2823, %v3081
      %v3156 = vadd.f32 %v2824, %v3086
      %v3157 = vadd.f32 %v2825, %v3089
      %v3158 = vadd.f32 %v2826, %v3094
      %v3159 = vadd.f32 %v2827, %v3097
      %v3160 = vadd.f32 %v2828, %v3102
      %v3161 = vadd.f32 %v2829, %v3105
      %v3162 = vadd.f32 %v2830, %v3110
      %v3163 = vadd.f32 %v2831, %v3113
      %v3164 = vadd.f32 %v2832, %v3118
      %v3165 = vadd.f32 %v2833, %v3121
      %v3166 = vadd.f32 %v2834, %v3126
      %v3167 = vadd.f32 %v2835, %v3129
      %vm3168 = vcmp.gt.f32.partialorder %v3132, 0.0
      %vm3169 = vcmp.gt.f32.partialorder %v3133, 0.0
      %vm3170 = vcmp.gt.f32.partialorder %v3134, 0.0
      %vm3171 = vcmp.gt.f32.partialorder %v3135, 0.0
      %vm3172 = vcmp.gt.f32.partialorder %v3136, 0.0
      %vm3173 = vcmp.gt.f32.partialorder %v3137, 0.0
      %vm3174 = vcmp.gt.f32.partialorder %v3138, 0.0
      %vm3175 = vcmp.gt.f32.partialorder %v3139, 0.0
      %vm3176 = vcmp.gt.f32.partialorder %v3140, 0.0
      %vm3177 = vcmp.gt.f32.partialorder %v3141, 0.0
      %vm3178 = vcmp.gt.f32.partialorder %v3142, 0.0
      %vm3179 = vcmp.gt.f32.partialorder %v3143, 0.0
      %vm3180 = vcmp.gt.f32.partialorder %v3144, 0.0
      %vm3181 = vcmp.gt.f32.partialorder %v3145, 0.0
      %vm3182 = vcmp.gt.f32.partialorder %v3146, 0.0
      %vm3183 = vcmp.gt.f32.partialorder %v3147, 0.0
      %vm3184 = vcmp.gt.f32.partialorder %v3148, 0.0
      %vm3185 = vcmp.gt.f32.partialorder %v3149, 0.0
      %vm3186 = vcmp.gt.f32.partialorder %v3150, 0.0
      %vm3187 = vcmp.gt.f32.partialorder %v3151, 0.0
      %vm3188 = vcmp.gt.f32.partialorder %v3152, 0.0
      %vm3189 = vcmp.gt.f32.partialorder %v3153, 0.0
      %vm3190 = vcmp.gt.f32.partialorder %v3154, 0.0
      %vm3191 = vcmp.gt.f32.partialorder %v3155, 0.0
      %vm3192 = vcmp.gt.f32.partialorder %v3156, 0.0
      %vm3193 = vcmp.gt.f32.partialorder %v3157, 0.0
      %vm3194 = vcmp.gt.f32.partialorder %v3158, 0.0
      %vm3195 = vcmp.gt.f32.partialorder %v3159, 0.0
      %vm3196 = vcmp.gt.f32.partialorder %v3160, 0.0
      %vm3197 = vcmp.gt.f32.partialorder %v3161, 0.0
      %vm3198 = vcmp.gt.f32.partialorder %v3162, 0.0
      %vm3199 = vcmp.gt.f32.partialorder %v3163, 0.0
      %vm3200 = vcmp.gt.f32.partialorder %v3164, 0.0
      %vm3201 = vcmp.gt.f32.partialorder %v3165, 0.0
      %vm3202 = vcmp.gt.f32.partialorder %v3166, 0.0
      %vm3203 = vcmp.gt.f32.partialorder %v3167, 0.0
      %v3204 = vld [vmem:[%s2] sm:$0x1]
      %v3206 = vlaneseq
      %v3207 = vshrl.u32 %v3206, 7
      %v3208 = vsub.s32 0, %v3207
      %v3209 = vrot.slane %v3204, %v3208
      %v3211 = vmul.f32 %v3132, %v3209
      %v3212 = vmul.f32 %v3133, %v3209
      %v3213 = vmul.f32 %v3134, %v3209
      %v3214 = vmul.f32 %v3135, %v3209
      %v3215 = vmul.f32 %v3136, %v3209
      %v3216 = vmul.f32 %v3137, %v3209
      %v3217 = vmul.f32 %v3138, %v3209
      %v3218 = vmul.f32 %v3139, %v3209
      %v3219 = vmul.f32 %v3140, %v3209
      %v3220 = vmul.f32 %v3141, %v3209
      %v3221 = vmul.f32 %v3142, %v3209
      %v3222 = vmul.f32 %v3143, %v3209
      %v3223 = vmul.f32 %v3144, %v3209
      %v3224 = vmul.f32 %v3145, %v3209
      %v3225 = vmul.f32 %v3146, %v3209
      %v3226 = vmul.f32 %v3147, %v3209
      %v3227 = vmul.f32 %v3148, %v3209
      %v3228 = vmul.f32 %v3149, %v3209
      %v3229 = vmul.f32 %v3150, %v3209
      %v3230 = vmul.f32 %v3151, %v3209
      %v3231 = vmul.f32 %v3152, %v3209
      %v3232 = vmul.f32 %v3153, %v3209
      %v3233 = vmul.f32 %v3154, %v3209
      %v3234 = vmul.f32 %v3155, %v3209
      %v3235 = vmul.f32 %v3156, %v3209
      %v3236 = vmul.f32 %v3157, %v3209
      %v3237 = vmul.f32 %v3158, %v3209
      %v3238 = vmul.f32 %v3159, %v3209
      %v3239 = vmul.f32 %v3160, %v3209
      %v3240 = vmul.f32 %v3161, %v3209
      %v3241 = vmul.f32 %v3162, %v3209
      %v3242 = vmul.f32 %v3163, %v3209
      %v3243 = vmul.f32 %v3164, %v3209
      %v3244 = vmul.f32 %v3165, %v3209
      %v3245 = vmul.f32 %v3166, %v3209
      %v3246 = vmul.f32 %v3167, %v3209
      %v3247 = vsel %vm3168, %v3132, %v3211
      %v3248 = vsel %vm3169, %v3133, %v3212
      %v3249 = vsel %vm3170, %v3134, %v3213
      %v3250 = vsel %vm3171, %v3135, %v3214
      %v3251 = vsel %vm3172, %v3136, %v3215
      %v3252 = vsel %vm3173, %v3137, %v3216
      %v3253 = vsel %vm3174, %v3138, %v3217
      %v3254 = vsel %vm3175, %v3139, %v3218
      %v3255 = vsel %vm3176, %v3140, %v3219
      %v3256 = vsel %vm3177, %v3141, %v3220
      %v3257 = vsel %vm3178, %v3142, %v3221
      %v3258 = vsel %vm3179, %v3143, %v3222
      %v3259 = vsel %vm3180, %v3144, %v3223
      %v3260 = vsel %vm3181, %v3145, %v3224
      %v3261 = vsel %vm3182, %v3146, %v3225
      %v3262 = vsel %vm3183, %v3147, %v3226
      %v3263 = vsel %vm3184, %v3148, %v3227
      %v3264 = vsel %vm3185, %v3149, %v3228
      %v3265 = vsel %vm3186, %v3150, %v3229
      %v3266 = vsel %vm3187, %v3151, %v3230
      %v3267 = vsel %vm3188, %v3152, %v3231
      %v3268 = vsel %vm3189, %v3153, %v3232
      %v3269 = vsel %vm3190, %v3154, %v3233
      %v3270 = vsel %vm3191, %v3155, %v3234
      %v3271 = vsel %vm3192, %v3156, %v3235
      %v3272 = vsel %vm3193, %v3157, %v3236
      %v3273 = vsel %vm3194, %v3158, %v3237
      %v3274 = vsel %vm3195, %v3159, %v3238
      %v3275 = vsel %vm3196, %v3160, %v3239
      %v3276 = vsel %vm3197, %v3161, %v3240
      %v3277 = vsel %vm3198, %v3162, %v3241
      %v3278 = vsel %vm3199, %v3163, %v3242
      %v3279 = vsel %vm3200, %v3164, %v3243
      %v3280 = vsel %vm3201, %v3165, %v3244
      %v3281 = vsel %vm3202, %v3166, %v3245
      %v3282 = vsel %vm3203, %v3167, %v3246
      %3283 = vst [vmem:[#allocation2] sm:$0xff] 0.0
      %3284 = vst [vmem:[#allocation2 + $0x8] sm:$0xff] 0.0
      %3285 = vst [vmem:[#allocation2 + $0x10] sm:$0x7] 0.0
      %v3286 = vld [vmem:[%s5] sm:$0xff]
      %v3287 = vld [vmem:[%s5 + $0x8] sm:$0xff]
      %v3288 = vld [vmem:[%s5 + $0x10] sm:$0xff]
      %v3289 = vld [vmem:[%s5 + $0x18] sm:$0xff]
      %v3290 = vld [vmem:[%s5 + $0x20] sm:$0xff]
      %v3291 = vld [vmem:[%s5 + $0x28] sm:$0xff]
      %v3292 = vld [vmem:[%s5 + $0x30] sm:$0xff]
      %v3293 = vld [vmem:[%s5 + $0x38] sm:$0xff]
      %v3294 = vld [vmem:[%s5 + $0x40] sm:$0xff]
      %v3295 = vld [vmem:[%s5 + $0x48] sm:$0xff]
      %v3296 = vld [vmem:[%s5 + $0x50] sm:$0xff]
      %v3297 = vld [vmem:[%s5 + $0x58] sm:$0xff]
      %v3298 = vld [vmem:[%s5 + $0x60] sm:$0xff]
      %v3299 = vld [vmem:[%s5 + $0x68] sm:$0xff]
      %v3300 = vld [vmem:[%s5 + $0x70] sm:$0xff]
      %v3301 = vld [vmem:[%s5 + $0x78] sm:$0xff]
      %v3302 = vld [vmem:[%s5 + $0x80] sm:$0xff]
      %v3303 = vld [vmem:[%s5 + $0x88] sm:$0xff]
      %v3304 = vld [vmem:[%s5 + $0x90] sm:$0xff]
      %v3305 = vld [vmem:[%s5 + $0x98] sm:$0xff]
      %v3306 = vld [vmem:[%s5 + $0xa0] sm:$0xff]
      %v3307 = vld [vmem:[%s5 + $0xa8] sm:$0xff]
      %v3308 = vld [vmem:[%s5 + $0xb0] sm:$0xff]
      %v3309 = vld [vmem:[%s5 + $0xb8] sm:$0xff]
      %v3310 = vld [vmem:[%s5 + $0xc0] sm:$0xff]
      %v3311 = vld [vmem:[%s5 + $0xc8] sm:$0xff]
      %v3312 = vld [vmem:[%s5 + $0xd0] sm:$0xff]
      %v3313 = vld [vmem:[%s5 + $0xd8] sm:$0xff]
      %v3314 = vld [vmem:[%s5 + $0xe0] sm:$0xff]
      %v3315 = vld [vmem:[%s5 + $0xe8] sm:$0xff]
      %v3316 = vld [vmem:[%s5 + $0xf0] sm:$0xff]
      %v3317 = vld [vmem:[%s5 + $0xf8] sm:$0xff]
      %v3318 = vld [vmem:[%s5 + $0x100] sm:$0xff]
      %v3319 = vld [vmem:[%s5 + $0x108] sm:$0xff]
      %v3320 = vld [vmem:[%s5 + $0x110] sm:$0xff]
      %v3321 = vld [vmem:[%s5 + $0x118] sm:$0x3f]
      %3323 = vset.pattern.permute.xlu0 0
      %3324 = vperm.xlu0 %3323, %v3286
      %v3325 = vpop.permute.xlu0 %3324
      %3328 = vset.pattern.permute.xlu0 0
      %3329 = vperm.xlu0 %3328, %v3287
      %v3330 = vpop.permute.xlu0 %3329
      %3333 = vset.pattern.permute.xlu0 0
      %3334 = vperm.xlu0 %3333, %v3288
      %v3335 = vpop.permute.xlu0 %3334
      %3338 = vset.pattern.permute.xlu0 0
      %3339 = vperm.xlu0 %3338, %v3289
      %v3340 = vpop.permute.xlu0 %3339
      %3343 = vset.pattern.permute.xlu0 0
      %3344 = vperm.xlu0 %3343, %v3290
      %v3345 = vpop.permute.xlu0 %3344
      %3348 = vset.pattern.permute.xlu0 0
      %3349 = vperm.xlu0 %3348, %v3291
      %v3350 = vpop.permute.xlu0 %3349
      %3353 = vset.pattern.permute.xlu0 0
      %3354 = vperm.xlu0 %3353, %v3292
      %v3355 = vpop.permute.xlu0 %3354
      %3358 = vset.pattern.permute.xlu0 0
      %3359 = vperm.xlu0 %3358, %v3293
      %v3360 = vpop.permute.xlu0 %3359
      %3363 = vset.pattern.permute.xlu0 0
      %3364 = vperm.xlu0 %3363, %v3294
      %v3365 = vpop.permute.xlu0 %3364
      %3368 = vset.pattern.permute.xlu0 0
      %3369 = vperm.xlu0 %3368, %v3295
      %v3370 = vpop.permute.xlu0 %3369
      %3373 = vset.pattern.permute.xlu0 0
      %3374 = vperm.xlu0 %3373, %v3296
      %v3375 = vpop.permute.xlu0 %3374
      %3378 = vset.pattern.permute.xlu0 0
      %3379 = vperm.xlu0 %3378, %v3297
      %v3380 = vpop.permute.xlu0 %3379
      %3383 = vset.pattern.permute.xlu0 0
      %3384 = vperm.xlu0 %3383, %v3298
      %v3385 = vpop.permute.xlu0 %3384
      %3388 = vset.pattern.permute.xlu0 0
      %3389 = vperm.xlu0 %3388, %v3299
      %v3390 = vpop.permute.xlu0 %3389
      %3393 = vset.pattern.permute.xlu0 0
      %3394 = vperm.xlu0 %3393, %v3300
      %v3395 = vpop.permute.xlu0 %3394
      %3398 = vset.pattern.permute.xlu0 0
      %3399 = vperm.xlu0 %3398, %v3301
      %v3400 = vpop.permute.xlu0 %3399
      %3403 = vset.pattern.permute.xlu0 0
      %3404 = vperm.xlu0 %3403, %v3302
      %v3405 = vpop.permute.xlu0 %3404
      %3408 = vset.pattern.permute.xlu0 0
      %3409 = vperm.xlu0 %3408, %v3303
      %v3410 = vpop.permute.xlu0 %3409
      %3413 = vset.pattern.permute.xlu0 0
      %3414 = vperm.xlu0 %3413, %v3304
      %v3415 = vpop.permute.xlu0 %3414
      %3418 = vset.pattern.permute.xlu0 0
      %3419 = vperm.xlu0 %3418, %v3305
      %v3420 = vpop.permute.xlu0 %3419
      %3423 = vset.pattern.permute.xlu0 0
      %3424 = vperm.xlu0 %3423, %v3306
      %v3425 = vpop.permute.xlu0 %3424
      %3428 = vset.pattern.permute.xlu0 0
      %3429 = vperm.xlu0 %3428, %v3307
      %v3430 = vpop.permute.xlu0 %3429
      %3433 = vset.pattern.permute.xlu0 0
      %3434 = vperm.xlu0 %3433, %v3308
      %v3435 = vpop.permute.xlu0 %3434
      %3438 = vset.pattern.permute.xlu0 0
      %3439 = vperm.xlu0 %3438, %v3309
      %v3440 = vpop.permute.xlu0 %3439
      %3443 = vset.pattern.permute.xlu0 0
      %3444 = vperm.xlu0 %3443, %v3310
      %v3445 = vpop.permute.xlu0 %3444
      %3448 = vset.pattern.permute.xlu0 0
      %3449 = vperm.xlu0 %3448, %v3311
      %v3450 = vpop.permute.xlu0 %3449
      %3453 = vset.pattern.permute.xlu0 0
      %3454 = vperm.xlu0 %3453, %v3312
      %v3455 = vpop.permute.xlu0 %3454
      %3458 = vset.pattern.permute.xlu0 0
      %3459 = vperm.xlu0 %3458, %v3313
      %v3460 = vpop.permute.xlu0 %3459
      %3463 = vset.pattern.permute.xlu0 0
      %3464 = vperm.xlu0 %3463, %v3314
      %v3465 = vpop.permute.xlu0 %3464
      %3468 = vset.pattern.permute.xlu0 0
      %3469 = vperm.xlu0 %3468, %v3315
      %v3470 = vpop.permute.xlu0 %3469
      %3473 = vset.pattern.permute.xlu0 0
      %3474 = vperm.xlu0 %3473, %v3316
      %v3475 = vpop.permute.xlu0 %3474
      %3478 = vset.pattern.permute.xlu0 0
      %3479 = vperm.xlu0 %3478, %v3317
      %v3480 = vpop.permute.xlu0 %3479
      %3483 = vset.pattern.permute.xlu0 0
      %3484 = vperm.xlu0 %3483, %v3318
      %v3485 = vpop.permute.xlu0 %3484
      %3488 = vset.pattern.permute.xlu0 0
      %3489 = vperm.xlu0 %3488, %v3319
      %v3490 = vpop.permute.xlu0 %3489
      %3493 = vset.pattern.permute.xlu0 0
      %3494 = vperm.xlu0 %3493, %v3320
      %v3495 = vpop.permute.xlu0 %3494
      %3498 = vset.pattern.permute.xlu0 0
      %3499 = vperm.xlu0 %3498, %v3321
      %v3500 = vpop.permute.xlu0 %3499
      %v3502 = vmul.f32 %v3247, %v3325
      %v3503 = vmul.f32 %v3248, %v3330
      %v3504 = vmul.f32 %v3249, %v3335
      %v3505 = vmul.f32 %v3250, %v3340
      %v3506 = vmul.f32 %v3251, %v3345
      %v3507 = vmul.f32 %v3252, %v3350
      %v3508 = vmul.f32 %v3253, %v3355
      %v3509 = vmul.f32 %v3254, %v3360
      %v3510 = vmul.f32 %v3255, %v3365
      %v3511 = vmul.f32 %v3256, %v3370
      %v3512 = vmul.f32 %v3257, %v3375
      %v3513 = vmul.f32 %v3258, %v3380
      %v3514 = vmul.f32 %v3259, %v3385
      %v3515 = vmul.f32 %v3260, %v3390
      %v3516 = vmul.f32 %v3261, %v3395
      %v3517 = vmul.f32 %v3262, %v3400
      %v3518 = vmul.f32 %v3263, %v3405
      %v3519 = vmul.f32 %v3264, %v3410
      %v3520 = vmul.f32 %v3265, %v3415
      %v3521 = vmul.f32 %v3266, %v3420
      %v3522 = vmul.f32 %v3267, %v3425
      %v3523 = vmul.f32 %v3268, %v3430
      %v3524 = vmul.f32 %v3269, %v3435
      %v3525 = vmul.f32 %v3270, %v3440
      %v3526 = vmul.f32 %v3271, %v3445
      %v3527 = vmul.f32 %v3272, %v3450
      %v3528 = vmul.f32 %v3273, %v3455
      %v3529 = vmul.f32 %v3274, %v3460
      %v3530 = vmul.f32 %v3275, %v3465
      %v3531 = vmul.f32 %v3276, %v3470
      %v3532 = vmul.f32 %v3277, %v3475
      %v3533 = vmul.f32 %v3278, %v3480
      %v3534 = vmul.f32 %v3279, %v3485
      %v3535 = vmul.f32 %v3280, %v3490
      %v3536 = vmul.f32 %v3281, %v3495
      %v3537 = vmul.f32 %v3282, %v3500
      %3538 = vst [vmem:[#allocation2 + $0x13] sm:$0xff] %v3502
      %3539 = vst [vmem:[#allocation2 + $0x1b] sm:$0xff] %v3503
      %3540 = vst [vmem:[#allocation2 + $0x23] sm:$0xff] %v3504
      %3541 = vst [vmem:[#allocation2 + $0x2b] sm:$0xff] %v3505
      %3542 = vst [vmem:[#allocation2 + $0x33] sm:$0xff] %v3506
      %3543 = vst [vmem:[#allocation2 + $0x3b] sm:$0xff] %v3507
      %3544 = vst [vmem:[#allocation2 + $0x43] sm:$0xff] %v3508
      %3545 = vst [vmem:[#allocation2 + $0x4b] sm:$0xff] %v3509
      %3546 = vst [vmem:[#allocation2 + $0x53] sm:$0xff] %v3510
      %3547 = vst [vmem:[#allocation2 + $0x5b] sm:$0xff] %v3511
      %3548 = vst [vmem:[#allocation2 + $0x63] sm:$0xff] %v3512
      %3549 = vst [vmem:[#allocation2 + $0x6b] sm:$0xff] %v3513
      %3550 = vst [vmem:[#allocation2 + $0x73] sm:$0xff] %v3514
      %3551 = vst [vmem:[#allocation2 + $0x7b] sm:$0xff] %v3515
      %3552 = vst [vmem:[#allocation2 + $0x83] sm:$0xff] %v3516
      %3553 = vst [vmem:[#allocation2 + $0x8b] sm:$0xff] %v3517
      %3554 = vst [vmem:[#allocation2 + $0x93] sm:$0xff] %v3518
      %3555 = vst [vmem:[#allocation2 + $0x9b] sm:$0xff] %v3519
      %3556 = vst [vmem:[#allocation2 + $0xa3] sm:$0xff] %v3520
      %3557 = vst [vmem:[#allocation2 + $0xab] sm:$0xff] %v3521
      %3558 = vst [vmem:[#allocation2 + $0xb3] sm:$0xff] %v3522
      %3559 = vst [vmem:[#allocation2 + $0xbb] sm:$0xff] %v3523
      %3560 = vst [vmem:[#allocation2 + $0xc3] sm:$0xff] %v3524
      %3561 = vst [vmem:[#allocation2 + $0xcb] sm:$0xff] %v3525
      %3562 = vst [vmem:[#allocation2 + $0xd3] sm:$0xff] %v3526
      %3563 = vst [vmem:[#allocation2 + $0xdb] sm:$0xff] %v3527
      %3564 = vst [vmem:[#allocation2 + $0xe3] sm:$0xff] %v3528
      %3565 = vst [vmem:[#allocation2 + $0xeb] sm:$0xff] %v3529
      %3566 = vst [vmem:[#allocation2 + $0xf3] sm:$0xff] %v3530
      %3567 = vst [vmem:[#allocation2 + $0xfb] sm:$0xff] %v3531
      %3568 = vst [vmem:[#allocation2 + $0x103] sm:$0xff] %v3532
      %3569 = vst [vmem:[#allocation2 + $0x10b] sm:$0xff] %v3533
      %3570 = vst [vmem:[#allocation2 + $0x113] sm:$0xff] %v3534
      %3571 = vst [vmem:[#allocation2 + $0x11b] sm:$0xff] %v3535
      %3572 = vst [vmem:[#allocation2 + $0x123] sm:$0xff] %v3536
      %3573 = vst [vmem:[#allocation2 + $0x12b] sm:$0x3f] %v3537
      %3574 = vst [vmem:[#allocation2 + $0x131] sm:$0xff] 0.0
      %3575 = vst [vmem:[#allocation2 + $0x139] sm:$0xff] 0.0
      %3576 = vst [vmem:[#allocation2 + $0x141] sm:$0x7] 0.0
      %v3577 = vld [vmem:[#allocation2] sm:$0xff]
      %v3578 = vld [vmem:[#allocation2 + $0x8] sm:$0xff]
      %v3579 = vld [vmem:[#allocation2 + $0x10] sm:$0xff]
      %v3580 = vld [vmem:[#allocation2 + $0x18] sm:$0xff]
      %v3581 = vld [vmem:[#allocation2 + $0x20] sm:$0xff]
      %v3582 = vld [vmem:[#allocation2 + $0x28] sm:$0xff]
      %v3583 = vld [vmem:[#allocation2 + $0x30] sm:$0xff]
      %v3584 = vld [vmem:[#allocation2 + $0x38] sm:$0xff]
      %v3585 = vld [vmem:[#allocation2 + $0x40] sm:$0xff]
      %v3586 = vld [vmem:[#allocation2 + $0x48] sm:$0xff]
      %v3587 = vld [vmem:[#allocation2 + $0x50] sm:$0xff]
      %v3588 = vld [vmem:[#allocation2 + $0x58] sm:$0xff]
      %v3589 = vld [vmem:[#allocation2 + $0x60] sm:$0xff]
      %v3590 = vld [vmem:[#allocation2 + $0x68] sm:$0xff]
      %v3591 = vld [vmem:[#allocation2 + $0x70] sm:$0xff]
      %v3592 = vld [vmem:[#allocation2 + $0x78] sm:$0xff]
      %v3593 = vld [vmem:[#allocation2 + $0x80] sm:$0xff]
      %v3594 = vld [vmem:[#allocation2 + $0x88] sm:$0xff]
      %v3595 = vld [vmem:[#allocation2 + $0x90] sm:$0xff]
      %v3596 = vld [vmem:[#allocation2 + $0x98] sm:$0xff]
      %v3597 = vld [vmem:[#allocation2 + $0xa0] sm:$0xff]
      %v3598 = vld [vmem:[#allocation2 + $0xa8] sm:$0xff]
      %v3599 = vld [vmem:[#allocation2 + $0xb0] sm:$0xff]
      %v3600 = vld [vmem:[#allocation2 + $0xb8] sm:$0xff]
      %v3601 = vld [vmem:[#allocation2 + $0xc0] sm:$0xff]
      %v3602 = vld [vmem:[#allocation2 + $0xc8] sm:$0xff]
      %v3603 = vld [vmem:[#allocation2 + $0xd0] sm:$0xff]
      %v3604 = vld [vmem:[#allocation2 + $0xd8] sm:$0xff]
      %v3605 = vld [vmem:[#allocation2 + $0xe0] sm:$0xff]
      %v3606 = vld [vmem:[#allocation2 + $0xe8] sm:$0xff]
      %v3607 = vld [vmem:[#allocation2 + $0xf0] sm:$0xff]
      %v3608 = vld [vmem:[#allocation2 + $0xf8] sm:$0xff]
      %v3609 = vld [vmem:[#allocation2 + $0x100] sm:$0xff]
      %v3610 = vld [vmem:[#allocation2 + $0x108] sm:$0xff]
      %v3611 = vld [vmem:[#allocation2 + $0x110] sm:$0xff]
      %v3612 = vld [vmem:[#allocation2 + $0x118] sm:$0x3f]
      %v3613 = vpack.c.bf16 %v3578, %v3577
      %v3614 = vpack.c.bf16 %v3580, %v3579
      %v3615 = vpack.c.bf16 %v3582, %v3581
      %v3616 = vpack.c.bf16 %v3584, %v3583
      %v3617 = vpack.c.bf16 %v3586, %v3585
      %v3618 = vpack.c.bf16 %v3588, %v3587
      %v3619 = vpack.c.bf16 %v3590, %v3589
      %v3620 = vpack.c.bf16 %v3592, %v3591
      %v3621 = vpack.c.bf16 %v3594, %v3593
      %v3622 = vpack.c.bf16 %v3596, %v3595
      %v3623 = vpack.c.bf16 %v3598, %v3597
      %v3624 = vpack.c.bf16 %v3600, %v3599
      %v3625 = vpack.c.bf16 %v3602, %v3601
      %v3626 = vpack.c.bf16 %v3604, %v3603
      %v3627 = vpack.c.bf16 %v3606, %v3605
      %v3628 = vpack.c.bf16 %v3608, %v3607
      %v3629 = vpack.c.bf16 %v3610, %v3609
      %v3630 = vpack.c.bf16 %v3612, %v3611
      %v3631 = vld [vmem:[%s3] sm:$0xf]
      %v3632 = vld [vmem:[%s3 + $0x4] sm:$0xf]
      %v3633 = vld [vmem:[%s3 + $0x8] sm:$0xf]
      %v3634 = vld [vmem:[%s3 + $0xc] sm:$0xf]
      %v3635 = vld [vmem:[%s3 + $0x10] sm:$0xf]
      %v3636 = vld [vmem:[%s3 + $0x14] sm:$0xf]
      %v3637 = vld [vmem:[%s3 + $0x18] sm:$0xf]
      %v3638 = vld [vmem:[%s3 + $0x1c] sm:$0xf]
      %v3639 = vld [vmem:[%s3 + $0x20] sm:$0xf]
      %v3640 = vld [vmem:[%s3 + $0x24] sm:$0xf]
      %v3641 = vld [vmem:[%s3 + $0x28] sm:$0xf]
      %v3642 = vld [vmem:[%s3 + $0x2c] sm:$0xf]
      %v3643 = vld [vmem:[%s3 + $0x30] sm:$0xf]
      %v3644 = vld [vmem:[%s3 + $0x34] sm:$0xf]
      %v3645 = vld [vmem:[%s3 + $0x38] sm:$0xf]
      %v3646 = vld [vmem:[%s3 + $0x3c] sm:$0xf]
      %v3647 = vld [vmem:[#allocation2 + $0x1] sm:$0xff]
      %v3648 = vld [vmem:[#allocation2 + $0x9] sm:$0xff]
      %v3649 = vld [vmem:[#allocation2 + $0x11] sm:$0xff]
      %v3650 = vld [vmem:[#allocation2 + $0x19] sm:$0xff]
      %v3651 = vld [vmem:[#allocation2 + $0x21] sm:$0xff]
      %v3652 = vld [vmem:[#allocation2 + $0x29] sm:$0xff]
      %v3653 = vld [vmem:[#allocation2 + $0x31] sm:$0xff]
      %v3654 = vld [vmem:[#allocation2 + $0x39] sm:$0xff]
      %v3655 = vld [vmem:[#allocation2 + $0x41] sm:$0xff]
      %v3656 = vld [vmem:[#allocation2 + $0x49] sm:$0xff]
      %v3657 = vld [vmem:[#allocation2 + $0x51] sm:$0xff]
      %v3658 = vld [vmem:[#allocation2 + $0x59] sm:$0xff]
      %v3659 = vld [vmem:[#allocation2 + $0x61] sm:$0xff]
      %v3660 = vld [vmem:[#allocation2 + $0x69] sm:$0xff]
      %v3661 = vld [vmem:[#allocation2 + $0x71] sm:$0xff]
      %v3662 = vld [vmem:[#allocation2 + $0x79] sm:$0xff]
      %v3663 = vld [vmem:[#allocation2 + $0x81] sm:$0xff]
      %v3664 = vld [vmem:[#allocation2 + $0x89] sm:$0xff]
      %v3665 = vld [vmem:[#allocation2 + $0x91] sm:$0xff]
      %v3666 = vld [vmem:[#allocation2 + $0x99] sm:$0xff]
      %v3667 = vld [vmem:[#allocation2 + $0xa1] sm:$0xff]
      %v3668 = vld [vmem:[#allocation2 + $0xa9] sm:$0xff]
      %v3669 = vld [vmem:[#allocation2 + $0xb1] sm:$0xff]
      %v3670 = vld [vmem:[#allocation2 + $0xb9] sm:$0xff]
      %v3671 = vld [vmem:[#allocation2 + $0xc1] sm:$0xff]
      %v3672 = vld [vmem:[#allocation2 + $0xc9] sm:$0xff]
      %v3673 = vld [vmem:[#allocation2 + $0xd1] sm:$0xff]
      %v3674 = vld [vmem:[#allocation2 + $0xd9] sm:$0xff]
      %v3675 = vld [vmem:[#allocation2 + $0xe1] sm:$0xff]
      %v3676 = vld [vmem:[#allocation2 + $0xe9] sm:$0xff]
      %v3677 = vld [vmem:[#allocation2 + $0xf1] sm:$0xff]
      %v3678 = vld [vmem:[#allocation2 + $0xf9] sm:$0xff]
      %v3679 = vld [vmem:[#allocation2 + $0x101] sm:$0xff]
      %v3680 = vld [vmem:[#allocation2 + $0x109] sm:$0xff]
      %v3681 = vld [vmem:[#allocation2 + $0x111] sm:$0xff]
      %v3682 = vld [vmem:[#allocation2 + $0x119] sm:$0x3f]
      %v3683 = vpack.c.bf16 %v3648, %v3647
      %v3684 = vpack.c.bf16 %v3650, %v3649
      %v3685 = vpack.c.bf16 %v3652, %v3651
      %v3686 = vpack.c.bf16 %v3654, %v3653
      %v3687 = vpack.c.bf16 %v3656, %v3655
      %v3688 = vpack.c.bf16 %v3658, %v3657
      %v3689 = vpack.c.bf16 %v3660, %v3659
      %v3690 = vpack.c.bf16 %v3662, %v3661
      %v3691 = vpack.c.bf16 %v3664, %v3663
      %v3692 = vpack.c.bf16 %v3666, %v3665
      %v3693 = vpack.c.bf16 %v3668, %v3667
      %v3694 = vpack.c.bf16 %v3670, %v3669
      %v3695 = vpack.c.bf16 %v3672, %v3671
      %v3696 = vpack.c.bf16 %v3674, %v3673
      %v3697 = vpack.c.bf16 %v3676, %v3675
      %v3698 = vpack.c.bf16 %v3678, %v3677
      %v3699 = vpack.c.bf16 %v3680, %v3679
      %v3700 = vpack.c.bf16 %v3682, %v3681
      %s3701 = scalar_lea.vmem %s3, 64
      %v3702 = vld [vmem:[%s3701] sm:$0xf]
      %v3703 = vld [vmem:[%s3701 + $0x4] sm:$0xf]
      %v3704 = vld [vmem:[%s3701 + $0x8] sm:$0xf]
      %v3705 = vld [vmem:[%s3701 + $0xc] sm:$0xf]
      %v3706 = vld [vmem:[%s3701 + $0x10] sm:$0xf]
      %v3707 = vld [vmem:[%s3701 + $0x14] sm:$0xf]
      %v3708 = vld [vmem:[%s3701 + $0x18] sm:$0xf]
      %v3709 = vld [vmem:[%s3701 + $0x1c] sm:$0xf]
      %v3710 = vld [vmem:[%s3701 + $0x20] sm:$0xf]
      %v3711 = vld [vmem:[%s3701 + $0x24] sm:$0xf]
      %v3712 = vld [vmem:[%s3701 + $0x28] sm:$0xf]
      %v3713 = vld [vmem:[%s3701 + $0x2c] sm:$0xf]
      %v3714 = vld [vmem:[%s3701 + $0x30] sm:$0xf]
      %v3715 = vld [vmem:[%s3701 + $0x34] sm:$0xf]
      %v3716 = vld [vmem:[%s3701 + $0x38] sm:$0xf]
      %v3717 = vld [vmem:[%s3701 + $0x3c] sm:$0xf]
      %v3734 = vunpack.c.l.b16 %v3702
      %v3735 = vunpack.c.l.b16 %v3703
      %v3736 = vunpack.c.l.b16 %v3704
      %v3737 = vunpack.c.l.b16 %v3705
      %v3738 = vunpack.c.l.b16 %v3706
      %v3739 = vunpack.c.l.b16 %v3707
      %v3740 = vunpack.c.l.b16 %v3708
      %v3741 = vunpack.c.l.b16 %v3709
      %v3742 = vunpack.c.l.b16 %v3710
      %v3743 = vunpack.c.l.b16 %v3711
      %v3744 = vunpack.c.l.b16 %v3712
      %v3745 = vunpack.c.l.b16 %v3713
      %v3746 = vunpack.c.l.b16 %v3714
      %v3747 = vunpack.c.l.b16 %v3715
      %v3748 = vunpack.c.l.b16 %v3716
      %v3749 = vunpack.c.l.b16 %v3717
      %v3750 = vpack.c.b16 %v3735, %v3734
      %v3751 = vpack.c.b16 %v3737, %v3736
      %v3752 = vpack.c.b16 %v3739, %v3738
      %v3753 = vpack.c.b16 %v3741, %v3740
      %v3754 = vpack.c.b16 %v3743, %v3742
      %v3755 = vpack.c.b16 %v3745, %v3744
      %v3756 = vpack.c.b16 %v3747, %v3746
      %v3757 = vpack.c.b16 %v3749, %v3748
      %3766 = vmatprep.subr.bf16.mxu0 0
      %3767 = vmatpush1.bf16.msra.mxu0 %v3757
      %3768 = vmatprep.subr.bf16.mxu0 0
      %3769 = vmatpush1.bf16.msra.mxu0 %v3756
      %3770 = vmatprep.subr.bf16.mxu0 0
      %3771 = vmatpush1.bf16.msra.mxu0 %v3755
      %3772 = vmatprep.subr.bf16.mxu0 0
      %3773 = vmatpush1.bf16.msra.mxu0 %v3754
      %3774 = vmatprep.subr.bf16.mxu0 0
      %3775 = vmatpush1.bf16.msra.mxu0 %v3753
      %3776 = vmatprep.subr.bf16.mxu0 0
      %3777 = vmatpush1.bf16.msra.mxu0 %v3752
      %3778 = vmatprep.subr.bf16.mxu0 0
      %3779 = vmatpush1.bf16.msra.mxu0 %v3751
      %3780 = vmatprep.subr.bf16.mxu0 0
      %3781 = vmatpush1.bf16.msra.mxu0 %v3750
      %3782 = vmatprep.subr.bf16.mxu0 0
      %3783 = vmatpush2.bf16.msra.mxu0 0
      %3784 = vmatprep.subr.bf16.mxu0 0
      %3785 = vmatpush2.bf16.msra.mxu0 0
      %3786 = vmatprep.subr.bf16.mxu0 0
      %3787 = vmatpush2.bf16.msra.mxu0 0
      %3788 = vmatprep.subr.bf16.mxu0 0
      %3789 = vmatpush2.bf16.msra.mxu0 0
      %3790 = vmatprep.subr.bf16.mxu0 0
      %3791 = vmatpush2.bf16.msra.mxu0 0
      %3792 = vmatprep.subr.bf16.mxu0 0
      %3793 = vmatpush2.bf16.msra.mxu0 0
      %3794 = vmatprep.subr.bf16.mxu0 0
      %3795 = vmatpush2.bf16.msra.mxu0 0
      %3796 = vmatprep.subr.bf16.mxu0 0
      %3797 = vmatpush2.bf16.msra.mxu0 0
      %3798 = vmatprep.mubr.bf16.mxu0 0
      %3799 = vmatmul.mubr.bf16.gmra.mxu0 %v3683
      %v3800 = vpop.f32.mrf.mxu0
      %v3801 = vadd.f32 0.0, %v3800
      %v3802 = vpop.f32.mrf.mxu0
      %v3803 = vpop.f32.mrf.mxu0
      %v3804 = vadd.f32 0.0, %v3803
      %v3805 = vpop.f32.mrf.mxu0
      %3806 = vmatprep.mubr.bf16.mxu0 0
      %3807 = vmatmul.mubr.bf16.gmra.mxu0 %v3684
      %v3808 = vpop.f32.mrf.mxu0
      %v3809 = vadd.f32 0.0, %v3808
      %v3810 = vpop.f32.mrf.mxu0
      %v3811 = vpop.f32.mrf.mxu0
      %v3812 = vadd.f32 0.0, %v3811
      %v3813 = vpop.f32.mrf.mxu0
      %3814 = vmatprep.mubr.bf16.mxu0 0
      %3815 = vmatmul.mubr.bf16.gmra.mxu0 %v3685
      %v3816 = vpop.f32.mrf.mxu0
      %v3817 = vadd.f32 0.0, %v3816
      %v3818 = vpop.f32.mrf.mxu0
      %v3819 = vpop.f32.mrf.mxu0
      %v3820 = vadd.f32 0.0, %v3819
      %v3821 = vpop.f32.mrf.mxu0
      %3822 = vmatprep.mubr.bf16.mxu0 0
      %3823 = vmatmul.mubr.bf16.gmra.mxu0 %v3686
      %v3824 = vpop.f32.mrf.mxu0
      %v3825 = vadd.f32 0.0, %v3824
      %v3826 = vpop.f32.mrf.mxu0
      %v3827 = vpop.f32.mrf.mxu0
      %v3828 = vadd.f32 0.0, %v3827
      %v3829 = vpop.f32.mrf.mxu0
      %3830 = vmatprep.mubr.bf16.mxu0 0
      %3831 = vmatmul.mubr.bf16.gmra.mxu0 %v3687
      %v3832 = vpop.f32.mrf.mxu0
      %v3833 = vadd.f32 0.0, %v3832
      %v3834 = vpop.f32.mrf.mxu0
      %v3835 = vpop.f32.mrf.mxu0
      %v3836 = vadd.f32 0.0, %v3835
      %v3837 = vpop.f32.mrf.mxu0
      %3838 = vmatprep.mubr.bf16.mxu0 0
      %3839 = vmatmul.mubr.bf16.gmra.mxu0 %v3688
      %v3840 = vpop.f32.mrf.mxu0
      %v3841 = vadd.f32 0.0, %v3840
      %v3842 = vpop.f32.mrf.mxu0
      %v3843 = vpop.f32.mrf.mxu0
      %v3844 = vadd.f32 0.0, %v3843
      %v3845 = vpop.f32.mrf.mxu0
      %3846 = vmatprep.mubr.bf16.mxu0 0
      %3847 = vmatmul.mubr.bf16.gmra.mxu0 %v3689
      %v3848 = vpop.f32.mrf.mxu0
      %v3849 = vadd.f32 0.0, %v3848
      %v3850 = vpop.f32.mrf.mxu0
      %v3851 = vpop.f32.mrf.mxu0
      %v3852 = vadd.f32 0.0, %v3851
      %v3853 = vpop.f32.mrf.mxu0
      %3854 = vmatprep.mubr.bf16.mxu0 0
      %3855 = vmatmul.mubr.bf16.gmra.mxu0 %v3690
      %v3856 = vpop.f32.mrf.mxu0
      %v3857 = vadd.f32 0.0, %v3856
      %v3858 = vpop.f32.mrf.mxu0
      %v3859 = vpop.f32.mrf.mxu0
      %v3860 = vadd.f32 0.0, %v3859
      %v3861 = vpop.f32.mrf.mxu0
      %3862 = vmatprep.mubr.bf16.mxu0 0
      %3863 = vmatmul.mubr.bf16.gmra.mxu0 %v3691
      %v3864 = vpop.f32.mrf.mxu0
      %v3865 = vadd.f32 0.0, %v3864
      %v3866 = vpop.f32.mrf.mxu0
      %v3867 = vpop.f32.mrf.mxu0
      %v3868 = vadd.f32 0.0, %v3867
      %v3869 = vpop.f32.mrf.mxu0
      %3870 = vmatprep.mubr.bf16.mxu0 0
      %3871 = vmatmul.mubr.bf16.gmra.mxu0 %v3692
      %v3872 = vpop.f32.mrf.mxu0
      %v3873 = vadd.f32 0.0, %v3872
      %v3874 = vpop.f32.mrf.mxu0
      %v3875 = vpop.f32.mrf.mxu0
      %v3876 = vadd.f32 0.0, %v3875
      %v3877 = vpop.f32.mrf.mxu0
      %3878 = vmatprep.mubr.bf16.mxu0 0
      %3879 = vmatmul.mubr.bf16.gmra.mxu0 %v3693
      %v3880 = vpop.f32.mrf.mxu0
      %v3881 = vadd.f32 0.0, %v3880
      %v3882 = vpop.f32.mrf.mxu0
      %v3883 = vpop.f32.mrf.mxu0
      %v3884 = vadd.f32 0.0, %v3883
      %v3885 = vpop.f32.mrf.mxu0
      %3886 = vmatprep.mubr.bf16.mxu0 0
      %3887 = vmatmul.mubr.bf16.gmra.mxu0 %v3694
      %v3888 = vpop.f32.mrf.mxu0
      %v3889 = vadd.f32 0.0, %v3888
      %v3890 = vpop.f32.mrf.mxu0
      %v3891 = vpop.f32.mrf.mxu0
      %v3892 = vadd.f32 0.0, %v3891
      %v3893 = vpop.f32.mrf.mxu0
      %3894 = vmatprep.mubr.bf16.mxu0 0
      %3895 = vmatmul.mubr.bf16.gmra.mxu0 %v3695
      %v3896 = vpop.f32.mrf.mxu0
      %v3897 = vadd.f32 0.0, %v3896
      %v3898 = vpop.f32.mrf.mxu0
      %v3899 = vpop.f32.mrf.mxu0
      %v3900 = vadd.f32 0.0, %v3899
      %v3901 = vpop.f32.mrf.mxu0
      %3902 = vmatprep.mubr.bf16.mxu0 0
      %3903 = vmatmul.mubr.bf16.gmra.mxu0 %v3696
      %v3904 = vpop.f32.mrf.mxu0
      %v3905 = vadd.f32 0.0, %v3904
      %v3906 = vpop.f32.mrf.mxu0
      %v3907 = vpop.f32.mrf.mxu0
      %v3908 = vadd.f32 0.0, %v3907
      %v3909 = vpop.f32.mrf.mxu0
      %3910 = vmatprep.mubr.bf16.mxu0 0
      %3911 = vmatmul.mubr.bf16.gmra.mxu0 %v3697
      %v3912 = vpop.f32.mrf.mxu0
      %v3913 = vadd.f32 0.0, %v3912
      %v3914 = vpop.f32.mrf.mxu0
      %v3915 = vpop.f32.mrf.mxu0
      %v3916 = vadd.f32 0.0, %v3915
      %v3917 = vpop.f32.mrf.mxu0
      %3918 = vmatprep.mubr.bf16.mxu0 0
      %3919 = vmatmul.mubr.bf16.gmra.mxu0 %v3698
      %v3920 = vpop.f32.mrf.mxu0
      %v3921 = vadd.f32 0.0, %v3920
      %v3922 = vpop.f32.mrf.mxu0
      %v3923 = vpop.f32.mrf.mxu0
      %v3924 = vadd.f32 0.0, %v3923
      %v3925 = vpop.f32.mrf.mxu0
      %3926 = vmatprep.mubr.bf16.mxu0 0
      %3927 = vmatmul.mubr.bf16.gmra.mxu0 %v3699
      %v3928 = vpop.f32.mrf.mxu0
      %v3929 = vadd.f32 0.0, %v3928
      %v3930 = vpop.f32.mrf.mxu0
      %v3931 = vpop.f32.mrf.mxu0
      %v3932 = vadd.f32 0.0, %v3931
      %v3933 = vpop.f32.mrf.mxu0
      %3934 = vmatprep.mubr.bf16.mxu0 0
      %3935 = vmatmul.mubr.bf16.gmra.mxu0 %v3700
      %v3936 = vpop.f32.mrf.mxu0
      %v3937 = vadd.f32 0.0, %v3936
      %v3938 = vpop.f32.mrf.mxu0
      %v3939 = vpop.f32.mrf.mxu0
      %v3940 = vadd.f32 0.0, %v3939
      %v3941 = vpop.f32.mrf.mxu0
      %3942 = vdwg.mxu0
      %v3959 = vunpack.c.l.b16 %v3631
      %v3960 = vunpack.c.l.b16 %v3632
      %v3961 = vunpack.c.l.b16 %v3633
      %v3962 = vunpack.c.l.b16 %v3634
      %v3963 = vunpack.c.l.b16 %v3635
      %v3964 = vunpack.c.l.b16 %v3636
      %v3965 = vunpack.c.l.b16 %v3637
      %v3966 = vunpack.c.l.b16 %v3638
      %v3967 = vunpack.c.l.b16 %v3639
      %v3968 = vunpack.c.l.b16 %v3640
      %v3969 = vunpack.c.l.b16 %v3641
      %v3970 = vunpack.c.l.b16 %v3642
      %v3971 = vunpack.c.l.b16 %v3643
      %v3972 = vunpack.c.l.b16 %v3644
      %v3973 = vunpack.c.l.b16 %v3645
      %v3974 = vunpack.c.l.b16 %v3646
      %v3975 = vpack.c.b16 %v3960, %v3959
      %v3976 = vpack.c.b16 %v3962, %v3961
      %v3977 = vpack.c.b16 %v3964, %v3963
      %v3978 = vpack.c.b16 %v3966, %v3965
      %v3979 = vpack.c.b16 %v3968, %v3967
      %v3980 = vpack.c.b16 %v3970, %v3969
      %v3981 = vpack.c.b16 %v3972, %v3971
      %v3982 = vpack.c.b16 %v3974, %v3973
      %3991 = vmatprep.subr.bf16.mxu0 0
      %3992 = vmatpush1.bf16.msra.mxu0 %v3982
      %3993 = vmatprep.subr.bf16.mxu0 0
      %3994 = vmatpush1.bf16.msra.mxu0 %v3981
      %3995 = vmatprep.subr.bf16.mxu0 0
      %3996 = vmatpush1.bf16.msra.mxu0 %v3980
      %3997 = vmatprep.subr.bf16.mxu0 0
      %3998 = vmatpush1.bf16.msra.mxu0 %v3979
      %3999 = vmatprep.subr.bf16.mxu0 0
      %4000 = vmatpush1.bf16.msra.mxu0 %v3978
      %4001 = vmatprep.subr.bf16.mxu0 0
      %4002 = vmatpush1.bf16.msra.mxu0 %v3977
      %4003 = vmatprep.subr.bf16.mxu0 0
      %4004 = vmatpush1.bf16.msra.mxu0 %v3976
      %4005 = vmatprep.subr.bf16.mxu0 0
      %4006 = vmatpush1.bf16.msra.mxu0 %v3975
      %4007 = vmatprep.subr.bf16.mxu0 0
      %4008 = vmatpush2.bf16.msra.mxu0 0
      %4009 = vmatprep.subr.bf16.mxu0 0
      %4010 = vmatpush2.bf16.msra.mxu0 0
      %4011 = vmatprep.subr.bf16.mxu0 0
      %4012 = vmatpush2.bf16.msra.mxu0 0
      %4013 = vmatprep.subr.bf16.mxu0 0
      %4014 = vmatpush2.bf16.msra.mxu0 0
      %4015 = vmatprep.subr.bf16.mxu0 0
      %4016 = vmatpush2.bf16.msra.mxu0 0
      %4017 = vmatprep.subr.bf16.mxu0 0
      %4018 = vmatpush2.bf16.msra.mxu0 0
      %4019 = vmatprep.subr.bf16.mxu0 0
      %4020 = vmatpush2.bf16.msra.mxu0 0
      %4021 = vmatprep.subr.bf16.mxu0 0
      %4022 = vmatpush2.bf16.msra.mxu0 0
      %4023 = vmatprep.mubr.bf16.mxu0 0
      %4024 = vmatmul.mubr.bf16.gmra.mxu0 %v3613
      %v4025 = vpop.f32.mrf.mxu0
      %v4026 = vadd.f32 %v3801, %v4025
      %v4027 = vpop.f32.mrf.mxu0
      %v4028 = vpop.f32.mrf.mxu0
      %v4029 = vadd.f32 %v3804, %v4028
      %v4030 = vpop.f32.mrf.mxu0
      %4031 = vmatprep.mubr.bf16.mxu0 0
      %4032 = vmatmul.mubr.bf16.gmra.mxu0 %v3614
      %v4033 = vpop.f32.mrf.mxu0
      %v4034 = vadd.f32 %v3809, %v4033
      %v4035 = vpop.f32.mrf.mxu0
      %v4036 = vpop.f32.mrf.mxu0
      %v4037 = vadd.f32 %v3812, %v4036
      %v4038 = vpop.f32.mrf.mxu0
      %4039 = vmatprep.mubr.bf16.mxu0 0
      %4040 = vmatmul.mubr.bf16.gmra.mxu0 %v3615
      %v4041 = vpop.f32.mrf.mxu0
      %v4042 = vadd.f32 %v3817, %v4041
      %v4043 = vpop.f32.mrf.mxu0
      %v4044 = vpop.f32.mrf.mxu0
      %v4045 = vadd.f32 %v3820, %v4044
      %v4046 = vpop.f32.mrf.mxu0
      %4047 = vmatprep.mubr.bf16.mxu0 0
      %4048 = vmatmul.mubr.bf16.gmra.mxu0 %v3616
      %v4049 = vpop.f32.mrf.mxu0
      %v4050 = vadd.f32 %v3825, %v4049
      %v4051 = vpop.f32.mrf.mxu0
      %v4052 = vpop.f32.mrf.mxu0
      %v4053 = vadd.f32 %v3828, %v4052
      %v4054 = vpop.f32.mrf.mxu0
      %4055 = vmatprep.mubr.bf16.mxu0 0
      %4056 = vmatmul.mubr.bf16.gmra.mxu0 %v3617
      %v4057 = vpop.f32.mrf.mxu0
      %v4058 = vadd.f32 %v3833, %v4057
      %v4059 = vpop.f32.mrf.mxu0
      %v4060 = vpop.f32.mrf.mxu0
      %v4061 = vadd.f32 %v3836, %v4060
      %v4062 = vpop.f32.mrf.mxu0
      %4063 = vmatprep.mubr.bf16.mxu0 0
      %4064 = vmatmul.mubr.bf16.gmra.mxu0 %v3618
      %v4065 = vpop.f32.mrf.mxu0
      %v4066 = vadd.f32 %v3841, %v4065
      %v4067 = vpop.f32.mrf.mxu0
      %v4068 = vpop.f32.mrf.mxu0
      %v4069 = vadd.f32 %v3844, %v4068
      %v4070 = vpop.f32.mrf.mxu0
      %4071 = vmatprep.mubr.bf16.mxu0 0
      %4072 = vmatmul.mubr.bf16.gmra.mxu0 %v3619
      %v4073 = vpop.f32.mrf.mxu0
      %v4074 = vadd.f32 %v3849, %v4073
      %v4075 = vpop.f32.mrf.mxu0
      %v4076 = vpop.f32.mrf.mxu0
      %v4077 = vadd.f32 %v3852, %v4076
      %v4078 = vpop.f32.mrf.mxu0
      %4079 = vmatprep.mubr.bf16.mxu0 0
      %4080 = vmatmul.mubr.bf16.gmra.mxu0 %v3620
      %v4081 = vpop.f32.mrf.mxu0
      %v4082 = vadd.f32 %v3857, %v4081
      %v4083 = vpop.f32.mrf.mxu0
      %v4084 = vpop.f32.mrf.mxu0
      %v4085 = vadd.f32 %v3860, %v4084
      %v4086 = vpop.f32.mrf.mxu0
      %4087 = vmatprep.mubr.bf16.mxu0 0
      %4088 = vmatmul.mubr.bf16.gmra.mxu0 %v3621
      %v4089 = vpop.f32.mrf.mxu0
      %v4090 = vadd.f32 %v3865, %v4089
      %v4091 = vpop.f32.mrf.mxu0
      %v4092 = vpop.f32.mrf.mxu0
      %v4093 = vadd.f32 %v3868, %v4092
      %v4094 = vpop.f32.mrf.mxu0
      %4095 = vmatprep.mubr.bf16.mxu0 0
      %4096 = vmatmul.mubr.bf16.gmra.mxu0 %v3622
      %v4097 = vpop.f32.mrf.mxu0
      %v4098 = vadd.f32 %v3873, %v4097
      %v4099 = vpop.f32.mrf.mxu0
      %v4100 = vpop.f32.mrf.mxu0
      %v4101 = vadd.f32 %v3876, %v4100
      %v4102 = vpop.f32.mrf.mxu0
      %4103 = vmatprep.mubr.bf16.mxu0 0
      %4104 = vmatmul.mubr.bf16.gmra.mxu0 %v3623
      %v4105 = vpop.f32.mrf.mxu0
      %v4106 = vadd.f32 %v3881, %v4105
      %v4107 = vpop.f32.mrf.mxu0
      %v4108 = vpop.f32.mrf.mxu0
      %v4109 = vadd.f32 %v3884, %v4108
      %v4110 = vpop.f32.mrf.mxu0
      %4111 = vmatprep.mubr.bf16.mxu0 0
      %4112 = vmatmul.mubr.bf16.gmra.mxu0 %v3624
      %v4113 = vpop.f32.mrf.mxu0
      %v4114 = vadd.f32 %v3889, %v4113
      %v4115 = vpop.f32.mrf.mxu0
      %v4116 = vpop.f32.mrf.mxu0
      %v4117 = vadd.f32 %v3892, %v4116
      %v4118 = vpop.f32.mrf.mxu0
      %4119 = vmatprep.mubr.bf16.mxu0 0
      %4120 = vmatmul.mubr.bf16.gmra.mxu0 %v3625
      %v4121 = vpop.f32.mrf.mxu0
      %v4122 = vadd.f32 %v3897, %v4121
      %v4123 = vpop.f32.mrf.mxu0
      %v4124 = vpop.f32.mrf.mxu0
      %v4125 = vadd.f32 %v3900, %v4124
      %v4126 = vpop.f32.mrf.mxu0
      %4127 = vmatprep.mubr.bf16.mxu0 0
      %4128 = vmatmul.mubr.bf16.gmra.mxu0 %v3626
      %v4129 = vpop.f32.mrf.mxu0
      %v4130 = vadd.f32 %v3905, %v4129
      %v4131 = vpop.f32.mrf.mxu0
      %v4132 = vpop.f32.mrf.mxu0
      %v4133 = vadd.f32 %v3908, %v4132
      %v4134 = vpop.f32.mrf.mxu0
      %4135 = vmatprep.mubr.bf16.mxu0 0
      %4136 = vmatmul.mubr.bf16.gmra.mxu0 %v3627
      %v4137 = vpop.f32.mrf.mxu0
      %v4138 = vadd.f32 %v3913, %v4137
      %v4139 = vpop.f32.mrf.mxu0
      %v4140 = vpop.f32.mrf.mxu0
      %v4141 = vadd.f32 %v3916, %v4140
      %v4142 = vpop.f32.mrf.mxu0
      %4143 = vmatprep.mubr.bf16.mxu0 0
      %4144 = vmatmul.mubr.bf16.gmra.mxu0 %v3628
      %v4145 = vpop.f32.mrf.mxu0
      %v4146 = vadd.f32 %v3921, %v4145
      %v4147 = vpop.f32.mrf.mxu0
      %v4148 = vpop.f32.mrf.mxu0
      %v4149 = vadd.f32 %v3924, %v4148
      %v4150 = vpop.f32.mrf.mxu0
      %4151 = vmatprep.mubr.bf16.mxu0 0
      %4152 = vmatmul.mubr.bf16.gmra.mxu0 %v3629
      %v4153 = vpop.f32.mrf.mxu0
      %v4154 = vadd.f32 %v3929, %v4153
      %v4155 = vpop.f32.mrf.mxu0
      %v4156 = vpop.f32.mrf.mxu0
      %v4157 = vadd.f32 %v3932, %v4156
      %v4158 = vpop.f32.mrf.mxu0
      %4159 = vmatprep.mubr.bf16.mxu0 0
      %4160 = vmatmul.mubr.bf16.gmra.mxu0 %v3630
      %v4161 = vpop.f32.mrf.mxu0
      %v4162 = vadd.f32 %v3937, %v4161
      %v4163 = vpop.f32.mrf.mxu0
      %v4164 = vpop.f32.mrf.mxu0
      %v4165 = vadd.f32 %v3940, %v4164
      %v4166 = vpop.f32.mrf.mxu0
      %4167 = vdwg.mxu0
      %v4168 = vld [vmem:[#allocation2 + $0x2] sm:$0xff]
      %v4169 = vld [vmem:[#allocation2 + $0xa] sm:$0xff]
      %v4170 = vld [vmem:[#allocation2 + $0x12] sm:$0xff]
      %v4171 = vld [vmem:[#allocation2 + $0x1a] sm:$0xff]
      %v4172 = vld [vmem:[#allocation2 + $0x22] sm:$0xff]
      %v4173 = vld [vmem:[#allocation2 + $0x2a] sm:$0xff]
      %v4174 = vld [vmem:[#allocation2 + $0x32] sm:$0xff]
      %v4175 = vld [vmem:[#allocation2 + $0x3a] sm:$0xff]
      %v4176 = vld [vmem:[#allocation2 + $0x42] sm:$0xff]
      %v4177 = vld [vmem:[#allocation2 + $0x4a] sm:$0xff]
      %v4178 = vld [vmem:[#allocation2 + $0x52] sm:$0xff]
      %v4179 = vld [vmem:[#allocation2 + $0x5a] sm:$0xff]
      %v4180 = vld [vmem:[#allocation2 + $0x62] sm:$0xff]
      %v4181 = vld [vmem:[#allocation2 + $0x6a] sm:$0xff]
      %v4182 = vld [vmem:[#allocation2 + $0x72] sm:$0xff]
      %v4183 = vld [vmem:[#allocation2 + $0x7a] sm:$0xff]
      %v4184 = vld [vmem:[#allocation2 + $0x82] sm:$0xff]
      %v4185 = vld [vmem:[#allocation2 + $0x8a] sm:$0xff]
      %v4186 = vld [vmem:[#allocation2 + $0x92] sm:$0xff]
      %v4187 = vld [vmem:[#allocation2 + $0x9a] sm:$0xff]
      %v4188 = vld [vmem:[#allocation2 + $0xa2] sm:$0xff]
      %v4189 = vld [vmem:[#allocation2 + $0xaa] sm:$0xff]
      %v4190 = vld [vmem:[#allocation2 + $0xb2] sm:$0xff]
      %v4191 = vld [vmem:[#allocation2 + $0xba] sm:$0xff]
      %v4192 = vld [vmem:[#allocation2 + $0xc2] sm:$0xff]
      %v4193 = vld [vmem:[#allocation2 + $0xca] sm:$0xff]
      %v4194 = vld [vmem:[#allocation2 + $0xd2] sm:$0xff]
      %v4195 = vld [vmem:[#allocation2 + $0xda] sm:$0xff]
      %v4196 = vld [vmem:[#allocation2 + $0xe2] sm:$0xff]
      %v4197 = vld [vmem:[#allocation2 + $0xea] sm:$0xff]
      %v4198 = vld [vmem:[#allocation2 + $0xf2] sm:$0xff]
      %v4199 = vld [vmem:[#allocation2 + $0xfa] sm:$0xff]
      %v4200 = vld [vmem:[#allocation2 + $0x102] sm:$0xff]
      %v4201 = vld [vmem:[#allocation2 + $0x10a] sm:$0xff]
      %v4202 = vld [vmem:[#allocation2 + $0x112] sm:$0xff]
      %v4203 = vld [vmem:[#allocation2 + $0x11a] sm:$0x3f]
      %v4204 = vpack.c.bf16 %v4169, %v4168
      %v4205 = vpack.c.bf16 %v4171, %v4170
      %v4206 = vpack.c.bf16 %v4173, %v4172
      %v4207 = vpack.c.bf16 %v4175, %v4174
      %v4208 = vpack.c.bf16 %v4177, %v4176
      %v4209 = vpack.c.bf16 %v4179, %v4178
      %v4210 = vpack.c.bf16 %v4181, %v4180
      %v4211 = vpack.c.bf16 %v4183, %v4182
      %v4212 = vpack.c.bf16 %v4185, %v4184
      %v4213 = vpack.c.bf16 %v4187, %v4186
      %v4214 = vpack.c.bf16 %v4189, %v4188
      %v4215 = vpack.c.bf16 %v4191, %v4190
      %v4216 = vpack.c.bf16 %v4193, %v4192
      %v4217 = vpack.c.bf16 %v4195, %v4194
      %v4218 = vpack.c.bf16 %v4197, %v4196
      %v4219 = vpack.c.bf16 %v4199, %v4198
      %v4220 = vpack.c.bf16 %v4201, %v4200
      %v4221 = vpack.c.bf16 %v4203, %v4202
      %s4222 = scalar_lea.vmem %s3, 128
      %v4223 = vld [vmem:[%s4222] sm:$0xf]
      %v4224 = vld [vmem:[%s4222 + $0x4] sm:$0xf]
      %v4225 = vld [vmem:[%s4222 + $0x8] sm:$0xf]
      %v4226 = vld [vmem:[%s4222 + $0xc] sm:$0xf]
      %v4227 = vld [vmem:[%s4222 + $0x10] sm:$0xf]
      %v4228 = vld [vmem:[%s4222 + $0x14] sm:$0xf]
      %v4229 = vld [vmem:[%s4222 + $0x18] sm:$0xf]
      %v4230 = vld [vmem:[%s4222 + $0x1c] sm:$0xf]
      %v4231 = vld [vmem:[%s4222 + $0x20] sm:$0xf]
      %v4232 = vld [vmem:[%s4222 + $0x24] sm:$0xf]
      %v4233 = vld [vmem:[%s4222 + $0x28] sm:$0xf]
      %v4234 = vld [vmem:[%s4222 + $0x2c] sm:$0xf]
      %v4235 = vld [vmem:[%s4222 + $0x30] sm:$0xf]
      %v4236 = vld [vmem:[%s4222 + $0x34] sm:$0xf]
      %v4237 = vld [vmem:[%s4222 + $0x38] sm:$0xf]
      %v4238 = vld [vmem:[%s4222 + $0x3c] sm:$0xf]
      %v4255 = vunpack.c.l.b16 %v4223
      %v4256 = vunpack.c.l.b16 %v4224
      %v4257 = vunpack.c.l.b16 %v4225
      %v4258 = vunpack.c.l.b16 %v4226
      %v4259 = vunpack.c.l.b16 %v4227
      %v4260 = vunpack.c.l.b16 %v4228
      %v4261 = vunpack.c.l.b16 %v4229
      %v4262 = vunpack.c.l.b16 %v4230
      %v4263 = vunpack.c.l.b16 %v4231
      %v4264 = vunpack.c.l.b16 %v4232
      %v4265 = vunpack.c.l.b16 %v4233
      %v4266 = vunpack.c.l.b16 %v4234
      %v4267 = vunpack.c.l.b16 %v4235
      %v4268 = vunpack.c.l.b16 %v4236
      %v4269 = vunpack.c.l.b16 %v4237
      %v4270 = vunpack.c.l.b16 %v4238
      %v4271 = vpack.c.b16 %v4256, %v4255
      %v4272 = vpack.c.b16 %v4258, %v4257
      %v4273 = vpack.c.b16 %v4260, %v4259
      %v4274 = vpack.c.b16 %v4262, %v4261
      %v4275 = vpack.c.b16 %v4264, %v4263
      %v4276 = vpack.c.b16 %v4266, %v4265
      %v4277 = vpack.c.b16 %v4268, %v4267
      %v4278 = vpack.c.b16 %v4270, %v4269
      %4287 = vmatprep.subr.bf16.mxu0 0
      %4288 = vmatpush1.bf16.msra.mxu0 %v4278
      %4289 = vmatprep.subr.bf16.mxu0 0
      %4290 = vmatpush1.bf16.msra.mxu0 %v4277
      %4291 = vmatprep.subr.bf16.mxu0 0
      %4292 = vmatpush1.bf16.msra.mxu0 %v4276
      %4293 = vmatprep.subr.bf16.mxu0 0
      %4294 = vmatpush1.bf16.msra.mxu0 %v4275
      %4295 = vmatprep.subr.bf16.mxu0 0
      %4296 = vmatpush1.bf16.msra.mxu0 %v4274
      %4297 = vmatprep.subr.bf16.mxu0 0
      %4298 = vmatpush1.bf16.msra.mxu0 %v4273
      %4299 = vmatprep.subr.bf16.mxu0 0
      %4300 = vmatpush1.bf16.msra.mxu0 %v4272
      %4301 = vmatprep.subr.bf16.mxu0 0
      %4302 = vmatpush1.bf16.msra.mxu0 %v4271
      %4303 = vmatprep.subr.bf16.mxu0 0
      %4304 = vmatpush2.bf16.msra.mxu0 0
      %4305 = vmatprep.subr.bf16.mxu0 0
      %4306 = vmatpush2.bf16.msra.mxu0 0
      %4307 = vmatprep.subr.bf16.mxu0 0
      %4308 = vmatpush2.bf16.msra.mxu0 0
      %4309 = vmatprep.subr.bf16.mxu0 0
      %4310 = vmatpush2.bf16.msra.mxu0 0
      %4311 = vmatprep.subr.bf16.mxu0 0
      %4312 = vmatpush2.bf16.msra.mxu0 0
      %4313 = vmatprep.subr.bf16.mxu0 0
      %4314 = vmatpush2.bf16.msra.mxu0 0
      %4315 = vmatprep.subr.bf16.mxu0 0
      %4316 = vmatpush2.bf16.msra.mxu0 0
      %4317 = vmatprep.subr.bf16.mxu0 0
      %4318 = vmatpush2.bf16.msra.mxu0 0
      %4319 = vmatprep.mubr.bf16.mxu0 0
      %4320 = vmatmul.mubr.bf16.gmra.mxu0 %v4204
      %v4321 = vpop.f32.mrf.mxu0
      %v4322 = vadd.f32 0.0, %v4321
      %v4323 = vpop.f32.mrf.mxu0
      %v4324 = vpop.f32.mrf.mxu0
      %v4325 = vadd.f32 0.0, %v4324
      %v4326 = vpop.f32.mrf.mxu0
      %4327 = vmatprep.mubr.bf16.mxu0 0
      %4328 = vmatmul.mubr.bf16.gmra.mxu0 %v4205
      %v4329 = vpop.f32.mrf.mxu0
      %v4330 = vadd.f32 0.0, %v4329
      %v4331 = vpop.f32.mrf.mxu0
      %v4332 = vpop.f32.mrf.mxu0
      %v4333 = vadd.f32 0.0, %v4332
      %v4334 = vpop.f32.mrf.mxu0
      %4335 = vmatprep.mubr.bf16.mxu0 0
      %4336 = vmatmul.mubr.bf16.gmra.mxu0 %v4206
      %v4337 = vpop.f32.mrf.mxu0
      %v4338 = vadd.f32 0.0, %v4337
      %v4339 = vpop.f32.mrf.mxu0
      %v4340 = vpop.f32.mrf.mxu0
      %v4341 = vadd.f32 0.0, %v4340
      %v4342 = vpop.f32.mrf.mxu0
      %4343 = vmatprep.mubr.bf16.mxu0 0
      %4344 = vmatmul.mubr.bf16.gmra.mxu0 %v4207
      %v4345 = vpop.f32.mrf.mxu0
      %v4346 = vadd.f32 0.0, %v4345
      %v4347 = vpop.f32.mrf.mxu0
      %v4348 = vpop.f32.mrf.mxu0
      %v4349 = vadd.f32 0.0, %v4348
      %v4350 = vpop.f32.mrf.mxu0
      %4351 = vmatprep.mubr.bf16.mxu0 0
      %4352 = vmatmul.mubr.bf16.gmra.mxu0 %v4208
      %v4353 = vpop.f32.mrf.mxu0
      %v4354 = vadd.f32 0.0, %v4353
      %v4355 = vpop.f32.mrf.mxu0
      %v4356 = vpop.f32.mrf.mxu0
      %v4357 = vadd.f32 0.0, %v4356
      %v4358 = vpop.f32.mrf.mxu0
      %4359 = vmatprep.mubr.bf16.mxu0 0
      %4360 = vmatmul.mubr.bf16.gmra.mxu0 %v4209
      %v4361 = vpop.f32.mrf.mxu0
      %v4362 = vadd.f32 0.0, %v4361
      %v4363 = vpop.f32.mrf.mxu0
      %v4364 = vpop.f32.mrf.mxu0
      %v4365 = vadd.f32 0.0, %v4364
      %v4366 = vpop.f32.mrf.mxu0
      %4367 = vmatprep.mubr.bf16.mxu0 0
      %4368 = vmatmul.mubr.bf16.gmra.mxu0 %v4210
      %v4369 = vpop.f32.mrf.mxu0
      %v4370 = vadd.f32 0.0, %v4369
      %v4371 = vpop.f32.mrf.mxu0
      %v4372 = vpop.f32.mrf.mxu0
      %v4373 = vadd.f32 0.0, %v4372
      %v4374 = vpop.f32.mrf.mxu0
      %4375 = vmatprep.mubr.bf16.mxu0 0
      %4376 = vmatmul.mubr.bf16.gmra.mxu0 %v4211
      %v4377 = vpop.f32.mrf.mxu0
      %v4378 = vadd.f32 0.0, %v4377
      %v4379 = vpop.f32.mrf.mxu0
      %v4380 = vpop.f32.mrf.mxu0
      %v4381 = vadd.f32 0.0, %v4380
      %v4382 = vpop.f32.mrf.mxu0
      %4383 = vmatprep.mubr.bf16.mxu0 0
      %4384 = vmatmul.mubr.bf16.gmra.mxu0 %v4212
      %v4385 = vpop.f32.mrf.mxu0
      %v4386 = vadd.f32 0.0, %v4385
      %v4387 = vpop.f32.mrf.mxu0
      %v4388 = vpop.f32.mrf.mxu0
      %v4389 = vadd.f32 0.0, %v4388
      %v4390 = vpop.f32.mrf.mxu0
      %4391 = vmatprep.mubr.bf16.mxu0 0
      %4392 = vmatmul.mubr.bf16.gmra.mxu0 %v4213
      %v4393 = vpop.f32.mrf.mxu0
      %v4394 = vadd.f32 0.0, %v4393
      %v4395 = vpop.f32.mrf.mxu0
      %v4396 = vpop.f32.mrf.mxu0
      %v4397 = vadd.f32 0.0, %v4396
      %v4398 = vpop.f32.mrf.mxu0
      %4399 = vmatprep.mubr.bf16.mxu0 0
      %4400 = vmatmul.mubr.bf16.gmra.mxu0 %v4214
      %v4401 = vpop.f32.mrf.mxu0
      %v4402 = vadd.f32 0.0, %v4401
      %v4403 = vpop.f32.mrf.mxu0
      %v4404 = vpop.f32.mrf.mxu0
      %v4405 = vadd.f32 0.0, %v4404
      %v4406 = vpop.f32.mrf.mxu0
      %4407 = vmatprep.mubr.bf16.mxu0 0
      %4408 = vmatmul.mubr.bf16.gmra.mxu0 %v4215
      %v4409 = vpop.f32.mrf.mxu0
      %v4410 = vadd.f32 0.0, %v4409
      %v4411 = vpop.f32.mrf.mxu0
      %v4412 = vpop.f32.mrf.mxu0
      %v4413 = vadd.f32 0.0, %v4412
      %v4414 = vpop.f32.mrf.mxu0
      %4415 = vmatprep.mubr.bf16.mxu0 0
      %4416 = vmatmul.mubr.bf16.gmra.mxu0 %v4216
      %v4417 = vpop.f32.mrf.mxu0
      %v4418 = vadd.f32 0.0, %v4417
      %v4419 = vpop.f32.mrf.mxu0
      %v4420 = vpop.f32.mrf.mxu0
      %v4421 = vadd.f32 0.0, %v4420
      %v4422 = vpop.f32.mrf.mxu0
      %4423 = vmatprep.mubr.bf16.mxu0 0
      %4424 = vmatmul.mubr.bf16.gmra.mxu0 %v4217
      %v4425 = vpop.f32.mrf.mxu0
      %v4426 = vadd.f32 0.0, %v4425
      %v4427 = vpop.f32.mrf.mxu0
      %v4428 = vpop.f32.mrf.mxu0
      %v4429 = vadd.f32 0.0, %v4428
      %v4430 = vpop.f32.mrf.mxu0
      %4431 = vmatprep.mubr.bf16.mxu0 0
      %4432 = vmatmul.mubr.bf16.gmra.mxu0 %v4218
      %v4433 = vpop.f32.mrf.mxu0
      %v4434 = vadd.f32 0.0, %v4433
      %v4435 = vpop.f32.mrf.mxu0
      %v4436 = vpop.f32.mrf.mxu0
      %v4437 = vadd.f32 0.0, %v4436
      %v4438 = vpop.f32.mrf.mxu0
      %4439 = vmatprep.mubr.bf16.mxu0 0
      %4440 = vmatmul.mubr.bf16.gmra.mxu0 %v4219
      %v4441 = vpop.f32.mrf.mxu0
      %v4442 = vadd.f32 0.0, %v4441
      %v4443 = vpop.f32.mrf.mxu0
      %v4444 = vpop.f32.mrf.mxu0
      %v4445 = vadd.f32 0.0, %v4444
      %v4446 = vpop.f32.mrf.mxu0
      %4447 = vmatprep.mubr.bf16.mxu0 0
      %4448 = vmatmul.mubr.bf16.gmra.mxu0 %v4220
      %v4449 = vpop.f32.mrf.mxu0
      %v4450 = vadd.f32 0.0, %v4449
      %v4451 = vpop.f32.mrf.mxu0
      %v4452 = vpop.f32.mrf.mxu0
      %v4453 = vadd.f32 0.0, %v4452
      %v4454 = vpop.f32.mrf.mxu0
      %4455 = vmatprep.mubr.bf16.mxu0 0
      %4456 = vmatmul.mubr.bf16.gmra.mxu0 %v4221
      %v4457 = vpop.f32.mrf.mxu0
      %v4458 = vadd.f32 0.0, %v4457
      %v4459 = vpop.f32.mrf.mxu0
      %v4460 = vpop.f32.mrf.mxu0
      %v4461 = vadd.f32 0.0, %v4460
      %v4462 = vpop.f32.mrf.mxu0
      %4463 = vdwg.mxu0
      %v4464 = vadd.f32 %v4026, %v4322
      %v4465 = vadd.f32 %v4029, %v4325
      %v4466 = vadd.f32 %v4034, %v4330
      %v4467 = vadd.f32 %v4037, %v4333
      %v4468 = vadd.f32 %v4042, %v4338
      %v4469 = vadd.f32 %v4045, %v4341
      %v4470 = vadd.f32 %v4050, %v4346
      %v4471 = vadd.f32 %v4053, %v4349
      %v4472 = vadd.f32 %v4058, %v4354
      %v4473 = vadd.f32 %v4061, %v4357
      %v4474 = vadd.f32 %v4066, %v4362
      %v4475 = vadd.f32 %v4069, %v4365
      %v4476 = vadd.f32 %v4074, %v4370
      %v4477 = vadd.f32 %v4077, %v4373
      %v4478 = vadd.f32 %v4082, %v4378
      %v4479 = vadd.f32 %v4085, %v4381
      %v4480 = vadd.f32 %v4090, %v4386
      %v4481 = vadd.f32 %v4093, %v4389
      %v4482 = vadd.f32 %v4098, %v4394
      %v4483 = vadd.f32 %v4101, %v4397
      %v4484 = vadd.f32 %v4106, %v4402
      %v4485 = vadd.f32 %v4109, %v4405
      %v4486 = vadd.f32 %v4114, %v4410
      %v4487 = vadd.f32 %v4117, %v4413
      %v4488 = vadd.f32 %v4122, %v4418
      %v4489 = vadd.f32 %v4125, %v4421
      %v4490 = vadd.f32 %v4130, %v4426
      %v4491 = vadd.f32 %v4133, %v4429
      %v4492 = vadd.f32 %v4138, %v4434
      %v4493 = vadd.f32 %v4141, %v4437
      %v4494 = vadd.f32 %v4146, %v4442
      %v4495 = vadd.f32 %v4149, %v4445
      %v4496 = vadd.f32 %v4154, %v4450
      %v4497 = vadd.f32 %v4157, %v4453
      %v4498 = vadd.f32 %v4162, %v4458
      %v4499 = vadd.f32 %v4165, %v4461
      %v4500 = vld [vmem:[#allocation2 + $0x12] sm:$0xff]
      %v4501 = vld [vmem:[#allocation2 + $0x1a] sm:$0xff]
      %v4502 = vld [vmem:[#allocation2 + $0x22] sm:$0xff]
      %v4503 = vld [vmem:[#allocation2 + $0x2a] sm:$0xff]
      %v4504 = vld [vmem:[#allocation2 + $0x32] sm:$0xff]
      %v4505 = vld [vmem:[#allocation2 + $0x3a] sm:$0xff]
      %v4506 = vld [vmem:[#allocation2 + $0x42] sm:$0xff]
      %v4507 = vld [vmem:[#allocation2 + $0x4a] sm:$0xff]
      %v4508 = vld [vmem:[#allocation2 + $0x52] sm:$0xff]
      %v4509 = vld [vmem:[#allocation2 + $0x5a] sm:$0xff]
      %v4510 = vld [vmem:[#allocation2 + $0x62] sm:$0xff]
      %v4511 = vld [vmem:[#allocation2 + $0x6a] sm:$0xff]
      %v4512 = vld [vmem:[#allocation2 + $0x72] sm:$0xff]
      %v4513 = vld [vmem:[#allocation2 + $0x7a] sm:$0xff]
      %v4514 = vld [vmem:[#allocation2 + $0x82] sm:$0xff]
      %v4515 = vld [vmem:[#allocation2 + $0x8a] sm:$0xff]
      %v4516 = vld [vmem:[#allocation2 + $0x92] sm:$0xff]
      %v4517 = vld [vmem:[#allocation2 + $0x9a] sm:$0xff]
      %v4518 = vld [vmem:[#allocation2 + $0xa2] sm:$0xff]
      %v4519 = vld [vmem:[#allocation2 + $0xaa] sm:$0xff]
      %v4520 = vld [vmem:[#allocation2 + $0xb2] sm:$0xff]
      %v4521 = vld [vmem:[#allocation2 + $0xba] sm:$0xff]
      %v4522 = vld [vmem:[#allocation2 + $0xc2] sm:$0xff]
      %v4523 = vld [vmem:[#allocation2 + $0xca] sm:$0xff]
      %v4524 = vld [vmem:[#allocation2 + $0xd2] sm:$0xff]
      %v4525 = vld [vmem:[#allocation2 + $0xda] sm:$0xff]
      %v4526 = vld [vmem:[#allocation2 + $0xe2] sm:$0xff]
      %v4527 = vld [vmem:[#allocation2 + $0xea] sm:$0xff]
      %v4528 = vld [vmem:[#allocation2 + $0xf2] sm:$0xff]
      %v4529 = vld [vmem:[#allocation2 + $0xfa] sm:$0xff]
      %v4530 = vld [vmem:[#allocation2 + $0x102] sm:$0xff]
      %v4531 = vld [vmem:[#allocation2 + $0x10a] sm:$0xff]
      %v4532 = vld [vmem:[#allocation2 + $0x112] sm:$0xff]
      %v4533 = vld [vmem:[#allocation2 + $0x11a] sm:$0xff]
      %v4534 = vld [vmem:[#allocation2 + $0x122] sm:$0xff]
      %v4535 = vld [vmem:[#allocation2 + $0x12a] sm:$0x3f]
      %v4536 = vpack.c.bf16 %v4501, %v4500
      %v4537 = vpack.c.bf16 %v4503, %v4502
      %v4538 = vpack.c.bf16 %v4505, %v4504
      %v4539 = vpack.c.bf16 %v4507, %v4506
      %v4540 = vpack.c.bf16 %v4509, %v4508
      %v4541 = vpack.c.bf16 %v4511, %v4510
      %v4542 = vpack.c.bf16 %v4513, %v4512
      %v4543 = vpack.c.bf16 %v4515, %v4514
      %v4544 = vpack.c.bf16 %v4517, %v4516
      %v4545 = vpack.c.bf16 %v4519, %v4518
      %v4546 = vpack.c.bf16 %v4521, %v4520
      %v4547 = vpack.c.bf16 %v4523, %v4522
      %v4548 = vpack.c.bf16 %v4525, %v4524
      %v4549 = vpack.c.bf16 %v4527, %v4526
      %v4550 = vpack.c.bf16 %v4529, %v4528
      %v4551 = vpack.c.bf16 %v4531, %v4530
      %v4552 = vpack.c.bf16 %v4533, %v4532
      %v4553 = vpack.c.bf16 %v4535, %v4534
      %s4554 = scalar_lea.vmem %s3, 192
      %v4555 = vld [vmem:[%s4554] sm:$0xf]
      %v4556 = vld [vmem:[%s4554 + $0x4] sm:$0xf]
      %v4557 = vld [vmem:[%s4554 + $0x8] sm:$0xf]
      %v4558 = vld [vmem:[%s4554 + $0xc] sm:$0xf]
      %v4559 = vld [vmem:[%s4554 + $0x10] sm:$0xf]
      %v4560 = vld [vmem:[%s4554 + $0x14] sm:$0xf]
      %v4561 = vld [vmem:[%s4554 + $0x18] sm:$0xf]
      %v4562 = vld [vmem:[%s4554 + $0x1c] sm:$0xf]
      %v4563 = vld [vmem:[%s4554 + $0x20] sm:$0xf]
      %v4564 = vld [vmem:[%s4554 + $0x24] sm:$0xf]
      %v4565 = vld [vmem:[%s4554 + $0x28] sm:$0xf]
      %v4566 = vld [vmem:[%s4554 + $0x2c] sm:$0xf]
      %v4567 = vld [vmem:[%s4554 + $0x30] sm:$0xf]
      %v4568 = vld [vmem:[%s4554 + $0x34] sm:$0xf]
      %v4569 = vld [vmem:[%s4554 + $0x38] sm:$0xf]
      %v4570 = vld [vmem:[%s4554 + $0x3c] sm:$0xf]
      %v4587 = vunpack.c.l.b16 %v4555
      %v4588 = vunpack.c.l.b16 %v4556
      %v4589 = vunpack.c.l.b16 %v4557
      %v4590 = vunpack.c.l.b16 %v4558
      %v4591 = vunpack.c.l.b16 %v4559
      %v4592 = vunpack.c.l.b16 %v4560
      %v4593 = vunpack.c.l.b16 %v4561
      %v4594 = vunpack.c.l.b16 %v4562
      %v4595 = vunpack.c.l.b16 %v4563
      %v4596 = vunpack.c.l.b16 %v4564
      %v4597 = vunpack.c.l.b16 %v4565
      %v4598 = vunpack.c.l.b16 %v4566
      %v4599 = vunpack.c.l.b16 %v4567
      %v4600 = vunpack.c.l.b16 %v4568
      %v4601 = vunpack.c.l.b16 %v4569
      %v4602 = vunpack.c.l.b16 %v4570
      %v4603 = vpack.c.b16 %v4588, %v4587
      %v4604 = vpack.c.b16 %v4590, %v4589
      %v4605 = vpack.c.b16 %v4592, %v4591
      %v4606 = vpack.c.b16 %v4594, %v4593
      %v4607 = vpack.c.b16 %v4596, %v4595
      %v4608 = vpack.c.b16 %v4598, %v4597
      %v4609 = vpack.c.b16 %v4600, %v4599
      %v4610 = vpack.c.b16 %v4602, %v4601
      %4619 = vmatprep.subr.bf16.mxu0 0
      %4620 = vmatpush1.bf16.msra.mxu0 %v4610
      %4621 = vmatprep.subr.bf16.mxu0 0
      %4622 = vmatpush1.bf16.msra.mxu0 %v4609
      %4623 = vmatprep.subr.bf16.mxu0 0
      %4624 = vmatpush1.bf16.msra.mxu0 %v4608
      %4625 = vmatprep.subr.bf16.mxu0 0
      %4626 = vmatpush1.bf16.msra.mxu0 %v4607
      %4627 = vmatprep.subr.bf16.mxu0 0
      %4628 = vmatpush1.bf16.msra.mxu0 %v4606
      %4629 = vmatprep.subr.bf16.mxu0 0
      %4630 = vmatpush1.bf16.msra.mxu0 %v4605
      %4631 = vmatprep.subr.bf16.mxu0 0
      %4632 = vmatpush1.bf16.msra.mxu0 %v4604
      %4633 = vmatprep.subr.bf16.mxu0 0
      %4634 = vmatpush1.bf16.msra.mxu0 %v4603
      %4635 = vmatprep.subr.bf16.mxu0 0
      %4636 = vmatpush2.bf16.msra.mxu0 0
      %4637 = vmatprep.subr.bf16.mxu0 0
      %4638 = vmatpush2.bf16.msra.mxu0 0
      %4639 = vmatprep.subr.bf16.mxu0 0
      %4640 = vmatpush2.bf16.msra.mxu0 0
      %4641 = vmatprep.subr.bf16.mxu0 0
      %4642 = vmatpush2.bf16.msra.mxu0 0
      %4643 = vmatprep.subr.bf16.mxu0 0
      %4644 = vmatpush2.bf16.msra.mxu0 0
      %4645 = vmatprep.subr.bf16.mxu0 0
      %4646 = vmatpush2.bf16.msra.mxu0 0
      %4647 = vmatprep.subr.bf16.mxu0 0
      %4648 = vmatpush2.bf16.msra.mxu0 0
      %4649 = vmatprep.subr.bf16.mxu0 0
      %4650 = vmatpush2.bf16.msra.mxu0 0
      %4651 = vmatprep.mubr.bf16.mxu0 0
      %4652 = vmatmul.mubr.bf16.gmra.mxu0 %v4536
      %v4653 = vpop.f32.mrf.mxu0
      %v4654 = vadd.f32 0.0, %v4653
      %v4655 = vpop.f32.mrf.mxu0
      %v4656 = vpop.f32.mrf.mxu0
      %v4657 = vadd.f32 0.0, %v4656
      %v4658 = vpop.f32.mrf.mxu0
      %4659 = vmatprep.mubr.bf16.mxu0 0
      %4660 = vmatmul.mubr.bf16.gmra.mxu0 %v4537
      %v4661 = vpop.f32.mrf.mxu0
      %v4662 = vadd.f32 0.0, %v4661
      %v4663 = vpop.f32.mrf.mxu0
      %v4664 = vpop.f32.mrf.mxu0
      %v4665 = vadd.f32 0.0, %v4664
      %v4666 = vpop.f32.mrf.mxu0
      %4667 = vmatprep.mubr.bf16.mxu0 0
      %4668 = vmatmul.mubr.bf16.gmra.mxu0 %v4538
      %v4669 = vpop.f32.mrf.mxu0
      %v4670 = vadd.f32 0.0, %v4669
      %v4671 = vpop.f32.mrf.mxu0
      %v4672 = vpop.f32.mrf.mxu0
      %v4673 = vadd.f32 0.0, %v4672
      %v4674 = vpop.f32.mrf.mxu0
      %4675 = vmatprep.mubr.bf16.mxu0 0
      %4676 = vmatmul.mubr.bf16.gmra.mxu0 %v4539
      %v4677 = vpop.f32.mrf.mxu0
      %v4678 = vadd.f32 0.0, %v4677
      %v4679 = vpop.f32.mrf.mxu0
      %v4680 = vpop.f32.mrf.mxu0
      %v4681 = vadd.f32 0.0, %v4680
      %v4682 = vpop.f32.mrf.mxu0
      %4683 = vmatprep.mubr.bf16.mxu0 0
      %4684 = vmatmul.mubr.bf16.gmra.mxu0 %v4540
      %v4685 = vpop.f32.mrf.mxu0
      %v4686 = vadd.f32 0.0, %v4685
      %v4687 = vpop.f32.mrf.mxu0
      %v4688 = vpop.f32.mrf.mxu0
      %v4689 = vadd.f32 0.0, %v4688
      %v4690 = vpop.f32.mrf.mxu0
      %4691 = vmatprep.mubr.bf16.mxu0 0
      %4692 = vmatmul.mubr.bf16.gmra.mxu0 %v4541
      %v4693 = vpop.f32.mrf.mxu0
      %v4694 = vadd.f32 0.0, %v4693
      %v4695 = vpop.f32.mrf.mxu0
      %v4696 = vpop.f32.mrf.mxu0
      %v4697 = vadd.f32 0.0, %v4696
      %v4698 = vpop.f32.mrf.mxu0
      %4699 = vmatprep.mubr.bf16.mxu0 0
      %4700 = vmatmul.mubr.bf16.gmra.mxu0 %v4542
      %v4701 = vpop.f32.mrf.mxu0
      %v4702 = vadd.f32 0.0, %v4701
      %v4703 = vpop.f32.mrf.mxu0
      %v4704 = vpop.f32.mrf.mxu0
      %v4705 = vadd.f32 0.0, %v4704
      %v4706 = vpop.f32.mrf.mxu0
      %4707 = vmatprep.mubr.bf16.mxu0 0
      %4708 = vmatmul.mubr.bf16.gmra.mxu0 %v4543
      %v4709 = vpop.f32.mrf.mxu0
      %v4710 = vadd.f32 0.0, %v4709
      %v4711 = vpop.f32.mrf.mxu0
      %v4712 = vpop.f32.mrf.mxu0
      %v4713 = vadd.f32 0.0, %v4712
      %v4714 = vpop.f32.mrf.mxu0
      %4715 = vmatprep.mubr.bf16.mxu0 0
      %4716 = vmatmul.mubr.bf16.gmra.mxu0 %v4544
      %v4717 = vpop.f32.mrf.mxu0
      %v4718 = vadd.f32 0.0, %v4717
      %v4719 = vpop.f32.mrf.mxu0
      %v4720 = vpop.f32.mrf.mxu0
      %v4721 = vadd.f32 0.0, %v4720
      %v4722 = vpop.f32.mrf.mxu0
      %4723 = vmatprep.mubr.bf16.mxu0 0
      %4724 = vmatmul.mubr.bf16.gmra.mxu0 %v4545
      %v4725 = vpop.f32.mrf.mxu0
      %v4726 = vadd.f32 0.0, %v4725
      %v4727 = vpop.f32.mrf.mxu0
      %v4728 = vpop.f32.mrf.mxu0
      %v4729 = vadd.f32 0.0, %v4728
      %v4730 = vpop.f32.mrf.mxu0
      %4731 = vmatprep.mubr.bf16.mxu0 0
      %4732 = vmatmul.mubr.bf16.gmra.mxu0 %v4546
      %v4733 = vpop.f32.mrf.mxu0
      %v4734 = vadd.f32 0.0, %v4733
      %v4735 = vpop.f32.mrf.mxu0
      %v4736 = vpop.f32.mrf.mxu0
      %v4737 = vadd.f32 0.0, %v4736
      %v4738 = vpop.f32.mrf.mxu0
      %4739 = vmatprep.mubr.bf16.mxu0 0
      %4740 = vmatmul.mubr.bf16.gmra.mxu0 %v4547
      %v4741 = vpop.f32.mrf.mxu0
      %v4742 = vadd.f32 0.0, %v4741
      %v4743 = vpop.f32.mrf.mxu0
      %v4744 = vpop.f32.mrf.mxu0
      %v4745 = vadd.f32 0.0, %v4744
      %v4746 = vpop.f32.mrf.mxu0
      %4747 = vmatprep.mubr.bf16.mxu0 0
      %4748 = vmatmul.mubr.bf16.gmra.mxu0 %v4548
      %v4749 = vpop.f32.mrf.mxu0
      %v4750 = vadd.f32 0.0, %v4749
      %v4751 = vpop.f32.mrf.mxu0
      %v4752 = vpop.f32.mrf.mxu0
      %v4753 = vadd.f32 0.0, %v4752
      %v4754 = vpop.f32.mrf.mxu0
      %4755 = vmatprep.mubr.bf16.mxu0 0
      %4756 = vmatmul.mubr.bf16.gmra.mxu0 %v4549
      %v4757 = vpop.f32.mrf.mxu0
      %v4758 = vadd.f32 0.0, %v4757
      %v4759 = vpop.f32.mrf.mxu0
      %v4760 = vpop.f32.mrf.mxu0
      %v4761 = vadd.f32 0.0, %v4760
      %v4762 = vpop.f32.mrf.mxu0
      %4763 = vmatprep.mubr.bf16.mxu0 0
      %4764 = vmatmul.mubr.bf16.gmra.mxu0 %v4550
      %v4765 = vpop.f32.mrf.mxu0
      %v4766 = vadd.f32 0.0, %v4765
      %v4767 = vpop.f32.mrf.mxu0
      %v4768 = vpop.f32.mrf.mxu0
      %v4769 = vadd.f32 0.0, %v4768
      %v4770 = vpop.f32.mrf.mxu0
      %4771 = vmatprep.mubr.bf16.mxu0 0
      %4772 = vmatmul.mubr.bf16.gmra.mxu0 %v4551
      %v4773 = vpop.f32.mrf.mxu0
      %v4774 = vadd.f32 0.0, %v4773
      %v4775 = vpop.f32.mrf.mxu0
      %v4776 = vpop.f32.mrf.mxu0
      %v4777 = vadd.f32 0.0, %v4776
      %v4778 = vpop.f32.mrf.mxu0
      %4779 = vmatprep.mubr.bf16.mxu0 0
      %4780 = vmatmul.mubr.bf16.gmra.mxu0 %v4552
      %v4781 = vpop.f32.mrf.mxu0
      %v4782 = vadd.f32 0.0, %v4781
      %v4783 = vpop.f32.mrf.mxu0
      %v4784 = vpop.f32.mrf.mxu0
      %v4785 = vadd.f32 0.0, %v4784
      %v4786 = vpop.f32.mrf.mxu0
      %4787 = vmatprep.mubr.bf16.mxu0 0
      %4788 = vmatmul.mubr.bf16.gmra.mxu0 %v4553
      %v4789 = vpop.f32.mrf.mxu0
      %v4790 = vadd.f32 0.0, %v4789
      %v4791 = vpop.f32.mrf.mxu0
      %v4792 = vpop.f32.mrf.mxu0
      %v4793 = vadd.f32 0.0, %v4792
      %v4794 = vpop.f32.mrf.mxu0
      %4795 = vdwg.mxu0
      %v4796 = vadd.f32 %v4464, %v4654
      %v4797 = vadd.f32 %v4465, %v4657
      %v4798 = vadd.f32 %v4466, %v4662
      %v4799 = vadd.f32 %v4467, %v4665
      %v4800 = vadd.f32 %v4468, %v4670
      %v4801 = vadd.f32 %v4469, %v4673
      %v4802 = vadd.f32 %v4470, %v4678
      %v4803 = vadd.f32 %v4471, %v4681
      %v4804 = vadd.f32 %v4472, %v4686
      %v4805 = vadd.f32 %v4473, %v4689
      %v4806 = vadd.f32 %v4474, %v4694
      %v4807 = vadd.f32 %v4475, %v4697
      %v4808 = vadd.f32 %v4476, %v4702
      %v4809 = vadd.f32 %v4477, %v4705
      %v4810 = vadd.f32 %v4478, %v4710
      %v4811 = vadd.f32 %v4479, %v4713
      %v4812 = vadd.f32 %v4480, %v4718
      %v4813 = vadd.f32 %v4481, %v4721
      %v4814 = vadd.f32 %v4482, %v4726
      %v4815 = vadd.f32 %v4483, %v4729
      %v4816 = vadd.f32 %v4484, %v4734
      %v4817 = vadd.f32 %v4485, %v4737
      %v4818 = vadd.f32 %v4486, %v4742
      %v4819 = vadd.f32 %v4487, %v4745
      %v4820 = vadd.f32 %v4488, %v4750
      %v4821 = vadd.f32 %v4489, %v4753
      %v4822 = vadd.f32 %v4490, %v4758
      %v4823 = vadd.f32 %v4491, %v4761
      %v4824 = vadd.f32 %v4492, %v4766
      %v4825 = vadd.f32 %v4493, %v4769
      %v4826 = vadd.f32 %v4494, %v4774
      %v4827 = vadd.f32 %v4495, %v4777
      %v4828 = vadd.f32 %v4496, %v4782
      %v4829 = vadd.f32 %v4497, %v4785
      %v4830 = vadd.f32 %v4498, %v4790
      %v4831 = vadd.f32 %v4499, %v4793
      %v4832 = vld [vmem:[#allocation2 + $0x13] sm:$0xff]
      %v4833 = vld [vmem:[#allocation2 + $0x1b] sm:$0xff]
      %v4834 = vld [vmem:[#allocation2 + $0x23] sm:$0xff]
      %v4835 = vld [vmem:[#allocation2 + $0x2b] sm:$0xff]
      %v4836 = vld [vmem:[#allocation2 + $0x33] sm:$0xff]
      %v4837 = vld [vmem:[#allocation2 + $0x3b] sm:$0xff]
      %v4838 = vld [vmem:[#allocation2 + $0x43] sm:$0xff]
      %v4839 = vld [vmem:[#allocation2 + $0x4b] sm:$0xff]
      %v4840 = vld [vmem:[#allocation2 + $0x53] sm:$0xff]
      %v4841 = vld [vmem:[#allocation2 + $0x5b] sm:$0xff]
      %v4842 = vld [vmem:[#allocation2 + $0x63] sm:$0xff]
      %v4843 = vld [vmem:[#allocation2 + $0x6b] sm:$0xff]
      %v4844 = vld [vmem:[#allocation2 + $0x73] sm:$0xff]
      %v4845 = vld [vmem:[#allocation2 + $0x7b] sm:$0xff]
      %v4846 = vld [vmem:[#allocation2 + $0x83] sm:$0xff]
      %v4847 = vld [vmem:[#allocation2 + $0x8b] sm:$0xff]
      %v4848 = vld [vmem:[#allocation2 + $0x93] sm:$0xff]
      %v4849 = vld [vmem:[#allocation2 + $0x9b] sm:$0xff]
      %v4850 = vld [vmem:[#allocation2 + $0xa3] sm:$0xff]
      %v4851 = vld [vmem:[#allocation2 + $0xab] sm:$0xff]
      %v4852 = vld [vmem:[#allocation2 + $0xb3] sm:$0xff]
      %v4853 = vld [vmem:[#allocation2 + $0xbb] sm:$0xff]
      %v4854 = vld [vmem:[#allocation2 + $0xc3] sm:$0xff]
      %v4855 = vld [vmem:[#allocation2 + $0xcb] sm:$0xff]
      %v4856 = vld [vmem:[#allocation2 + $0xd3] sm:$0xff]
      %v4857 = vld [vmem:[#allocation2 + $0xdb] sm:$0xff]
      %v4858 = vld [vmem:[#allocation2 + $0xe3] sm:$0xff]
      %v4859 = vld [vmem:[#allocation2 + $0xeb] sm:$0xff]
      %v4860 = vld [vmem:[#allocation2 + $0xf3] sm:$0xff]
      %v4861 = vld [vmem:[#allocation2 + $0xfb] sm:$0xff]
      %v4862 = vld [vmem:[#allocation2 + $0x103] sm:$0xff]
      %v4863 = vld [vmem:[#allocation2 + $0x10b] sm:$0xff]
      %v4864 = vld [vmem:[#allocation2 + $0x113] sm:$0xff]
      %v4865 = vld [vmem:[#allocation2 + $0x11b] sm:$0xff]
      %v4866 = vld [vmem:[#allocation2 + $0x123] sm:$0xff]
      %v4867 = vld [vmem:[#allocation2 + $0x12b] sm:$0x3f]
      %v4868 = vpack.c.bf16 %v4833, %v4832
      %v4869 = vpack.c.bf16 %v4835, %v4834
      %v4870 = vpack.c.bf16 %v4837, %v4836
      %v4871 = vpack.c.bf16 %v4839, %v4838
      %v4872 = vpack.c.bf16 %v4841, %v4840
      %v4873 = vpack.c.bf16 %v4843, %v4842
      %v4874 = vpack.c.bf16 %v4845, %v4844
      %v4875 = vpack.c.bf16 %v4847, %v4846
      %v4876 = vpack.c.bf16 %v4849, %v4848
      %v4877 = vpack.c.bf16 %v4851, %v4850
      %v4878 = vpack.c.bf16 %v4853, %v4852
      %v4879 = vpack.c.bf16 %v4855, %v4854
      %v4880 = vpack.c.bf16 %v4857, %v4856
      %v4881 = vpack.c.bf16 %v4859, %v4858
      %v4882 = vpack.c.bf16 %v4861, %v4860
      %v4883 = vpack.c.bf16 %v4863, %v4862
      %v4884 = vpack.c.bf16 %v4865, %v4864
      %v4885 = vpack.c.bf16 %v4867, %v4866
      %s4886 = scalar_lea.vmem %s3, 256
      %v4887 = vld [vmem:[%s4886] sm:$0xf]
      %v4888 = vld [vmem:[%s4886 + $0x4] sm:$0xf]
      %v4889 = vld [vmem:[%s4886 + $0x8] sm:$0xf]
      %v4890 = vld [vmem:[%s4886 + $0xc] sm:$0xf]
      %v4891 = vld [vmem:[%s4886 + $0x10] sm:$0xf]
      %v4892 = vld [vmem:[%s4886 + $0x14] sm:$0xf]
      %v4893 = vld [vmem:[%s4886 + $0x18] sm:$0xf]
      %v4894 = vld [vmem:[%s4886 + $0x1c] sm:$0xf]
      %v4895 = vld [vmem:[%s4886 + $0x20] sm:$0xf]
      %v4896 = vld [vmem:[%s4886 + $0x24] sm:$0xf]
      %v4897 = vld [vmem:[%s4886 + $0x28] sm:$0xf]
      %v4898 = vld [vmem:[%s4886 + $0x2c] sm:$0xf]
      %v4899 = vld [vmem:[%s4886 + $0x30] sm:$0xf]
      %v4900 = vld [vmem:[%s4886 + $0x34] sm:$0xf]
      %v4901 = vld [vmem:[%s4886 + $0x38] sm:$0xf]
      %v4902 = vld [vmem:[%s4886 + $0x3c] sm:$0xf]
      %v4919 = vunpack.c.l.b16 %v4887
      %v4920 = vunpack.c.l.b16 %v4888
      %v4921 = vunpack.c.l.b16 %v4889
      %v4922 = vunpack.c.l.b16 %v4890
      %v4923 = vunpack.c.l.b16 %v4891
      %v4924 = vunpack.c.l.b16 %v4892
      %v4925 = vunpack.c.l.b16 %v4893
      %v4926 = vunpack.c.l.b16 %v4894
      %v4927 = vunpack.c.l.b16 %v4895
      %v4928 = vunpack.c.l.b16 %v4896
      %v4929 = vunpack.c.l.b16 %v4897
      %v4930 = vunpack.c.l.b16 %v4898
      %v4931 = vunpack.c.l.b16 %v4899
      %v4932 = vunpack.c.l.b16 %v4900
      %v4933 = vunpack.c.l.b16 %v4901
      %v4934 = vunpack.c.l.b16 %v4902
      %v4935 = vpack.c.b16 %v4920, %v4919
      %v4936 = vpack.c.b16 %v4922, %v4921
      %v4937 = vpack.c.b16 %v4924, %v4923
      %v4938 = vpack.c.b16 %v4926, %v4925
      %v4939 = vpack.c.b16 %v4928, %v4927
      %v4940 = vpack.c.b16 %v4930, %v4929
      %v4941 = vpack.c.b16 %v4932, %v4931
      %v4942 = vpack.c.b16 %v4934, %v4933
      %4951 = vmatprep.subr.bf16.mxu0 0
      %4952 = vmatpush1.bf16.msra.mxu0 %v4942
      %4953 = vmatprep.subr.bf16.mxu0 0
      %4954 = vmatpush1.bf16.msra.mxu0 %v4941
      %4955 = vmatprep.subr.bf16.mxu0 0
      %4956 = vmatpush1.bf16.msra.mxu0 %v4940
      %4957 = vmatprep.subr.bf16.mxu0 0
      %4958 = vmatpush1.bf16.msra.mxu0 %v4939
      %4959 = vmatprep.subr.bf16.mxu0 0
      %4960 = vmatpush1.bf16.msra.mxu0 %v4938
      %4961 = vmatprep.subr.bf16.mxu0 0
      %4962 = vmatpush1.bf16.msra.mxu0 %v4937
      %4963 = vmatprep.subr.bf16.mxu0 0
      %4964 = vmatpush1.bf16.msra.mxu0 %v4936
      %4965 = vmatprep.subr.bf16.mxu0 0
      %4966 = vmatpush1.bf16.msra.mxu0 %v4935
      %4967 = vmatprep.subr.bf16.mxu0 0
      %4968 = vmatpush2.bf16.msra.mxu0 0
      %4969 = vmatprep.subr.bf16.mxu0 0
      %4970 = vmatpush2.bf16.msra.mxu0 0
      %4971 = vmatprep.subr.bf16.mxu0 0
      %4972 = vmatpush2.bf16.msra.mxu0 0
      %4973 = vmatprep.subr.bf16.mxu0 0
      %4974 = vmatpush2.bf16.msra.mxu0 0
      %4975 = vmatprep.subr.bf16.mxu0 0
      %4976 = vmatpush2.bf16.msra.mxu0 0
      %4977 = vmatprep.subr.bf16.mxu0 0
      %4978 = vmatpush2.bf16.msra.mxu0 0
      %4979 = vmatprep.subr.bf16.mxu0 0
      %4980 = vmatpush2.bf16.msra.mxu0 0
      %4981 = vmatprep.subr.bf16.mxu0 0
      %4982 = vmatpush2.bf16.msra.mxu0 0
      %4983 = vmatprep.mubr.bf16.mxu0 0
      %4984 = vmatmul.mubr.bf16.gmra.mxu0 %v4868
      %v4985 = vpop.f32.mrf.mxu0
      %v4986 = vadd.f32 0.0, %v4985
      %v4987 = vpop.f32.mrf.mxu0
      %v4988 = vpop.f32.mrf.mxu0
      %v4989 = vadd.f32 0.0, %v4988
      %v4990 = vpop.f32.mrf.mxu0
      %4991 = vmatprep.mubr.bf16.mxu0 0
      %4992 = vmatmul.mubr.bf16.gmra.mxu0 %v4869
      %v4993 = vpop.f32.mrf.mxu0
      %v4994 = vadd.f32 0.0, %v4993
      %v4995 = vpop.f32.mrf.mxu0
      %v4996 = vpop.f32.mrf.mxu0
      %v4997 = vadd.f32 0.0, %v4996
      %v4998 = vpop.f32.mrf.mxu0
      %4999 = vmatprep.mubr.bf16.mxu0 0
      %5000 = vmatmul.mubr.bf16.gmra.mxu0 %v4870
      %v5001 = vpop.f32.mrf.mxu0
      %v5002 = vadd.f32 0.0, %v5001
      %v5003 = vpop.f32.mrf.mxu0
      %v5004 = vpop.f32.mrf.mxu0
      %v5005 = vadd.f32 0.0, %v5004
      %v5006 = vpop.f32.mrf.mxu0
      %5007 = vmatprep.mubr.bf16.mxu0 0
      %5008 = vmatmul.mubr.bf16.gmra.mxu0 %v4871
      %v5009 = vpop.f32.mrf.mxu0
      %v5010 = vadd.f32 0.0, %v5009
      %v5011 = vpop.f32.mrf.mxu0
      %v5012 = vpop.f32.mrf.mxu0
      %v5013 = vadd.f32 0.0, %v5012
      %v5014 = vpop.f32.mrf.mxu0
      %5015 = vmatprep.mubr.bf16.mxu0 0
      %5016 = vmatmul.mubr.bf16.gmra.mxu0 %v4872
      %v5017 = vpop.f32.mrf.mxu0
      %v5018 = vadd.f32 0.0, %v5017
      %v5019 = vpop.f32.mrf.mxu0
      %v5020 = vpop.f32.mrf.mxu0
      %v5021 = vadd.f32 0.0, %v5020
      %v5022 = vpop.f32.mrf.mxu0
      %5023 = vmatprep.mubr.bf16.mxu0 0
      %5024 = vmatmul.mubr.bf16.gmra.mxu0 %v4873
      %v5025 = vpop.f32.mrf.mxu0
      %v5026 = vadd.f32 0.0, %v5025
      %v5027 = vpop.f32.mrf.mxu0
      %v5028 = vpop.f32.mrf.mxu0
      %v5029 = vadd.f32 0.0, %v5028
      %v5030 = vpop.f32.mrf.mxu0
      %5031 = vmatprep.mubr.bf16.mxu0 0
      %5032 = vmatmul.mubr.bf16.gmra.mxu0 %v4874
      %v5033 = vpop.f32.mrf.mxu0
      %v5034 = vadd.f32 0.0, %v5033
      %v5035 = vpop.f32.mrf.mxu0
      %v5036 = vpop.f32.mrf.mxu0
      %v5037 = vadd.f32 0.0, %v5036
      %v5038 = vpop.f32.mrf.mxu0
      %5039 = vmatprep.mubr.bf16.mxu0 0
      %5040 = vmatmul.mubr.bf16.gmra.mxu0 %v4875
      %v5041 = vpop.f32.mrf.mxu0
      %v5042 = vadd.f32 0.0, %v5041
      %v5043 = vpop.f32.mrf.mxu0
      %v5044 = vpop.f32.mrf.mxu0
      %v5045 = vadd.f32 0.0, %v5044
      %v5046 = vpop.f32.mrf.mxu0
      %5047 = vmatprep.mubr.bf16.mxu0 0
      %5048 = vmatmul.mubr.bf16.gmra.mxu0 %v4876
      %v5049 = vpop.f32.mrf.mxu0
      %v5050 = vadd.f32 0.0, %v5049
      %v5051 = vpop.f32.mrf.mxu0
      %v5052 = vpop.f32.mrf.mxu0
      %v5053 = vadd.f32 0.0, %v5052
      %v5054 = vpop.f32.mrf.mxu0
      %5055 = vmatprep.mubr.bf16.mxu0 0
      %5056 = vmatmul.mubr.bf16.gmra.mxu0 %v4877
      %v5057 = vpop.f32.mrf.mxu0
      %v5058 = vadd.f32 0.0, %v5057
      %v5059 = vpop.f32.mrf.mxu0
      %v5060 = vpop.f32.mrf.mxu0
      %v5061 = vadd.f32 0.0, %v5060
      %v5062 = vpop.f32.mrf.mxu0
      %5063 = vmatprep.mubr.bf16.mxu0 0
      %5064 = vmatmul.mubr.bf16.gmra.mxu0 %v4878
      %v5065 = vpop.f32.mrf.mxu0
      %v5066 = vadd.f32 0.0, %v5065
      %v5067 = vpop.f32.mrf.mxu0
      %v5068 = vpop.f32.mrf.mxu0
      %v5069 = vadd.f32 0.0, %v5068
      %v5070 = vpop.f32.mrf.mxu0
      %5071 = vmatprep.mubr.bf16.mxu0 0
      %5072 = vmatmul.mubr.bf16.gmra.mxu0 %v4879
      %v5073 = vpop.f32.mrf.mxu0
      %v5074 = vadd.f32 0.0, %v5073
      %v5075 = vpop.f32.mrf.mxu0
      %v5076 = vpop.f32.mrf.mxu0
      %v5077 = vadd.f32 0.0, %v5076
      %v5078 = vpop.f32.mrf.mxu0
      %5079 = vmatprep.mubr.bf16.mxu0 0
      %5080 = vmatmul.mubr.bf16.gmra.mxu0 %v4880
      %v5081 = vpop.f32.mrf.mxu0
      %v5082 = vadd.f32 0.0, %v5081
      %v5083 = vpop.f32.mrf.mxu0
      %v5084 = vpop.f32.mrf.mxu0
      %v5085 = vadd.f32 0.0, %v5084
      %v5086 = vpop.f32.mrf.mxu0
      %5087 = vmatprep.mubr.bf16.mxu0 0
      %5088 = vmatmul.mubr.bf16.gmra.mxu0 %v4881
      %v5089 = vpop.f32.mrf.mxu0
      %v5090 = vadd.f32 0.0, %v5089
      %v5091 = vpop.f32.mrf.mxu0
      %v5092 = vpop.f32.mrf.mxu0
      %v5093 = vadd.f32 0.0, %v5092
      %v5094 = vpop.f32.mrf.mxu0
      %5095 = vmatprep.mubr.bf16.mxu0 0
      %5096 = vmatmul.mubr.bf16.gmra.mxu0 %v4882
      %v5097 = vpop.f32.mrf.mxu0
      %v5098 = vadd.f32 0.0, %v5097
      %v5099 = vpop.f32.mrf.mxu0
      %v5100 = vpop.f32.mrf.mxu0
      %v5101 = vadd.f32 0.0, %v5100
      %v5102 = vpop.f32.mrf.mxu0
      %5103 = vmatprep.mubr.bf16.mxu0 0
      %5104 = vmatmul.mubr.bf16.gmra.mxu0 %v4883
      %v5105 = vpop.f32.mrf.mxu0
      %v5106 = vadd.f32 0.0, %v5105
      %v5107 = vpop.f32.mrf.mxu0
      %v5108 = vpop.f32.mrf.mxu0
      %v5109 = vadd.f32 0.0, %v5108
      %v5110 = vpop.f32.mrf.mxu0
      %5111 = vmatprep.mubr.bf16.mxu0 0
      %5112 = vmatmul.mubr.bf16.gmra.mxu0 %v4884
      %v5113 = vpop.f32.mrf.mxu0
      %v5114 = vadd.f32 0.0, %v5113
      %v5115 = vpop.f32.mrf.mxu0
      %v5116 = vpop.f32.mrf.mxu0
      %v5117 = vadd.f32 0.0, %v5116
      %v5118 = vpop.f32.mrf.mxu0
      %5119 = vmatprep.mubr.bf16.mxu0 0
      %5120 = vmatmul.mubr.bf16.gmra.mxu0 %v4885
      %v5121 = vpop.f32.mrf.mxu0
      %v5122 = vadd.f32 0.0, %v5121
      %v5123 = vpop.f32.mrf.mxu0
      %v5124 = vpop.f32.mrf.mxu0
      %v5125 = vadd.f32 0.0, %v5124
      %v5126 = vpop.f32.mrf.mxu0
      %5127 = vdwg.mxu0
      %v5128 = vadd.f32 %v4796, %v4986
      %v5129 = vadd.f32 %v4797, %v4989
      %v5130 = vadd.f32 %v4798, %v4994
      %v5131 = vadd.f32 %v4799, %v4997
      %v5132 = vadd.f32 %v4800, %v5002
      %v5133 = vadd.f32 %v4801, %v5005
      %v5134 = vadd.f32 %v4802, %v5010
      %v5135 = vadd.f32 %v4803, %v5013
      %v5136 = vadd.f32 %v4804, %v5018
      %v5137 = vadd.f32 %v4805, %v5021
      %v5138 = vadd.f32 %v4806, %v5026
      %v5139 = vadd.f32 %v4807, %v5029
      %v5140 = vadd.f32 %v4808, %v5034
      %v5141 = vadd.f32 %v4809, %v5037
      %v5142 = vadd.f32 %v4810, %v5042
      %v5143 = vadd.f32 %v4811, %v5045
      %v5144 = vadd.f32 %v4812, %v5050
      %v5145 = vadd.f32 %v4813, %v5053
      %v5146 = vadd.f32 %v4814, %v5058
      %v5147 = vadd.f32 %v4815, %v5061
      %v5148 = vadd.f32 %v4816, %v5066
      %v5149 = vadd.f32 %v4817, %v5069
      %v5150 = vadd.f32 %v4818, %v5074
      %v5151 = vadd.f32 %v4819, %v5077
      %v5152 = vadd.f32 %v4820, %v5082
      %v5153 = vadd.f32 %v4821, %v5085
      %v5154 = vadd.f32 %v4822, %v5090
      %v5155 = vadd.f32 %v4823, %v5093
      %v5156 = vadd.f32 %v4824, %v5098
      %v5157 = vadd.f32 %v4825, %v5101
      %v5158 = vadd.f32 %v4826, %v5106
      %v5159 = vadd.f32 %v4827, %v5109
      %v5160 = vadd.f32 %v4828, %v5114
      %v5161 = vadd.f32 %v4829, %v5117
      %v5162 = vadd.f32 %v4830, %v5122
      %v5163 = vadd.f32 %v4831, %v5125
      %v5164 = vld [vmem:[#allocation2 + $0x14] sm:$0xff]
      %v5165 = vld [vmem:[#allocation2 + $0x1c] sm:$0xff]
      %v5166 = vld [vmem:[#allocation2 + $0x24] sm:$0xff]
      %v5167 = vld [vmem:[#allocation2 + $0x2c] sm:$0xff]
      %v5168 = vld [vmem:[#allocation2 + $0x34] sm:$0xff]
      %v5169 = vld [vmem:[#allocation2 + $0x3c] sm:$0xff]
      %v5170 = vld [vmem:[#allocation2 + $0x44] sm:$0xff]
      %v5171 = vld [vmem:[#allocation2 + $0x4c] sm:$0xff]
      %v5172 = vld [vmem:[#allocation2 + $0x54] sm:$0xff]
      %v5173 = vld [vmem:[#allocation2 + $0x5c] sm:$0xff]
      %v5174 = vld [vmem:[#allocation2 + $0x64] sm:$0xff]
      %v5175 = vld [vmem:[#allocation2 + $0x6c] sm:$0xff]
      %v5176 = vld [vmem:[#allocation2 + $0x74] sm:$0xff]
      %v5177 = vld [vmem:[#allocation2 + $0x7c] sm:$0xff]
      %v5178 = vld [vmem:[#allocation2 + $0x84] sm:$0xff]
      %v5179 = vld [vmem:[#allocation2 + $0x8c] sm:$0xff]
      %v5180 = vld [vmem:[#allocation2 + $0x94] sm:$0xff]
      %v5181 = vld [vmem:[#allocation2 + $0x9c] sm:$0xff]
      %v5182 = vld [vmem:[#allocation2 + $0xa4] sm:$0xff]
      %v5183 = vld [vmem:[#allocation2 + $0xac] sm:$0xff]
      %v5184 = vld [vmem:[#allocation2 + $0xb4] sm:$0xff]
      %v5185 = vld [vmem:[#allocation2 + $0xbc] sm:$0xff]
      %v5186 = vld [vmem:[#allocation2 + $0xc4] sm:$0xff]
      %v5187 = vld [vmem:[#allocation2 + $0xcc] sm:$0xff]
      %v5188 = vld [vmem:[#allocation2 + $0xd4] sm:$0xff]
      %v5189 = vld [vmem:[#allocation2 + $0xdc] sm:$0xff]
      %v5190 = vld [vmem:[#allocation2 + $0xe4] sm:$0xff]
      %v5191 = vld [vmem:[#allocation2 + $0xec] sm:$0xff]
      %v5192 = vld [vmem:[#allocation2 + $0xf4] sm:$0xff]
      %v5193 = vld [vmem:[#allocation2 + $0xfc] sm:$0xff]
      %v5194 = vld [vmem:[#allocation2 + $0x104] sm:$0xff]
      %v5195 = vld [vmem:[#allocation2 + $0x10c] sm:$0xff]
      %v5196 = vld [vmem:[#allocation2 + $0x114] sm:$0xff]
      %v5197 = vld [vmem:[#allocation2 + $0x11c] sm:$0xff]
      %v5198 = vld [vmem:[#allocation2 + $0x124] sm:$0xff]
      %v5199 = vld [vmem:[#allocation2 + $0x12c] sm:$0x3f]
      %v5200 = vpack.c.bf16 %v5165, %v5164
      %v5201 = vpack.c.bf16 %v5167, %v5166
      %v5202 = vpack.c.bf16 %v5169, %v5168
      %v5203 = vpack.c.bf16 %v5171, %v5170
      %v5204 = vpack.c.bf16 %v5173, %v5172
      %v5205 = vpack.c.bf16 %v5175, %v5174
      %v5206 = vpack.c.bf16 %v5177, %v5176
      %v5207 = vpack.c.bf16 %v5179, %v5178
      %v5208 = vpack.c.bf16 %v5181, %v5180
      %v5209 = vpack.c.bf16 %v5183, %v5182
      %v5210 = vpack.c.bf16 %v5185, %v5184
      %v5211 = vpack.c.bf16 %v5187, %v5186
      %v5212 = vpack.c.bf16 %v5189, %v5188
      %v5213 = vpack.c.bf16 %v5191, %v5190
      %v5214 = vpack.c.bf16 %v5193, %v5192
      %v5215 = vpack.c.bf16 %v5195, %v5194
      %v5216 = vpack.c.bf16 %v5197, %v5196
      %v5217 = vpack.c.bf16 %v5199, %v5198
      %s5218 = scalar_lea.vmem %s3, 320
      %v5219 = vld [vmem:[%s5218] sm:$0xf]
      %v5220 = vld [vmem:[%s5218 + $0x4] sm:$0xf]
      %v5221 = vld [vmem:[%s5218 + $0x8] sm:$0xf]
      %v5222 = vld [vmem:[%s5218 + $0xc] sm:$0xf]
      %v5223 = vld [vmem:[%s5218 + $0x10] sm:$0xf]
      %v5224 = vld [vmem:[%s5218 + $0x14] sm:$0xf]
      %v5225 = vld [vmem:[%s5218 + $0x18] sm:$0xf]
      %v5226 = vld [vmem:[%s5218 + $0x1c] sm:$0xf]
      %v5227 = vld [vmem:[%s5218 + $0x20] sm:$0xf]
      %v5228 = vld [vmem:[%s5218 + $0x24] sm:$0xf]
      %v5229 = vld [vmem:[%s5218 + $0x28] sm:$0xf]
      %v5230 = vld [vmem:[%s5218 + $0x2c] sm:$0xf]
      %v5231 = vld [vmem:[%s5218 + $0x30] sm:$0xf]
      %v5232 = vld [vmem:[%s5218 + $0x34] sm:$0xf]
      %v5233 = vld [vmem:[%s5218 + $0x38] sm:$0xf]
      %v5234 = vld [vmem:[%s5218 + $0x3c] sm:$0xf]
      %v5251 = vunpack.c.l.b16 %v5219
      %v5252 = vunpack.c.l.b16 %v5220
      %v5253 = vunpack.c.l.b16 %v5221
      %v5254 = vunpack.c.l.b16 %v5222
      %v5255 = vunpack.c.l.b16 %v5223
      %v5256 = vunpack.c.l.b16 %v5224
      %v5257 = vunpack.c.l.b16 %v5225
      %v5258 = vunpack.c.l.b16 %v5226
      %v5259 = vunpack.c.l.b16 %v5227
      %v5260 = vunpack.c.l.b16 %v5228
      %v5261 = vunpack.c.l.b16 %v5229
      %v5262 = vunpack.c.l.b16 %v5230
      %v5263 = vunpack.c.l.b16 %v5231
      %v5264 = vunpack.c.l.b16 %v5232
      %v5265 = vunpack.c.l.b16 %v5233
      %v5266 = vunpack.c.l.b16 %v5234
      %v5267 = vpack.c.b16 %v5252, %v5251
      %v5268 = vpack.c.b16 %v5254, %v5253
      %v5269 = vpack.c.b16 %v5256, %v5255
      %v5270 = vpack.c.b16 %v5258, %v5257
      %v5271 = vpack.c.b16 %v5260, %v5259
      %v5272 = vpack.c.b16 %v5262, %v5261
      %v5273 = vpack.c.b16 %v5264, %v5263
      %v5274 = vpack.c.b16 %v5266, %v5265
      %5283 = vmatprep.subr.bf16.mxu0 0
      %5284 = vmatpush1.bf16.msra.mxu0 %v5274
      %5285 = vmatprep.subr.bf16.mxu0 0
      %5286 = vmatpush1.bf16.msra.mxu0 %v5273
      %5287 = vmatprep.subr.bf16.mxu0 0
      %5288 = vmatpush1.bf16.msra.mxu0 %v5272
      %5289 = vmatprep.subr.bf16.mxu0 0
      %5290 = vmatpush1.bf16.msra.mxu0 %v5271
      %5291 = vmatprep.subr.bf16.mxu0 0
      %5292 = vmatpush1.bf16.msra.mxu0 %v5270
      %5293 = vmatprep.subr.bf16.mxu0 0
      %5294 = vmatpush1.bf16.msra.mxu0 %v5269
      %5295 = vmatprep.subr.bf16.mxu0 0
      %5296 = vmatpush1.bf16.msra.mxu0 %v5268
      %5297 = vmatprep.subr.bf16.mxu0 0
      %5298 = vmatpush1.bf16.msra.mxu0 %v5267
      %5299 = vmatprep.subr.bf16.mxu0 0
      %5300 = vmatpush2.bf16.msra.mxu0 0
      %5301 = vmatprep.subr.bf16.mxu0 0
      %5302 = vmatpush2.bf16.msra.mxu0 0
      %5303 = vmatprep.subr.bf16.mxu0 0
      %5304 = vmatpush2.bf16.msra.mxu0 0
      %5305 = vmatprep.subr.bf16.mxu0 0
      %5306 = vmatpush2.bf16.msra.mxu0 0
      %5307 = vmatprep.subr.bf16.mxu0 0
      %5308 = vmatpush2.bf16.msra.mxu0 0
      %5309 = vmatprep.subr.bf16.mxu0 0
      %5310 = vmatpush2.bf16.msra.mxu0 0
      %5311 = vmatprep.subr.bf16.mxu0 0
      %5312 = vmatpush2.bf16.msra.mxu0 0
      %5313 = vmatprep.subr.bf16.mxu0 0
      %5314 = vmatpush2.bf16.msra.mxu0 0
      %5315 = vmatprep.mubr.bf16.mxu0 0
      %5316 = vmatmul.mubr.bf16.gmra.mxu0 %v5200
      %v5317 = vpop.f32.mrf.mxu0
      %v5318 = vadd.f32 0.0, %v5317
      %v5319 = vpop.f32.mrf.mxu0
      %v5320 = vpop.f32.mrf.mxu0
      %v5321 = vadd.f32 0.0, %v5320
      %v5322 = vpop.f32.mrf.mxu0
      %5323 = vmatprep.mubr.bf16.mxu0 0
      %5324 = vmatmul.mubr.bf16.gmra.mxu0 %v5201
      %v5325 = vpop.f32.mrf.mxu0
      %v5326 = vadd.f32 0.0, %v5325
      %v5327 = vpop.f32.mrf.mxu0
      %v5328 = vpop.f32.mrf.mxu0
      %v5329 = vadd.f32 0.0, %v5328
      %v5330 = vpop.f32.mrf.mxu0
      %5331 = vmatprep.mubr.bf16.mxu0 0
      %5332 = vmatmul.mubr.bf16.gmra.mxu0 %v5202
      %v5333 = vpop.f32.mrf.mxu0
      %v5334 = vadd.f32 0.0, %v5333
      %v5335 = vpop.f32.mrf.mxu0
      %v5336 = vpop.f32.mrf.mxu0
      %v5337 = vadd.f32 0.0, %v5336
      %v5338 = vpop.f32.mrf.mxu0
      %5339 = vmatprep.mubr.bf16.mxu0 0
      %5340 = vmatmul.mubr.bf16.gmra.mxu0 %v5203
      %v5341 = vpop.f32.mrf.mxu0
      %v5342 = vadd.f32 0.0, %v5341
      %v5343 = vpop.f32.mrf.mxu0
      %v5344 = vpop.f32.mrf.mxu0
      %v5345 = vadd.f32 0.0, %v5344
      %v5346 = vpop.f32.mrf.mxu0
      %5347 = vmatprep.mubr.bf16.mxu0 0
      %5348 = vmatmul.mubr.bf16.gmra.mxu0 %v5204
      %v5349 = vpop.f32.mrf.mxu0
      %v5350 = vadd.f32 0.0, %v5349
      %v5351 = vpop.f32.mrf.mxu0
      %v5352 = vpop.f32.mrf.mxu0
      %v5353 = vadd.f32 0.0, %v5352
      %v5354 = vpop.f32.mrf.mxu0
      %5355 = vmatprep.mubr.bf16.mxu0 0
      %5356 = vmatmul.mubr.bf16.gmra.mxu0 %v5205
      %v5357 = vpop.f32.mrf.mxu0
      %v5358 = vadd.f32 0.0, %v5357
      %v5359 = vpop.f32.mrf.mxu0
      %v5360 = vpop.f32.mrf.mxu0
      %v5361 = vadd.f32 0.0, %v5360
      %v5362 = vpop.f32.mrf.mxu0
      %5363 = vmatprep.mubr.bf16.mxu0 0
      %5364 = vmatmul.mubr.bf16.gmra.mxu0 %v5206
      %v5365 = vpop.f32.mrf.mxu0
      %v5366 = vadd.f32 0.0, %v5365
      %v5367 = vpop.f32.mrf.mxu0
      %v5368 = vpop.f32.mrf.mxu0
      %v5369 = vadd.f32 0.0, %v5368
      %v5370 = vpop.f32.mrf.mxu0
      %5371 = vmatprep.mubr.bf16.mxu0 0
      %5372 = vmatmul.mubr.bf16.gmra.mxu0 %v5207
      %v5373 = vpop.f32.mrf.mxu0
      %v5374 = vadd.f32 0.0, %v5373
      %v5375 = vpop.f32.mrf.mxu0
      %v5376 = vpop.f32.mrf.mxu0
      %v5377 = vadd.f32 0.0, %v5376
      %v5378 = vpop.f32.mrf.mxu0
      %5379 = vmatprep.mubr.bf16.mxu0 0
      %5380 = vmatmul.mubr.bf16.gmra.mxu0 %v5208
      %v5381 = vpop.f32.mrf.mxu0
      %v5382 = vadd.f32 0.0, %v5381
      %v5383 = vpop.f32.mrf.mxu0
      %v5384 = vpop.f32.mrf.mxu0
      %v5385 = vadd.f32 0.0, %v5384
      %v5386 = vpop.f32.mrf.mxu0
      %5387 = vmatprep.mubr.bf16.mxu0 0
      %5388 = vmatmul.mubr.bf16.gmra.mxu0 %v5209
      %v5389 = vpop.f32.mrf.mxu0
      %v5390 = vadd.f32 0.0, %v5389
      %v5391 = vpop.f32.mrf.mxu0
      %v5392 = vpop.f32.mrf.mxu0
      %v5393 = vadd.f32 0.0, %v5392
      %v5394 = vpop.f32.mrf.mxu0
      %5395 = vmatprep.mubr.bf16.mxu0 0
      %5396 = vmatmul.mubr.bf16.gmra.mxu0 %v5210
      %v5397 = vpop.f32.mrf.mxu0
      %v5398 = vadd.f32 0.0, %v5397
      %v5399 = vpop.f32.mrf.mxu0
      %v5400 = vpop.f32.mrf.mxu0
      %v5401 = vadd.f32 0.0, %v5400
      %v5402 = vpop.f32.mrf.mxu0
      %5403 = vmatprep.mubr.bf16.mxu0 0
      %5404 = vmatmul.mubr.bf16.gmra.mxu0 %v5211
      %v5405 = vpop.f32.mrf.mxu0
      %v5406 = vadd.f32 0.0, %v5405
      %v5407 = vpop.f32.mrf.mxu0
      %v5408 = vpop.f32.mrf.mxu0
      %v5409 = vadd.f32 0.0, %v5408
      %v5410 = vpop.f32.mrf.mxu0
      %5411 = vmatprep.mubr.bf16.mxu0 0
      %5412 = vmatmul.mubr.bf16.gmra.mxu0 %v5212
      %v5413 = vpop.f32.mrf.mxu0
      %v5414 = vadd.f32 0.0, %v5413
      %v5415 = vpop.f32.mrf.mxu0
      %v5416 = vpop.f32.mrf.mxu0
      %v5417 = vadd.f32 0.0, %v5416
      %v5418 = vpop.f32.mrf.mxu0
      %5419 = vmatprep.mubr.bf16.mxu0 0
      %5420 = vmatmul.mubr.bf16.gmra.mxu0 %v5213
      %v5421 = vpop.f32.mrf.mxu0
      %v5422 = vadd.f32 0.0, %v5421
      %v5423 = vpop.f32.mrf.mxu0
      %v5424 = vpop.f32.mrf.mxu0
      %v5425 = vadd.f32 0.0, %v5424
      %v5426 = vpop.f32.mrf.mxu0
      %5427 = vmatprep.mubr.bf16.mxu0 0
      %5428 = vmatmul.mubr.bf16.gmra.mxu0 %v5214
      %v5429 = vpop.f32.mrf.mxu0
      %v5430 = vadd.f32 0.0, %v5429
      %v5431 = vpop.f32.mrf.mxu0
      %v5432 = vpop.f32.mrf.mxu0
      %v5433 = vadd.f32 0.0, %v5432
      %v5434 = vpop.f32.mrf.mxu0
      %5435 = vmatprep.mubr.bf16.mxu0 0
      %5436 = vmatmul.mubr.bf16.gmra.mxu0 %v5215
      %v5437 = vpop.f32.mrf.mxu0
      %v5438 = vadd.f32 0.0, %v5437
      %v5439 = vpop.f32.mrf.mxu0
      %v5440 = vpop.f32.mrf.mxu0
      %v5441 = vadd.f32 0.0, %v5440
      %v5442 = vpop.f32.mrf.mxu0
      %5443 = vmatprep.mubr.bf16.mxu0 0
      %5444 = vmatmul.mubr.bf16.gmra.mxu0 %v5216
      %v5445 = vpop.f32.mrf.mxu0
      %v5446 = vadd.f32 0.0, %v5445
      %v5447 = vpop.f32.mrf.mxu0
      %v5448 = vpop.f32.mrf.mxu0
      %v5449 = vadd.f32 0.0, %v5448
      %v5450 = vpop.f32.mrf.mxu0
      %5451 = vmatprep.mubr.bf16.mxu0 0
      %5452 = vmatmul.mubr.bf16.gmra.mxu0 %v5217
      %v5453 = vpop.f32.mrf.mxu0
      %v5454 = vadd.f32 0.0, %v5453
      %v5455 = vpop.f32.mrf.mxu0
      %v5456 = vpop.f32.mrf.mxu0
      %v5457 = vadd.f32 0.0, %v5456
      %v5458 = vpop.f32.mrf.mxu0
      %5459 = vdwg.mxu0
      %v5460 = vadd.f32 %v5128, %v5318
      %v5461 = vadd.f32 %v5129, %v5321
      %v5462 = vadd.f32 %v5130, %v5326
      %v5463 = vadd.f32 %v5131, %v5329
      %v5464 = vadd.f32 %v5132, %v5334
      %v5465 = vadd.f32 %v5133, %v5337
      %v5466 = vadd.f32 %v5134, %v5342
      %v5467 = vadd.f32 %v5135, %v5345
      %v5468 = vadd.f32 %v5136, %v5350
      %v5469 = vadd.f32 %v5137, %v5353
      %v5470 = vadd.f32 %v5138, %v5358
      %v5471 = vadd.f32 %v5139, %v5361
      %v5472 = vadd.f32 %v5140, %v5366
      %v5473 = vadd.f32 %v5141, %v5369
      %v5474 = vadd.f32 %v5142, %v5374
      %v5475 = vadd.f32 %v5143, %v5377
      %v5476 = vadd.f32 %v5144, %v5382
      %v5477 = vadd.f32 %v5145, %v5385
      %v5478 = vadd.f32 %v5146, %v5390
      %v5479 = vadd.f32 %v5147, %v5393
      %v5480 = vadd.f32 %v5148, %v5398
      %v5481 = vadd.f32 %v5149, %v5401
      %v5482 = vadd.f32 %v5150, %v5406
      %v5483 = vadd.f32 %v5151, %v5409
      %v5484 = vadd.f32 %v5152, %v5414
      %v5485 = vadd.f32 %v5153, %v5417
      %v5486 = vadd.f32 %v5154, %v5422
      %v5487 = vadd.f32 %v5155, %v5425
      %v5488 = vadd.f32 %v5156, %v5430
      %v5489 = vadd.f32 %v5157, %v5433
      %v5490 = vadd.f32 %v5158, %v5438
      %v5491 = vadd.f32 %v5159, %v5441
      %v5492 = vadd.f32 %v5160, %v5446
      %v5493 = vadd.f32 %v5161, %v5449
      %v5494 = vadd.f32 %v5162, %v5454
      %v5495 = vadd.f32 %v5163, %v5457
      %v5496 = vld [vmem:[#allocation2 + $0x24] sm:$0xff]
      %v5497 = vld [vmem:[#allocation2 + $0x2c] sm:$0xff]
      %v5498 = vld [vmem:[#allocation2 + $0x34] sm:$0xff]
      %v5499 = vld [vmem:[#allocation2 + $0x3c] sm:$0xff]
      %v5500 = vld [vmem:[#allocation2 + $0x44] sm:$0xff]
      %v5501 = vld [vmem:[#allocation2 + $0x4c] sm:$0xff]
      %v5502 = vld [vmem:[#allocation2 + $0x54] sm:$0xff]
      %v5503 = vld [vmem:[#allocation2 + $0x5c] sm:$0xff]
      %v5504 = vld [vmem:[#allocation2 + $0x64] sm:$0xff]
      %v5505 = vld [vmem:[#allocation2 + $0x6c] sm:$0xff]
      %v5506 = vld [vmem:[#allocation2 + $0x74] sm:$0xff]
      %v5507 = vld [vmem:[#allocation2 + $0x7c] sm:$0xff]
      %v5508 = vld [vmem:[#allocation2 + $0x84] sm:$0xff]
      %v5509 = vld [vmem:[#allocation2 + $0x8c] sm:$0xff]
      %v5510 = vld [vmem:[#allocation2 + $0x94] sm:$0xff]
      %v5511 = vld [vmem:[#allocation2 + $0x9c] sm:$0xff]
      %v5512 = vld [vmem:[#allocation2 + $0xa4] sm:$0xff]
      %v5513 = vld [vmem:[#allocation2 + $0xac] sm:$0xff]
      %v5514 = vld [vmem:[#allocation2 + $0xb4] sm:$0xff]
      %v5515 = vld [vmem:[#allocation2 + $0xbc] sm:$0xff]
      %v5516 = vld [vmem:[#allocation2 + $0xc4] sm:$0xff]
      %v5517 = vld [vmem:[#allocation2 + $0xcc] sm:$0xff]
      %v5518 = vld [vmem:[#allocation2 + $0xd4] sm:$0xff]
      %v5519 = vld [vmem:[#allocation2 + $0xdc] sm:$0xff]
      %v5520 = vld [vmem:[#allocation2 + $0xe4] sm:$0xff]
      %v5521 = vld [vmem:[#allocation2 + $0xec] sm:$0xff]
      %v5522 = vld [vmem:[#allocation2 + $0xf4] sm:$0xff]
      %v5523 = vld [vmem:[#allocation2 + $0xfc] sm:$0xff]
      %v5524 = vld [vmem:[#allocation2 + $0x104] sm:$0xff]
      %v5525 = vld [vmem:[#allocation2 + $0x10c] sm:$0xff]
      %v5526 = vld [vmem:[#allocation2 + $0x114] sm:$0xff]
      %v5527 = vld [vmem:[#allocation2 + $0x11c] sm:$0xff]
      %v5528 = vld [vmem:[#allocation2 + $0x124] sm:$0xff]
      %v5529 = vld [vmem:[#allocation2 + $0x12c] sm:$0xff]
      %v5530 = vld [vmem:[#allocation2 + $0x134] sm:$0xff]
      %v5531 = vld [vmem:[#allocation2 + $0x13c] sm:$0x3f]
      %v5532 = vpack.c.bf16 %v5497, %v5496
      %v5533 = vpack.c.bf16 %v5499, %v5498
      %v5534 = vpack.c.bf16 %v5501, %v5500
      %v5535 = vpack.c.bf16 %v5503, %v5502
      %v5536 = vpack.c.bf16 %v5505, %v5504
      %v5537 = vpack.c.bf16 %v5507, %v5506
      %v5538 = vpack.c.bf16 %v5509, %v5508
      %v5539 = vpack.c.bf16 %v5511, %v5510
      %v5540 = vpack.c.bf16 %v5513, %v5512
      %v5541 = vpack.c.bf16 %v5515, %v5514
      %v5542 = vpack.c.bf16 %v5517, %v5516
      %v5543 = vpack.c.bf16 %v5519, %v5518
      %v5544 = vpack.c.bf16 %v5521, %v5520
      %v5545 = vpack.c.bf16 %v5523, %v5522
      %v5546 = vpack.c.bf16 %v5525, %v5524
      %v5547 = vpack.c.bf16 %v5527, %v5526
      %v5548 = vpack.c.bf16 %v5529, %v5528
      %v5549 = vpack.c.bf16 %v5531, %v5530
      %s5550 = scalar_lea.vmem %s3, 384
      %v5551 = vld [vmem:[%s5550] sm:$0xf]
      %v5552 = vld [vmem:[%s5550 + $0x4] sm:$0xf]
      %v5553 = vld [vmem:[%s5550 + $0x8] sm:$0xf]
      %v5554 = vld [vmem:[%s5550 + $0xc] sm:$0xf]
      %v5555 = vld [vmem:[%s5550 + $0x10] sm:$0xf]
      %v5556 = vld [vmem:[%s5550 + $0x14] sm:$0xf]
      %v5557 = vld [vmem:[%s5550 + $0x18] sm:$0xf]
      %v5558 = vld [vmem:[%s5550 + $0x1c] sm:$0xf]
      %v5559 = vld [vmem:[%s5550 + $0x20] sm:$0xf]
      %v5560 = vld [vmem:[%s5550 + $0x24] sm:$0xf]
      %v5561 = vld [vmem:[%s5550 + $0x28] sm:$0xf]
      %v5562 = vld [vmem:[%s5550 + $0x2c] sm:$0xf]
      %v5563 = vld [vmem:[%s5550 + $0x30] sm:$0xf]
      %v5564 = vld [vmem:[%s5550 + $0x34] sm:$0xf]
      %v5565 = vld [vmem:[%s5550 + $0x38] sm:$0xf]
      %v5566 = vld [vmem:[%s5550 + $0x3c] sm:$0xf]
      %v5583 = vunpack.c.l.b16 %v5551
      %v5584 = vunpack.c.l.b16 %v5552
      %v5585 = vunpack.c.l.b16 %v5553
      %v5586 = vunpack.c.l.b16 %v5554
      %v5587 = vunpack.c.l.b16 %v5555
      %v5588 = vunpack.c.l.b16 %v5556
      %v5589 = vunpack.c.l.b16 %v5557
      %v5590 = vunpack.c.l.b16 %v5558
      %v5591 = vunpack.c.l.b16 %v5559
      %v5592 = vunpack.c.l.b16 %v5560
      %v5593 = vunpack.c.l.b16 %v5561
      %v5594 = vunpack.c.l.b16 %v5562
      %v5595 = vunpack.c.l.b16 %v5563
      %v5596 = vunpack.c.l.b16 %v5564
      %v5597 = vunpack.c.l.b16 %v5565
      %v5598 = vunpack.c.l.b16 %v5566
      %v5599 = vpack.c.b16 %v5584, %v5583
      %v5600 = vpack.c.b16 %v5586, %v5585
      %v5601 = vpack.c.b16 %v5588, %v5587
      %v5602 = vpack.c.b16 %v5590, %v5589
      %v5603 = vpack.c.b16 %v5592, %v5591
      %v5604 = vpack.c.b16 %v5594, %v5593
      %v5605 = vpack.c.b16 %v5596, %v5595
      %v5606 = vpack.c.b16 %v5598, %v5597
      %5615 = vmatprep.subr.bf16.mxu0 0
      %5616 = vmatpush1.bf16.msra.mxu0 %v5606
      %5617 = vmatprep.subr.bf16.mxu0 0
      %5618 = vmatpush1.bf16.msra.mxu0 %v5605
      %5619 = vmatprep.subr.bf16.mxu0 0
      %5620 = vmatpush1.bf16.msra.mxu0 %v5604
      %5621 = vmatprep.subr.bf16.mxu0 0
      %5622 = vmatpush1.bf16.msra.mxu0 %v5603
      %5623 = vmatprep.subr.bf16.mxu0 0
      %5624 = vmatpush1.bf16.msra.mxu0 %v5602
      %5625 = vmatprep.subr.bf16.mxu0 0
      %5626 = vmatpush1.bf16.msra.mxu0 %v5601
      %5627 = vmatprep.subr.bf16.mxu0 0
      %5628 = vmatpush1.bf16.msra.mxu0 %v5600
      %5629 = vmatprep.subr.bf16.mxu0 0
      %5630 = vmatpush1.bf16.msra.mxu0 %v5599
      %5631 = vmatprep.subr.bf16.mxu0 0
      %5632 = vmatpush2.bf16.msra.mxu0 0
      %5633 = vmatprep.subr.bf16.mxu0 0
      %5634 = vmatpush2.bf16.msra.mxu0 0
      %5635 = vmatprep.subr.bf16.mxu0 0
      %5636 = vmatpush2.bf16.msra.mxu0 0
      %5637 = vmatprep.subr.bf16.mxu0 0
      %5638 = vmatpush2.bf16.msra.mxu0 0
      %5639 = vmatprep.subr.bf16.mxu0 0
      %5640 = vmatpush2.bf16.msra.mxu0 0
      %5641 = vmatprep.subr.bf16.mxu0 0
      %5642 = vmatpush2.bf16.msra.mxu0 0
      %5643 = vmatprep.subr.bf16.mxu0 0
      %5644 = vmatpush2.bf16.msra.mxu0 0
      %5645 = vmatprep.subr.bf16.mxu0 0
      %5646 = vmatpush2.bf16.msra.mxu0 0
      %5647 = vmatprep.mubr.bf16.mxu0 0
      %5648 = vmatmul.mubr.bf16.gmra.mxu0 %v5532
      %v5649 = vpop.f32.mrf.mxu0
      %v5650 = vadd.f32 0.0, %v5649
      %v5651 = vpop.f32.mrf.mxu0
      %v5652 = vpop.f32.mrf.mxu0
      %v5653 = vadd.f32 0.0, %v5652
      %v5654 = vpop.f32.mrf.mxu0
      %5655 = vmatprep.mubr.bf16.mxu0 0
      %5656 = vmatmul.mubr.bf16.gmra.mxu0 %v5533
      %v5657 = vpop.f32.mrf.mxu0
      %v5658 = vadd.f32 0.0, %v5657
      %v5659 = vpop.f32.mrf.mxu0
      %v5660 = vpop.f32.mrf.mxu0
      %v5661 = vadd.f32 0.0, %v5660
      %v5662 = vpop.f32.mrf.mxu0
      %5663 = vmatprep.mubr.bf16.mxu0 0
      %5664 = vmatmul.mubr.bf16.gmra.mxu0 %v5534
      %v5665 = vpop.f32.mrf.mxu0
      %v5666 = vadd.f32 0.0, %v5665
      %v5667 = vpop.f32.mrf.mxu0
      %v5668 = vpop.f32.mrf.mxu0
      %v5669 = vadd.f32 0.0, %v5668
      %v5670 = vpop.f32.mrf.mxu0
      %5671 = vmatprep.mubr.bf16.mxu0 0
      %5672 = vmatmul.mubr.bf16.gmra.mxu0 %v5535
      %v5673 = vpop.f32.mrf.mxu0
      %v5674 = vadd.f32 0.0, %v5673
      %v5675 = vpop.f32.mrf.mxu0
      %v5676 = vpop.f32.mrf.mxu0
      %v5677 = vadd.f32 0.0, %v5676
      %v5678 = vpop.f32.mrf.mxu0
      %5679 = vmatprep.mubr.bf16.mxu0 0
      %5680 = vmatmul.mubr.bf16.gmra.mxu0 %v5536
      %v5681 = vpop.f32.mrf.mxu0
      %v5682 = vadd.f32 0.0, %v5681
      %v5683 = vpop.f32.mrf.mxu0
      %v5684 = vpop.f32.mrf.mxu0
      %v5685 = vadd.f32 0.0, %v5684
      %v5686 = vpop.f32.mrf.mxu0
      %5687 = vmatprep.mubr.bf16.mxu0 0
      %5688 = vmatmul.mubr.bf16.gmra.mxu0 %v5537
      %v5689 = vpop.f32.mrf.mxu0
      %v5690 = vadd.f32 0.0, %v5689
      %v5691 = vpop.f32.mrf.mxu0
      %v5692 = vpop.f32.mrf.mxu0
      %v5693 = vadd.f32 0.0, %v5692
      %v5694 = vpop.f32.mrf.mxu0
      %5695 = vmatprep.mubr.bf16.mxu0 0
      %5696 = vmatmul.mubr.bf16.gmra.mxu0 %v5538
      %v5697 = vpop.f32.mrf.mxu0
      %v5698 = vadd.f32 0.0, %v5697
      %v5699 = vpop.f32.mrf.mxu0
      %v5700 = vpop.f32.mrf.mxu0
      %v5701 = vadd.f32 0.0, %v5700
      %v5702 = vpop.f32.mrf.mxu0
      %5703 = vmatprep.mubr.bf16.mxu0 0
      %5704 = vmatmul.mubr.bf16.gmra.mxu0 %v5539
      %v5705 = vpop.f32.mrf.mxu0
      %v5706 = vadd.f32 0.0, %v5705
      %v5707 = vpop.f32.mrf.mxu0
      %v5708 = vpop.f32.mrf.mxu0
      %v5709 = vadd.f32 0.0, %v5708
      %v5710 = vpop.f32.mrf.mxu0
      %5711 = vmatprep.mubr.bf16.mxu0 0
      %5712 = vmatmul.mubr.bf16.gmra.mxu0 %v5540
      %v5713 = vpop.f32.mrf.mxu0
      %v5714 = vadd.f32 0.0, %v5713
      %v5715 = vpop.f32.mrf.mxu0
      %v5716 = vpop.f32.mrf.mxu0
      %v5717 = vadd.f32 0.0, %v5716
      %v5718 = vpop.f32.mrf.mxu0
      %5719 = vmatprep.mubr.bf16.mxu0 0
      %5720 = vmatmul.mubr.bf16.gmra.mxu0 %v5541
      %v5721 = vpop.f32.mrf.mxu0
      %v5722 = vadd.f32 0.0, %v5721
      %v5723 = vpop.f32.mrf.mxu0
      %v5724 = vpop.f32.mrf.mxu0
      %v5725 = vadd.f32 0.0, %v5724
      %v5726 = vpop.f32.mrf.mxu0
      %5727 = vmatprep.mubr.bf16.mxu0 0
      %5728 = vmatmul.mubr.bf16.gmra.mxu0 %v5542
      %v5729 = vpop.f32.mrf.mxu0
      %v5730 = vadd.f32 0.0, %v5729
      %v5731 = vpop.f32.mrf.mxu0
      %v5732 = vpop.f32.mrf.mxu0
      %v5733 = vadd.f32 0.0, %v5732
      %v5734 = vpop.f32.mrf.mxu0
      %5735 = vmatprep.mubr.bf16.mxu0 0
      %5736 = vmatmul.mubr.bf16.gmra.mxu0 %v5543
      %v5737 = vpop.f32.mrf.mxu0
      %v5738 = vadd.f32 0.0, %v5737
      %v5739 = vpop.f32.mrf.mxu0
      %v5740 = vpop.f32.mrf.mxu0
      %v5741 = vadd.f32 0.0, %v5740
      %v5742 = vpop.f32.mrf.mxu0
      %5743 = vmatprep.mubr.bf16.mxu0 0
      %5744 = vmatmul.mubr.bf16.gmra.mxu0 %v5544
      %v5745 = vpop.f32.mrf.mxu0
      %v5746 = vadd.f32 0.0, %v5745
      %v5747 = vpop.f32.mrf.mxu0
      %v5748 = vpop.f32.mrf.mxu0
      %v5749 = vadd.f32 0.0, %v5748
      %v5750 = vpop.f32.mrf.mxu0
      %5751 = vmatprep.mubr.bf16.mxu0 0
      %5752 = vmatmul.mubr.bf16.gmra.mxu0 %v5545
      %v5753 = vpop.f32.mrf.mxu0
      %v5754 = vadd.f32 0.0, %v5753
      %v5755 = vpop.f32.mrf.mxu0
      %v5756 = vpop.f32.mrf.mxu0
      %v5757 = vadd.f32 0.0, %v5756
      %v5758 = vpop.f32.mrf.mxu0
      %5759 = vmatprep.mubr.bf16.mxu0 0
      %5760 = vmatmul.mubr.bf16.gmra.mxu0 %v5546
      %v5761 = vpop.f32.mrf.mxu0
      %v5762 = vadd.f32 0.0, %v5761
      %v5763 = vpop.f32.mrf.mxu0
      %v5764 = vpop.f32.mrf.mxu0
      %v5765 = vadd.f32 0.0, %v5764
      %v5766 = vpop.f32.mrf.mxu0
      %5767 = vmatprep.mubr.bf16.mxu0 0
      %5768 = vmatmul.mubr.bf16.gmra.mxu0 %v5547
      %v5769 = vpop.f32.mrf.mxu0
      %v5770 = vadd.f32 0.0, %v5769
      %v5771 = vpop.f32.mrf.mxu0
      %v5772 = vpop.f32.mrf.mxu0
      %v5773 = vadd.f32 0.0, %v5772
      %v5774 = vpop.f32.mrf.mxu0
      %5775 = vmatprep.mubr.bf16.mxu0 0
      %5776 = vmatmul.mubr.bf16.gmra.mxu0 %v5548
      %v5777 = vpop.f32.mrf.mxu0
      %v5778 = vadd.f32 0.0, %v5777
      %v5779 = vpop.f32.mrf.mxu0
      %v5780 = vpop.f32.mrf.mxu0
      %v5781 = vadd.f32 0.0, %v5780
      %v5782 = vpop.f32.mrf.mxu0
      %5783 = vmatprep.mubr.bf16.mxu0 0
      %5784 = vmatmul.mubr.bf16.gmra.mxu0 %v5549
      %v5785 = vpop.f32.mrf.mxu0
      %v5786 = vadd.f32 0.0, %v5785
      %v5787 = vpop.f32.mrf.mxu0
      %v5788 = vpop.f32.mrf.mxu0
      %v5789 = vadd.f32 0.0, %v5788
      %v5790 = vpop.f32.mrf.mxu0
      %5791 = vdwg.mxu0
      %v5792 = vadd.f32 %v5460, %v5650
      %v5793 = vadd.f32 %v5461, %v5653
      %v5794 = vadd.f32 %v5462, %v5658
      %v5795 = vadd.f32 %v5463, %v5661
      %v5796 = vadd.f32 %v5464, %v5666
      %v5797 = vadd.f32 %v5465, %v5669
      %v5798 = vadd.f32 %v5466, %v5674
      %v5799 = vadd.f32 %v5467, %v5677
      %v5800 = vadd.f32 %v5468, %v5682
      %v5801 = vadd.f32 %v5469, %v5685
      %v5802 = vadd.f32 %v5470, %v5690
      %v5803 = vadd.f32 %v5471, %v5693
      %v5804 = vadd.f32 %v5472, %v5698
      %v5805 = vadd.f32 %v5473, %v5701
      %v5806 = vadd.f32 %v5474, %v5706
      %v5807 = vadd.f32 %v5475, %v5709
      %v5808 = vadd.f32 %v5476, %v5714
      %v5809 = vadd.f32 %v5477, %v5717
      %v5810 = vadd.f32 %v5478, %v5722
      %v5811 = vadd.f32 %v5479, %v5725
      %v5812 = vadd.f32 %v5480, %v5730
      %v5813 = vadd.f32 %v5481, %v5733
      %v5814 = vadd.f32 %v5482, %v5738
      %v5815 = vadd.f32 %v5483, %v5741
      %v5816 = vadd.f32 %v5484, %v5746
      %v5817 = vadd.f32 %v5485, %v5749
      %v5818 = vadd.f32 %v5486, %v5754
      %v5819 = vadd.f32 %v5487, %v5757
      %v5820 = vadd.f32 %v5488, %v5762
      %v5821 = vadd.f32 %v5489, %v5765
      %v5822 = vadd.f32 %v5490, %v5770
      %v5823 = vadd.f32 %v5491, %v5773
      %v5824 = vadd.f32 %v5492, %v5778
      %v5825 = vadd.f32 %v5493, %v5781
      %v5826 = vadd.f32 %v5494, %v5786
      %v5827 = vadd.f32 %v5495, %v5789
      %v5828 = vld [vmem:[#allocation2 + $0x25] sm:$0xff]
      %v5829 = vld [vmem:[#allocation2 + $0x2d] sm:$0xff]
      %v5830 = vld [vmem:[#allocation2 + $0x35] sm:$0xff]
      %v5831 = vld [vmem:[#allocation2 + $0x3d] sm:$0xff]
      %v5832 = vld [vmem:[#allocation2 + $0x45] sm:$0xff]
      %v5833 = vld [vmem:[#allocation2 + $0x4d] sm:$0xff]
      %v5834 = vld [vmem:[#allocation2 + $0x55] sm:$0xff]
      %v5835 = vld [vmem:[#allocation2 + $0x5d] sm:$0xff]
      %v5836 = vld [vmem:[#allocation2 + $0x65] sm:$0xff]
      %v5837 = vld [vmem:[#allocation2 + $0x6d] sm:$0xff]
      %v5838 = vld [vmem:[#allocation2 + $0x75] sm:$0xff]
      %v5839 = vld [vmem:[#allocation2 + $0x7d] sm:$0xff]
      %v5840 = vld [vmem:[#allocation2 + $0x85] sm:$0xff]
      %v5841 = vld [vmem:[#allocation2 + $0x8d] sm:$0xff]
      %v5842 = vld [vmem:[#allocation2 + $0x95] sm:$0xff]
      %v5843 = vld [vmem:[#allocation2 + $0x9d] sm:$0xff]
      %v5844 = vld [vmem:[#allocation2 + $0xa5] sm:$0xff]
      %v5845 = vld [vmem:[#allocation2 + $0xad] sm:$0xff]
      %v5846 = vld [vmem:[#allocation2 + $0xb5] sm:$0xff]
      %v5847 = vld [vmem:[#allocation2 + $0xbd] sm:$0xff]
      %v5848 = vld [vmem:[#allocation2 + $0xc5] sm:$0xff]
      %v5849 = vld [vmem:[#allocation2 + $0xcd] sm:$0xff]
      %v5850 = vld [vmem:[#allocation2 + $0xd5] sm:$0xff]
      %v5851 = vld [vmem:[#allocation2 + $0xdd] sm:$0xff]
      %v5852 = vld [vmem:[#allocation2 + $0xe5] sm:$0xff]
      %v5853 = vld [vmem:[#allocation2 + $0xed] sm:$0xff]
      %v5854 = vld [vmem:[#allocation2 + $0xf5] sm:$0xff]
      %v5855 = vld [vmem:[#allocation2 + $0xfd] sm:$0xff]
      %v5856 = vld [vmem:[#allocation2 + $0x105] sm:$0xff]
      %v5857 = vld [vmem:[#allocation2 + $0x10d] sm:$0xff]
      %v5858 = vld [vmem:[#allocation2 + $0x115] sm:$0xff]
      %v5859 = vld [vmem:[#allocation2 + $0x11d] sm:$0xff]
      %v5860 = vld [vmem:[#allocation2 + $0x125] sm:$0xff]
      %v5861 = vld [vmem:[#allocation2 + $0x12d] sm:$0xff]
      %v5862 = vld [vmem:[#allocation2 + $0x135] sm:$0xff]
      %v5863 = vld [vmem:[#allocation2 + $0x13d] sm:$0x3f]
      %v5864 = vpack.c.bf16 %v5829, %v5828
      %v5865 = vpack.c.bf16 %v5831, %v5830
      %v5866 = vpack.c.bf16 %v5833, %v5832
      %v5867 = vpack.c.bf16 %v5835, %v5834
      %v5868 = vpack.c.bf16 %v5837, %v5836
      %v5869 = vpack.c.bf16 %v5839, %v5838
      %v5870 = vpack.c.bf16 %v5841, %v5840
      %v5871 = vpack.c.bf16 %v5843, %v5842
      %v5872 = vpack.c.bf16 %v5845, %v5844
      %v5873 = vpack.c.bf16 %v5847, %v5846
      %v5874 = vpack.c.bf16 %v5849, %v5848
      %v5875 = vpack.c.bf16 %v5851, %v5850
      %v5876 = vpack.c.bf16 %v5853, %v5852
      %v5877 = vpack.c.bf16 %v5855, %v5854
      %v5878 = vpack.c.bf16 %v5857, %v5856
      %v5879 = vpack.c.bf16 %v5859, %v5858
      %v5880 = vpack.c.bf16 %v5861, %v5860
      %v5881 = vpack.c.bf16 %v5863, %v5862
      %s5882 = scalar_lea.vmem %s3, 448
      %v5883 = vld [vmem:[%s5882] sm:$0xf]
      %v5884 = vld [vmem:[%s5882 + $0x4] sm:$0xf]
      %v5885 = vld [vmem:[%s5882 + $0x8] sm:$0xf]
      %v5886 = vld [vmem:[%s5882 + $0xc] sm:$0xf]
      %v5887 = vld [vmem:[%s5882 + $0x10] sm:$0xf]
      %v5888 = vld [vmem:[%s5882 + $0x14] sm:$0xf]
      %v5889 = vld [vmem:[%s5882 + $0x18] sm:$0xf]
      %v5890 = vld [vmem:[%s5882 + $0x1c] sm:$0xf]
      %v5891 = vld [vmem:[%s5882 + $0x20] sm:$0xf]
      %v5892 = vld [vmem:[%s5882 + $0x24] sm:$0xf]
      %v5893 = vld [vmem:[%s5882 + $0x28] sm:$0xf]
      %v5894 = vld [vmem:[%s5882 + $0x2c] sm:$0xf]
      %v5895 = vld [vmem:[%s5882 + $0x30] sm:$0xf]
      %v5896 = vld [vmem:[%s5882 + $0x34] sm:$0xf]
      %v5897 = vld [vmem:[%s5882 + $0x38] sm:$0xf]
      %v5898 = vld [vmem:[%s5882 + $0x3c] sm:$0xf]
      %v5915 = vunpack.c.l.b16 %v5883
      %v5916 = vunpack.c.l.b16 %v5884
      %v5917 = vunpack.c.l.b16 %v5885
      %v5918 = vunpack.c.l.b16 %v5886
      %v5919 = vunpack.c.l.b16 %v5887
      %v5920 = vunpack.c.l.b16 %v5888
      %v5921 = vunpack.c.l.b16 %v5889
      %v5922 = vunpack.c.l.b16 %v5890
      %v5923 = vunpack.c.l.b16 %v5891
      %v5924 = vunpack.c.l.b16 %v5892
      %v5925 = vunpack.c.l.b16 %v5893
      %v5926 = vunpack.c.l.b16 %v5894
      %v5927 = vunpack.c.l.b16 %v5895
      %v5928 = vunpack.c.l.b16 %v5896
      %v5929 = vunpack.c.l.b16 %v5897
      %v5930 = vunpack.c.l.b16 %v5898
      %v5931 = vpack.c.b16 %v5916, %v5915
      %v5932 = vpack.c.b16 %v5918, %v5917
      %v5933 = vpack.c.b16 %v5920, %v5919
      %v5934 = vpack.c.b16 %v5922, %v5921
      %v5935 = vpack.c.b16 %v5924, %v5923
      %v5936 = vpack.c.b16 %v5926, %v5925
      %v5937 = vpack.c.b16 %v5928, %v5927
      %v5938 = vpack.c.b16 %v5930, %v5929
      %5947 = vmatprep.subr.bf16.mxu0 0
      %5948 = vmatpush1.bf16.msra.mxu0 %v5938
      %5949 = vmatprep.subr.bf16.mxu0 0
      %5950 = vmatpush1.bf16.msra.mxu0 %v5937
      %5951 = vmatprep.subr.bf16.mxu0 0
      %5952 = vmatpush1.bf16.msra.mxu0 %v5936
      %5953 = vmatprep.subr.bf16.mxu0 0
      %5954 = vmatpush1.bf16.msra.mxu0 %v5935
      %5955 = vmatprep.subr.bf16.mxu0 0
      %5956 = vmatpush1.bf16.msra.mxu0 %v5934
      %5957 = vmatprep.subr.bf16.mxu0 0
      %5958 = vmatpush1.bf16.msra.mxu0 %v5933
      %5959 = vmatprep.subr.bf16.mxu0 0
      %5960 = vmatpush1.bf16.msra.mxu0 %v5932
      %5961 = vmatprep.subr.bf16.mxu0 0
      %5962 = vmatpush1.bf16.msra.mxu0 %v5931
      %5963 = vmatprep.subr.bf16.mxu0 0
      %5964 = vmatpush2.bf16.msra.mxu0 0
      %5965 = vmatprep.subr.bf16.mxu0 0
      %5966 = vmatpush2.bf16.msra.mxu0 0
      %5967 = vmatprep.subr.bf16.mxu0 0
      %5968 = vmatpush2.bf16.msra.mxu0 0
      %5969 = vmatprep.subr.bf16.mxu0 0
      %5970 = vmatpush2.bf16.msra.mxu0 0
      %5971 = vmatprep.subr.bf16.mxu0 0
      %5972 = vmatpush2.bf16.msra.mxu0 0
      %5973 = vmatprep.subr.bf16.mxu0 0
      %5974 = vmatpush2.bf16.msra.mxu0 0
      %5975 = vmatprep.subr.bf16.mxu0 0
      %5976 = vmatpush2.bf16.msra.mxu0 0
      %5977 = vmatprep.subr.bf16.mxu0 0
      %5978 = vmatpush2.bf16.msra.mxu0 0
      %5979 = vmatprep.mubr.bf16.mxu0 0
      %5980 = vmatmul.mubr.bf16.gmra.mxu0 %v5864
      %v5981 = vpop.f32.mrf.mxu0
      %v5982 = vadd.f32 0.0, %v5981
      %v5983 = vpop.f32.mrf.mxu0
      %v5984 = vpop.f32.mrf.mxu0
      %v5985 = vadd.f32 0.0, %v5984
      %v5986 = vpop.f32.mrf.mxu0
      %5987 = vmatprep.mubr.bf16.mxu0 0
      %5988 = vmatmul.mubr.bf16.gmra.mxu0 %v5865
      %v5989 = vpop.f32.mrf.mxu0
      %v5990 = vadd.f32 0.0, %v5989
      %v5991 = vpop.f32.mrf.mxu0
      %v5992 = vpop.f32.mrf.mxu0
      %v5993 = vadd.f32 0.0, %v5992
      %v5994 = vpop.f32.mrf.mxu0
      %5995 = vmatprep.mubr.bf16.mxu0 0
      %5996 = vmatmul.mubr.bf16.gmra.mxu0 %v5866
      %v5997 = vpop.f32.mrf.mxu0
      %v5998 = vadd.f32 0.0, %v5997
      %v5999 = vpop.f32.mrf.mxu0
      %v6000 = vpop.f32.mrf.mxu0
      %v6001 = vadd.f32 0.0, %v6000
      %v6002 = vpop.f32.mrf.mxu0
      %6003 = vmatprep.mubr.bf16.mxu0 0
      %6004 = vmatmul.mubr.bf16.gmra.mxu0 %v5867
      %v6005 = vpop.f32.mrf.mxu0
      %v6006 = vadd.f32 0.0, %v6005
      %v6007 = vpop.f32.mrf.mxu0
      %v6008 = vpop.f32.mrf.mxu0
      %v6009 = vadd.f32 0.0, %v6008
      %v6010 = vpop.f32.mrf.mxu0
      %6011 = vmatprep.mubr.bf16.mxu0 0
      %6012 = vmatmul.mubr.bf16.gmra.mxu0 %v5868
      %v6013 = vpop.f32.mrf.mxu0
      %v6014 = vadd.f32 0.0, %v6013
      %v6015 = vpop.f32.mrf.mxu0
      %v6016 = vpop.f32.mrf.mxu0
      %v6017 = vadd.f32 0.0, %v6016
      %v6018 = vpop.f32.mrf.mxu0
      %6019 = vmatprep.mubr.bf16.mxu0 0
      %6020 = vmatmul.mubr.bf16.gmra.mxu0 %v5869
      %v6021 = vpop.f32.mrf.mxu0
      %v6022 = vadd.f32 0.0, %v6021
      %v6023 = vpop.f32.mrf.mxu0
      %v6024 = vpop.f32.mrf.mxu0
      %v6025 = vadd.f32 0.0, %v6024
      %v6026 = vpop.f32.mrf.mxu0
      %6027 = vmatprep.mubr.bf16.mxu0 0
      %6028 = vmatmul.mubr.bf16.gmra.mxu0 %v5870
      %v6029 = vpop.f32.mrf.mxu0
      %v6030 = vadd.f32 0.0, %v6029
      %v6031 = vpop.f32.mrf.mxu0
      %v6032 = vpop.f32.mrf.mxu0
      %v6033 = vadd.f32 0.0, %v6032
      %v6034 = vpop.f32.mrf.mxu0
      %6035 = vmatprep.mubr.bf16.mxu0 0
      %6036 = vmatmul.mubr.bf16.gmra.mxu0 %v5871
      %v6037 = vpop.f32.mrf.mxu0
      %v6038 = vadd.f32 0.0, %v6037
      %v6039 = vpop.f32.mrf.mxu0
      %v6040 = vpop.f32.mrf.mxu0
      %v6041 = vadd.f32 0.0, %v6040
      %v6042 = vpop.f32.mrf.mxu0
      %6043 = vmatprep.mubr.bf16.mxu0 0
      %6044 = vmatmul.mubr.bf16.gmra.mxu0 %v5872
      %v6045 = vpop.f32.mrf.mxu0
      %v6046 = vadd.f32 0.0, %v6045
      %v6047 = vpop.f32.mrf.mxu0
      %v6048 = vpop.f32.mrf.mxu0
      %v6049 = vadd.f32 0.0, %v6048
      %v6050 = vpop.f32.mrf.mxu0
      %6051 = vmatprep.mubr.bf16.mxu0 0
      %6052 = vmatmul.mubr.bf16.gmra.mxu0 %v5873
      %v6053 = vpop.f32.mrf.mxu0
      %v6054 = vadd.f32 0.0, %v6053
      %v6055 = vpop.f32.mrf.mxu0
      %v6056 = vpop.f32.mrf.mxu0
      %v6057 = vadd.f32 0.0, %v6056
      %v6058 = vpop.f32.mrf.mxu0
      %6059 = vmatprep.mubr.bf16.mxu0 0
      %6060 = vmatmul.mubr.bf16.gmra.mxu0 %v5874
      %v6061 = vpop.f32.mrf.mxu0
      %v6062 = vadd.f32 0.0, %v6061
      %v6063 = vpop.f32.mrf.mxu0
      %v6064 = vpop.f32.mrf.mxu0
      %v6065 = vadd.f32 0.0, %v6064
      %v6066 = vpop.f32.mrf.mxu0
      %6067 = vmatprep.mubr.bf16.mxu0 0
      %6068 = vmatmul.mubr.bf16.gmra.mxu0 %v5875
      %v6069 = vpop.f32.mrf.mxu0
      %v6070 = vadd.f32 0.0, %v6069
      %v6071 = vpop.f32.mrf.mxu0
      %v6072 = vpop.f32.mrf.mxu0
      %v6073 = vadd.f32 0.0, %v6072
      %v6074 = vpop.f32.mrf.mxu0
      %6075 = vmatprep.mubr.bf16.mxu0 0
      %6076 = vmatmul.mubr.bf16.gmra.mxu0 %v5876
      %v6077 = vpop.f32.mrf.mxu0
      %v6078 = vadd.f32 0.0, %v6077
      %v6079 = vpop.f32.mrf.mxu0
      %v6080 = vpop.f32.mrf.mxu0
      %v6081 = vadd.f32 0.0, %v6080
      %v6082 = vpop.f32.mrf.mxu0
      %6083 = vmatprep.mubr.bf16.mxu0 0
      %6084 = vmatmul.mubr.bf16.gmra.mxu0 %v5877
      %v6085 = vpop.f32.mrf.mxu0
      %v6086 = vadd.f32 0.0, %v6085
      %v6087 = vpop.f32.mrf.mxu0
      %v6088 = vpop.f32.mrf.mxu0
      %v6089 = vadd.f32 0.0, %v6088
      %v6090 = vpop.f32.mrf.mxu0
      %6091 = vmatprep.mubr.bf16.mxu0 0
      %6092 = vmatmul.mubr.bf16.gmra.mxu0 %v5878
      %v6093 = vpop.f32.mrf.mxu0
      %v6094 = vadd.f32 0.0, %v6093
      %v6095 = vpop.f32.mrf.mxu0
      %v6096 = vpop.f32.mrf.mxu0
      %v6097 = vadd.f32 0.0, %v6096
      %v6098 = vpop.f32.mrf.mxu0
      %6099 = vmatprep.mubr.bf16.mxu0 0
      %6100 = vmatmul.mubr.bf16.gmra.mxu0 %v5879
      %v6101 = vpop.f32.mrf.mxu0
      %v6102 = vadd.f32 0.0, %v6101
      %v6103 = vpop.f32.mrf.mxu0
      %v6104 = vpop.f32.mrf.mxu0
      %v6105 = vadd.f32 0.0, %v6104
      %v6106 = vpop.f32.mrf.mxu0
      %6107 = vmatprep.mubr.bf16.mxu0 0
      %6108 = vmatmul.mubr.bf16.gmra.mxu0 %v5880
      %v6109 = vpop.f32.mrf.mxu0
      %v6110 = vadd.f32 0.0, %v6109
      %v6111 = vpop.f32.mrf.mxu0
      %v6112 = vpop.f32.mrf.mxu0
      %v6113 = vadd.f32 0.0, %v6112
      %v6114 = vpop.f32.mrf.mxu0
      %6115 = vmatprep.mubr.bf16.mxu0 0
      %6116 = vmatmul.mubr.bf16.gmra.mxu0 %v5881
      %v6117 = vpop.f32.mrf.mxu0
      %v6118 = vadd.f32 0.0, %v6117
      %v6119 = vpop.f32.mrf.mxu0
      %v6120 = vpop.f32.mrf.mxu0
      %v6121 = vadd.f32 0.0, %v6120
      %v6122 = vpop.f32.mrf.mxu0
      %6123 = vdwg.mxu0
      %v6124 = vadd.f32 %v5792, %v5982
      %v6125 = vadd.f32 %v5793, %v5985
      %v6126 = vadd.f32 %v5794, %v5990
      %v6127 = vadd.f32 %v5795, %v5993
      %v6128 = vadd.f32 %v5796, %v5998
      %v6129 = vadd.f32 %v5797, %v6001
      %v6130 = vadd.f32 %v5798, %v6006
      %v6131 = vadd.f32 %v5799, %v6009
      %v6132 = vadd.f32 %v5800, %v6014
      %v6133 = vadd.f32 %v5801, %v6017
      %v6134 = vadd.f32 %v5802, %v6022
      %v6135 = vadd.f32 %v5803, %v6025
      %v6136 = vadd.f32 %v5804, %v6030
      %v6137 = vadd.f32 %v5805, %v6033
      %v6138 = vadd.f32 %v5806, %v6038
      %v6139 = vadd.f32 %v5807, %v6041
      %v6140 = vadd.f32 %v5808, %v6046
      %v6141 = vadd.f32 %v5809, %v6049
      %v6142 = vadd.f32 %v5810, %v6054
      %v6143 = vadd.f32 %v5811, %v6057
      %v6144 = vadd.f32 %v5812, %v6062
      %v6145 = vadd.f32 %v5813, %v6065
      %v6146 = vadd.f32 %v5814, %v6070
      %v6147 = vadd.f32 %v5815, %v6073
      %v6148 = vadd.f32 %v5816, %v6078
      %v6149 = vadd.f32 %v5817, %v6081
      %v6150 = vadd.f32 %v5818, %v6086
      %v6151 = vadd.f32 %v5819, %v6089
      %v6152 = vadd.f32 %v5820, %v6094
      %v6153 = vadd.f32 %v5821, %v6097
      %v6154 = vadd.f32 %v5822, %v6102
      %v6155 = vadd.f32 %v5823, %v6105
      %v6156 = vadd.f32 %v5824, %v6110
      %v6157 = vadd.f32 %v5825, %v6113
      %v6158 = vadd.f32 %v5826, %v6118
      %v6159 = vadd.f32 %v5827, %v6121
      %v6160 = vld [vmem:[#allocation2 + $0x26] sm:$0xff]
      %v6161 = vld [vmem:[#allocation2 + $0x2e] sm:$0xff]
      %v6162 = vld [vmem:[#allocation2 + $0x36] sm:$0xff]
      %v6163 = vld [vmem:[#allocation2 + $0x3e] sm:$0xff]
      %v6164 = vld [vmem:[#allocation2 + $0x46] sm:$0xff]
      %v6165 = vld [vmem:[#allocation2 + $0x4e] sm:$0xff]
      %v6166 = vld [vmem:[#allocation2 + $0x56] sm:$0xff]
      %v6167 = vld [vmem:[#allocation2 + $0x5e] sm:$0xff]
      %v6168 = vld [vmem:[#allocation2 + $0x66] sm:$0xff]
      %v6169 = vld [vmem:[#allocation2 + $0x6e] sm:$0xff]
      %v6170 = vld [vmem:[#allocation2 + $0x76] sm:$0xff]
      %v6171 = vld [vmem:[#allocation2 + $0x7e] sm:$0xff]
      %v6172 = vld [vmem:[#allocation2 + $0x86] sm:$0xff]
      %v6173 = vld [vmem:[#allocation2 + $0x8e] sm:$0xff]
      %v6174 = vld [vmem:[#allocation2 + $0x96] sm:$0xff]
      %v6175 = vld [vmem:[#allocation2 + $0x9e] sm:$0xff]
      %v6176 = vld [vmem:[#allocation2 + $0xa6] sm:$0xff]
      %v6177 = vld [vmem:[#allocation2 + $0xae] sm:$0xff]
      %v6178 = vld [vmem:[#allocation2 + $0xb6] sm:$0xff]
      %v6179 = vld [vmem:[#allocation2 + $0xbe] sm:$0xff]
      %v6180 = vld [vmem:[#allocation2 + $0xc6] sm:$0xff]
      %v6181 = vld [vmem:[#allocation2 + $0xce] sm:$0xff]
      %v6182 = vld [vmem:[#allocation2 + $0xd6] sm:$0xff]
      %v6183 = vld [vmem:[#allocation2 + $0xde] sm:$0xff]
      %v6184 = vld [vmem:[#allocation2 + $0xe6] sm:$0xff]
      %v6185 = vld [vmem:[#allocation2 + $0xee] sm:$0xff]
      %v6186 = vld [vmem:[#allocation2 + $0xf6] sm:$0xff]
      %v6187 = vld [vmem:[#allocation2 + $0xfe] sm:$0xff]
      %v6188 = vld [vmem:[#allocation2 + $0x106] sm:$0xff]
      %v6189 = vld [vmem:[#allocation2 + $0x10e] sm:$0xff]
      %v6190 = vld [vmem:[#allocation2 + $0x116] sm:$0xff]
      %v6191 = vld [vmem:[#allocation2 + $0x11e] sm:$0xff]
      %v6192 = vld [vmem:[#allocation2 + $0x126] sm:$0xff]
      %v6193 = vld [vmem:[#allocation2 + $0x12e] sm:$0xff]
      %v6194 = vld [vmem:[#allocation2 + $0x136] sm:$0xff]
      %v6195 = vld [vmem:[#allocation2 + $0x13e] sm:$0x3f]
      %v6196 = vpack.c.bf16 %v6161, %v6160
      %v6197 = vpack.c.bf16 %v6163, %v6162
      %v6198 = vpack.c.bf16 %v6165, %v6164
      %v6199 = vpack.c.bf16 %v6167, %v6166
      %v6200 = vpack.c.bf16 %v6169, %v6168
      %v6201 = vpack.c.bf16 %v6171, %v6170
      %v6202 = vpack.c.bf16 %v6173, %v6172
      %v6203 = vpack.c.bf16 %v6175, %v6174
      %v6204 = vpack.c.bf16 %v6177, %v6176
      %v6205 = vpack.c.bf16 %v6179, %v6178
      %v6206 = vpack.c.bf16 %v6181, %v6180
      %v6207 = vpack.c.bf16 %v6183, %v6182
      %v6208 = vpack.c.bf16 %v6185, %v6184
      %v6209 = vpack.c.bf16 %v6187, %v6186
      %v6210 = vpack.c.bf16 %v6189, %v6188
      %v6211 = vpack.c.bf16 %v6191, %v6190
      %v6212 = vpack.c.bf16 %v6193, %v6192
      %v6213 = vpack.c.bf16 %v6195, %v6194
      %s6214 = scalar_lea.vmem %s3, 512
      %v6215 = vld [vmem:[%s6214] sm:$0xf]
      %v6216 = vld [vmem:[%s6214 + $0x4] sm:$0xf]
      %v6217 = vld [vmem:[%s6214 + $0x8] sm:$0xf]
      %v6218 = vld [vmem:[%s6214 + $0xc] sm:$0xf]
      %v6219 = vld [vmem:[%s6214 + $0x10] sm:$0xf]
      %v6220 = vld [vmem:[%s6214 + $0x14] sm:$0xf]
      %v6221 = vld [vmem:[%s6214 + $0x18] sm:$0xf]
      %v6222 = vld [vmem:[%s6214 + $0x1c] sm:$0xf]
      %v6223 = vld [vmem:[%s6214 + $0x20] sm:$0xf]
      %v6224 = vld [vmem:[%s6214 + $0x24] sm:$0xf]
      %v6225 = vld [vmem:[%s6214 + $0x28] sm:$0xf]
      %v6226 = vld [vmem:[%s6214 + $0x2c] sm:$0xf]
      %v6227 = vld [vmem:[%s6214 + $0x30] sm:$0xf]
      %v6228 = vld [vmem:[%s6214 + $0x34] sm:$0xf]
      %v6229 = vld [vmem:[%s6214 + $0x38] sm:$0xf]
      %v6230 = vld [vmem:[%s6214 + $0x3c] sm:$0xf]
      %v6247 = vunpack.c.l.b16 %v6215
      %v6248 = vunpack.c.l.b16 %v6216
      %v6249 = vunpack.c.l.b16 %v6217
      %v6250 = vunpack.c.l.b16 %v6218
      %v6251 = vunpack.c.l.b16 %v6219
      %v6252 = vunpack.c.l.b16 %v6220
      %v6253 = vunpack.c.l.b16 %v6221
      %v6254 = vunpack.c.l.b16 %v6222
      %v6255 = vunpack.c.l.b16 %v6223
      %v6256 = vunpack.c.l.b16 %v6224
      %v6257 = vunpack.c.l.b16 %v6225
      %v6258 = vunpack.c.l.b16 %v6226
      %v6259 = vunpack.c.l.b16 %v6227
      %v6260 = vunpack.c.l.b16 %v6228
      %v6261 = vunpack.c.l.b16 %v6229
      %v6262 = vunpack.c.l.b16 %v6230
      %v6263 = vpack.c.b16 %v6248, %v6247
      %v6264 = vpack.c.b16 %v6250, %v6249
      %v6265 = vpack.c.b16 %v6252, %v6251
      %v6266 = vpack.c.b16 %v6254, %v6253
      %v6267 = vpack.c.b16 %v6256, %v6255
      %v6268 = vpack.c.b16 %v6258, %v6257
      %v6269 = vpack.c.b16 %v6260, %v6259
      %v6270 = vpack.c.b16 %v6262, %v6261
      %6279 = vmatprep.subr.bf16.mxu0 0
      %6280 = vmatpush1.bf16.msra.mxu0 %v6270
      %6281 = vmatprep.subr.bf16.mxu0 0
      %6282 = vmatpush1.bf16.msra.mxu0 %v6269
      %6283 = vmatprep.subr.bf16.mxu0 0
      %6284 = vmatpush1.bf16.msra.mxu0 %v6268
      %6285 = vmatprep.subr.bf16.mxu0 0
      %6286 = vmatpush1.bf16.msra.mxu0 %v6267
      %6287 = vmatprep.subr.bf16.mxu0 0
      %6288 = vmatpush1.bf16.msra.mxu0 %v6266
      %6289 = vmatprep.subr.bf16.mxu0 0
      %6290 = vmatpush1.bf16.msra.mxu0 %v6265
      %6291 = vmatprep.subr.bf16.mxu0 0
      %6292 = vmatpush1.bf16.msra.mxu0 %v6264
      %6293 = vmatprep.subr.bf16.mxu0 0
      %6294 = vmatpush1.bf16.msra.mxu0 %v6263
      %6295 = vmatprep.subr.bf16.mxu0 0
      %6296 = vmatpush2.bf16.msra.mxu0 0
      %6297 = vmatprep.subr.bf16.mxu0 0
      %6298 = vmatpush2.bf16.msra.mxu0 0
      %6299 = vmatprep.subr.bf16.mxu0 0
      %6300 = vmatpush2.bf16.msra.mxu0 0
      %6301 = vmatprep.subr.bf16.mxu0 0
      %6302 = vmatpush2.bf16.msra.mxu0 0
      %6303 = vmatprep.subr.bf16.mxu0 0
      %6304 = vmatpush2.bf16.msra.mxu0 0
      %6305 = vmatprep.subr.bf16.mxu0 0
      %6306 = vmatpush2.bf16.msra.mxu0 0
      %6307 = vmatprep.subr.bf16.mxu0 0
      %6308 = vmatpush2.bf16.msra.mxu0 0
      %6309 = vmatprep.subr.bf16.mxu0 0
      %6310 = vmatpush2.bf16.msra.mxu0 0
      %6311 = vmatprep.mubr.bf16.mxu0 0
      %6312 = vmatmul.mubr.bf16.gmra.mxu0 %v6196
      %v6313 = vpop.f32.mrf.mxu0
      %v6314 = vadd.f32 0.0, %v6313
      %v6315 = vpop.f32.mrf.mxu0
      %v6316 = vpop.f32.mrf.mxu0
      %v6317 = vadd.f32 0.0, %v6316
      %v6318 = vpop.f32.mrf.mxu0
      %6319 = vmatprep.mubr.bf16.mxu0 0
      %6320 = vmatmul.mubr.bf16.gmra.mxu0 %v6197
      %v6321 = vpop.f32.mrf.mxu0
      %v6322 = vadd.f32 0.0, %v6321
      %v6323 = vpop.f32.mrf.mxu0
      %v6324 = vpop.f32.mrf.mxu0
      %v6325 = vadd.f32 0.0, %v6324
      %v6326 = vpop.f32.mrf.mxu0
      %6327 = vmatprep.mubr.bf16.mxu0 0
      %6328 = vmatmul.mubr.bf16.gmra.mxu0 %v6198
      %v6329 = vpop.f32.mrf.mxu0
      %v6330 = vadd.f32 0.0, %v6329
      %v6331 = vpop.f32.mrf.mxu0
      %v6332 = vpop.f32.mrf.mxu0
      %v6333 = vadd.f32 0.0, %v6332
      %v6334 = vpop.f32.mrf.mxu0
      %6335 = vmatprep.mubr.bf16.mxu0 0
      %6336 = vmatmul.mubr.bf16.gmra.mxu0 %v6199
      %v6337 = vpop.f32.mrf.mxu0
      %v6338 = vadd.f32 0.0, %v6337
      %v6339 = vpop.f32.mrf.mxu0
      %v6340 = vpop.f32.mrf.mxu0
      %v6341 = vadd.f32 0.0, %v6340
      %v6342 = vpop.f32.mrf.mxu0
      %6343 = vmatprep.mubr.bf16.mxu0 0
      %6344 = vmatmul.mubr.bf16.gmra.mxu0 %v6200
      %v6345 = vpop.f32.mrf.mxu0
      %v6346 = vadd.f32 0.0, %v6345
      %v6347 = vpop.f32.mrf.mxu0
      %v6348 = vpop.f32.mrf.mxu0
      %v6349 = vadd.f32 0.0, %v6348
      %v6350 = vpop.f32.mrf.mxu0
      %6351 = vmatprep.mubr.bf16.mxu0 0
      %6352 = vmatmul.mubr.bf16.gmra.mxu0 %v6201
      %v6353 = vpop.f32.mrf.mxu0
      %v6354 = vadd.f32 0.0, %v6353
      %v6355 = vpop.f32.mrf.mxu0
      %v6356 = vpop.f32.mrf.mxu0
      %v6357 = vadd.f32 0.0, %v6356
      %v6358 = vpop.f32.mrf.mxu0
      %6359 = vmatprep.mubr.bf16.mxu0 0
      %6360 = vmatmul.mubr.bf16.gmra.mxu0 %v6202
      %v6361 = vpop.f32.mrf.mxu0
      %v6362 = vadd.f32 0.0, %v6361
      %v6363 = vpop.f32.mrf.mxu0
      %v6364 = vpop.f32.mrf.mxu0
      %v6365 = vadd.f32 0.0, %v6364
      %v6366 = vpop.f32.mrf.mxu0
      %6367 = vmatprep.mubr.bf16.mxu0 0
      %6368 = vmatmul.mubr.bf16.gmra.mxu0 %v6203
      %v6369 = vpop.f32.mrf.mxu0
      %v6370 = vadd.f32 0.0, %v6369
      %v6371 = vpop.f32.mrf.mxu0
      %v6372 = vpop.f32.mrf.mxu0
      %v6373 = vadd.f32 0.0, %v6372
      %v6374 = vpop.f32.mrf.mxu0
      %6375 = vmatprep.mubr.bf16.mxu0 0
      %6376 = vmatmul.mubr.bf16.gmra.mxu0 %v6204
      %v6377 = vpop.f32.mrf.mxu0
      %v6378 = vadd.f32 0.0, %v6377
      %v6379 = vpop.f32.mrf.mxu0
      %v6380 = vpop.f32.mrf.mxu0
      %v6381 = vadd.f32 0.0, %v6380
      %v6382 = vpop.f32.mrf.mxu0
      %6383 = vmatprep.mubr.bf16.mxu0 0
      %6384 = vmatmul.mubr.bf16.gmra.mxu0 %v6205
      %v6385 = vpop.f32.mrf.mxu0
      %v6386 = vadd.f32 0.0, %v6385
      %v6387 = vpop.f32.mrf.mxu0
      %v6388 = vpop.f32.mrf.mxu0
      %v6389 = vadd.f32 0.0, %v6388
      %v6390 = vpop.f32.mrf.mxu0
      %6391 = vmatprep.mubr.bf16.mxu0 0
      %6392 = vmatmul.mubr.bf16.gmra.mxu0 %v6206
      %v6393 = vpop.f32.mrf.mxu0
      %v6394 = vadd.f32 0.0, %v6393
      %v6395 = vpop.f32.mrf.mxu0
      %v6396 = vpop.f32.mrf.mxu0
      %v6397 = vadd.f32 0.0, %v6396
      %v6398 = vpop.f32.mrf.mxu0
      %6399 = vmatprep.mubr.bf16.mxu0 0
      %6400 = vmatmul.mubr.bf16.gmra.mxu0 %v6207
      %v6401 = vpop.f32.mrf.mxu0
      %v6402 = vadd.f32 0.0, %v6401
      %v6403 = vpop.f32.mrf.mxu0
      %v6404 = vpop.f32.mrf.mxu0
      %v6405 = vadd.f32 0.0, %v6404
      %v6406 = vpop.f32.mrf.mxu0
      %6407 = vmatprep.mubr.bf16.mxu0 0
      %6408 = vmatmul.mubr.bf16.gmra.mxu0 %v6208
      %v6409 = vpop.f32.mrf.mxu0
      %v6410 = vadd.f32 0.0, %v6409
      %v6411 = vpop.f32.mrf.mxu0
      %v6412 = vpop.f32.mrf.mxu0
      %v6413 = vadd.f32 0.0, %v6412
      %v6414 = vpop.f32.mrf.mxu0
      %6415 = vmatprep.mubr.bf16.mxu0 0
      %6416 = vmatmul.mubr.bf16.gmra.mxu0 %v6209
      %v6417 = vpop.f32.mrf.mxu0
      %v6418 = vadd.f32 0.0, %v6417
      %v6419 = vpop.f32.mrf.mxu0
      %v6420 = vpop.f32.mrf.mxu0
      %v6421 = vadd.f32 0.0, %v6420
      %v6422 = vpop.f32.mrf.mxu0
      %6423 = vmatprep.mubr.bf16.mxu0 0
      %6424 = vmatmul.mubr.bf16.gmra.mxu0 %v6210
      %v6425 = vpop.f32.mrf.mxu0
      %v6426 = vadd.f32 0.0, %v6425
      %v6427 = vpop.f32.mrf.mxu0
      %v6428 = vpop.f32.mrf.mxu0
      %v6429 = vadd.f32 0.0, %v6428
      %v6430 = vpop.f32.mrf.mxu0
      %6431 = vmatprep.mubr.bf16.mxu0 0
      %6432 = vmatmul.mubr.bf16.gmra.mxu0 %v6211
      %v6433 = vpop.f32.mrf.mxu0
      %v6434 = vadd.f32 0.0, %v6433
      %v6435 = vpop.f32.mrf.mxu0
      %v6436 = vpop.f32.mrf.mxu0
      %v6437 = vadd.f32 0.0, %v6436
      %v6438 = vpop.f32.mrf.mxu0
      %6439 = vmatprep.mubr.bf16.mxu0 0
      %6440 = vmatmul.mubr.bf16.gmra.mxu0 %v6212
      %v6441 = vpop.f32.mrf.mxu0
      %v6442 = vadd.f32 0.0, %v6441
      %v6443 = vpop.f32.mrf.mxu0
      %v6444 = vpop.f32.mrf.mxu0
      %v6445 = vadd.f32 0.0, %v6444
      %v6446 = vpop.f32.mrf.mxu0
      %6447 = vmatprep.mubr.bf16.mxu0 0
      %6448 = vmatmul.mubr.bf16.gmra.mxu0 %v6213
      %v6449 = vpop.f32.mrf.mxu0
      %v6450 = vadd.f32 0.0, %v6449
      %v6451 = vpop.f32.mrf.mxu0
      %v6452 = vpop.f32.mrf.mxu0
      %v6453 = vadd.f32 0.0, %v6452
      %v6454 = vpop.f32.mrf.mxu0
      %6455 = vdwg.mxu0
      %v6456 = vadd.f32 %v6124, %v6314
      %v6457 = vadd.f32 %v6125, %v6317
      %v6458 = vadd.f32 %v6126, %v6322
      %v6459 = vadd.f32 %v6127, %v6325
      %v6460 = vadd.f32 %v6128, %v6330
      %v6461 = vadd.f32 %v6129, %v6333
      %v6462 = vadd.f32 %v6130, %v6338
      %v6463 = vadd.f32 %v6131, %v6341
      %v6464 = vadd.f32 %v6132, %v6346
      %v6465 = vadd.f32 %v6133, %v6349
      %v6466 = vadd.f32 %v6134, %v6354
      %v6467 = vadd.f32 %v6135, %v6357
      %v6468 = vadd.f32 %v6136, %v6362
      %v6469 = vadd.f32 %v6137, %v6365
      %v6470 = vadd.f32 %v6138, %v6370
      %v6471 = vadd.f32 %v6139, %v6373
      %v6472 = vadd.f32 %v6140, %v6378
      %v6473 = vadd.f32 %v6141, %v6381
      %v6474 = vadd.f32 %v6142, %v6386
      %v6475 = vadd.f32 %v6143, %v6389
      %v6476 = vadd.f32 %v6144, %v6394
      %v6477 = vadd.f32 %v6145, %v6397
      %v6478 = vadd.f32 %v6146, %v6402
      %v6479 = vadd.f32 %v6147, %v6405
      %v6480 = vadd.f32 %v6148, %v6410
      %v6481 = vadd.f32 %v6149, %v6413
      %v6482 = vadd.f32 %v6150, %v6418
      %v6483 = vadd.f32 %v6151, %v6421
      %v6484 = vadd.f32 %v6152, %v6426
      %v6485 = vadd.f32 %v6153, %v6429
      %v6486 = vadd.f32 %v6154, %v6434
      %v6487 = vadd.f32 %v6155, %v6437
      %v6488 = vadd.f32 %v6156, %v6442
      %v6489 = vadd.f32 %v6157, %v6445
      %v6490 = vadd.f32 %v6158, %v6450
      %v6491 = vadd.f32 %v6159, %v6453
      %vm6492 = vcmp.gt.f32.partialorder %v6456, 0.0
      %vm6493 = vcmp.gt.f32.partialorder %v6457, 0.0
      %vm6494 = vcmp.gt.f32.partialorder %v6458, 0.0
      %vm6495 = vcmp.gt.f32.partialorder %v6459, 0.0
      %vm6496 = vcmp.gt.f32.partialorder %v6460, 0.0
      %vm6497 = vcmp.gt.f32.partialorder %v6461, 0.0
      %vm6498 = vcmp.gt.f32.partialorder %v6462, 0.0
      %vm6499 = vcmp.gt.f32.partialorder %v6463, 0.0
      %vm6500 = vcmp.gt.f32.partialorder %v6464, 0.0
      %vm6501 = vcmp.gt.f32.partialorder %v6465, 0.0
      %vm6502 = vcmp.gt.f32.partialorder %v6466, 0.0
      %vm6503 = vcmp.gt.f32.partialorder %v6467, 0.0
      %vm6504 = vcmp.gt.f32.partialorder %v6468, 0.0
      %vm6505 = vcmp.gt.f32.partialorder %v6469, 0.0
      %vm6506 = vcmp.gt.f32.partialorder %v6470, 0.0
      %vm6507 = vcmp.gt.f32.partialorder %v6471, 0.0
      %vm6508 = vcmp.gt.f32.partialorder %v6472, 0.0
      %vm6509 = vcmp.gt.f32.partialorder %v6473, 0.0
      %vm6510 = vcmp.gt.f32.partialorder %v6474, 0.0
      %vm6511 = vcmp.gt.f32.partialorder %v6475, 0.0
      %vm6512 = vcmp.gt.f32.partialorder %v6476, 0.0
      %vm6513 = vcmp.gt.f32.partialorder %v6477, 0.0
      %vm6514 = vcmp.gt.f32.partialorder %v6478, 0.0
      %vm6515 = vcmp.gt.f32.partialorder %v6479, 0.0
      %vm6516 = vcmp.gt.f32.partialorder %v6480, 0.0
      %vm6517 = vcmp.gt.f32.partialorder %v6481, 0.0
      %vm6518 = vcmp.gt.f32.partialorder %v6482, 0.0
      %vm6519 = vcmp.gt.f32.partialorder %v6483, 0.0
      %vm6520 = vcmp.gt.f32.partialorder %v6484, 0.0
      %vm6521 = vcmp.gt.f32.partialorder %v6485, 0.0
      %vm6522 = vcmp.gt.f32.partialorder %v6486, 0.0
      %vm6523 = vcmp.gt.f32.partialorder %v6487, 0.0
      %vm6524 = vcmp.gt.f32.partialorder %v6488, 0.0
      %vm6525 = vcmp.gt.f32.partialorder %v6489, 0.0
      %vm6526 = vcmp.gt.f32.partialorder %v6490, 0.0
      %vm6527 = vcmp.gt.f32.partialorder %v6491, 0.0
      %v6528 = vld [vmem:[%s4] sm:$0x1]
      %v6530 = vlaneseq
      %v6531 = vshrl.u32 %v6530, 7
      %v6532 = vsub.s32 0, %v6531
      %v6533 = vrot.slane %v6528, %v6532
      %v6535 = vmul.f32 %v6456, %v6533
      %v6536 = vmul.f32 %v6457, %v6533
      %v6537 = vmul.f32 %v6458, %v6533
      %v6538 = vmul.f32 %v6459, %v6533
      %v6539 = vmul.f32 %v6460, %v6533
      %v6540 = vmul.f32 %v6461, %v6533
      %v6541 = vmul.f32 %v6462, %v6533
      %v6542 = vmul.f32 %v6463, %v6533
      %v6543 = vmul.f32 %v6464, %v6533
      %v6544 = vmul.f32 %v6465, %v6533
      %v6545 = vmul.f32 %v6466, %v6533
      %v6546 = vmul.f32 %v6467, %v6533
      %v6547 = vmul.f32 %v6468, %v6533
      %v6548 = vmul.f32 %v6469, %v6533
      %v6549 = vmul.f32 %v6470, %v6533
      %v6550 = vmul.f32 %v6471, %v6533
      %v6551 = vmul.f32 %v6472, %v6533
      %v6552 = vmul.f32 %v6473, %v6533
      %v6553 = vmul.f32 %v6474, %v6533
      %v6554 = vmul.f32 %v6475, %v6533
      %v6555 = vmul.f32 %v6476, %v6533
      %v6556 = vmul.f32 %v6477, %v6533
      %v6557 = vmul.f32 %v6478, %v6533
      %v6558 = vmul.f32 %v6479, %v6533
      %v6559 = vmul.f32 %v6480, %v6533
      %v6560 = vmul.f32 %v6481, %v6533
      %v6561 = vmul.f32 %v6482, %v6533
      %v6562 = vmul.f32 %v6483, %v6533
      %v6563 = vmul.f32 %v6484, %v6533
      %v6564 = vmul.f32 %v6485, %v6533
      %v6565 = vmul.f32 %v6486, %v6533
      %v6566 = vmul.f32 %v6487, %v6533
      %v6567 = vmul.f32 %v6488, %v6533
      %v6568 = vmul.f32 %v6489, %v6533
      %v6569 = vmul.f32 %v6490, %v6533
      %v6570 = vmul.f32 %v6491, %v6533
      %v6571 = vsel %vm6492, %v6456, %v6535
      %v6572 = vsel %vm6493, %v6457, %v6536
      %v6573 = vsel %vm6494, %v6458, %v6537
      %v6574 = vsel %vm6495, %v6459, %v6538
      %v6575 = vsel %vm6496, %v6460, %v6539
      %v6576 = vsel %vm6497, %v6461, %v6540
      %v6577 = vsel %vm6498, %v6462, %v6541
      %v6578 = vsel %vm6499, %v6463, %v6542
      %v6579 = vsel %vm6500, %v6464, %v6543
      %v6580 = vsel %vm6501, %v6465, %v6544
      %v6581 = vsel %vm6502, %v6466, %v6545
      %v6582 = vsel %vm6503, %v6467, %v6546
      %v6583 = vsel %vm6504, %v6468, %v6547
      %v6584 = vsel %vm6505, %v6469, %v6548
      %v6585 = vsel %vm6506, %v6470, %v6549
      %v6586 = vsel %vm6507, %v6471, %v6550
      %v6587 = vsel %vm6508, %v6472, %v6551
      %v6588 = vsel %vm6509, %v6473, %v6552
      %v6589 = vsel %vm6510, %v6474, %v6553
      %v6590 = vsel %vm6511, %v6475, %v6554
      %v6591 = vsel %vm6512, %v6476, %v6555
      %v6592 = vsel %vm6513, %v6477, %v6556
      %v6593 = vsel %vm6514, %v6478, %v6557
      %v6594 = vsel %vm6515, %v6479, %v6558
      %v6595 = vsel %vm6516, %v6480, %v6559
      %v6596 = vsel %vm6517, %v6481, %v6560
      %v6597 = vsel %vm6518, %v6482, %v6561
      %v6598 = vsel %vm6519, %v6483, %v6562
      %v6599 = vsel %vm6520, %v6484, %v6563
      %v6600 = vsel %vm6521, %v6485, %v6564
      %v6601 = vsel %vm6522, %v6486, %v6565
      %v6602 = vsel %vm6523, %v6487, %v6566
      %v6603 = vsel %vm6524, %v6488, %v6567
      %v6604 = vsel %vm6525, %v6489, %v6568
      %v6605 = vsel %vm6526, %v6490, %v6569
      %v6606 = vsel %vm6527, %v6491, %v6570
      %v6607 = vld [vmem:[%s246 + $0x13] sm:$0xff]
      %v6608 = vld [vmem:[%s246 + $0x1b] sm:$0xff]
      %v6609 = vld [vmem:[%s246 + $0x23] sm:$0xff]
      %v6610 = vld [vmem:[%s246 + $0x2b] sm:$0xff]
      %v6611 = vld [vmem:[%s246 + $0x33] sm:$0xff]
      %v6612 = vld [vmem:[%s246 + $0x3b] sm:$0xff]
      %v6613 = vld [vmem:[%s246 + $0x43] sm:$0xff]
      %v6614 = vld [vmem:[%s246 + $0x4b] sm:$0xff]
      %v6615 = vld [vmem:[%s246 + $0x53] sm:$0xff]
      %v6616 = vld [vmem:[%s246 + $0x5b] sm:$0xff]
      %v6617 = vld [vmem:[%s246 + $0x63] sm:$0xff]
      %v6618 = vld [vmem:[%s246 + $0x6b] sm:$0xff]
      %v6619 = vld [vmem:[%s246 + $0x73] sm:$0xff]
      %v6620 = vld [vmem:[%s246 + $0x7b] sm:$0xff]
      %v6621 = vld [vmem:[%s246 + $0x83] sm:$0xff]
      %v6622 = vld [vmem:[%s246 + $0x8b] sm:$0xff]
      %v6623 = vld [vmem:[%s246 + $0x93] sm:$0xff]
      %v6624 = vld [vmem:[%s246 + $0x9b] sm:$0xff]
      %v6625 = vld [vmem:[%s246 + $0xa3] sm:$0xff]
      %v6626 = vld [vmem:[%s246 + $0xab] sm:$0xff]
      %v6627 = vld [vmem:[%s246 + $0xb3] sm:$0xff]
      %v6628 = vld [vmem:[%s246 + $0xbb] sm:$0xff]
      %v6629 = vld [vmem:[%s246 + $0xc3] sm:$0xff]
      %v6630 = vld [vmem:[%s246 + $0xcb] sm:$0xff]
      %v6631 = vld [vmem:[%s246 + $0xd3] sm:$0xff]
      %v6632 = vld [vmem:[%s246 + $0xdb] sm:$0xff]
      %v6633 = vld [vmem:[%s246 + $0xe3] sm:$0xff]
      %v6634 = vld [vmem:[%s246 + $0xeb] sm:$0xff]
      %v6635 = vld [vmem:[%s246 + $0xf3] sm:$0xff]
      %v6636 = vld [vmem:[%s246 + $0xfb] sm:$0xff]
      %v6637 = vld [vmem:[%s246 + $0x103] sm:$0xff]
      %v6638 = vld [vmem:[%s246 + $0x10b] sm:$0xff]
      %v6639 = vld [vmem:[%s246 + $0x113] sm:$0xff]
      %v6640 = vld [vmem:[%s246 + $0x11b] sm:$0xff]
      %v6641 = vld [vmem:[%s246 + $0x123] sm:$0xff]
      %v6642 = vld [vmem:[%s246 + $0x12b] sm:$0x3f]
      %v6643 = vadd.f32 %v6571, %v6607
      %v6644 = vadd.f32 %v6572, %v6608
      %v6645 = vadd.f32 %v6573, %v6609
      %v6646 = vadd.f32 %v6574, %v6610
      %v6647 = vadd.f32 %v6575, %v6611
      %v6648 = vadd.f32 %v6576, %v6612
      %v6649 = vadd.f32 %v6577, %v6613
      %v6650 = vadd.f32 %v6578, %v6614
      %v6651 = vadd.f32 %v6579, %v6615
      %v6652 = vadd.f32 %v6580, %v6616
      %v6653 = vadd.f32 %v6581, %v6617
      %v6654 = vadd.f32 %v6582, %v6618
      %v6655 = vadd.f32 %v6583, %v6619
      %v6656 = vadd.f32 %v6584, %v6620
      %v6657 = vadd.f32 %v6585, %v6621
      %v6658 = vadd.f32 %v6586, %v6622
      %v6659 = vadd.f32 %v6587, %v6623
      %v6660 = vadd.f32 %v6588, %v6624
      %v6661 = vadd.f32 %v6589, %v6625
      %v6662 = vadd.f32 %v6590, %v6626
      %v6663 = vadd.f32 %v6591, %v6627
      %v6664 = vadd.f32 %v6592, %v6628
      %v6665 = vadd.f32 %v6593, %v6629
      %v6666 = vadd.f32 %v6594, %v6630
      %v6667 = vadd.f32 %v6595, %v6631
      %v6668 = vadd.f32 %v6596, %v6632
      %v6669 = vadd.f32 %v6597, %v6633
      %v6670 = vadd.f32 %v6598, %v6634
      %v6671 = vadd.f32 %v6599, %v6635
      %v6672 = vadd.f32 %v6600, %v6636
      %v6673 = vadd.f32 %v6601, %v6637
      %v6674 = vadd.f32 %v6602, %v6638
      %v6675 = vadd.f32 %v6603, %v6639
      %v6676 = vadd.f32 %v6604, %v6640
      %v6677 = vadd.f32 %v6605, %v6641
      %v6678 = vadd.f32 %v6606, %v6642
      %6679 = vst [vmem:[%s251] sm:$0xff] %v6643
      %6680 = vst [vmem:[%s251 + $0x8] sm:$0xff] %v6644
      %6681 = vst [vmem:[%s251 + $0x10] sm:$0xff] %v6645
      %6682 = vst [vmem:[%s251 + $0x18] sm:$0xff] %v6646
      %6683 = vst [vmem:[%s251 + $0x20] sm:$0xff] %v6647
      %6684 = vst [vmem:[%s251 + $0x28] sm:$0xff] %v6648
      %6685 = vst [vmem:[%s251 + $0x30] sm:$0xff] %v6649
      %6686 = vst [vmem:[%s251 + $0x38] sm:$0xff] %v6650
      %6687 = vst [vmem:[%s251 + $0x40] sm:$0xff] %v6651
      %6688 = vst [vmem:[%s251 + $0x48] sm:$0xff] %v6652
      %6689 = vst [vmem:[%s251 + $0x50] sm:$0xff] %v6653
      %6690 = vst [vmem:[%s251 + $0x58] sm:$0xff] %v6654
      %6691 = vst [vmem:[%s251 + $0x60] sm:$0xff] %v6655
      %6692 = vst [vmem:[%s251 + $0x68] sm:$0xff] %v6656
      %6693 = vst [vmem:[%s251 + $0x70] sm:$0xff] %v6657
      %6694 = vst [vmem:[%s251 + $0x78] sm:$0xff] %v6658
      %6695 = vst [vmem:[%s251 + $0x80] sm:$0xff] %v6659
      %6696 = vst [vmem:[%s251 + $0x88] sm:$0xff] %v6660
      %6697 = vst [vmem:[%s251 + $0x90] sm:$0xff] %v6661
      %6698 = vst [vmem:[%s251 + $0x98] sm:$0xff] %v6662
      %6699 = vst [vmem:[%s251 + $0xa0] sm:$0xff] %v6663
      %6700 = vst [vmem:[%s251 + $0xa8] sm:$0xff] %v6664
      %6701 = vst [vmem:[%s251 + $0xb0] sm:$0xff] %v6665
      %6702 = vst [vmem:[%s251 + $0xb8] sm:$0xff] %v6666
      %6703 = vst [vmem:[%s251 + $0xc0] sm:$0xff] %v6667
      %6704 = vst [vmem:[%s251 + $0xc8] sm:$0xff] %v6668
      %6705 = vst [vmem:[%s251 + $0xd0] sm:$0xff] %v6669
      %6706 = vst [vmem:[%s251 + $0xd8] sm:$0xff] %v6670
      %6707 = vst [vmem:[%s251 + $0xe0] sm:$0xff] %v6671
      %6708 = vst [vmem:[%s251 + $0xe8] sm:$0xff] %v6672
      %6709 = vst [vmem:[%s251 + $0xf0] sm:$0xff] %v6673
      %6710 = vst [vmem:[%s251 + $0xf8] sm:$0xff] %v6674
      %6711 = vst [vmem:[%s251 + $0x100] sm:$0xff] %v6675
      %6712 = vst [vmem:[%s251 + $0x108] sm:$0xff] %v6676
      %6713 = vst [vmem:[%s251 + $0x110] sm:$0xff] %v6677
      %6714 = vst [vmem:[%s251 + $0x118] sm:$0x3f] %v6678
      %p6715 = scmp.lt.s32.totalorder %s17, 1
      %s6716 = scalar_select %p6715, %s17, 1
      %s6717 = smul.addr %s6716, 36
      %s6718 = smul.addr %s6717, 8
      %s6719 = scalar_lea.vmem %s6, %s6718
      // Predicated region
      $region45: #{basic_block_pallas.1} parent=43 // pred_check
        %p6720 = pneg %p166
      $region46: #{basic_block_pallas.1} parent=43 // pred_check_branch
        %6722 = sbr.rel (%p6720) target = $region48
      $region47: #{basic_block_pallas.1} parent=43 // pred_region
        _
      $region48: #{basic_block_pallas.1} parent=43 // pred_fallthru
        _
    $region44: #{basic_block_pallas.1} parent=5 // pred_fallthru
      _
    %p6723 = scmp.le.s32.totalorder 2, %s12
    // Predicated region
    $region49: #{basic_block_pallas.1} parent=5 // pred_check
      %p6724 = pneg %p6723
    $region50: #{basic_block_pallas.1} parent=5 // pred_check_branch
      %6726 = sbr.rel (%p6724) target = $region52
    $region51: #{basic_block_pallas.1} parent=5 // pred_region
      %s6727 = ssub.s32 %s12, 2
      // Predicated region
      $region53: #{basic_block_pallas.1} parent=51 // pred_check
        %p6728 = pneg %p172
      $region54: #{basic_block_pallas.1} parent=51 // pred_check_branch
        %6730 = sbr.rel (%p6728) target = $region56
      $region55: #{basic_block_pallas.1} parent=51 // pred_region
        %p6731 = scmp.lt.s32.totalorder %s18, 1
        %s6732 = scalar_select %p6731, %s18, 1
        %s6733 = smul.addr %s6732, 36
        %s6734 = smul.addr %s6733, 8
        %s6735 = scalar_lea.vmem %s6, %s6734
      $region56: #{basic_block_pallas.1} parent=51 // pred_fallthru
        _
    $region52: #{basic_block_pallas.1} parent=5 // pred_fallthru
      _
  $region6: #{basic_block_pallas.1} parent=0 // loop_footer
    %s16 = sadd.s32 1, %s12
  $region7: #{basic_block_pallas.1} parent=0 // loop_footer_branch
    %11 = sbr.rel target = $region3
  $region8: #{basic_block_pallas.1} parent=0 // loop_exit
    _

</llo_original>
